<compile_context>
chip_gen: v6e
topology: v6e:2x2x1
jax: 0.10.0
libtpu: 0.0.40
codegen_flags: <defaults>
</compile_context>

<pallas_src>
import functools

import jax
import jax.numpy as jnp
from jax.experimental import pallas as pl
from jax.experimental.pallas import tpu as pltpu


# ---------------------------------------------------------------------------
# helpers
# ---------------------------------------------------------------------------
def _full_spec(shape):
    """BlockSpec covering the whole array (block == full array) for grid=(1,)."""
    nd = len(shape)
    return pl.BlockSpec(shape, lambda i, _nd=nd: (0,) * _nd)


_EE = functools.partial(jnp.einsum, preferred_element_type=jnp.float32)


def _dot(a, b):
    return jnp.dot(a, b, preferred_element_type=jnp.float32)


def _sigmoid(x):
    # exact identity; avoids relying on a logistic lowering inside the kernel
    return 0.5 * (jnp.tanh(0.5 * x) + 1.0)


# ---------------------------------------------------------------------------
# Fused forward kernel (everything after the embedding gather)
# ---------------------------------------------------------------------------
def _coattention_kernel(
    words_ref, vt_ref,
    wcat_ref, bcat_ref,
    wiht_ref, whht_ref, bih_ref, bhh_ref,
    wb_ref, wqt_ref, wvt_ref, whv_ref, whq_ref,
    wwt_ref, bw_ref, wp1t_ref, wp2t_ref, bp_ref,
    ws1t_ref, ws2t_ref, bs_ref, fct_ref, bfc_ref,
    out_ref,
):
    x = words_ref[...]                        # (B, T, D) word embeddings
    Vt = vt_ref[...]                          # (B, N, D) image features (transposed)
    B, T, D = x.shape
    N = Vt.shape[1]
    K = wqt_ref.shape[1]
    L = wiht_ref.shape[0]                     # LSTM layers

    # ---- 1) unigram/bigram/trigram dilated conv + tanh + max-pool, ONE MXU pass ----
    def shift(v, s):
        # y[:, t, :] = v[:, t + s, :], zero-padded outside [0, T)
        if s == 0:
            return v
        z = jnp.zeros((B, abs(s), D), jnp.float32)
        if s > 0:
            return jnp.concatenate([v[:, s:, :], z], axis=1)
        return jnp.concatenate([z, v[:, :T + s, :]], axis=1)

    # taps: [x, x[t-1], x[t+1], x[t-2], x[t+2]]  (must match wcat row-block order)
    x_cat = jnp.concatenate(
        [x, shift(x, -1), shift(x, +1), shift(x, -2), shift(x, +2)], axis=-1)
    act = jnp.tanh(_dot(x_cat.reshape(B * T, 5 * D), wcat_ref[...]) + bcat_ref[...])
    # MaxPool2d((3,1)) over stacked n-grams == elementwise max of the 3 column blocks
    phrase = jnp.maximum(jnp.maximum(act[:, :D], act[:, D:2 * D]),
                         act[:, 2 * D:3 * D]).reshape(B, T, D)

    # ---- 2) 3-layer LSTM, fully unrolled in VMEM (PyTorch gate order i,f,g,o) ----
    # TODO(synk): inter-layer dropout (p=0.4, training mode) omitted — eval-mode LSTM.
    seq = phrase
    for l in range(L):
        wiht, whht = wiht_ref[l], whht_ref[l]            # (D, 4D) each
        bih, bhh = bih_ref[l], bhh_ref[l]                # (1, 4D) each
        xw = (_dot(seq.reshape(B * T, D), wiht) + bih).reshape(B, T, 4 * D)
        h = jnp.zeros((B, D), jnp.float32)
        c = jnp.zeros((B, D), jnp.float32)
        hs = []
        for t in range(T):
            g = xw[:, t, :] + _dot(h, whht) + bhh
            i_g = _sigmoid(g[:, :D])
            f_g = _sigmoid(g[:, D:2 * D])
            g_g = jnp.tanh(g[:, 2 * D:3 * D])
            o_g = _sigmoid(g[:, 3 * D:])
            c = f_g * c + i_g * g_g
            h = o_g * jnp.tanh(c)
            hs.append(h[:, None, :])
        seq = jnp.concatenate(hs, axis=1)                # (B, T, D)
    sentence = seq

    # ---- 3) parallel co-attention; the 3 levels folded into one batch of 3B ----
    G = 3 * B
    Q_all = jnp.concatenate([x, phrase, sentence], axis=0)          # (3B, T, D)
    Vt3 = jnp.concatenate([Vt, Vt, Vt], axis=0)                     # (3B, N, D)

    q_flat = Q_all.reshape(G * T, D)
    QWb = _dot(q_flat, wb_ref[...]).reshape(G, T, D)                # Q @ W_b
    QWqT = _dot(q_flat, wqt_ref[...]).reshape(G, T, K)              # (W_q Q^T)^T

    # level-invariant: (W_v V)^T, computed once (B) then replicated to 3B
    WvVt = _dot(Vt.reshape(B * N, D), wvt_ref[...]).reshape(B, N, K)
    WvVt3 = jnp.concatenate([WvVt, WvVt, WvVt], axis=0)             # (3B, N, K)

    # affinity C and its transpose (second orientation recomputed: cheaper/safer
    # than an in-kernel transpose at this tiny size)
    C = jnp.tanh(_EE('gtd,gnd->gtn', QWb, Vt3))                     # (3B, T, N)
    Ct = jnp.tanh(_EE('gnd,gtd->gnt', Vt3, QWb))                    # (3B, N, T)

    HvT = jnp.tanh(WvVt3 + _EE('gnt,gtk->gnk', Ct, QWqT))           # (3B, N, K)
    HqT = jnp.tanh(QWqT + _EE('gtn,gnk->gtk', C, WvVt3))            # (3B, T, K)

    av_logits = jnp.sum(HvT * whv_ref[...][None], axis=-1)          # (3B, N)
    aq_logits = jnp.sum(HqT * whq_ref[...][None], axis=-1)          # (3B, T)

    def softmax(z):
        m = jnp.max(z, axis=-1, keepdims=True)
        e = jnp.exp(z - m)
        return e * pl.reciprocal(jnp.sum(e, axis=-1, keepdims=True), approx=True)

    a_v = softmax(av_logits)                                        # (3B, N)
    a_q = softmax(aq_logits)                                        # (3B, T)

    v_att = jnp.sum(a_v[:, :, None] * Vt3, axis=1)                  # (3B, D)
    q_att = jnp.sum(a_q[:, :, None] * Q_all, axis=1)                # (3B, D)

    # ---- 4) fusion MLP (W_w, W_p, W_s, fc) ----
    s = v_att + q_att                                               # (3B, D)
    s_w, s_p, s_s = s[:B], s[B:2 * B], s[2 * B:3 * B]
    h_w = jnp.tanh(_dot(s_w, wwt_ref[...]) + bw_ref[...])
    h_p = jnp.tanh(_dot(s_p, wp1t_ref[...]) + _dot(h_w, wp2t_ref[...]) + bp_ref[...])
    h_s = jnp.tanh(_dot(s_s, ws1t_ref[...]) + _dot(h_p, ws2t_ref[...]) + bs_ref[...])
    out_ref[...] = _dot(h_s, fct_ref[...]) + bfc_ref[...]


# ---------------------------------------------------------------------------
# Parameters (deterministic synthetic init, shapes from CoattentionNet.__init__)
# ---------------------------------------------------------------------------
def init_params(key, vocab, D, K, C):
    ks = iter(jax.random.split(key, 40))

    def rn(shape, scale=0.1):
        return (scale * jax.random.normal(next(ks), shape)).astype(jnp.float32)

    p = {}
    p['embed'] = rn((vocab, D))
    p['uni_w'], p['uni_b'] = rn((D, D, 1)), rn((D,), 0.01)
    p['bi_w'],  p['bi_b']  = rn((D, D, 2)), rn((D,), 0.01)
    p['tri_w'], p['tri_b'] = rn((D, D, 3)), rn((D,), 0.01)
    p['lstm'] = [dict(Wih=rn((4 * D, D)), Whh=rn((4 * D, D)),
                      bih=rn((4 * D,), 0.01), bhh=rn((4 * D,), 0.01))
                 for _ in range(3)]
    p['W_b'] = rn((D, D))
    p['W_v'] = rn((K, D))
    p['W_q'] = rn((K, D))
    p['W_hv'] = rn((K, 1))
    p['W_hq'] = rn((K, 1))
    p['W_w'], p['b_w'] = rn((D, D)), rn((D,), 0.01)
    p['W_p'], p['b_p'] = rn((D, 2 * D)), rn((D,), 0.01)
    p['W_s'], p['b_s'] = rn((D, 2 * D)), rn((D,), 0.01)
    p['fc_w'], p['fc_b'] = rn((C, D)), rn((C,), 0.01)
    return p


# ---------------------------------------------------------------------------
# Full forward pass: embedding gather (glue) + ONE fused Pallas kernel
# ---------------------------------------------------------------------------
def coattention_forward(params, image, question):
    B, T = question.shape
    D = params['embed'].shape[1]
    K = params['W_v'].shape[0]
    C = params['fc_w'].shape[0]

    # embedding lookup stays in plain JAX (gather)
    words = params['embed'][question].astype(jnp.float32)          # (B, T, D)
    image_t = jnp.transpose(image, (0, 2, 1))                      # (B, N, D)

    # one-MXU-pass n-gram weight block: rows match taps [x, x[t-1], x[t+1], x[t-2], x[t+2]],
    # columns are [unigram | bigram | trigram] pre-activations.
    Z = jnp.zeros((D, D), jnp.float32)
    w1t = params['uni_w'][:, :, 0].T
    w20t = params['bi_w'][:, :, 0].T
    w21t = params['bi_w'][:, :, 1].T
    w30t = params['tri_w'][:, :, 0].T
    w31t = params['tri_w'][:, :, 1].T
    w32t = params['tri_w'][:, :, 2].T
    wcat = jnp.concatenate([
        jnp.concatenate([w1t, Z,    w31t], axis=1),
        jnp.concatenate([Z,   w20t, Z],    axis=1),
        jnp.concatenate([Z,   w21t, Z],    axis=1),
        jnp.concatenate([Z,   Z,    w30t], axis=1),
        jnp.concatenate([Z,   Z,    w32t], axis=1),
    ], axis=0)                                                     # (5D, 3D)
    bcat = jnp.concatenate(
        [params['uni_b'], params['bi_b'], params['tri_b']]).reshape(1, 3 * D)

    wiht = jnp.stack([l['Wih'].T for l in params['lstm']])         # (3, D, 4D)
    whht = jnp.stack([l['Whh'].T for l in params['lstm']])         # (3, D, 4D)
    bih = jnp.stack([l['bih'].reshape(1, 4 * D) for l in params['lstm']])
    bhh = jnp.stack([l['bhh'].reshape(1, 4 * D) for l in params['lstm']])

    args = (
        words, image_t, wcat, bcat, wiht, whht, bih, bhh,
        params['W_b'], params['W_q'].T, params['W_v'].T,
        params['W_hv'].reshape(1, K), params['W_hq'].reshape(1, K),
        params['W_w'].T, params['b_w'].reshape(1, D),
        params['W_p'][:, :D].T, params['W_p'][:, D:].T, params['b_p'].reshape(1, D),
        params['W_s'][:, :D].T, params['W_s'][:, D:].T, params['b_s'].reshape(1, D),
        params['fc_w'].T, params['fc_b'].reshape(1, C),
    )

    return pl.pallas_call(
        _coattention_kernel,
        out_shape=jax.ShapeDtypeStruct((B, C), jnp.float32),
        grid=(1,),
        in_specs=[_full_spec(a.shape) for a in args],
        out_specs=_full_spec((B, C)),
        compiler_params=pltpu.CompilerParams(dimension_semantics=("arbitrary",)),
    )(*args)


# ---------------------------------------------------------------------------
if __name__ == "__main__":
    VOCAB, NUM_CLASSES = 50, 16
    D, K = 32, 8            # embedding_dimension, k
    B, T, N = 2, 8, 16      # batch, question length, image regions

    key = jax.random.PRNGKey(0)
    k_img, k_q, k_par = jax.random.split(key, 3)
    image = jax.random.normal(k_img, (B, D, N), dtype=jnp.float32)
    question = jax.random.randint(k_q, (B, T), 0, VOCAB, dtype=jnp.int32)
    params = init_params(k_par, VOCAB, D, K, NUM_CLASSES)

    out = jax.jit(coattention_forward)(params, image, question)
    out = jax.block_until_ready(out)

    assert out.shape == (B, NUM_CLASSES), out.shape
    assert bool(jnp.all(jnp.isfinite(out)))
    print("KERNEL_OK")
</pallas_src>

<mosaic_0001>
module attributes {stable_mosaic.version = 11 : i64} {
  func.func @_coattention_kernel(%arg0: i32, %arg1: memref<2x8x32xf32, #tpu.memory_space<vmem>>, %arg2: memref<2x16x32xf32, #tpu.memory_space<vmem>>, %arg3: memref<160x96xf32, #tpu.memory_space<vmem>>, %arg4: memref<1x96xf32, #tpu.memory_space<vmem>>, %arg5: memref<3x32x128xf32, #tpu.memory_space<vmem>>, %arg6: memref<3x32x128xf32, #tpu.memory_space<vmem>>, %arg7: memref<3x1x128xf32, #tpu.memory_space<vmem>>, %arg8: memref<3x1x128xf32, #tpu.memory_space<vmem>>, %arg9: memref<32x32xf32, #tpu.memory_space<vmem>>, %arg10: memref<32x8xf32, #tpu.memory_space<vmem>>, %arg11: memref<32x8xf32, #tpu.memory_space<vmem>>, %arg12: memref<1x8xf32, #tpu.memory_space<vmem>>, %arg13: memref<1x8xf32, #tpu.memory_space<vmem>>, %arg14: memref<32x32xf32, #tpu.memory_space<vmem>>, %arg15: memref<1x32xf32, #tpu.memory_space<vmem>>, %arg16: memref<32x32xf32, #tpu.memory_space<vmem>>, %arg17: memref<32x32xf32, #tpu.memory_space<vmem>>, %arg18: memref<1x32xf32, #tpu.memory_space<vmem>>, %arg19: memref<32x32xf32, #tpu.memory_space<vmem>>, %arg20: memref<32x32xf32, #tpu.memory_space<vmem>>, %arg21: memref<1x32xf32, #tpu.memory_space<vmem>>, %arg22: memref<32x16xf32, #tpu.memory_space<vmem>>, %arg23: memref<1x16xf32, #tpu.memory_space<vmem>>, %arg24: memref<2x16xf32, #tpu.memory_space<vmem>>) attributes {dimension_semantics = [#tpu.dimension_semantics<arbitrary>], iteration_bounds = array<i64: 1>, scalar_prefetch = 0 : i64, scratch_operands = 0 : i64, tpu.core_type = #tpu.core_type<tc>, window_params = [{pipeline_mode = #tpu.pipeline_mode<synchronous>, transform_indices = @transform_0, window_bounds = array<i64: 2, 8, 32>}, {pipeline_mode = #tpu.pipeline_mode<synchronous>, transform_indices = @transform_1, window_bounds = array<i64: 2, 16, 32>}, {pipeline_mode = #tpu.pipeline_mode<synchronous>, transform_indices = @transform_2, window_bounds = array<i64: 160, 96>}, {pipeline_mode = #tpu.pipeline_mode<synchronous>, transform_indices = @transform_3, window_bounds = array<i64: 1, 96>}, {pipeline_mode = #tpu.pipeline_mode<synchronous>, transform_indices = @transform_4, window_bounds = array<i64: 3, 32, 128>}, {pipeline_mode = #tpu.pipeline_mode<synchronous>, transform_indices = @transform_5, window_bounds = array<i64: 3, 32, 128>}, {pipeline_mode = #tpu.pipeline_mode<synchronous>, transform_indices = @transform_6, window_bounds = array<i64: 3, 1, 128>}, {pipeline_mode = #tpu.pipeline_mode<synchronous>, transform_indices = @transform_7, window_bounds = array<i64: 3, 1, 128>}, {pipeline_mode = #tpu.pipeline_mode<synchronous>, transform_indices = @transform_8, window_bounds = array<i64: 32, 32>}, {pipeline_mode = #tpu.pipeline_mode<synchronous>, transform_indices = @transform_9, window_bounds = array<i64: 32, 8>}, {pipeline_mode = #tpu.pipeline_mode<synchronous>, transform_indices = @transform_10, window_bounds = array<i64: 32, 8>}, {pipeline_mode = #tpu.pipeline_mode<synchronous>, transform_indices = @transform_11, window_bounds = array<i64: 1, 8>}, {pipeline_mode = #tpu.pipeline_mode<synchronous>, transform_indices = @transform_12, window_bounds = array<i64: 1, 8>}, {pipeline_mode = #tpu.pipeline_mode<synchronous>, transform_indices = @transform_13, window_bounds = array<i64: 32, 32>}, {pipeline_mode = #tpu.pipeline_mode<synchronous>, transform_indices = @transform_14, window_bounds = array<i64: 1, 32>}, {pipeline_mode = #tpu.pipeline_mode<synchronous>, transform_indices = @transform_15, window_bounds = array<i64: 32, 32>}, {pipeline_mode = #tpu.pipeline_mode<synchronous>, transform_indices = @transform_16, window_bounds = array<i64: 32, 32>}, {pipeline_mode = #tpu.pipeline_mode<synchronous>, transform_indices = @transform_17, window_bounds = array<i64: 1, 32>}, {pipeline_mode = #tpu.pipeline_mode<synchronous>, transform_indices = @transform_18, window_bounds = array<i64: 32, 32>}, {pipeline_mode = #tpu.pipeline_mode<synchronous>, transform_indices = @transform_19, window_bounds = array<i64: 32, 32>}, {pipeline_mode = #tpu.pipeline_mode<synchronous>, transform_indices = @transform_20, window_bounds = array<i64: 1, 32>}, {pipeline_mode = #tpu.pipeline_mode<synchronous>, transform_indices = @transform_21, window_bounds = array<i64: 32, 16>}, {pipeline_mode = #tpu.pipeline_mode<synchronous>, transform_indices = @transform_22, window_bounds = array<i64: 1, 16>}, {pipeline_mode = #tpu.pipeline_mode<synchronous>, transform_indices = @transform_23, window_bounds = array<i64: 2, 16>}]} {
    %c0 = arith.constant 0 : index
    %c0_0 = arith.constant 0 : index
    %c0_1 = arith.constant 0 : index
    %0 = vector.load %arg1[%c0, %c0_0, %c0_1] : memref<2x8x32xf32, #tpu.memory_space<vmem>>, vector<2x8x32xf32>
    %c0_2 = arith.constant 0 : index
    %c0_3 = arith.constant 0 : index
    %c0_4 = arith.constant 0 : index
    %1 = vector.load %arg2[%c0_2, %c0_3, %c0_4] : memref<2x16x32xf32, #tpu.memory_space<vmem>>, vector<2x16x32xf32>
    %cst = arith.constant 0.000000e+00 : f32
    %2 = vector.broadcast %cst : f32 to vector<2x1x32xf32>
    %3 = vector.extract_strided_slice %0 {offsets = [0, 0, 0], sizes = [2, 7, 32], strides = [1, 1, 1]} : vector<2x8x32xf32> to vector<2x7x32xf32>
    %4 = tpu.concatenate %2, %3 in 1 : vector<2x1x32xf32>, vector<2x7x32xf32> -> vector<2x8x32xf32>
    %cst_5 = arith.constant 0.000000e+00 : f32
    %5 = vector.broadcast %cst_5 : f32 to vector<2x1x32xf32>
    %6 = vector.extract_strided_slice %0 {offsets = [0, 1, 0], sizes = [2, 7, 32], strides = [1, 1, 1]} : vector<2x8x32xf32> to vector<2x7x32xf32>
    %7 = tpu.concatenate %6, %5 in 1 : vector<2x7x32xf32>, vector<2x1x32xf32> -> vector<2x8x32xf32>
    %cst_6 = arith.constant 0.000000e+00 : f32
    %8 = vector.broadcast %cst_6 : f32 to vector<2x2x32xf32>
    %9 = vector.extract_strided_slice %0 {offsets = [0, 0, 0], sizes = [2, 6, 32], strides = [1, 1, 1]} : vector<2x8x32xf32> to vector<2x6x32xf32>
    %10 = tpu.concatenate %8, %9 in 1 : vector<2x2x32xf32>, vector<2x6x32xf32> -> vector<2x8x32xf32>
    %cst_7 = arith.constant 0.000000e+00 : f32
    %11 = vector.broadcast %cst_7 : f32 to vector<2x2x32xf32>
    %12 = vector.extract_strided_slice %0 {offsets = [0, 2, 0], sizes = [2, 6, 32], strides = [1, 1, 1]} : vector<2x8x32xf32> to vector<2x6x32xf32>
    %13 = tpu.concatenate %12, %11 in 1 : vector<2x6x32xf32>, vector<2x2x32xf32> -> vector<2x8x32xf32>
    %14 = tpu.concatenate %0, %4, %7, %10, %13 in 2 : vector<2x8x32xf32>, vector<2x8x32xf32>, vector<2x8x32xf32>, vector<2x8x32xf32>, vector<2x8x32xf32> -> vector<2x8x160xf32>
    %15 = vector.shape_cast %14 : vector<2x8x160xf32> to vector<16x160xf32>
    %c0_8 = arith.constant 0 : index
    %c0_9 = arith.constant 0 : index
    %16 = vector.load %arg3[%c0_8, %c0_9] : memref<160x96xf32, #tpu.memory_space<vmem>>, vector<160x96xf32>
    %cst_10 = arith.constant dense<0.000000e+00> : vector<16x96xf32>
    %17 = tpu.matmul %15, %16, %cst_10 {dimension_numbers = #tpu.dot_dimension_numbers<[1], [0], [0], [1], [0, 0, 1, 1], [], []>} : vector<16x160xf32>, vector<160x96xf32>, vector<16x96xf32> -> vector<16x96xf32>
    %c0_11 = arith.constant 0 : index
    %c0_12 = arith.constant 0 : index
    %18 = vector.load %arg4[%c0_11, %c0_12] : memref<1x96xf32, #tpu.memory_space<vmem>>, vector<1x96xf32>
    %19 = vector.broadcast %18 : vector<1x96xf32> to vector<16x96xf32>
    %20 = arith.addf %17, %19 : vector<16x96xf32>
    %21 = math.tanh %20 : vector<16x96xf32>
    %22 = vector.extract_strided_slice %21 {offsets = [0, 0], sizes = [16, 32], strides = [1, 1]} : vector<16x96xf32> to vector<16x32xf32>
    %23 = vector.extract_strided_slice %21 {offsets = [0, 32], sizes = [16, 32], strides = [1, 1]} : vector<16x96xf32> to vector<16x32xf32>
    %24 = arith.maximumf %22, %23 : vector<16x32xf32>
    %25 = vector.extract_strided_slice %21 {offsets = [0, 64], sizes = [16, 32], strides = [1, 1]} : vector<16x96xf32> to vector<16x32xf32>
    %26 = arith.maximumf %24, %25 : vector<16x32xf32>
    %27 = vector.shape_cast %26 : vector<16x32xf32> to vector<2x8x32xf32>
    %c0_13 = arith.constant 0 : index
    %c0_14 = arith.constant 0 : index
    %c0_15 = arith.constant 0 : index
    %28 = vector.load %arg5[%c0_13, %c0_14, %c0_15] : memref<3x32x128xf32, #tpu.memory_space<vmem>>, vector<1x32x128xf32>
    %29 = vector.shape_cast %28 : vector<1x32x128xf32> to vector<32x128xf32>
    %c0_16 = arith.constant 0 : index
    %c0_17 = arith.constant 0 : index
    %c0_18 = arith.constant 0 : index
    %30 = vector.load %arg6[%c0_16, %c0_17, %c0_18] : memref<3x32x128xf32, #tpu.memory_space<vmem>>, vector<1x32x128xf32>
    %31 = vector.shape_cast %30 : vector<1x32x128xf32> to vector<32x128xf32>
    %c0_19 = arith.constant 0 : index
    %c0_20 = arith.constant 0 : index
    %c0_21 = arith.constant 0 : index
    %32 = vector.load %arg7[%c0_19, %c0_20, %c0_21] : memref<3x1x128xf32, #tpu.memory_space<vmem>>, vector<1x1x128xf32>
    %33 = vector.shape_cast %32 : vector<1x1x128xf32> to vector<1x128xf32>
    %c0_22 = arith.constant 0 : index
    %c0_23 = arith.constant 0 : index
    %c0_24 = arith.constant 0 : index
    %34 = vector.load %arg8[%c0_22, %c0_23, %c0_24] : memref<3x1x128xf32, #tpu.memory_space<vmem>>, vector<1x1x128xf32>
    %35 = vector.shape_cast %34 : vector<1x1x128xf32> to vector<1x128xf32>
    %36 = vector.shape_cast %27 : vector<2x8x32xf32> to vector<16x32xf32>
    %cst_25 = arith.constant dense<0.000000e+00> : vector<16x128xf32>
    %37 = tpu.matmul %36, %29, %cst_25 {dimension_numbers = #tpu.dot_dimension_numbers<[1], [0], [0], [1], [0, 0, 1, 1], [], []>} : vector<16x32xf32>, vector<32x128xf32>, vector<16x128xf32> -> vector<16x128xf32>
    %38 = vector.broadcast %33 : vector<1x128xf32> to vector<16x128xf32>
    %39 = arith.addf %37, %38 : vector<16x128xf32>
    %40 = vector.shape_cast %39 : vector<16x128xf32> to vector<2x8x128xf32>
    %cst_26 = arith.constant 0.000000e+00 : f32
    %41 = vector.broadcast %cst_26 : f32 to vector<2x32xf32>
    %cst_27 = arith.constant 0.000000e+00 : f32
    %42 = vector.broadcast %cst_27 : f32 to vector<2x32xf32>
    %43 = vector.extract_strided_slice %40 {offsets = [0, 0, 0], sizes = [2, 1, 128], strides = [1, 1, 1]} : vector<2x8x128xf32> to vector<2x1x128xf32>
    %44 = vector.shape_cast %43 : vector<2x1x128xf32> to vector<2x128xf32>
    %cst_28 = arith.constant dense<0.000000e+00> : vector<2x128xf32>
    %45 = tpu.matmul %41, %31, %cst_28 {dimension_numbers = #tpu.dot_dimension_numbers<[1], [0], [0], [1], [0, 0, 1, 1], [], []>} : vector<2x32xf32>, vector<32x128xf32>, vector<2x128xf32> -> vector<2x128xf32>
    %46 = arith.addf %44, %45 : vector<2x128xf32>
    %47 = vector.broadcast %35 : vector<1x128xf32> to vector<2x128xf32>
    %48 = arith.addf %46, %47 : vector<2x128xf32>
    %49 = vector.extract_strided_slice %48 {offsets = [0, 0], sizes = [2, 32], strides = [1, 1]} : vector<2x128xf32> to vector<2x32xf32>
    %cst_29 = arith.constant 5.000000e-01 : f32
    %50 = vector.broadcast %cst_29 : f32 to vector<2x32xf32>
    %51 = arith.mulf %50, %49 : vector<2x32xf32>
    %52 = math.tanh %51 : vector<2x32xf32>
    %cst_30 = arith.constant 1.000000e+00 : f32
    %53 = vector.broadcast %cst_30 : f32 to vector<2x32xf32>
    %54 = arith.addf %52, %53 : vector<2x32xf32>
    %cst_31 = arith.constant 5.000000e-01 : f32
    %55 = vector.broadcast %cst_31 : f32 to vector<2x32xf32>
    %56 = arith.mulf %55, %54 : vector<2x32xf32>
    %57 = vector.extract_strided_slice %48 {offsets = [0, 32], sizes = [2, 32], strides = [1, 1]} : vector<2x128xf32> to vector<2x32xf32>
    %cst_32 = arith.constant 5.000000e-01 : f32
    %58 = vector.broadcast %cst_32 : f32 to vector<2x32xf32>
    %59 = arith.mulf %58, %57 : vector<2x32xf32>
    %60 = math.tanh %59 : vector<2x32xf32>
    %cst_33 = arith.constant 1.000000e+00 : f32
    %61 = vector.broadcast %cst_33 : f32 to vector<2x32xf32>
    %62 = arith.addf %60, %61 : vector<2x32xf32>
    %cst_34 = arith.constant 5.000000e-01 : f32
    %63 = vector.broadcast %cst_34 : f32 to vector<2x32xf32>
    %64 = arith.mulf %63, %62 : vector<2x32xf32>
    %65 = vector.extract_strided_slice %48 {offsets = [0, 64], sizes = [2, 32], strides = [1, 1]} : vector<2x128xf32> to vector<2x32xf32>
    %66 = math.tanh %65 : vector<2x32xf32>
    %67 = vector.extract_strided_slice %48 {offsets = [0, 96], sizes = [2, 32], strides = [1, 1]} : vector<2x128xf32> to vector<2x32xf32>
    %cst_35 = arith.constant 5.000000e-01 : f32
    %68 = vector.broadcast %cst_35 : f32 to vector<2x32xf32>
    %69 = arith.mulf %68, %67 : vector<2x32xf32>
    %70 = math.tanh %69 : vector<2x32xf32>
    %cst_36 = arith.constant 1.000000e+00 : f32
    %71 = vector.broadcast %cst_36 : f32 to vector<2x32xf32>
    %72 = arith.addf %70, %71 : vector<2x32xf32>
    %cst_37 = arith.constant 5.000000e-01 : f32
    %73 = vector.broadcast %cst_37 : f32 to vector<2x32xf32>
    %74 = arith.mulf %73, %72 : vector<2x32xf32>
    %75 = arith.mulf %64, %42 : vector<2x32xf32>
    %76 = arith.mulf %56, %66 : vector<2x32xf32>
    %77 = arith.addf %75, %76 : vector<2x32xf32>
    %78 = math.tanh %77 : vector<2x32xf32>
    %79 = arith.mulf %74, %78 : vector<2x32xf32>
    %80 = vector.shape_cast %79 : vector<2x32xf32> to vector<2x1x32xf32>
    %81 = vector.extract_strided_slice %40 {offsets = [0, 1, 0], sizes = [2, 1, 128], strides = [1, 1, 1]} : vector<2x8x128xf32> to vector<2x1x128xf32>
    %82 = vector.shape_cast %81 : vector<2x1x128xf32> to vector<2x128xf32>
    %cst_38 = arith.constant dense<0.000000e+00> : vector<2x128xf32>
    %83 = tpu.matmul %79, %31, %cst_38 {dimension_numbers = #tpu.dot_dimension_numbers<[1], [0], [0], [1], [0, 0, 1, 1], [], []>} : vector<2x32xf32>, vector<32x128xf32>, vector<2x128xf32> -> vector<2x128xf32>
    %84 = arith.addf %82, %83 : vector<2x128xf32>
    %85 = vector.broadcast %35 : vector<1x128xf32> to vector<2x128xf32>
    %86 = arith.addf %84, %85 : vector<2x128xf32>
    %87 = vector.extract_strided_slice %86 {offsets = [0, 0], sizes = [2, 32], strides = [1, 1]} : vector<2x128xf32> to vector<2x32xf32>
    %cst_39 = arith.constant 5.000000e-01 : f32
    %88 = vector.broadcast %cst_39 : f32 to vector<2x32xf32>
    %89 = arith.mulf %88, %87 : vector<2x32xf32>
    %90 = math.tanh %89 : vector<2x32xf32>
    %cst_40 = arith.constant 1.000000e+00 : f32
    %91 = vector.broadcast %cst_40 : f32 to vector<2x32xf32>
    %92 = arith.addf %90, %91 : vector<2x32xf32>
    %cst_41 = arith.constant 5.000000e-01 : f32
    %93 = vector.broadcast %cst_41 : f32 to vector<2x32xf32>
    %94 = arith.mulf %93, %92 : vector<2x32xf32>
    %95 = vector.extract_strided_slice %86 {offsets = [0, 32], sizes = [2, 32], strides = [1, 1]} : vector<2x128xf32> to vector<2x32xf32>
    %cst_42 = arith.constant 5.000000e-01 : f32
    %96 = vector.broadcast %cst_42 : f32 to vector<2x32xf32>
    %97 = arith.mulf %96, %95 : vector<2x32xf32>
    %98 = math.tanh %97 : vector<2x32xf32>
    %cst_43 = arith.constant 1.000000e+00 : f32
    %99 = vector.broadcast %cst_43 : f32 to vector<2x32xf32>
    %100 = arith.addf %98, %99 : vector<2x32xf32>
    %cst_44 = arith.constant 5.000000e-01 : f32
    %101 = vector.broadcast %cst_44 : f32 to vector<2x32xf32>
    %102 = arith.mulf %101, %100 : vector<2x32xf32>
    %103 = vector.extract_strided_slice %86 {offsets = [0, 64], sizes = [2, 32], strides = [1, 1]} : vector<2x128xf32> to vector<2x32xf32>
    %104 = math.tanh %103 : vector<2x32xf32>
    %105 = vector.extract_strided_slice %86 {offsets = [0, 96], sizes = [2, 32], strides = [1, 1]} : vector<2x128xf32> to vector<2x32xf32>
    %cst_45 = arith.constant 5.000000e-01 : f32
    %106 = vector.broadcast %cst_45 : f32 to vector<2x32xf32>
    %107 = arith.mulf %106, %105 : vector<2x32xf32>
    %108 = math.tanh %107 : vector<2x32xf32>
    %cst_46 = arith.constant 1.000000e+00 : f32
    %109 = vector.broadcast %cst_46 : f32 to vector<2x32xf32>
    %110 = arith.addf %108, %109 : vector<2x32xf32>
    %cst_47 = arith.constant 5.000000e-01 : f32
    %111 = vector.broadcast %cst_47 : f32 to vector<2x32xf32>
    %112 = arith.mulf %111, %110 : vector<2x32xf32>
    %113 = arith.mulf %102, %77 : vector<2x32xf32>
    %114 = arith.mulf %94, %104 : vector<2x32xf32>
    %115 = arith.addf %113, %114 : vector<2x32xf32>
    %116 = math.tanh %115 : vector<2x32xf32>
    %117 = arith.mulf %112, %116 : vector<2x32xf32>
    %118 = vector.shape_cast %117 : vector<2x32xf32> to vector<2x1x32xf32>
    %119 = vector.extract_strided_slice %40 {offsets = [0, 2, 0], sizes = [2, 1, 128], strides = [1, 1, 1]} : vector<2x8x128xf32> to vector<2x1x128xf32>
    %120 = vector.shape_cast %119 : vector<2x1x128xf32> to vector<2x128xf32>
    %cst_48 = arith.constant dense<0.000000e+00> : vector<2x128xf32>
    %121 = tpu.matmul %117, %31, %cst_48 {dimension_numbers = #tpu.dot_dimension_numbers<[1], [0], [0], [1], [0, 0, 1, 1], [], []>} : vector<2x32xf32>, vector<32x128xf32>, vector<2x128xf32> -> vector<2x128xf32>
    %122 = arith.addf %120, %121 : vector<2x128xf32>
    %123 = vector.broadcast %35 : vector<1x128xf32> to vector<2x128xf32>
    %124 = arith.addf %122, %123 : vector<2x128xf32>
    %125 = vector.extract_strided_slice %124 {offsets = [0, 0], sizes = [2, 32], strides = [1, 1]} : vector<2x128xf32> to vector<2x32xf32>
    %cst_49 = arith.constant 5.000000e-01 : f32
    %126 = vector.broadcast %cst_49 : f32 to vector<2x32xf32>
    %127 = arith.mulf %126, %125 : vector<2x32xf32>
    %128 = math.tanh %127 : vector<2x32xf32>
    %cst_50 = arith.constant 1.000000e+00 : f32
    %129 = vector.broadcast %cst_50 : f32 to vector<2x32xf32>
    %130 = arith.addf %128, %129 : vector<2x32xf32>
    %cst_51 = arith.constant 5.000000e-01 : f32
    %131 = vector.broadcast %cst_51 : f32 to vector<2x32xf32>
    %132 = arith.mulf %131, %130 : vector<2x32xf32>
    %133 = vector.extract_strided_slice %124 {offsets = [0, 32], sizes = [2, 32], strides = [1, 1]} : vector<2x128xf32> to vector<2x32xf32>
    %cst_52 = arith.constant 5.000000e-01 : f32
    %134 = vector.broadcast %cst_52 : f32 to vector<2x32xf32>
    %135 = arith.mulf %134, %133 : vector<2x32xf32>
    %136 = math.tanh %135 : vector<2x32xf32>
    %cst_53 = arith.constant 1.000000e+00 : f32
    %137 = vector.broadcast %cst_53 : f32 to vector<2x32xf32>
    %138 = arith.addf %136, %137 : vector<2x32xf32>
    %cst_54 = arith.constant 5.000000e-01 : f32
    %139 = vector.broadcast %cst_54 : f32 to vector<2x32xf32>
    %140 = arith.mulf %139, %138 : vector<2x32xf32>
    %141 = vector.extract_strided_slice %124 {offsets = [0, 64], sizes = [2, 32], strides = [1, 1]} : vector<2x128xf32> to vector<2x32xf32>
    %142 = math.tanh %141 : vector<2x32xf32>
    %143 = vector.extract_strided_slice %124 {offsets = [0, 96], sizes = [2, 32], strides = [1, 1]} : vector<2x128xf32> to vector<2x32xf32>
    %cst_55 = arith.constant 5.000000e-01 : f32
    %144 = vector.broadcast %cst_55 : f32 to vector<2x32xf32>
    %145 = arith.mulf %144, %143 : vector<2x32xf32>
    %146 = math.tanh %145 : vector<2x32xf32>
    %cst_56 = arith.constant 1.000000e+00 : f32
    %147 = vector.broadcast %cst_56 : f32 to vector<2x32xf32>
    %148 = arith.addf %146, %147 : vector<2x32xf32>
    %cst_57 = arith.constant 5.000000e-01 : f32
    %149 = vector.broadcast %cst_57 : f32 to vector<2x32xf32>
    %150 = arith.mulf %149, %148 : vector<2x32xf32>
    %151 = arith.mulf %140, %115 : vector<2x32xf32>
    %152 = arith.mulf %132, %142 : vector<2x32xf32>
    %153 = arith.addf %151, %152 : vector<2x32xf32>
    %154 = math.tanh %153 : vector<2x32xf32>
    %155 = arith.mulf %150, %154 : vector<2x32xf32>
    %156 = vector.shape_cast %155 : vector<2x32xf32> to vector<2x1x32xf32>
    %157 = vector.extract_strided_slice %40 {offsets = [0, 3, 0], sizes = [2, 1, 128], strides = [1, 1, 1]} : vector<2x8x128xf32> to vector<2x1x128xf32>
    %158 = vector.shape_cast %157 : vector<2x1x128xf32> to vector<2x128xf32>
    %cst_58 = arith.constant dense<0.000000e+00> : vector<2x128xf32>
    %159 = tpu.matmul %155, %31, %cst_58 {dimension_numbers = #tpu.dot_dimension_numbers<[1], [0], [0], [1], [0, 0, 1, 1], [], []>} : vector<2x32xf32>, vector<32x128xf32>, vector<2x128xf32> -> vector<2x128xf32>
    %160 = arith.addf %158, %159 : vector<2x128xf32>
    %161 = vector.broadcast %35 : vector<1x128xf32> to vector<2x128xf32>
    %162 = arith.addf %160, %161 : vector<2x128xf32>
    %163 = vector.extract_strided_slice %162 {offsets = [0, 0], sizes = [2, 32], strides = [1, 1]} : vector<2x128xf32> to vector<2x32xf32>
    %cst_59 = arith.constant 5.000000e-01 : f32
    %164 = vector.broadcast %cst_59 : f32 to vector<2x32xf32>
    %165 = arith.mulf %164, %163 : vector<2x32xf32>
    %166 = math.tanh %165 : vector<2x32xf32>
    %cst_60 = arith.constant 1.000000e+00 : f32
    %167 = vector.broadcast %cst_60 : f32 to vector<2x32xf32>
    %168 = arith.addf %166, %167 : vector<2x32xf32>
    %cst_61 = arith.constant 5.000000e-01 : f32
    %169 = vector.broadcast %cst_61 : f32 to vector<2x32xf32>
    %170 = arith.mulf %169, %168 : vector<2x32xf32>
    %171 = vector.extract_strided_slice %162 {offsets = [0, 32], sizes = [2, 32], strides = [1, 1]} : vector<2x128xf32> to vector<2x32xf32>
    %cst_62 = arith.constant 5.000000e-01 : f32
    %172 = vector.broadcast %cst_62 : f32 to vector<2x32xf32>
    %173 = arith.mulf %172, %171 : vector<2x32xf32>
    %174 = math.tanh %173 : vector<2x32xf32>
    %cst_63 = arith.constant 1.000000e+00 : f32
    %175 = vector.broadcast %cst_63 : f32 to vector<2x32xf32>
    %176 = arith.addf %174, %175 : vector<2x32xf32>
    %cst_64 = arith.constant 5.000000e-01 : f32
    %177 = vector.broadcast %cst_64 : f32 to vector<2x32xf32>
    %178 = arith.mulf %177, %176 : vector<2x32xf32>
    %179 = vector.extract_strided_slice %162 {offsets = [0, 64], sizes = [2, 32], strides = [1, 1]} : vector<2x128xf32> to vector<2x32xf32>
    %180 = math.tanh %179 : vector<2x32xf32>
    %181 = vector.extract_strided_slice %162 {offsets = [0, 96], sizes = [2, 32], strides = [1, 1]} : vector<2x128xf32> to vector<2x32xf32>
    %cst_65 = arith.constant 5.000000e-01 : f32
    %182 = vector.broadcast %cst_65 : f32 to vector<2x32xf32>
    %183 = arith.mulf %182, %181 : vector<2x32xf32>
    %184 = math.tanh %183 : vector<2x32xf32>
    %cst_66 = arith.constant 1.000000e+00 : f32
    %185 = vector.broadcast %cst_66 : f32 to vector<2x32xf32>
    %186 = arith.addf %184, %185 : vector<2x32xf32>
    %cst_67 = arith.constant 5.000000e-01 : f32
    %187 = vector.broadcast %cst_67 : f32 to vector<2x32xf32>
    %188 = arith.mulf %187, %186 : vector<2x32xf32>
    %189 = arith.mulf %178, %153 : vector<2x32xf32>
    %190 = arith.mulf %170, %180 : vector<2x32xf32>
    %191 = arith.addf %189, %190 : vector<2x32xf32>
    %192 = math.tanh %191 : vector<2x32xf32>
    %193 = arith.mulf %188, %192 : vector<2x32xf32>
    %194 = vector.shape_cast %193 : vector<2x32xf32> to vector<2x1x32xf32>
    %195 = vector.extract_strided_slice %40 {offsets = [0, 4, 0], sizes = [2, 1, 128], strides = [1, 1, 1]} : vector<2x8x128xf32> to vector<2x1x128xf32>
    %196 = vector.shape_cast %195 : vector<2x1x128xf32> to vector<2x128xf32>
    %cst_68 = arith.constant dense<0.000000e+00> : vector<2x128xf32>
    %197 = tpu.matmul %193, %31, %cst_68 {dimension_numbers = #tpu.dot_dimension_numbers<[1], [0], [0], [1], [0, 0, 1, 1], [], []>} : vector<2x32xf32>, vector<32x128xf32>, vector<2x128xf32> -> vector<2x128xf32>
    %198 = arith.addf %196, %197 : vector<2x128xf32>
    %199 = vector.broadcast %35 : vector<1x128xf32> to vector<2x128xf32>
    %200 = arith.addf %198, %199 : vector<2x128xf32>
    %201 = vector.extract_strided_slice %200 {offsets = [0, 0], sizes = [2, 32], strides = [1, 1]} : vector<2x128xf32> to vector<2x32xf32>
    %cst_69 = arith.constant 5.000000e-01 : f32
    %202 = vector.broadcast %cst_69 : f32 to vector<2x32xf32>
    %203 = arith.mulf %202, %201 : vector<2x32xf32>
    %204 = math.tanh %203 : vector<2x32xf32>
    %cst_70 = arith.constant 1.000000e+00 : f32
    %205 = vector.broadcast %cst_70 : f32 to vector<2x32xf32>
    %206 = arith.addf %204, %205 : vector<2x32xf32>
    %cst_71 = arith.constant 5.000000e-01 : f32
    %207 = vector.broadcast %cst_71 : f32 to vector<2x32xf32>
    %208 = arith.mulf %207, %206 : vector<2x32xf32>
    %209 = vector.extract_strided_slice %200 {offsets = [0, 32], sizes = [2, 32], strides = [1, 1]} : vector<2x128xf32> to vector<2x32xf32>
    %cst_72 = arith.constant 5.000000e-01 : f32
    %210 = vector.broadcast %cst_72 : f32 to vector<2x32xf32>
    %211 = arith.mulf %210, %209 : vector<2x32xf32>
    %212 = math.tanh %211 : vector<2x32xf32>
    %cst_73 = arith.constant 1.000000e+00 : f32
    %213 = vector.broadcast %cst_73 : f32 to vector<2x32xf32>
    %214 = arith.addf %212, %213 : vector<2x32xf32>
    %cst_74 = arith.constant 5.000000e-01 : f32
    %215 = vector.broadcast %cst_74 : f32 to vector<2x32xf32>
    %216 = arith.mulf %215, %214 : vector<2x32xf32>
    %217 = vector.extract_strided_slice %200 {offsets = [0, 64], sizes = [2, 32], strides = [1, 1]} : vector<2x128xf32> to vector<2x32xf32>
    %218 = math.tanh %217 : vector<2x32xf32>
    %219 = vector.extract_strided_slice %200 {offsets = [0, 96], sizes = [2, 32], strides = [1, 1]} : vector<2x128xf32> to vector<2x32xf32>
    %cst_75 = arith.constant 5.000000e-01 : f32
    %220 = vector.broadcast %cst_75 : f32 to vector<2x32xf32>
    %221 = arith.mulf %220, %219 : vector<2x32xf32>
    %222 = math.tanh %221 : vector<2x32xf32>
    %cst_76 = arith.constant 1.000000e+00 : f32
    %223 = vector.broadcast %cst_76 : f32 to vector<2x32xf32>
    %224 = arith.addf %222, %223 : vector<2x32xf32>
    %cst_77 = arith.constant 5.000000e-01 : f32
    %225 = vector.broadcast %cst_77 : f32 to vector<2x32xf32>
    %226 = arith.mulf %225, %224 : vector<2x32xf32>
    %227 = arith.mulf %216, %191 : vector<2x32xf32>
    %228 = arith.mulf %208, %218 : vector<2x32xf32>
    %229 = arith.addf %227, %228 : vector<2x32xf32>
    %230 = math.tanh %229 : vector<2x32xf32>
    %231 = arith.mulf %226, %230 : vector<2x32xf32>
    %232 = vector.shape_cast %231 : vector<2x32xf32> to vector<2x1x32xf32>
    %233 = vector.extract_strided_slice %40 {offsets = [0, 5, 0], sizes = [2, 1, 128], strides = [1, 1, 1]} : vector<2x8x128xf32> to vector<2x1x128xf32>
    %234 = vector.shape_cast %233 : vector<2x1x128xf32> to vector<2x128xf32>
    %cst_78 = arith.constant dense<0.000000e+00> : vector<2x128xf32>
    %235 = tpu.matmul %231, %31, %cst_78 {dimension_numbers = #tpu.dot_dimension_numbers<[1], [0], [0], [1], [0, 0, 1, 1], [], []>} : vector<2x32xf32>, vector<32x128xf32>, vector<2x128xf32> -> vector<2x128xf32>
    %236 = arith.addf %234, %235 : vector<2x128xf32>
    %237 = vector.broadcast %35 : vector<1x128xf32> to vector<2x128xf32>
    %238 = arith.addf %236, %237 : vector<2x128xf32>
    %239 = vector.extract_strided_slice %238 {offsets = [0, 0], sizes = [2, 32], strides = [1, 1]} : vector<2x128xf32> to vector<2x32xf32>
    %cst_79 = arith.constant 5.000000e-01 : f32
    %240 = vector.broadcast %cst_79 : f32 to vector<2x32xf32>
    %241 = arith.mulf %240, %239 : vector<2x32xf32>
    %242 = math.tanh %241 : vector<2x32xf32>
    %cst_80 = arith.constant 1.000000e+00 : f32
    %243 = vector.broadcast %cst_80 : f32 to vector<2x32xf32>
    %244 = arith.addf %242, %243 : vector<2x32xf32>
    %cst_81 = arith.constant 5.000000e-01 : f32
    %245 = vector.broadcast %cst_81 : f32 to vector<2x32xf32>
    %246 = arith.mulf %245, %244 : vector<2x32xf32>
    %247 = vector.extract_strided_slice %238 {offsets = [0, 32], sizes = [2, 32], strides = [1, 1]} : vector<2x128xf32> to vector<2x32xf32>
    %cst_82 = arith.constant 5.000000e-01 : f32
    %248 = vector.broadcast %cst_82 : f32 to vector<2x32xf32>
    %249 = arith.mulf %248, %247 : vector<2x32xf32>
    %250 = math.tanh %249 : vector<2x32xf32>
    %cst_83 = arith.constant 1.000000e+00 : f32
    %251 = vector.broadcast %cst_83 : f32 to vector<2x32xf32>
    %252 = arith.addf %250, %251 : vector<2x32xf32>
    %cst_84 = arith.constant 5.000000e-01 : f32
    %253 = vector.broadcast %cst_84 : f32 to vector<2x32xf32>
    %254 = arith.mulf %253, %252 : vector<2x32xf32>
    %255 = vector.extract_strided_slice %238 {offsets = [0, 64], sizes = [2, 32], strides = [1, 1]} : vector<2x128xf32> to vector<2x32xf32>
    %256 = math.tanh %255 : vector<2x32xf32>
    %257 = vector.extract_strided_slice %238 {offsets = [0, 96], sizes = [2, 32], strides = [1, 1]} : vector<2x128xf32> to vector<2x32xf32>
    %cst_85 = arith.constant 5.000000e-01 : f32
    %258 = vector.broadcast %cst_85 : f32 to vector<2x32xf32>
    %259 = arith.mulf %258, %257 : vector<2x32xf32>
    %260 = math.tanh %259 : vector<2x32xf32>
    %cst_86 = arith.constant 1.000000e+00 : f32
    %261 = vector.broadcast %cst_86 : f32 to vector<2x32xf32>
    %262 = arith.addf %260, %261 : vector<2x32xf32>
    %cst_87 = arith.constant 5.000000e-01 : f32
    %263 = vector.broadcast %cst_87 : f32 to vector<2x32xf32>
    %264 = arith.mulf %263, %262 : vector<2x32xf32>
    %265 = arith.mulf %254, %229 : vector<2x32xf32>
    %266 = arith.mulf %246, %256 : vector<2x32xf32>
    %267 = arith.addf %265, %266 : vector<2x32xf32>
    %268 = math.tanh %267 : vector<2x32xf32>
    %269 = arith.mulf %264, %268 : vector<2x32xf32>
    %270 = vector.shape_cast %269 : vector<2x32xf32> to vector<2x1x32xf32>
    %271 = vector.extract_strided_slice %40 {offsets = [0, 6, 0], sizes = [2, 1, 128], strides = [1, 1, 1]} : vector<2x8x128xf32> to vector<2x1x128xf32>
    %272 = vector.shape_cast %271 : vector<2x1x128xf32> to vector<2x128xf32>
    %cst_88 = arith.constant dense<0.000000e+00> : vector<2x128xf32>
    %273 = tpu.matmul %269, %31, %cst_88 {dimension_numbers = #tpu.dot_dimension_numbers<[1], [0], [0], [1], [0, 0, 1, 1], [], []>} : vector<2x32xf32>, vector<32x128xf32>, vector<2x128xf32> -> vector<2x128xf32>
    %274 = arith.addf %272, %273 : vector<2x128xf32>
    %275 = vector.broadcast %35 : vector<1x128xf32> to vector<2x128xf32>
    %276 = arith.addf %274, %275 : vector<2x128xf32>
    %277 = vector.extract_strided_slice %276 {offsets = [0, 0], sizes = [2, 32], strides = [1, 1]} : vector<2x128xf32> to vector<2x32xf32>
    %cst_89 = arith.constant 5.000000e-01 : f32
    %278 = vector.broadcast %cst_89 : f32 to vector<2x32xf32>
    %279 = arith.mulf %278, %277 : vector<2x32xf32>
    %280 = math.tanh %279 : vector<2x32xf32>
    %cst_90 = arith.constant 1.000000e+00 : f32
    %281 = vector.broadcast %cst_90 : f32 to vector<2x32xf32>
    %282 = arith.addf %280, %281 : vector<2x32xf32>
    %cst_91 = arith.constant 5.000000e-01 : f32
    %283 = vector.broadcast %cst_91 : f32 to vector<2x32xf32>
    %284 = arith.mulf %283, %282 : vector<2x32xf32>
    %285 = vector.extract_strided_slice %276 {offsets = [0, 32], sizes = [2, 32], strides = [1, 1]} : vector<2x128xf32> to vector<2x32xf32>
    %cst_92 = arith.constant 5.000000e-01 : f32
    %286 = vector.broadcast %cst_92 : f32 to vector<2x32xf32>
    %287 = arith.mulf %286, %285 : vector<2x32xf32>
    %288 = math.tanh %287 : vector<2x32xf32>
    %cst_93 = arith.constant 1.000000e+00 : f32
    %289 = vector.broadcast %cst_93 : f32 to vector<2x32xf32>
    %290 = arith.addf %288, %289 : vector<2x32xf32>
    %cst_94 = arith.constant 5.000000e-01 : f32
    %291 = vector.broadcast %cst_94 : f32 to vector<2x32xf32>
    %292 = arith.mulf %291, %290 : vector<2x32xf32>
    %293 = vector.extract_strided_slice %276 {offsets = [0, 64], sizes = [2, 32], strides = [1, 1]} : vector<2x128xf32> to vector<2x32xf32>
    %294 = math.tanh %293 : vector<2x32xf32>
    %295 = vector.extract_strided_slice %276 {offsets = [0, 96], sizes = [2, 32], strides = [1, 1]} : vector<2x128xf32> to vector<2x32xf32>
    %cst_95 = arith.constant 5.000000e-01 : f32
    %296 = vector.broadcast %cst_95 : f32 to vector<2x32xf32>
    %297 = arith.mulf %296, %295 : vector<2x32xf32>
    %298 = math.tanh %297 : vector<2x32xf32>
    %cst_96 = arith.constant 1.000000e+00 : f32
    %299 = vector.broadcast %cst_96 : f32 to vector<2x32xf32>
    %300 = arith.addf %298, %299 : vector<2x32xf32>
    %cst_97 = arith.constant 5.000000e-01 : f32
    %301 = vector.broadcast %cst_97 : f32 to vector<2x32xf32>
    %302 = arith.mulf %301, %300 : vector<2x32xf32>
    %303 = arith.mulf %292, %267 : vector<2x32xf32>
    %304 = arith.mulf %284, %294 : vector<2x32xf32>
    %305 = arith.addf %303, %304 : vector<2x32xf32>
    %306 = math.tanh %305 : vector<2x32xf32>
    %307 = arith.mulf %302, %306 : vector<2x32xf32>
    %308 = vector.shape_cast %307 : vector<2x32xf32> to vector<2x1x32xf32>
    %309 = vector.extract_strided_slice %40 {offsets = [0, 7, 0], sizes = [2, 1, 128], strides = [1, 1, 1]} : vector<2x8x128xf32> to vector<2x1x128xf32>
    %310 = vector.shape_cast %309 : vector<2x1x128xf32> to vector<2x128xf32>
    %cst_98 = arith.constant dense<0.000000e+00> : vector<2x128xf32>
    %311 = tpu.matmul %307, %31, %cst_98 {dimension_numbers = #tpu.dot_dimension_numbers<[1], [0], [0], [1], [0, 0, 1, 1], [], []>} : vector<2x32xf32>, vector<32x128xf32>, vector<2x128xf32> -> vector<2x128xf32>
    %312 = arith.addf %310, %311 : vector<2x128xf32>
    %313 = vector.broadcast %35 : vector<1x128xf32> to vector<2x128xf32>
    %314 = arith.addf %312, %313 : vector<2x128xf32>
    %315 = vector.extract_strided_slice %314 {offsets = [0, 0], sizes = [2, 32], strides = [1, 1]} : vector<2x128xf32> to vector<2x32xf32>
    %cst_99 = arith.constant 5.000000e-01 : f32
    %316 = vector.broadcast %cst_99 : f32 to vector<2x32xf32>
    %317 = arith.mulf %316, %315 : vector<2x32xf32>
    %318 = math.tanh %317 : vector<2x32xf32>
    %cst_100 = arith.constant 1.000000e+00 : f32
    %319 = vector.broadcast %cst_100 : f32 to vector<2x32xf32>
    %320 = arith.addf %318, %319 : vector<2x32xf32>
    %cst_101 = arith.constant 5.000000e-01 : f32
    %321 = vector.broadcast %cst_101 : f32 to vector<2x32xf32>
    %322 = arith.mulf %321, %320 : vector<2x32xf32>
    %323 = vector.extract_strided_slice %314 {offsets = [0, 32], sizes = [2, 32], strides = [1, 1]} : vector<2x128xf32> to vector<2x32xf32>
    %cst_102 = arith.constant 5.000000e-01 : f32
    %324 = vector.broadcast %cst_102 : f32 to vector<2x32xf32>
    %325 = arith.mulf %324, %323 : vector<2x32xf32>
    %326 = math.tanh %325 : vector<2x32xf32>
    %cst_103 = arith.constant 1.000000e+00 : f32
    %327 = vector.broadcast %cst_103 : f32 to vector<2x32xf32>
    %328 = arith.addf %326, %327 : vector<2x32xf32>
    %cst_104 = arith.constant 5.000000e-01 : f32
    %329 = vector.broadcast %cst_104 : f32 to vector<2x32xf32>
    %330 = arith.mulf %329, %328 : vector<2x32xf32>
    %331 = vector.extract_strided_slice %314 {offsets = [0, 64], sizes = [2, 32], strides = [1, 1]} : vector<2x128xf32> to vector<2x32xf32>
    %332 = math.tanh %331 : vector<2x32xf32>
    %333 = vector.extract_strided_slice %314 {offsets = [0, 96], sizes = [2, 32], strides = [1, 1]} : vector<2x128xf32> to vector<2x32xf32>
    %cst_105 = arith.constant 5.000000e-01 : f32
    %334 = vector.broadcast %cst_105 : f32 to vector<2x32xf32>
    %335 = arith.mulf %334, %333 : vector<2x32xf32>
    %336 = math.tanh %335 : vector<2x32xf32>
    %cst_106 = arith.constant 1.000000e+00 : f32
    %337 = vector.broadcast %cst_106 : f32 to vector<2x32xf32>
    %338 = arith.addf %336, %337 : vector<2x32xf32>
    %cst_107 = arith.constant 5.000000e-01 : f32
    %339 = vector.broadcast %cst_107 : f32 to vector<2x32xf32>
    %340 = arith.mulf %339, %338 : vector<2x32xf32>
    %341 = arith.mulf %330, %305 : vector<2x32xf32>
    %342 = arith.mulf %322, %332 : vector<2x32xf32>
    %343 = arith.addf %341, %342 : vector<2x32xf32>
    %344 = math.tanh %343 : vector<2x32xf32>
    %345 = arith.mulf %340, %344 : vector<2x32xf32>
    %346 = vector.shape_cast %345 : vector<2x32xf32> to vector<2x1x32xf32>
    %347 = tpu.concatenate %80, %118, %156, %194, %232, %270, %308, %346 in 1 : vector<2x1x32xf32>, vector<2x1x32xf32>, vector<2x1x32xf32>, vector<2x1x32xf32>, vector<2x1x32xf32>, vector<2x1x32xf32>, vector<2x1x32xf32>, vector<2x1x32xf32> -> vector<2x8x32xf32>
    %c1 = arith.constant 1 : index
    %c0_108 = arith.constant 0 : index
    %c0_109 = arith.constant 0 : index
    %348 = vector.load %arg5[%c1, %c0_108, %c0_109] : memref<3x32x128xf32, #tpu.memory_space<vmem>>, vector<1x32x128xf32>
    %349 = vector.shape_cast %348 : vector<1x32x128xf32> to vector<32x128xf32>
    %c1_110 = arith.constant 1 : index
    %c0_111 = arith.constant 0 : index
    %c0_112 = arith.constant 0 : index
    %350 = vector.load %arg6[%c1_110, %c0_111, %c0_112] : memref<3x32x128xf32, #tpu.memory_space<vmem>>, vector<1x32x128xf32>
    %351 = vector.shape_cast %350 : vector<1x32x128xf32> to vector<32x128xf32>
    %c1_113 = arith.constant 1 : index
    %c0_114 = arith.constant 0 : index
    %c0_115 = arith.constant 0 : index
    %352 = vector.load %arg7[%c1_113, %c0_114, %c0_115] : memref<3x1x128xf32, #tpu.memory_space<vmem>>, vector<1x1x128xf32>
    %353 = vector.shape_cast %352 : vector<1x1x128xf32> to vector<1x128xf32>
    %c1_116 = arith.constant 1 : index
    %c0_117 = arith.constant 0 : index
    %c0_118 = arith.constant 0 : index
    %354 = vector.load %arg8[%c1_116, %c0_117, %c0_118] : memref<3x1x128xf32, #tpu.memory_space<vmem>>, vector<1x1x128xf32>
    %355 = vector.shape_cast %354 : vector<1x1x128xf32> to vector<1x128xf32>
    %356 = vector.shape_cast %347 : vector<2x8x32xf32> to vector<16x32xf32>
    %cst_119 = arith.constant dense<0.000000e+00> : vector<16x128xf32>
    %357 = tpu.matmul %356, %349, %cst_119 {dimension_numbers = #tpu.dot_dimension_numbers<[1], [0], [0], [1], [0, 0, 1, 1], [], []>} : vector<16x32xf32>, vector<32x128xf32>, vector<16x128xf32> -> vector<16x128xf32>
    %358 = vector.broadcast %353 : vector<1x128xf32> to vector<16x128xf32>
    %359 = arith.addf %357, %358 : vector<16x128xf32>
    %360 = vector.shape_cast %359 : vector<16x128xf32> to vector<2x8x128xf32>
    %cst_120 = arith.constant 0.000000e+00 : f32
    %361 = vector.broadcast %cst_120 : f32 to vector<2x32xf32>
    %cst_121 = arith.constant 0.000000e+00 : f32
    %362 = vector.broadcast %cst_121 : f32 to vector<2x32xf32>
    %363 = vector.extract_strided_slice %360 {offsets = [0, 0, 0], sizes = [2, 1, 128], strides = [1, 1, 1]} : vector<2x8x128xf32> to vector<2x1x128xf32>
    %364 = vector.shape_cast %363 : vector<2x1x128xf32> to vector<2x128xf32>
    %cst_122 = arith.constant dense<0.000000e+00> : vector<2x128xf32>
    %365 = tpu.matmul %361, %351, %cst_122 {dimension_numbers = #tpu.dot_dimension_numbers<[1], [0], [0], [1], [0, 0, 1, 1], [], []>} : vector<2x32xf32>, vector<32x128xf32>, vector<2x128xf32> -> vector<2x128xf32>
    %366 = arith.addf %364, %365 : vector<2x128xf32>
    %367 = vector.broadcast %355 : vector<1x128xf32> to vector<2x128xf32>
    %368 = arith.addf %366, %367 : vector<2x128xf32>
    %369 = vector.extract_strided_slice %368 {offsets = [0, 0], sizes = [2, 32], strides = [1, 1]} : vector<2x128xf32> to vector<2x32xf32>
    %cst_123 = arith.constant 5.000000e-01 : f32
    %370 = vector.broadcast %cst_123 : f32 to vector<2x32xf32>
    %371 = arith.mulf %370, %369 : vector<2x32xf32>
    %372 = math.tanh %371 : vector<2x32xf32>
    %cst_124 = arith.constant 1.000000e+00 : f32
    %373 = vector.broadcast %cst_124 : f32 to vector<2x32xf32>
    %374 = arith.addf %372, %373 : vector<2x32xf32>
    %cst_125 = arith.constant 5.000000e-01 : f32
    %375 = vector.broadcast %cst_125 : f32 to vector<2x32xf32>
    %376 = arith.mulf %375, %374 : vector<2x32xf32>
    %377 = vector.extract_strided_slice %368 {offsets = [0, 32], sizes = [2, 32], strides = [1, 1]} : vector<2x128xf32> to vector<2x32xf32>
    %cst_126 = arith.constant 5.000000e-01 : f32
    %378 = vector.broadcast %cst_126 : f32 to vector<2x32xf32>
    %379 = arith.mulf %378, %377 : vector<2x32xf32>
    %380 = math.tanh %379 : vector<2x32xf32>
    %cst_127 = arith.constant 1.000000e+00 : f32
    %381 = vector.broadcast %cst_127 : f32 to vector<2x32xf32>
    %382 = arith.addf %380, %381 : vector<2x32xf32>
    %cst_128 = arith.constant 5.000000e-01 : f32
    %383 = vector.broadcast %cst_128 : f32 to vector<2x32xf32>
    %384 = arith.mulf %383, %382 : vector<2x32xf32>
    %385 = vector.extract_strided_slice %368 {offsets = [0, 64], sizes = [2, 32], strides = [1, 1]} : vector<2x128xf32> to vector<2x32xf32>
    %386 = math.tanh %385 : vector<2x32xf32>
    %387 = vector.extract_strided_slice %368 {offsets = [0, 96], sizes = [2, 32], strides = [1, 1]} : vector<2x128xf32> to vector<2x32xf32>
    %cst_129 = arith.constant 5.000000e-01 : f32
    %388 = vector.broadcast %cst_129 : f32 to vector<2x32xf32>
    %389 = arith.mulf %388, %387 : vector<2x32xf32>
    %390 = math.tanh %389 : vector<2x32xf32>
    %cst_130 = arith.constant 1.000000e+00 : f32
    %391 = vector.broadcast %cst_130 : f32 to vector<2x32xf32>
    %392 = arith.addf %390, %391 : vector<2x32xf32>
    %cst_131 = arith.constant 5.000000e-01 : f32
    %393 = vector.broadcast %cst_131 : f32 to vector<2x32xf32>
    %394 = arith.mulf %393, %392 : vector<2x32xf32>
    %395 = arith.mulf %384, %362 : vector<2x32xf32>
    %396 = arith.mulf %376, %386 : vector<2x32xf32>
    %397 = arith.addf %395, %396 : vector<2x32xf32>
    %398 = math.tanh %397 : vector<2x32xf32>
    %399 = arith.mulf %394, %398 : vector<2x32xf32>
    %400 = vector.shape_cast %399 : vector<2x32xf32> to vector<2x1x32xf32>
    %401 = vector.extract_strided_slice %360 {offsets = [0, 1, 0], sizes = [2, 1, 128], strides = [1, 1, 1]} : vector<2x8x128xf32> to vector<2x1x128xf32>
    %402 = vector.shape_cast %401 : vector<2x1x128xf32> to vector<2x128xf32>
    %cst_132 = arith.constant dense<0.000000e+00> : vector<2x128xf32>
    %403 = tpu.matmul %399, %351, %cst_132 {dimension_numbers = #tpu.dot_dimension_numbers<[1], [0], [0], [1], [0, 0, 1, 1], [], []>} : vector<2x32xf32>, vector<32x128xf32>, vector<2x128xf32> -> vector<2x128xf32>
    %404 = arith.addf %402, %403 : vector<2x128xf32>
    %405 = vector.broadcast %355 : vector<1x128xf32> to vector<2x128xf32>
    %406 = arith.addf %404, %405 : vector<2x128xf32>
    %407 = vector.extract_strided_slice %406 {offsets = [0, 0], sizes = [2, 32], strides = [1, 1]} : vector<2x128xf32> to vector<2x32xf32>
    %cst_133 = arith.constant 5.000000e-01 : f32
    %408 = vector.broadcast %cst_133 : f32 to vector<2x32xf32>
    %409 = arith.mulf %408, %407 : vector<2x32xf32>
    %410 = math.tanh %409 : vector<2x32xf32>
    %cst_134 = arith.constant 1.000000e+00 : f32
    %411 = vector.broadcast %cst_134 : f32 to vector<2x32xf32>
    %412 = arith.addf %410, %411 : vector<2x32xf32>
    %cst_135 = arith.constant 5.000000e-01 : f32
    %413 = vector.broadcast %cst_135 : f32 to vector<2x32xf32>
    %414 = arith.mulf %413, %412 : vector<2x32xf32>
    %415 = vector.extract_strided_slice %406 {offsets = [0, 32], sizes = [2, 32], strides = [1, 1]} : vector<2x128xf32> to vector<2x32xf32>
    %cst_136 = arith.constant 5.000000e-01 : f32
    %416 = vector.broadcast %cst_136 : f32 to vector<2x32xf32>
    %417 = arith.mulf %416, %415 : vector<2x32xf32>
    %418 = math.tanh %417 : vector<2x32xf32>
    %cst_137 = arith.constant 1.000000e+00 : f32
    %419 = vector.broadcast %cst_137 : f32 to vector<2x32xf32>
    %420 = arith.addf %418, %419 : vector<2x32xf32>
    %cst_138 = arith.constant 5.000000e-01 : f32
    %421 = vector.broadcast %cst_138 : f32 to vector<2x32xf32>
    %422 = arith.mulf %421, %420 : vector<2x32xf32>
    %423 = vector.extract_strided_slice %406 {offsets = [0, 64], sizes = [2, 32], strides = [1, 1]} : vector<2x128xf32> to vector<2x32xf32>
    %424 = math.tanh %423 : vector<2x32xf32>
    %425 = vector.extract_strided_slice %406 {offsets = [0, 96], sizes = [2, 32], strides = [1, 1]} : vector<2x128xf32> to vector<2x32xf32>
    %cst_139 = arith.constant 5.000000e-01 : f32
    %426 = vector.broadcast %cst_139 : f32 to vector<2x32xf32>
    %427 = arith.mulf %426, %425 : vector<2x32xf32>
    %428 = math.tanh %427 : vector<2x32xf32>
    %cst_140 = arith.constant 1.000000e+00 : f32
    %429 = vector.broadcast %cst_140 : f32 to vector<2x32xf32>
    %430 = arith.addf %428, %429 : vector<2x32xf32>
    %cst_141 = arith.constant 5.000000e-01 : f32
    %431 = vector.broadcast %cst_141 : f32 to vector<2x32xf32>
    %432 = arith.mulf %431, %430 : vector<2x32xf32>
    %433 = arith.mulf %422, %397 : vector<2x32xf32>
    %434 = arith.mulf %414, %424 : vector<2x32xf32>
    %435 = arith.addf %433, %434 : vector<2x32xf32>
    %436 = math.tanh %435 : vector<2x32xf32>
    %437 = arith.mulf %432, %436 : vector<2x32xf32>
    %438 = vector.shape_cast %437 : vector<2x32xf32> to vector<2x1x32xf32>
    %439 = vector.extract_strided_slice %360 {offsets = [0, 2, 0], sizes = [2, 1, 128], strides = [1, 1, 1]} : vector<2x8x128xf32> to vector<2x1x128xf32>
    %440 = vector.shape_cast %439 : vector<2x1x128xf32> to vector<2x128xf32>
    %cst_142 = arith.constant dense<0.000000e+00> : vector<2x128xf32>
    %441 = tpu.matmul %437, %351, %cst_142 {dimension_numbers = #tpu.dot_dimension_numbers<[1], [0], [0], [1], [0, 0, 1, 1], [], []>} : vector<2x32xf32>, vector<32x128xf32>, vector<2x128xf32> -> vector<2x128xf32>
    %442 = arith.addf %440, %441 : vector<2x128xf32>
    %443 = vector.broadcast %355 : vector<1x128xf32> to vector<2x128xf32>
    %444 = arith.addf %442, %443 : vector<2x128xf32>
    %445 = vector.extract_strided_slice %444 {offsets = [0, 0], sizes = [2, 32], strides = [1, 1]} : vector<2x128xf32> to vector<2x32xf32>
    %cst_143 = arith.constant 5.000000e-01 : f32
    %446 = vector.broadcast %cst_143 : f32 to vector<2x32xf32>
    %447 = arith.mulf %446, %445 : vector<2x32xf32>
    %448 = math.tanh %447 : vector<2x32xf32>
    %cst_144 = arith.constant 1.000000e+00 : f32
    %449 = vector.broadcast %cst_144 : f32 to vector<2x32xf32>
    %450 = arith.addf %448, %449 : vector<2x32xf32>
    %cst_145 = arith.constant 5.000000e-01 : f32
    %451 = vector.broadcast %cst_145 : f32 to vector<2x32xf32>
    %452 = arith.mulf %451, %450 : vector<2x32xf32>
    %453 = vector.extract_strided_slice %444 {offsets = [0, 32], sizes = [2, 32], strides = [1, 1]} : vector<2x128xf32> to vector<2x32xf32>
    %cst_146 = arith.constant 5.000000e-01 : f32
    %454 = vector.broadcast %cst_146 : f32 to vector<2x32xf32>
    %455 = arith.mulf %454, %453 : vector<2x32xf32>
    %456 = math.tanh %455 : vector<2x32xf32>
    %cst_147 = arith.constant 1.000000e+00 : f32
    %457 = vector.broadcast %cst_147 : f32 to vector<2x32xf32>
    %458 = arith.addf %456, %457 : vector<2x32xf32>
    %cst_148 = arith.constant 5.000000e-01 : f32
    %459 = vector.broadcast %cst_148 : f32 to vector<2x32xf32>
    %460 = arith.mulf %459, %458 : vector<2x32xf32>
    %461 = vector.extract_strided_slice %444 {offsets = [0, 64], sizes = [2, 32], strides = [1, 1]} : vector<2x128xf32> to vector<2x32xf32>
    %462 = math.tanh %461 : vector<2x32xf32>
    %463 = vector.extract_strided_slice %444 {offsets = [0, 96], sizes = [2, 32], strides = [1, 1]} : vector<2x128xf32> to vector<2x32xf32>
    %cst_149 = arith.constant 5.000000e-01 : f32
    %464 = vector.broadcast %cst_149 : f32 to vector<2x32xf32>
    %465 = arith.mulf %464, %463 : vector<2x32xf32>
    %466 = math.tanh %465 : vector<2x32xf32>
    %cst_150 = arith.constant 1.000000e+00 : f32
    %467 = vector.broadcast %cst_150 : f32 to vector<2x32xf32>
    %468 = arith.addf %466, %467 : vector<2x32xf32>
    %cst_151 = arith.constant 5.000000e-01 : f32
    %469 = vector.broadcast %cst_151 : f32 to vector<2x32xf32>
    %470 = arith.mulf %469, %468 : vector<2x32xf32>
    %471 = arith.mulf %460, %435 : vector<2x32xf32>
    %472 = arith.mulf %452, %462 : vector<2x32xf32>
    %473 = arith.addf %471, %472 : vector<2x32xf32>
    %474 = math.tanh %473 : vector<2x32xf32>
    %475 = arith.mulf %470, %474 : vector<2x32xf32>
    %476 = vector.shape_cast %475 : vector<2x32xf32> to vector<2x1x32xf32>
    %477 = vector.extract_strided_slice %360 {offsets = [0, 3, 0], sizes = [2, 1, 128], strides = [1, 1, 1]} : vector<2x8x128xf32> to vector<2x1x128xf32>
    %478 = vector.shape_cast %477 : vector<2x1x128xf32> to vector<2x128xf32>
    %cst_152 = arith.constant dense<0.000000e+00> : vector<2x128xf32>
    %479 = tpu.matmul %475, %351, %cst_152 {dimension_numbers = #tpu.dot_dimension_numbers<[1], [0], [0], [1], [0, 0, 1, 1], [], []>} : vector<2x32xf32>, vector<32x128xf32>, vector<2x128xf32> -> vector<2x128xf32>
    %480 = arith.addf %478, %479 : vector<2x128xf32>
    %481 = vector.broadcast %355 : vector<1x128xf32> to vector<2x128xf32>
    %482 = arith.addf %480, %481 : vector<2x128xf32>
    %483 = vector.extract_strided_slice %482 {offsets = [0, 0], sizes = [2, 32], strides = [1, 1]} : vector<2x128xf32> to vector<2x32xf32>
    %cst_153 = arith.constant 5.000000e-01 : f32
    %484 = vector.broadcast %cst_153 : f32 to vector<2x32xf32>
    %485 = arith.mulf %484, %483 : vector<2x32xf32>
    %486 = math.tanh %485 : vector<2x32xf32>
    %cst_154 = arith.constant 1.000000e+00 : f32
    %487 = vector.broadcast %cst_154 : f32 to vector<2x32xf32>
    %488 = arith.addf %486, %487 : vector<2x32xf32>
    %cst_155 = arith.constant 5.000000e-01 : f32
    %489 = vector.broadcast %cst_155 : f32 to vector<2x32xf32>
    %490 = arith.mulf %489, %488 : vector<2x32xf32>
    %491 = vector.extract_strided_slice %482 {offsets = [0, 32], sizes = [2, 32], strides = [1, 1]} : vector<2x128xf32> to vector<2x32xf32>
    %cst_156 = arith.constant 5.000000e-01 : f32
    %492 = vector.broadcast %cst_156 : f32 to vector<2x32xf32>
    %493 = arith.mulf %492, %491 : vector<2x32xf32>
    %494 = math.tanh %493 : vector<2x32xf32>
    %cst_157 = arith.constant 1.000000e+00 : f32
    %495 = vector.broadcast %cst_157 : f32 to vector<2x32xf32>
    %496 = arith.addf %494, %495 : vector<2x32xf32>
    %cst_158 = arith.constant 5.000000e-01 : f32
    %497 = vector.broadcast %cst_158 : f32 to vector<2x32xf32>
    %498 = arith.mulf %497, %496 : vector<2x32xf32>
    %499 = vector.extract_strided_slice %482 {offsets = [0, 64], sizes = [2, 32], strides = [1, 1]} : vector<2x128xf32> to vector<2x32xf32>
    %500 = math.tanh %499 : vector<2x32xf32>
    %501 = vector.extract_strided_slice %482 {offsets = [0, 96], sizes = [2, 32], strides = [1, 1]} : vector<2x128xf32> to vector<2x32xf32>
    %cst_159 = arith.constant 5.000000e-01 : f32
    %502 = vector.broadcast %cst_159 : f32 to vector<2x32xf32>
    %503 = arith.mulf %502, %501 : vector<2x32xf32>
    %504 = math.tanh %503 : vector<2x32xf32>
    %cst_160 = arith.constant 1.000000e+00 : f32
    %505 = vector.broadcast %cst_160 : f32 to vector<2x32xf32>
    %506 = arith.addf %504, %505 : vector<2x32xf32>
    %cst_161 = arith.constant 5.000000e-01 : f32
    %507 = vector.broadcast %cst_161 : f32 to vector<2x32xf32>
    %508 = arith.mulf %507, %506 : vector<2x32xf32>
    %509 = arith.mulf %498, %473 : vector<2x32xf32>
    %510 = arith.mulf %490, %500 : vector<2x32xf32>
    %511 = arith.addf %509, %510 : vector<2x32xf32>
    %512 = math.tanh %511 : vector<2x32xf32>
    %513 = arith.mulf %508, %512 : vector<2x32xf32>
    %514 = vector.shape_cast %513 : vector<2x32xf32> to vector<2x1x32xf32>
    %515 = vector.extract_strided_slice %360 {offsets = [0, 4, 0], sizes = [2, 1, 128], strides = [1, 1, 1]} : vector<2x8x128xf32> to vector<2x1x128xf32>
    %516 = vector.shape_cast %515 : vector<2x1x128xf32> to vector<2x128xf32>
    %cst_162 = arith.constant dense<0.000000e+00> : vector<2x128xf32>
    %517 = tpu.matmul %513, %351, %cst_162 {dimension_numbers = #tpu.dot_dimension_numbers<[1], [0], [0], [1], [0, 0, 1, 1], [], []>} : vector<2x32xf32>, vector<32x128xf32>, vector<2x128xf32> -> vector<2x128xf32>
    %518 = arith.addf %516, %517 : vector<2x128xf32>
    %519 = vector.broadcast %355 : vector<1x128xf32> to vector<2x128xf32>
    %520 = arith.addf %518, %519 : vector<2x128xf32>
    %521 = vector.extract_strided_slice %520 {offsets = [0, 0], sizes = [2, 32], strides = [1, 1]} : vector<2x128xf32> to vector<2x32xf32>
    %cst_163 = arith.constant 5.000000e-01 : f32
    %522 = vector.broadcast %cst_163 : f32 to vector<2x32xf32>
    %523 = arith.mulf %522, %521 : vector<2x32xf32>
    %524 = math.tanh %523 : vector<2x32xf32>
    %cst_164 = arith.constant 1.000000e+00 : f32
    %525 = vector.broadcast %cst_164 : f32 to vector<2x32xf32>
    %526 = arith.addf %524, %525 : vector<2x32xf32>
    %cst_165 = arith.constant 5.000000e-01 : f32
    %527 = vector.broadcast %cst_165 : f32 to vector<2x32xf32>
    %528 = arith.mulf %527, %526 : vector<2x32xf32>
    %529 = vector.extract_strided_slice %520 {offsets = [0, 32], sizes = [2, 32], strides = [1, 1]} : vector<2x128xf32> to vector<2x32xf32>
    %cst_166 = arith.constant 5.000000e-01 : f32
    %530 = vector.broadcast %cst_166 : f32 to vector<2x32xf32>
    %531 = arith.mulf %530, %529 : vector<2x32xf32>
    %532 = math.tanh %531 : vector<2x32xf32>
    %cst_167 = arith.constant 1.000000e+00 : f32
    %533 = vector.broadcast %cst_167 : f32 to vector<2x32xf32>
    %534 = arith.addf %532, %533 : vector<2x32xf32>
    %cst_168 = arith.constant 5.000000e-01 : f32
    %535 = vector.broadcast %cst_168 : f32 to vector<2x32xf32>
    %536 = arith.mulf %535, %534 : vector<2x32xf32>
    %537 = vector.extract_strided_slice %520 {offsets = [0, 64], sizes = [2, 32], strides = [1, 1]} : vector<2x128xf32> to vector<2x32xf32>
    %538 = math.tanh %537 : vector<2x32xf32>
    %539 = vector.extract_strided_slice %520 {offsets = [0, 96], sizes = [2, 32], strides = [1, 1]} : vector<2x128xf32> to vector<2x32xf32>
    %cst_169 = arith.constant 5.000000e-01 : f32
    %540 = vector.broadcast %cst_169 : f32 to vector<2x32xf32>
    %541 = arith.mulf %540, %539 : vector<2x32xf32>
    %542 = math.tanh %541 : vector<2x32xf32>
    %cst_170 = arith.constant 1.000000e+00 : f32
    %543 = vector.broadcast %cst_170 : f32 to vector<2x32xf32>
    %544 = arith.addf %542, %543 : vector<2x32xf32>
    %cst_171 = arith.constant 5.000000e-01 : f32
    %545 = vector.broadcast %cst_171 : f32 to vector<2x32xf32>
    %546 = arith.mulf %545, %544 : vector<2x32xf32>
    %547 = arith.mulf %536, %511 : vector<2x32xf32>
    %548 = arith.mulf %528, %538 : vector<2x32xf32>
    %549 = arith.addf %547, %548 : vector<2x32xf32>
    %550 = math.tanh %549 : vector<2x32xf32>
    %551 = arith.mulf %546, %550 : vector<2x32xf32>
    %552 = vector.shape_cast %551 : vector<2x32xf32> to vector<2x1x32xf32>
    %553 = vector.extract_strided_slice %360 {offsets = [0, 5, 0], sizes = [2, 1, 128], strides = [1, 1, 1]} : vector<2x8x128xf32> to vector<2x1x128xf32>
    %554 = vector.shape_cast %553 : vector<2x1x128xf32> to vector<2x128xf32>
    %cst_172 = arith.constant dense<0.000000e+00> : vector<2x128xf32>
    %555 = tpu.matmul %551, %351, %cst_172 {dimension_numbers = #tpu.dot_dimension_numbers<[1], [0], [0], [1], [0, 0, 1, 1], [], []>} : vector<2x32xf32>, vector<32x128xf32>, vector<2x128xf32> -> vector<2x128xf32>
    %556 = arith.addf %554, %555 : vector<2x128xf32>
    %557 = vector.broadcast %355 : vector<1x128xf32> to vector<2x128xf32>
    %558 = arith.addf %556, %557 : vector<2x128xf32>
    %559 = vector.extract_strided_slice %558 {offsets = [0, 0], sizes = [2, 32], strides = [1, 1]} : vector<2x128xf32> to vector<2x32xf32>
    %cst_173 = arith.constant 5.000000e-01 : f32
    %560 = vector.broadcast %cst_173 : f32 to vector<2x32xf32>
    %561 = arith.mulf %560, %559 : vector<2x32xf32>
    %562 = math.tanh %561 : vector<2x32xf32>
    %cst_174 = arith.constant 1.000000e+00 : f32
    %563 = vector.broadcast %cst_174 : f32 to vector<2x32xf32>
    %564 = arith.addf %562, %563 : vector<2x32xf32>
    %cst_175 = arith.constant 5.000000e-01 : f32
    %565 = vector.broadcast %cst_175 : f32 to vector<2x32xf32>
    %566 = arith.mulf %565, %564 : vector<2x32xf32>
    %567 = vector.extract_strided_slice %558 {offsets = [0, 32], sizes = [2, 32], strides = [1, 1]} : vector<2x128xf32> to vector<2x32xf32>
    %cst_176 = arith.constant 5.000000e-01 : f32
    %568 = vector.broadcast %cst_176 : f32 to vector<2x32xf32>
    %569 = arith.mulf %568, %567 : vector<2x32xf32>
    %570 = math.tanh %569 : vector<2x32xf32>
    %cst_177 = arith.constant 1.000000e+00 : f32
    %571 = vector.broadcast %cst_177 : f32 to vector<2x32xf32>
    %572 = arith.addf %570, %571 : vector<2x32xf32>
    %cst_178 = arith.constant 5.000000e-01 : f32
    %573 = vector.broadcast %cst_178 : f32 to vector<2x32xf32>
    %574 = arith.mulf %573, %572 : vector<2x32xf32>
    %575 = vector.extract_strided_slice %558 {offsets = [0, 64], sizes = [2, 32], strides = [1, 1]} : vector<2x128xf32> to vector<2x32xf32>
    %576 = math.tanh %575 : vector<2x32xf32>
    %577 = vector.extract_strided_slice %558 {offsets = [0, 96], sizes = [2, 32], strides = [1, 1]} : vector<2x128xf32> to vector<2x32xf32>
    %cst_179 = arith.constant 5.000000e-01 : f32
    %578 = vector.broadcast %cst_179 : f32 to vector<2x32xf32>
    %579 = arith.mulf %578, %577 : vector<2x32xf32>
    %580 = math.tanh %579 : vector<2x32xf32>
    %cst_180 = arith.constant 1.000000e+00 : f32
    %581 = vector.broadcast %cst_180 : f32 to vector<2x32xf32>
    %582 = arith.addf %580, %581 : vector<2x32xf32>
    %cst_181 = arith.constant 5.000000e-01 : f32
    %583 = vector.broadcast %cst_181 : f32 to vector<2x32xf32>
    %584 = arith.mulf %583, %582 : vector<2x32xf32>
    %585 = arith.mulf %574, %549 : vector<2x32xf32>
    %586 = arith.mulf %566, %576 : vector<2x32xf32>
    %587 = arith.addf %585, %586 : vector<2x32xf32>
    %588 = math.tanh %587 : vector<2x32xf32>
    %589 = arith.mulf %584, %588 : vector<2x32xf32>
    %590 = vector.shape_cast %589 : vector<2x32xf32> to vector<2x1x32xf32>
    %591 = vector.extract_strided_slice %360 {offsets = [0, 6, 0], sizes = [2, 1, 128], strides = [1, 1, 1]} : vector<2x8x128xf32> to vector<2x1x128xf32>
    %592 = vector.shape_cast %591 : vector<2x1x128xf32> to vector<2x128xf32>
    %cst_182 = arith.constant dense<0.000000e+00> : vector<2x128xf32>
    %593 = tpu.matmul %589, %351, %cst_182 {dimension_numbers = #tpu.dot_dimension_numbers<[1], [0], [0], [1], [0, 0, 1, 1], [], []>} : vector<2x32xf32>, vector<32x128xf32>, vector<2x128xf32> -> vector<2x128xf32>
    %594 = arith.addf %592, %593 : vector<2x128xf32>
    %595 = vector.broadcast %355 : vector<1x128xf32> to vector<2x128xf32>
    %596 = arith.addf %594, %595 : vector<2x128xf32>
    %597 = vector.extract_strided_slice %596 {offsets = [0, 0], sizes = [2, 32], strides = [1, 1]} : vector<2x128xf32> to vector<2x32xf32>
    %cst_183 = arith.constant 5.000000e-01 : f32
    %598 = vector.broadcast %cst_183 : f32 to vector<2x32xf32>
    %599 = arith.mulf %598, %597 : vector<2x32xf32>
    %600 = math.tanh %599 : vector<2x32xf32>
    %cst_184 = arith.constant 1.000000e+00 : f32
    %601 = vector.broadcast %cst_184 : f32 to vector<2x32xf32>
    %602 = arith.addf %600, %601 : vector<2x32xf32>
    %cst_185 = arith.constant 5.000000e-01 : f32
    %603 = vector.broadcast %cst_185 : f32 to vector<2x32xf32>
    %604 = arith.mulf %603, %602 : vector<2x32xf32>
    %605 = vector.extract_strided_slice %596 {offsets = [0, 32], sizes = [2, 32], strides = [1, 1]} : vector<2x128xf32> to vector<2x32xf32>
    %cst_186 = arith.constant 5.000000e-01 : f32
    %606 = vector.broadcast %cst_186 : f32 to vector<2x32xf32>
    %607 = arith.mulf %606, %605 : vector<2x32xf32>
    %608 = math.tanh %607 : vector<2x32xf32>
    %cst_187 = arith.constant 1.000000e+00 : f32
    %609 = vector.broadcast %cst_187 : f32 to vector<2x32xf32>
    %610 = arith.addf %608, %609 : vector<2x32xf32>
    %cst_188 = arith.constant 5.000000e-01 : f32
    %611 = vector.broadcast %cst_188 : f32 to vector<2x32xf32>
    %612 = arith.mulf %611, %610 : vector<2x32xf32>
    %613 = vector.extract_strided_slice %596 {offsets = [0, 64], sizes = [2, 32], strides = [1, 1]} : vector<2x128xf32> to vector<2x32xf32>
    %614 = math.tanh %613 : vector<2x32xf32>
    %615 = vector.extract_strided_slice %596 {offsets = [0, 96], sizes = [2, 32], strides = [1, 1]} : vector<2x128xf32> to vector<2x32xf32>
    %cst_189 = arith.constant 5.000000e-01 : f32
    %616 = vector.broadcast %cst_189 : f32 to vector<2x32xf32>
    %617 = arith.mulf %616, %615 : vector<2x32xf32>
    %618 = math.tanh %617 : vector<2x32xf32>
    %cst_190 = arith.constant 1.000000e+00 : f32
    %619 = vector.broadcast %cst_190 : f32 to vector<2x32xf32>
    %620 = arith.addf %618, %619 : vector<2x32xf32>
    %cst_191 = arith.constant 5.000000e-01 : f32
    %621 = vector.broadcast %cst_191 : f32 to vector<2x32xf32>
    %622 = arith.mulf %621, %620 : vector<2x32xf32>
    %623 = arith.mulf %612, %587 : vector<2x32xf32>
    %624 = arith.mulf %604, %614 : vector<2x32xf32>
    %625 = arith.addf %623, %624 : vector<2x32xf32>
    %626 = math.tanh %625 : vector<2x32xf32>
    %627 = arith.mulf %622, %626 : vector<2x32xf32>
    %628 = vector.shape_cast %627 : vector<2x32xf32> to vector<2x1x32xf32>
    %629 = vector.extract_strided_slice %360 {offsets = [0, 7, 0], sizes = [2, 1, 128], strides = [1, 1, 1]} : vector<2x8x128xf32> to vector<2x1x128xf32>
    %630 = vector.shape_cast %629 : vector<2x1x128xf32> to vector<2x128xf32>
    %cst_192 = arith.constant dense<0.000000e+00> : vector<2x128xf32>
    %631 = tpu.matmul %627, %351, %cst_192 {dimension_numbers = #tpu.dot_dimension_numbers<[1], [0], [0], [1], [0, 0, 1, 1], [], []>} : vector<2x32xf32>, vector<32x128xf32>, vector<2x128xf32> -> vector<2x128xf32>
    %632 = arith.addf %630, %631 : vector<2x128xf32>
    %633 = vector.broadcast %355 : vector<1x128xf32> to vector<2x128xf32>
    %634 = arith.addf %632, %633 : vector<2x128xf32>
    %635 = vector.extract_strided_slice %634 {offsets = [0, 0], sizes = [2, 32], strides = [1, 1]} : vector<2x128xf32> to vector<2x32xf32>
    %cst_193 = arith.constant 5.000000e-01 : f32
    %636 = vector.broadcast %cst_193 : f32 to vector<2x32xf32>
    %637 = arith.mulf %636, %635 : vector<2x32xf32>
    %638 = math.tanh %637 : vector<2x32xf32>
    %cst_194 = arith.constant 1.000000e+00 : f32
    %639 = vector.broadcast %cst_194 : f32 to vector<2x32xf32>
    %640 = arith.addf %638, %639 : vector<2x32xf32>
    %cst_195 = arith.constant 5.000000e-01 : f32
    %641 = vector.broadcast %cst_195 : f32 to vector<2x32xf32>
    %642 = arith.mulf %641, %640 : vector<2x32xf32>
    %643 = vector.extract_strided_slice %634 {offsets = [0, 32], sizes = [2, 32], strides = [1, 1]} : vector<2x128xf32> to vector<2x32xf32>
    %cst_196 = arith.constant 5.000000e-01 : f32
    %644 = vector.broadcast %cst_196 : f32 to vector<2x32xf32>
    %645 = arith.mulf %644, %643 : vector<2x32xf32>
    %646 = math.tanh %645 : vector<2x32xf32>
    %cst_197 = arith.constant 1.000000e+00 : f32
    %647 = vector.broadcast %cst_197 : f32 to vector<2x32xf32>
    %648 = arith.addf %646, %647 : vector<2x32xf32>
    %cst_198 = arith.constant 5.000000e-01 : f32
    %649 = vector.broadcast %cst_198 : f32 to vector<2x32xf32>
    %650 = arith.mulf %649, %648 : vector<2x32xf32>
    %651 = vector.extract_strided_slice %634 {offsets = [0, 64], sizes = [2, 32], strides = [1, 1]} : vector<2x128xf32> to vector<2x32xf32>
    %652 = math.tanh %651 : vector<2x32xf32>
    %653 = vector.extract_strided_slice %634 {offsets = [0, 96], sizes = [2, 32], strides = [1, 1]} : vector<2x128xf32> to vector<2x32xf32>
    %cst_199 = arith.constant 5.000000e-01 : f32
    %654 = vector.broadcast %cst_199 : f32 to vector<2x32xf32>
    %655 = arith.mulf %654, %653 : vector<2x32xf32>
    %656 = math.tanh %655 : vector<2x32xf32>
    %cst_200 = arith.constant 1.000000e+00 : f32
    %657 = vector.broadcast %cst_200 : f32 to vector<2x32xf32>
    %658 = arith.addf %656, %657 : vector<2x32xf32>
    %cst_201 = arith.constant 5.000000e-01 : f32
    %659 = vector.broadcast %cst_201 : f32 to vector<2x32xf32>
    %660 = arith.mulf %659, %658 : vector<2x32xf32>
    %661 = arith.mulf %650, %625 : vector<2x32xf32>
    %662 = arith.mulf %642, %652 : vector<2x32xf32>
    %663 = arith.addf %661, %662 : vector<2x32xf32>
    %664 = math.tanh %663 : vector<2x32xf32>
    %665 = arith.mulf %660, %664 : vector<2x32xf32>
    %666 = vector.shape_cast %665 : vector<2x32xf32> to vector<2x1x32xf32>
    %667 = tpu.concatenate %400, %438, %476, %514, %552, %590, %628, %666 in 1 : vector<2x1x32xf32>, vector<2x1x32xf32>, vector<2x1x32xf32>, vector<2x1x32xf32>, vector<2x1x32xf32>, vector<2x1x32xf32>, vector<2x1x32xf32>, vector<2x1x32xf32> -> vector<2x8x32xf32>
    %c2 = arith.constant 2 : index
    %c0_202 = arith.constant 0 : index
    %c0_203 = arith.constant 0 : index
    %668 = vector.load %arg5[%c2, %c0_202, %c0_203] : memref<3x32x128xf32, #tpu.memory_space<vmem>>, vector<1x32x128xf32>
    %669 = vector.shape_cast %668 : vector<1x32x128xf32> to vector<32x128xf32>
    %c2_204 = arith.constant 2 : index
    %c0_205 = arith.constant 0 : index
    %c0_206 = arith.constant 0 : index
    %670 = vector.load %arg6[%c2_204, %c0_205, %c0_206] : memref<3x32x128xf32, #tpu.memory_space<vmem>>, vector<1x32x128xf32>
    %671 = vector.shape_cast %670 : vector<1x32x128xf32> to vector<32x128xf32>
    %c2_207 = arith.constant 2 : index
    %c0_208 = arith.constant 0 : index
    %c0_209 = arith.constant 0 : index
    %672 = vector.load %arg7[%c2_207, %c0_208, %c0_209] : memref<3x1x128xf32, #tpu.memory_space<vmem>>, vector<1x1x128xf32>
    %673 = vector.shape_cast %672 : vector<1x1x128xf32> to vector<1x128xf32>
    %c2_210 = arith.constant 2 : index
    %c0_211 = arith.constant 0 : index
    %c0_212 = arith.constant 0 : index
    %674 = vector.load %arg8[%c2_210, %c0_211, %c0_212] : memref<3x1x128xf32, #tpu.memory_space<vmem>>, vector<1x1x128xf32>
    %675 = vector.shape_cast %674 : vector<1x1x128xf32> to vector<1x128xf32>
    %676 = vector.shape_cast %667 : vector<2x8x32xf32> to vector<16x32xf32>
    %cst_213 = arith.constant dense<0.000000e+00> : vector<16x128xf32>
    %677 = tpu.matmul %676, %669, %cst_213 {dimension_numbers = #tpu.dot_dimension_numbers<[1], [0], [0], [1], [0, 0, 1, 1], [], []>} : vector<16x32xf32>, vector<32x128xf32>, vector<16x128xf32> -> vector<16x128xf32>
    %678 = vector.broadcast %673 : vector<1x128xf32> to vector<16x128xf32>
    %679 = arith.addf %677, %678 : vector<16x128xf32>
    %680 = vector.shape_cast %679 : vector<16x128xf32> to vector<2x8x128xf32>
    %cst_214 = arith.constant 0.000000e+00 : f32
    %681 = vector.broadcast %cst_214 : f32 to vector<2x32xf32>
    %cst_215 = arith.constant 0.000000e+00 : f32
    %682 = vector.broadcast %cst_215 : f32 to vector<2x32xf32>
    %683 = vector.extract_strided_slice %680 {offsets = [0, 0, 0], sizes = [2, 1, 128], strides = [1, 1, 1]} : vector<2x8x128xf32> to vector<2x1x128xf32>
    %684 = vector.shape_cast %683 : vector<2x1x128xf32> to vector<2x128xf32>
    %cst_216 = arith.constant dense<0.000000e+00> : vector<2x128xf32>
    %685 = tpu.matmul %681, %671, %cst_216 {dimension_numbers = #tpu.dot_dimension_numbers<[1], [0], [0], [1], [0, 0, 1, 1], [], []>} : vector<2x32xf32>, vector<32x128xf32>, vector<2x128xf32> -> vector<2x128xf32>
    %686 = arith.addf %684, %685 : vector<2x128xf32>
    %687 = vector.broadcast %675 : vector<1x128xf32> to vector<2x128xf32>
    %688 = arith.addf %686, %687 : vector<2x128xf32>
    %689 = vector.extract_strided_slice %688 {offsets = [0, 0], sizes = [2, 32], strides = [1, 1]} : vector<2x128xf32> to vector<2x32xf32>
    %cst_217 = arith.constant 5.000000e-01 : f32
    %690 = vector.broadcast %cst_217 : f32 to vector<2x32xf32>
    %691 = arith.mulf %690, %689 : vector<2x32xf32>
    %692 = math.tanh %691 : vector<2x32xf32>
    %cst_218 = arith.constant 1.000000e+00 : f32
    %693 = vector.broadcast %cst_218 : f32 to vector<2x32xf32>
    %694 = arith.addf %692, %693 : vector<2x32xf32>
    %cst_219 = arith.constant 5.000000e-01 : f32
    %695 = vector.broadcast %cst_219 : f32 to vector<2x32xf32>
    %696 = arith.mulf %695, %694 : vector<2x32xf32>
    %697 = vector.extract_strided_slice %688 {offsets = [0, 32], sizes = [2, 32], strides = [1, 1]} : vector<2x128xf32> to vector<2x32xf32>
    %cst_220 = arith.constant 5.000000e-01 : f32
    %698 = vector.broadcast %cst_220 : f32 to vector<2x32xf32>
    %699 = arith.mulf %698, %697 : vector<2x32xf32>
    %700 = math.tanh %699 : vector<2x32xf32>
    %cst_221 = arith.constant 1.000000e+00 : f32
    %701 = vector.broadcast %cst_221 : f32 to vector<2x32xf32>
    %702 = arith.addf %700, %701 : vector<2x32xf32>
    %cst_222 = arith.constant 5.000000e-01 : f32
    %703 = vector.broadcast %cst_222 : f32 to vector<2x32xf32>
    %704 = arith.mulf %703, %702 : vector<2x32xf32>
    %705 = vector.extract_strided_slice %688 {offsets = [0, 64], sizes = [2, 32], strides = [1, 1]} : vector<2x128xf32> to vector<2x32xf32>
    %706 = math.tanh %705 : vector<2x32xf32>
    %707 = vector.extract_strided_slice %688 {offsets = [0, 96], sizes = [2, 32], strides = [1, 1]} : vector<2x128xf32> to vector<2x32xf32>
    %cst_223 = arith.constant 5.000000e-01 : f32
    %708 = vector.broadcast %cst_223 : f32 to vector<2x32xf32>
    %709 = arith.mulf %708, %707 : vector<2x32xf32>
    %710 = math.tanh %709 : vector<2x32xf32>
    %cst_224 = arith.constant 1.000000e+00 : f32
    %711 = vector.broadcast %cst_224 : f32 to vector<2x32xf32>
    %712 = arith.addf %710, %711 : vector<2x32xf32>
    %cst_225 = arith.constant 5.000000e-01 : f32
    %713 = vector.broadcast %cst_225 : f32 to vector<2x32xf32>
    %714 = arith.mulf %713, %712 : vector<2x32xf32>
    %715 = arith.mulf %704, %682 : vector<2x32xf32>
    %716 = arith.mulf %696, %706 : vector<2x32xf32>
    %717 = arith.addf %715, %716 : vector<2x32xf32>
    %718 = math.tanh %717 : vector<2x32xf32>
    %719 = arith.mulf %714, %718 : vector<2x32xf32>
    %720 = vector.shape_cast %719 : vector<2x32xf32> to vector<2x1x32xf32>
    %721 = vector.extract_strided_slice %680 {offsets = [0, 1, 0], sizes = [2, 1, 128], strides = [1, 1, 1]} : vector<2x8x128xf32> to vector<2x1x128xf32>
    %722 = vector.shape_cast %721 : vector<2x1x128xf32> to vector<2x128xf32>
    %cst_226 = arith.constant dense<0.000000e+00> : vector<2x128xf32>
    %723 = tpu.matmul %719, %671, %cst_226 {dimension_numbers = #tpu.dot_dimension_numbers<[1], [0], [0], [1], [0, 0, 1, 1], [], []>} : vector<2x32xf32>, vector<32x128xf32>, vector<2x128xf32> -> vector<2x128xf32>
    %724 = arith.addf %722, %723 : vector<2x128xf32>
    %725 = vector.broadcast %675 : vector<1x128xf32> to vector<2x128xf32>
    %726 = arith.addf %724, %725 : vector<2x128xf32>
    %727 = vector.extract_strided_slice %726 {offsets = [0, 0], sizes = [2, 32], strides = [1, 1]} : vector<2x128xf32> to vector<2x32xf32>
    %cst_227 = arith.constant 5.000000e-01 : f32
    %728 = vector.broadcast %cst_227 : f32 to vector<2x32xf32>
    %729 = arith.mulf %728, %727 : vector<2x32xf32>
    %730 = math.tanh %729 : vector<2x32xf32>
    %cst_228 = arith.constant 1.000000e+00 : f32
    %731 = vector.broadcast %cst_228 : f32 to vector<2x32xf32>
    %732 = arith.addf %730, %731 : vector<2x32xf32>
    %cst_229 = arith.constant 5.000000e-01 : f32
    %733 = vector.broadcast %cst_229 : f32 to vector<2x32xf32>
    %734 = arith.mulf %733, %732 : vector<2x32xf32>
    %735 = vector.extract_strided_slice %726 {offsets = [0, 32], sizes = [2, 32], strides = [1, 1]} : vector<2x128xf32> to vector<2x32xf32>
    %cst_230 = arith.constant 5.000000e-01 : f32
    %736 = vector.broadcast %cst_230 : f32 to vector<2x32xf32>
    %737 = arith.mulf %736, %735 : vector<2x32xf32>
    %738 = math.tanh %737 : vector<2x32xf32>
    %cst_231 = arith.constant 1.000000e+00 : f32
    %739 = vector.broadcast %cst_231 : f32 to vector<2x32xf32>
    %740 = arith.addf %738, %739 : vector<2x32xf32>
    %cst_232 = arith.constant 5.000000e-01 : f32
    %741 = vector.broadcast %cst_232 : f32 to vector<2x32xf32>
    %742 = arith.mulf %741, %740 : vector<2x32xf32>
    %743 = vector.extract_strided_slice %726 {offsets = [0, 64], sizes = [2, 32], strides = [1, 1]} : vector<2x128xf32> to vector<2x32xf32>
    %744 = math.tanh %743 : vector<2x32xf32>
    %745 = vector.extract_strided_slice %726 {offsets = [0, 96], sizes = [2, 32], strides = [1, 1]} : vector<2x128xf32> to vector<2x32xf32>
    %cst_233 = arith.constant 5.000000e-01 : f32
    %746 = vector.broadcast %cst_233 : f32 to vector<2x32xf32>
    %747 = arith.mulf %746, %745 : vector<2x32xf32>
    %748 = math.tanh %747 : vector<2x32xf32>
    %cst_234 = arith.constant 1.000000e+00 : f32
    %749 = vector.broadcast %cst_234 : f32 to vector<2x32xf32>
    %750 = arith.addf %748, %749 : vector<2x32xf32>
    %cst_235 = arith.constant 5.000000e-01 : f32
    %751 = vector.broadcast %cst_235 : f32 to vector<2x32xf32>
    %752 = arith.mulf %751, %750 : vector<2x32xf32>
    %753 = arith.mulf %742, %717 : vector<2x32xf32>
    %754 = arith.mulf %734, %744 : vector<2x32xf32>
    %755 = arith.addf %753, %754 : vector<2x32xf32>
    %756 = math.tanh %755 : vector<2x32xf32>
    %757 = arith.mulf %752, %756 : vector<2x32xf32>
    %758 = vector.shape_cast %757 : vector<2x32xf32> to vector<2x1x32xf32>
    %759 = vector.extract_strided_slice %680 {offsets = [0, 2, 0], sizes = [2, 1, 128], strides = [1, 1, 1]} : vector<2x8x128xf32> to vector<2x1x128xf32>
    %760 = vector.shape_cast %759 : vector<2x1x128xf32> to vector<2x128xf32>
    %cst_236 = arith.constant dense<0.000000e+00> : vector<2x128xf32>
    %761 = tpu.matmul %757, %671, %cst_236 {dimension_numbers = #tpu.dot_dimension_numbers<[1], [0], [0], [1], [0, 0, 1, 1], [], []>} : vector<2x32xf32>, vector<32x128xf32>, vector<2x128xf32> -> vector<2x128xf32>
    %762 = arith.addf %760, %761 : vector<2x128xf32>
    %763 = vector.broadcast %675 : vector<1x128xf32> to vector<2x128xf32>
    %764 = arith.addf %762, %763 : vector<2x128xf32>
    %765 = vector.extract_strided_slice %764 {offsets = [0, 0], sizes = [2, 32], strides = [1, 1]} : vector<2x128xf32> to vector<2x32xf32>
    %cst_237 = arith.constant 5.000000e-01 : f32
    %766 = vector.broadcast %cst_237 : f32 to vector<2x32xf32>
    %767 = arith.mulf %766, %765 : vector<2x32xf32>
    %768 = math.tanh %767 : vector<2x32xf32>
    %cst_238 = arith.constant 1.000000e+00 : f32
    %769 = vector.broadcast %cst_238 : f32 to vector<2x32xf32>
    %770 = arith.addf %768, %769 : vector<2x32xf32>
    %cst_239 = arith.constant 5.000000e-01 : f32
    %771 = vector.broadcast %cst_239 : f32 to vector<2x32xf32>
    %772 = arith.mulf %771, %770 : vector<2x32xf32>
    %773 = vector.extract_strided_slice %764 {offsets = [0, 32], sizes = [2, 32], strides = [1, 1]} : vector<2x128xf32> to vector<2x32xf32>
    %cst_240 = arith.constant 5.000000e-01 : f32
    %774 = vector.broadcast %cst_240 : f32 to vector<2x32xf32>
    %775 = arith.mulf %774, %773 : vector<2x32xf32>
    %776 = math.tanh %775 : vector<2x32xf32>
    %cst_241 = arith.constant 1.000000e+00 : f32
    %777 = vector.broadcast %cst_241 : f32 to vector<2x32xf32>
    %778 = arith.addf %776, %777 : vector<2x32xf32>
    %cst_242 = arith.constant 5.000000e-01 : f32
    %779 = vector.broadcast %cst_242 : f32 to vector<2x32xf32>
    %780 = arith.mulf %779, %778 : vector<2x32xf32>
    %781 = vector.extract_strided_slice %764 {offsets = [0, 64], sizes = [2, 32], strides = [1, 1]} : vector<2x128xf32> to vector<2x32xf32>
    %782 = math.tanh %781 : vector<2x32xf32>
    %783 = vector.extract_strided_slice %764 {offsets = [0, 96], sizes = [2, 32], strides = [1, 1]} : vector<2x128xf32> to vector<2x32xf32>
    %cst_243 = arith.constant 5.000000e-01 : f32
    %784 = vector.broadcast %cst_243 : f32 to vector<2x32xf32>
    %785 = arith.mulf %784, %783 : vector<2x32xf32>
    %786 = math.tanh %785 : vector<2x32xf32>
    %cst_244 = arith.constant 1.000000e+00 : f32
    %787 = vector.broadcast %cst_244 : f32 to vector<2x32xf32>
    %788 = arith.addf %786, %787 : vector<2x32xf32>
    %cst_245 = arith.constant 5.000000e-01 : f32
    %789 = vector.broadcast %cst_245 : f32 to vector<2x32xf32>
    %790 = arith.mulf %789, %788 : vector<2x32xf32>
    %791 = arith.mulf %780, %755 : vector<2x32xf32>
    %792 = arith.mulf %772, %782 : vector<2x32xf32>
    %793 = arith.addf %791, %792 : vector<2x32xf32>
    %794 = math.tanh %793 : vector<2x32xf32>
    %795 = arith.mulf %790, %794 : vector<2x32xf32>
    %796 = vector.shape_cast %795 : vector<2x32xf32> to vector<2x1x32xf32>
    %797 = vector.extract_strided_slice %680 {offsets = [0, 3, 0], sizes = [2, 1, 128], strides = [1, 1, 1]} : vector<2x8x128xf32> to vector<2x1x128xf32>
    %798 = vector.shape_cast %797 : vector<2x1x128xf32> to vector<2x128xf32>
    %cst_246 = arith.constant dense<0.000000e+00> : vector<2x128xf32>
    %799 = tpu.matmul %795, %671, %cst_246 {dimension_numbers = #tpu.dot_dimension_numbers<[1], [0], [0], [1], [0, 0, 1, 1], [], []>} : vector<2x32xf32>, vector<32x128xf32>, vector<2x128xf32> -> vector<2x128xf32>
    %800 = arith.addf %798, %799 : vector<2x128xf32>
    %801 = vector.broadcast %675 : vector<1x128xf32> to vector<2x128xf32>
    %802 = arith.addf %800, %801 : vector<2x128xf32>
    %803 = vector.extract_strided_slice %802 {offsets = [0, 0], sizes = [2, 32], strides = [1, 1]} : vector<2x128xf32> to vector<2x32xf32>
    %cst_247 = arith.constant 5.000000e-01 : f32
    %804 = vector.broadcast %cst_247 : f32 to vector<2x32xf32>
    %805 = arith.mulf %804, %803 : vector<2x32xf32>
    %806 = math.tanh %805 : vector<2x32xf32>
    %cst_248 = arith.constant 1.000000e+00 : f32
    %807 = vector.broadcast %cst_248 : f32 to vector<2x32xf32>
    %808 = arith.addf %806, %807 : vector<2x32xf32>
    %cst_249 = arith.constant 5.000000e-01 : f32
    %809 = vector.broadcast %cst_249 : f32 to vector<2x32xf32>
    %810 = arith.mulf %809, %808 : vector<2x32xf32>
    %811 = vector.extract_strided_slice %802 {offsets = [0, 32], sizes = [2, 32], strides = [1, 1]} : vector<2x128xf32> to vector<2x32xf32>
    %cst_250 = arith.constant 5.000000e-01 : f32
    %812 = vector.broadcast %cst_250 : f32 to vector<2x32xf32>
    %813 = arith.mulf %812, %811 : vector<2x32xf32>
    %814 = math.tanh %813 : vector<2x32xf32>
    %cst_251 = arith.constant 1.000000e+00 : f32
    %815 = vector.broadcast %cst_251 : f32 to vector<2x32xf32>
    %816 = arith.addf %814, %815 : vector<2x32xf32>
    %cst_252 = arith.constant 5.000000e-01 : f32
    %817 = vector.broadcast %cst_252 : f32 to vector<2x32xf32>
    %818 = arith.mulf %817, %816 : vector<2x32xf32>
    %819 = vector.extract_strided_slice %802 {offsets = [0, 64], sizes = [2, 32], strides = [1, 1]} : vector<2x128xf32> to vector<2x32xf32>
    %820 = math.tanh %819 : vector<2x32xf32>
    %821 = vector.extract_strided_slice %802 {offsets = [0, 96], sizes = [2, 32], strides = [1, 1]} : vector<2x128xf32> to vector<2x32xf32>
    %cst_253 = arith.constant 5.000000e-01 : f32
    %822 = vector.broadcast %cst_253 : f32 to vector<2x32xf32>
    %823 = arith.mulf %822, %821 : vector<2x32xf32>
    %824 = math.tanh %823 : vector<2x32xf32>
    %cst_254 = arith.constant 1.000000e+00 : f32
    %825 = vector.broadcast %cst_254 : f32 to vector<2x32xf32>
    %826 = arith.addf %824, %825 : vector<2x32xf32>
    %cst_255 = arith.constant 5.000000e-01 : f32
    %827 = vector.broadcast %cst_255 : f32 to vector<2x32xf32>
    %828 = arith.mulf %827, %826 : vector<2x32xf32>
    %829 = arith.mulf %818, %793 : vector<2x32xf32>
    %830 = arith.mulf %810, %820 : vector<2x32xf32>
    %831 = arith.addf %829, %830 : vector<2x32xf32>
    %832 = math.tanh %831 : vector<2x32xf32>
    %833 = arith.mulf %828, %832 : vector<2x32xf32>
    %834 = vector.shape_cast %833 : vector<2x32xf32> to vector<2x1x32xf32>
    %835 = vector.extract_strided_slice %680 {offsets = [0, 4, 0], sizes = [2, 1, 128], strides = [1, 1, 1]} : vector<2x8x128xf32> to vector<2x1x128xf32>
    %836 = vector.shape_cast %835 : vector<2x1x128xf32> to vector<2x128xf32>
    %cst_256 = arith.constant dense<0.000000e+00> : vector<2x128xf32>
    %837 = tpu.matmul %833, %671, %cst_256 {dimension_numbers = #tpu.dot_dimension_numbers<[1], [0], [0], [1], [0, 0, 1, 1], [], []>} : vector<2x32xf32>, vector<32x128xf32>, vector<2x128xf32> -> vector<2x128xf32>
    %838 = arith.addf %836, %837 : vector<2x128xf32>
    %839 = vector.broadcast %675 : vector<1x128xf32> to vector<2x128xf32>
    %840 = arith.addf %838, %839 : vector<2x128xf32>
    %841 = vector.extract_strided_slice %840 {offsets = [0, 0], sizes = [2, 32], strides = [1, 1]} : vector<2x128xf32> to vector<2x32xf32>
    %cst_257 = arith.constant 5.000000e-01 : f32
    %842 = vector.broadcast %cst_257 : f32 to vector<2x32xf32>
    %843 = arith.mulf %842, %841 : vector<2x32xf32>
    %844 = math.tanh %843 : vector<2x32xf32>
    %cst_258 = arith.constant 1.000000e+00 : f32
    %845 = vector.broadcast %cst_258 : f32 to vector<2x32xf32>
    %846 = arith.addf %844, %845 : vector<2x32xf32>
    %cst_259 = arith.constant 5.000000e-01 : f32
    %847 = vector.broadcast %cst_259 : f32 to vector<2x32xf32>
    %848 = arith.mulf %847, %846 : vector<2x32xf32>
    %849 = vector.extract_strided_slice %840 {offsets = [0, 32], sizes = [2, 32], strides = [1, 1]} : vector<2x128xf32> to vector<2x32xf32>
    %cst_260 = arith.constant 5.000000e-01 : f32
    %850 = vector.broadcast %cst_260 : f32 to vector<2x32xf32>
    %851 = arith.mulf %850, %849 : vector<2x32xf32>
    %852 = math.tanh %851 : vector<2x32xf32>
    %cst_261 = arith.constant 1.000000e+00 : f32
    %853 = vector.broadcast %cst_261 : f32 to vector<2x32xf32>
    %854 = arith.addf %852, %853 : vector<2x32xf32>
    %cst_262 = arith.constant 5.000000e-01 : f32
    %855 = vector.broadcast %cst_262 : f32 to vector<2x32xf32>
    %856 = arith.mulf %855, %854 : vector<2x32xf32>
    %857 = vector.extract_strided_slice %840 {offsets = [0, 64], sizes = [2, 32], strides = [1, 1]} : vector<2x128xf32> to vector<2x32xf32>
    %858 = math.tanh %857 : vector<2x32xf32>
    %859 = vector.extract_strided_slice %840 {offsets = [0, 96], sizes = [2, 32], strides = [1, 1]} : vector<2x128xf32> to vector<2x32xf32>
    %cst_263 = arith.constant 5.000000e-01 : f32
    %860 = vector.broadcast %cst_263 : f32 to vector<2x32xf32>
    %861 = arith.mulf %860, %859 : vector<2x32xf32>
    %862 = math.tanh %861 : vector<2x32xf32>
    %cst_264 = arith.constant 1.000000e+00 : f32
    %863 = vector.broadcast %cst_264 : f32 to vector<2x32xf32>
    %864 = arith.addf %862, %863 : vector<2x32xf32>
    %cst_265 = arith.constant 5.000000e-01 : f32
    %865 = vector.broadcast %cst_265 : f32 to vector<2x32xf32>
    %866 = arith.mulf %865, %864 : vector<2x32xf32>
    %867 = arith.mulf %856, %831 : vector<2x32xf32>
    %868 = arith.mulf %848, %858 : vector<2x32xf32>
    %869 = arith.addf %867, %868 : vector<2x32xf32>
    %870 = math.tanh %869 : vector<2x32xf32>
    %871 = arith.mulf %866, %870 : vector<2x32xf32>
    %872 = vector.shape_cast %871 : vector<2x32xf32> to vector<2x1x32xf32>
    %873 = vector.extract_strided_slice %680 {offsets = [0, 5, 0], sizes = [2, 1, 128], strides = [1, 1, 1]} : vector<2x8x128xf32> to vector<2x1x128xf32>
    %874 = vector.shape_cast %873 : vector<2x1x128xf32> to vector<2x128xf32>
    %cst_266 = arith.constant dense<0.000000e+00> : vector<2x128xf32>
    %875 = tpu.matmul %871, %671, %cst_266 {dimension_numbers = #tpu.dot_dimension_numbers<[1], [0], [0], [1], [0, 0, 1, 1], [], []>} : vector<2x32xf32>, vector<32x128xf32>, vector<2x128xf32> -> vector<2x128xf32>
    %876 = arith.addf %874, %875 : vector<2x128xf32>
    %877 = vector.broadcast %675 : vector<1x128xf32> to vector<2x128xf32>
    %878 = arith.addf %876, %877 : vector<2x128xf32>
    %879 = vector.extract_strided_slice %878 {offsets = [0, 0], sizes = [2, 32], strides = [1, 1]} : vector<2x128xf32> to vector<2x32xf32>
    %cst_267 = arith.constant 5.000000e-01 : f32
    %880 = vector.broadcast %cst_267 : f32 to vector<2x32xf32>
    %881 = arith.mulf %880, %879 : vector<2x32xf32>
    %882 = math.tanh %881 : vector<2x32xf32>
    %cst_268 = arith.constant 1.000000e+00 : f32
    %883 = vector.broadcast %cst_268 : f32 to vector<2x32xf32>
    %884 = arith.addf %882, %883 : vector<2x32xf32>
    %cst_269 = arith.constant 5.000000e-01 : f32
    %885 = vector.broadcast %cst_269 : f32 to vector<2x32xf32>
    %886 = arith.mulf %885, %884 : vector<2x32xf32>
    %887 = vector.extract_strided_slice %878 {offsets = [0, 32], sizes = [2, 32], strides = [1, 1]} : vector<2x128xf32> to vector<2x32xf32>
    %cst_270 = arith.constant 5.000000e-01 : f32
    %888 = vector.broadcast %cst_270 : f32 to vector<2x32xf32>
    %889 = arith.mulf %888, %887 : vector<2x32xf32>
    %890 = math.tanh %889 : vector<2x32xf32>
    %cst_271 = arith.constant 1.000000e+00 : f32
    %891 = vector.broadcast %cst_271 : f32 to vector<2x32xf32>
    %892 = arith.addf %890, %891 : vector<2x32xf32>
    %cst_272 = arith.constant 5.000000e-01 : f32
    %893 = vector.broadcast %cst_272 : f32 to vector<2x32xf32>
    %894 = arith.mulf %893, %892 : vector<2x32xf32>
    %895 = vector.extract_strided_slice %878 {offsets = [0, 64], sizes = [2, 32], strides = [1, 1]} : vector<2x128xf32> to vector<2x32xf32>
    %896 = math.tanh %895 : vector<2x32xf32>
    %897 = vector.extract_strided_slice %878 {offsets = [0, 96], sizes = [2, 32], strides = [1, 1]} : vector<2x128xf32> to vector<2x32xf32>
    %cst_273 = arith.constant 5.000000e-01 : f32
    %898 = vector.broadcast %cst_273 : f32 to vector<2x32xf32>
    %899 = arith.mulf %898, %897 : vector<2x32xf32>
    %900 = math.tanh %899 : vector<2x32xf32>
    %cst_274 = arith.constant 1.000000e+00 : f32
    %901 = vector.broadcast %cst_274 : f32 to vector<2x32xf32>
    %902 = arith.addf %900, %901 : vector<2x32xf32>
    %cst_275 = arith.constant 5.000000e-01 : f32
    %903 = vector.broadcast %cst_275 : f32 to vector<2x32xf32>
    %904 = arith.mulf %903, %902 : vector<2x32xf32>
    %905 = arith.mulf %894, %869 : vector<2x32xf32>
    %906 = arith.mulf %886, %896 : vector<2x32xf32>
    %907 = arith.addf %905, %906 : vector<2x32xf32>
    %908 = math.tanh %907 : vector<2x32xf32>
    %909 = arith.mulf %904, %908 : vector<2x32xf32>
    %910 = vector.shape_cast %909 : vector<2x32xf32> to vector<2x1x32xf32>
    %911 = vector.extract_strided_slice %680 {offsets = [0, 6, 0], sizes = [2, 1, 128], strides = [1, 1, 1]} : vector<2x8x128xf32> to vector<2x1x128xf32>
    %912 = vector.shape_cast %911 : vector<2x1x128xf32> to vector<2x128xf32>
    %cst_276 = arith.constant dense<0.000000e+00> : vector<2x128xf32>
    %913 = tpu.matmul %909, %671, %cst_276 {dimension_numbers = #tpu.dot_dimension_numbers<[1], [0], [0], [1], [0, 0, 1, 1], [], []>} : vector<2x32xf32>, vector<32x128xf32>, vector<2x128xf32> -> vector<2x128xf32>
    %914 = arith.addf %912, %913 : vector<2x128xf32>
    %915 = vector.broadcast %675 : vector<1x128xf32> to vector<2x128xf32>
    %916 = arith.addf %914, %915 : vector<2x128xf32>
    %917 = vector.extract_strided_slice %916 {offsets = [0, 0], sizes = [2, 32], strides = [1, 1]} : vector<2x128xf32> to vector<2x32xf32>
    %cst_277 = arith.constant 5.000000e-01 : f32
    %918 = vector.broadcast %cst_277 : f32 to vector<2x32xf32>
    %919 = arith.mulf %918, %917 : vector<2x32xf32>
    %920 = math.tanh %919 : vector<2x32xf32>
    %cst_278 = arith.constant 1.000000e+00 : f32
    %921 = vector.broadcast %cst_278 : f32 to vector<2x32xf32>
    %922 = arith.addf %920, %921 : vector<2x32xf32>
    %cst_279 = arith.constant 5.000000e-01 : f32
    %923 = vector.broadcast %cst_279 : f32 to vector<2x32xf32>
    %924 = arith.mulf %923, %922 : vector<2x32xf32>
    %925 = vector.extract_strided_slice %916 {offsets = [0, 32], sizes = [2, 32], strides = [1, 1]} : vector<2x128xf32> to vector<2x32xf32>
    %cst_280 = arith.constant 5.000000e-01 : f32
    %926 = vector.broadcast %cst_280 : f32 to vector<2x32xf32>
    %927 = arith.mulf %926, %925 : vector<2x32xf32>
    %928 = math.tanh %927 : vector<2x32xf32>
    %cst_281 = arith.constant 1.000000e+00 : f32
    %929 = vector.broadcast %cst_281 : f32 to vector<2x32xf32>
    %930 = arith.addf %928, %929 : vector<2x32xf32>
    %cst_282 = arith.constant 5.000000e-01 : f32
    %931 = vector.broadcast %cst_282 : f32 to vector<2x32xf32>
    %932 = arith.mulf %931, %930 : vector<2x32xf32>
    %933 = vector.extract_strided_slice %916 {offsets = [0, 64], sizes = [2, 32], strides = [1, 1]} : vector<2x128xf32> to vector<2x32xf32>
    %934 = math.tanh %933 : vector<2x32xf32>
    %935 = vector.extract_strided_slice %916 {offsets = [0, 96], sizes = [2, 32], strides = [1, 1]} : vector<2x128xf32> to vector<2x32xf32>
    %cst_283 = arith.constant 5.000000e-01 : f32
    %936 = vector.broadcast %cst_283 : f32 to vector<2x32xf32>
    %937 = arith.mulf %936, %935 : vector<2x32xf32>
    %938 = math.tanh %937 : vector<2x32xf32>
    %cst_284 = arith.constant 1.000000e+00 : f32
    %939 = vector.broadcast %cst_284 : f32 to vector<2x32xf32>
    %940 = arith.addf %938, %939 : vector<2x32xf32>
    %cst_285 = arith.constant 5.000000e-01 : f32
    %941 = vector.broadcast %cst_285 : f32 to vector<2x32xf32>
    %942 = arith.mulf %941, %940 : vector<2x32xf32>
    %943 = arith.mulf %932, %907 : vector<2x32xf32>
    %944 = arith.mulf %924, %934 : vector<2x32xf32>
    %945 = arith.addf %943, %944 : vector<2x32xf32>
    %946 = math.tanh %945 : vector<2x32xf32>
    %947 = arith.mulf %942, %946 : vector<2x32xf32>
    %948 = vector.shape_cast %947 : vector<2x32xf32> to vector<2x1x32xf32>
    %949 = vector.extract_strided_slice %680 {offsets = [0, 7, 0], sizes = [2, 1, 128], strides = [1, 1, 1]} : vector<2x8x128xf32> to vector<2x1x128xf32>
    %950 = vector.shape_cast %949 : vector<2x1x128xf32> to vector<2x128xf32>
    %cst_286 = arith.constant dense<0.000000e+00> : vector<2x128xf32>
    %951 = tpu.matmul %947, %671, %cst_286 {dimension_numbers = #tpu.dot_dimension_numbers<[1], [0], [0], [1], [0, 0, 1, 1], [], []>} : vector<2x32xf32>, vector<32x128xf32>, vector<2x128xf32> -> vector<2x128xf32>
    %952 = arith.addf %950, %951 : vector<2x128xf32>
    %953 = vector.broadcast %675 : vector<1x128xf32> to vector<2x128xf32>
    %954 = arith.addf %952, %953 : vector<2x128xf32>
    %955 = vector.extract_strided_slice %954 {offsets = [0, 0], sizes = [2, 32], strides = [1, 1]} : vector<2x128xf32> to vector<2x32xf32>
    %cst_287 = arith.constant 5.000000e-01 : f32
    %956 = vector.broadcast %cst_287 : f32 to vector<2x32xf32>
    %957 = arith.mulf %956, %955 : vector<2x32xf32>
    %958 = math.tanh %957 : vector<2x32xf32>
    %cst_288 = arith.constant 1.000000e+00 : f32
    %959 = vector.broadcast %cst_288 : f32 to vector<2x32xf32>
    %960 = arith.addf %958, %959 : vector<2x32xf32>
    %cst_289 = arith.constant 5.000000e-01 : f32
    %961 = vector.broadcast %cst_289 : f32 to vector<2x32xf32>
    %962 = arith.mulf %961, %960 : vector<2x32xf32>
    %963 = vector.extract_strided_slice %954 {offsets = [0, 32], sizes = [2, 32], strides = [1, 1]} : vector<2x128xf32> to vector<2x32xf32>
    %cst_290 = arith.constant 5.000000e-01 : f32
    %964 = vector.broadcast %cst_290 : f32 to vector<2x32xf32>
    %965 = arith.mulf %964, %963 : vector<2x32xf32>
    %966 = math.tanh %965 : vector<2x32xf32>
    %cst_291 = arith.constant 1.000000e+00 : f32
    %967 = vector.broadcast %cst_291 : f32 to vector<2x32xf32>
    %968 = arith.addf %966, %967 : vector<2x32xf32>
    %cst_292 = arith.constant 5.000000e-01 : f32
    %969 = vector.broadcast %cst_292 : f32 to vector<2x32xf32>
    %970 = arith.mulf %969, %968 : vector<2x32xf32>
    %971 = vector.extract_strided_slice %954 {offsets = [0, 64], sizes = [2, 32], strides = [1, 1]} : vector<2x128xf32> to vector<2x32xf32>
    %972 = math.tanh %971 : vector<2x32xf32>
    %973 = vector.extract_strided_slice %954 {offsets = [0, 96], sizes = [2, 32], strides = [1, 1]} : vector<2x128xf32> to vector<2x32xf32>
    %cst_293 = arith.constant 5.000000e-01 : f32
    %974 = vector.broadcast %cst_293 : f32 to vector<2x32xf32>
    %975 = arith.mulf %974, %973 : vector<2x32xf32>
    %976 = math.tanh %975 : vector<2x32xf32>
    %cst_294 = arith.constant 1.000000e+00 : f32
    %977 = vector.broadcast %cst_294 : f32 to vector<2x32xf32>
    %978 = arith.addf %976, %977 : vector<2x32xf32>
    %cst_295 = arith.constant 5.000000e-01 : f32
    %979 = vector.broadcast %cst_295 : f32 to vector<2x32xf32>
    %980 = arith.mulf %979, %978 : vector<2x32xf32>
    %981 = arith.mulf %970, %945 : vector<2x32xf32>
    %982 = arith.mulf %962, %972 : vector<2x32xf32>
    %983 = arith.addf %981, %982 : vector<2x32xf32>
    %984 = math.tanh %983 : vector<2x32xf32>
    %985 = arith.mulf %980, %984 : vector<2x32xf32>
    %986 = vector.shape_cast %985 : vector<2x32xf32> to vector<2x1x32xf32>
    %987 = tpu.concatenate %720, %758, %796, %834, %872, %910, %948, %986 in 1 : vector<2x1x32xf32>, vector<2x1x32xf32>, vector<2x1x32xf32>, vector<2x1x32xf32>, vector<2x1x32xf32>, vector<2x1x32xf32>, vector<2x1x32xf32>, vector<2x1x32xf32> -> vector<2x8x32xf32>
    %988 = tpu.concatenate %0, %27, %987 in 0 : vector<2x8x32xf32>, vector<2x8x32xf32>, vector<2x8x32xf32> -> vector<6x8x32xf32>
    %989 = tpu.concatenate %1, %1, %1 in 0 : vector<2x16x32xf32>, vector<2x16x32xf32>, vector<2x16x32xf32> -> vector<6x16x32xf32>
    %990 = vector.shape_cast %988 : vector<6x8x32xf32> to vector<48x32xf32>
    %c0_296 = arith.constant 0 : index
    %c0_297 = arith.constant 0 : index
    %991 = vector.load %arg9[%c0_296, %c0_297] : memref<32x32xf32, #tpu.memory_space<vmem>>, vector<32x32xf32>
    %cst_298 = arith.constant dense<0.000000e+00> : vector<48x32xf32>
    %992 = tpu.matmul %990, %991, %cst_298 {dimension_numbers = #tpu.dot_dimension_numbers<[1], [0], [0], [1], [0, 0, 1, 1], [], []>} : vector<48x32xf32>, vector<32x32xf32>, vector<48x32xf32> -> vector<48x32xf32>
    %993 = vector.shape_cast %992 : vector<48x32xf32> to vector<6x8x32xf32>
    %c0_299 = arith.constant 0 : index
    %c0_300 = arith.constant 0 : index
    %994 = vector.load %arg10[%c0_299, %c0_300] : memref<32x8xf32, #tpu.memory_space<vmem>>, vector<32x8xf32>
    %cst_301 = arith.constant dense<0.000000e+00> : vector<48x8xf32>
    %995 = tpu.matmul %990, %994, %cst_301 {dimension_numbers = #tpu.dot_dimension_numbers<[1], [0], [0], [1], [0, 0, 1, 1], [], []>} : vector<48x32xf32>, vector<32x8xf32>, vector<48x8xf32> -> vector<48x8xf32>
    %996 = vector.shape_cast %995 : vector<48x8xf32> to vector<6x8x8xf32>
    %997 = vector.shape_cast %1 : vector<2x16x32xf32> to vector<32x32xf32>
    %c0_302 = arith.constant 0 : index
    %c0_303 = arith.constant 0 : index
    %998 = vector.load %arg11[%c0_302, %c0_303] : memref<32x8xf32, #tpu.memory_space<vmem>>, vector<32x8xf32>
    %cst_304 = arith.constant dense<0.000000e+00> : vector<32x8xf32>
    %999 = tpu.matmul %997, %998, %cst_304 {dimension_numbers = #tpu.dot_dimension_numbers<[1], [0], [0], [1], [0, 0, 1, 1], [], []>} : vector<32x32xf32>, vector<32x8xf32>, vector<32x8xf32> -> vector<32x8xf32>
    %1000 = vector.shape_cast %999 : vector<32x8xf32> to vector<2x16x8xf32>
    %1001 = tpu.concatenate %1000, %1000, %1000 in 0 : vector<2x16x8xf32>, vector<2x16x8xf32>, vector<2x16x8xf32> -> vector<6x16x8xf32>
    "tpu.trace_start"() <{level = 10 : i32, message = "gtd,gnd->gtn"}> : () -> ()
    %cst_305 = arith.constant dense<0.000000e+00> : vector<6x8x16xf32>
    %1002 = tpu.matmul %993, %989, %cst_305 {dimension_numbers = #tpu.dot_dimension_numbers<[2], [2], [1], [1], [0, 0, 0, 1, 1, 1], [0], [0]>} : vector<6x8x32xf32>, vector<6x16x32xf32>, vector<6x8x16xf32> -> vector<6x8x16xf32>
    "tpu.trace_stop"() : () -> ()
    %1003 = math.tanh %1002 : vector<6x8x16xf32>
    "tpu.trace_start"() <{level = 10 : i32, message = "gnd,gtd->gnt"}> : () -> ()
    %cst_306 = arith.constant dense<0.000000e+00> : vector<6x16x8xf32>
    %1004 = tpu.matmul %989, %993, %cst_306 {dimension_numbers = #tpu.dot_dimension_numbers<[2], [2], [1], [1], [0, 0, 0, 1, 1, 1], [0], [0]>} : vector<6x16x32xf32>, vector<6x8x32xf32>, vector<6x16x8xf32> -> vector<6x16x8xf32>
    "tpu.trace_stop"() : () -> ()
    %1005 = math.tanh %1004 : vector<6x16x8xf32>
    "tpu.trace_start"() <{level = 10 : i32, message = "gnt,gtk->gnk"}> : () -> ()
    %cst_307 = arith.constant dense<0.000000e+00> : vector<6x16x8xf32>
    %1006 = tpu.matmul %1005, %996, %cst_307 {dimension_numbers = #tpu.dot_dimension_numbers<[2], [1], [1], [2], [0, 0, 0, 1, 1, 2], [0], [0]>} : vector<6x16x8xf32>, vector<6x8x8xf32>, vector<6x16x8xf32> -> vector<6x16x8xf32>
    "tpu.trace_stop"() : () -> ()
    %1007 = arith.addf %1001, %1006 : vector<6x16x8xf32>
    %1008 = math.tanh %1007 : vector<6x16x8xf32>
    "tpu.trace_start"() <{level = 10 : i32, message = "gtn,gnk->gtk"}> : () -> ()
    %cst_308 = arith.constant dense<0.000000e+00> : vector<6x8x8xf32>
    %1009 = tpu.matmul %1003, %1001, %cst_308 {dimension_numbers = #tpu.dot_dimension_numbers<[2], [1], [1], [2], [0, 0, 0, 1, 1, 2], [0], [0]>} : vector<6x8x16xf32>, vector<6x16x8xf32>, vector<6x8x8xf32> -> vector<6x8x8xf32>
    "tpu.trace_stop"() : () -> ()
    %1010 = arith.addf %996, %1009 : vector<6x8x8xf32>
    %1011 = math.tanh %1010 : vector<6x8x8xf32>
    %c0_309 = arith.constant 0 : index
    %c0_310 = arith.constant 0 : index
    %1012 = vector.load %arg12[%c0_309, %c0_310] : memref<1x8xf32, #tpu.memory_space<vmem>>, vector<1x8xf32>
    %1013 = vector.shape_cast %1012 : vector<1x8xf32> to vector<1x1x8xf32>
    %1014 = vector.broadcast %1013 : vector<1x1x8xf32> to vector<6x16x8xf32>
    %1015 = arith.mulf %1008, %1014 : vector<6x16x8xf32>
    %cst_311 = arith.constant dense<0.000000e+00> : vector<6x16xf32>
    %1016 = vector.multi_reduction <add>, %1015, %cst_311 [2] : vector<6x16x8xf32> to vector<6x16xf32>
    %c0_312 = arith.constant 0 : index
    %c0_313 = arith.constant 0 : index
    %1017 = vector.load %arg13[%c0_312, %c0_313] : memref<1x8xf32, #tpu.memory_space<vmem>>, vector<1x8xf32>
    %1018 = vector.shape_cast %1017 : vector<1x8xf32> to vector<1x1x8xf32>
    %1019 = vector.broadcast %1018 : vector<1x1x8xf32> to vector<6x8x8xf32>
    %1020 = arith.mulf %1011, %1019 : vector<6x8x8xf32>
    %cst_314 = arith.constant dense<0.000000e+00> : vector<6x8xf32>
    %1021 = vector.multi_reduction <add>, %1020, %cst_314 [2] : vector<6x8x8xf32> to vector<6x8xf32>
    %cst_315 = arith.constant dense<0xFF800000> : vector<6xf32>
    %1022 = vector.multi_reduction <maximumf>, %1016, %cst_315 [1] : vector<6x16xf32> to vector<6xf32>
    %1023 = vector.shape_cast %1022 : vector<6xf32> to vector<6x1xf32>
    %1024 = vector.broadcast %1023 : vector<6x1xf32> to vector<6x16xf32>
    %1025 = arith.subf %1016, %1024 : vector<6x16xf32>
    %1026 = math.exp %1025 : vector<6x16xf32>
    %cst_316 = arith.constant dense<0.000000e+00> : vector<6xf32>
    %1027 = vector.multi_reduction <add>, %1026, %cst_316 [1] : vector<6x16xf32> to vector<6xf32>
    %1028 = vector.shape_cast %1027 : vector<6xf32> to vector<6x1xf32>
    %1029 = tpu.reciprocal %1028 {approx = true} : vector<6x1xf32> -> vector<6x1xf32>
    %1030 = vector.broadcast %1029 : vector<6x1xf32> to vector<6x16xf32>
    %1031 = arith.mulf %1026, %1030 : vector<6x16xf32>
    %cst_317 = arith.constant dense<0xFF800000> : vector<6xf32>
    %1032 = vector.multi_reduction <maximumf>, %1021, %cst_317 [1] : vector<6x8xf32> to vector<6xf32>
    %1033 = vector.shape_cast %1032 : vector<6xf32> to vector<6x1xf32>
    %1034 = vector.broadcast %1033 : vector<6x1xf32> to vector<6x8xf32>
    %1035 = arith.subf %1021, %1034 : vector<6x8xf32>
    %1036 = math.exp %1035 : vector<6x8xf32>
    %cst_318 = arith.constant dense<0.000000e+00> : vector<6xf32>
    %1037 = vector.multi_reduction <add>, %1036, %cst_318 [1] : vector<6x8xf32> to vector<6xf32>
    %1038 = vector.shape_cast %1037 : vector<6xf32> to vector<6x1xf32>
    %1039 = tpu.reciprocal %1038 {approx = true} : vector<6x1xf32> -> vector<6x1xf32>
    %1040 = vector.broadcast %1039 : vector<6x1xf32> to vector<6x8xf32>
    %1041 = arith.mulf %1036, %1040 : vector<6x8xf32>
    %1042 = vector.shape_cast %1031 : vector<6x16xf32> to vector<6x16x1xf32>
    %1043 = vector.broadcast %1042 : vector<6x16x1xf32> to vector<6x16x32xf32>
    %1044 = arith.mulf %1043, %989 : vector<6x16x32xf32>
    %cst_319 = arith.constant dense<0.000000e+00> : vector<6x32xf32>
    %1045 = vector.multi_reduction <add>, %1044, %cst_319 [1] : vector<6x16x32xf32> to vector<6x32xf32>
    %1046 = vector.shape_cast %1041 : vector<6x8xf32> to vector<6x8x1xf32>
    %1047 = vector.broadcast %1046 : vector<6x8x1xf32> to vector<6x8x32xf32>
    %1048 = arith.mulf %1047, %988 : vector<6x8x32xf32>
    %cst_320 = arith.constant dense<0.000000e+00> : vector<6x32xf32>
    %1049 = vector.multi_reduction <add>, %1048, %cst_320 [1] : vector<6x8x32xf32> to vector<6x32xf32>
    %1050 = arith.addf %1045, %1049 : vector<6x32xf32>
    %1051 = vector.extract_strided_slice %1050 {offsets = [0, 0], sizes = [2, 32], strides = [1, 1]} : vector<6x32xf32> to vector<2x32xf32>
    %1052 = vector.extract_strided_slice %1050 {offsets = [2, 0], sizes = [2, 32], strides = [1, 1]} : vector<6x32xf32> to vector<2x32xf32>
    %1053 = vector.extract_strided_slice %1050 {offsets = [4, 0], sizes = [2, 32], strides = [1, 1]} : vector<6x32xf32> to vector<2x32xf32>
    %c0_321 = arith.constant 0 : index
    %c0_322 = arith.constant 0 : index
    %1054 = vector.load %arg14[%c0_321, %c0_322] : memref<32x32xf32, #tpu.memory_space<vmem>>, vector<32x32xf32>
    %cst_323 = arith.constant dense<0.000000e+00> : vector<2x32xf32>
    %1055 = tpu.matmul %1051, %1054, %cst_323 {dimension_numbers = #tpu.dot_dimension_numbers<[1], [0], [0], [1], [0, 0, 1, 1], [], []>} : vector<2x32xf32>, vector<32x32xf32>, vector<2x32xf32> -> vector<2x32xf32>
    %c0_324 = arith.constant 0 : index
    %c0_325 = arith.constant 0 : index
    %1056 = vector.load %arg15[%c0_324, %c0_325] : memref<1x32xf32, #tpu.memory_space<vmem>>, vector<1x32xf32>
    %1057 = vector.broadcast %1056 : vector<1x32xf32> to vector<2x32xf32>
    %1058 = arith.addf %1055, %1057 : vector<2x32xf32>
    %1059 = math.tanh %1058 : vector<2x32xf32>
    %c0_326 = arith.constant 0 : index
    %c0_327 = arith.constant 0 : index
    %1060 = vector.load %arg16[%c0_326, %c0_327] : memref<32x32xf32, #tpu.memory_space<vmem>>, vector<32x32xf32>
    %cst_328 = arith.constant dense<0.000000e+00> : vector<2x32xf32>
    %1061 = tpu.matmul %1052, %1060, %cst_328 {dimension_numbers = #tpu.dot_dimension_numbers<[1], [0], [0], [1], [0, 0, 1, 1], [], []>} : vector<2x32xf32>, vector<32x32xf32>, vector<2x32xf32> -> vector<2x32xf32>
    %c0_329 = arith.constant 0 : index
    %c0_330 = arith.constant 0 : index
    %1062 = vector.load %arg17[%c0_329, %c0_330] : memref<32x32xf32, #tpu.memory_space<vmem>>, vector<32x32xf32>
    %cst_331 = arith.constant dense<0.000000e+00> : vector<2x32xf32>
    %1063 = tpu.matmul %1059, %1062, %cst_331 {dimension_numbers = #tpu.dot_dimension_numbers<[1], [0], [0], [1], [0, 0, 1, 1], [], []>} : vector<2x32xf32>, vector<32x32xf32>, vector<2x32xf32> -> vector<2x32xf32>
    %1064 = arith.addf %1061, %1063 : vector<2x32xf32>
    %c0_332 = arith.constant 0 : index
    %c0_333 = arith.constant 0 : index
    %1065 = vector.load %arg18[%c0_332, %c0_333] : memref<1x32xf32, #tpu.memory_space<vmem>>, vector<1x32xf32>
    %1066 = vector.broadcast %1065 : vector<1x32xf32> to vector<2x32xf32>
    %1067 = arith.addf %1064, %1066 : vector<2x32xf32>
    %1068 = math.tanh %1067 : vector<2x32xf32>
    %c0_334 = arith.constant 0 : index
    %c0_335 = arith.constant 0 : index
    %1069 = vector.load %arg19[%c0_334, %c0_335] : memref<32x32xf32, #tpu.memory_space<vmem>>, vector<32x32xf32>
    %cst_336 = arith.constant dense<0.000000e+00> : vector<2x32xf32>
    %1070 = tpu.matmul %1053, %1069, %cst_336 {dimension_numbers = #tpu.dot_dimension_numbers<[1], [0], [0], [1], [0, 0, 1, 1], [], []>} : vector<2x32xf32>, vector<32x32xf32>, vector<2x32xf32> -> vector<2x32xf32>
    %c0_337 = arith.constant 0 : index
    %c0_338 = arith.constant 0 : index
    %1071 = vector.load %arg20[%c0_337, %c0_338] : memref<32x32xf32, #tpu.memory_space<vmem>>, vector<32x32xf32>
    %cst_339 = arith.constant dense<0.000000e+00> : vector<2x32xf32>
    %1072 = tpu.matmul %1068, %1071, %cst_339 {dimension_numbers = #tpu.dot_dimension_numbers<[1], [0], [0], [1], [0, 0, 1, 1], [], []>} : vector<2x32xf32>, vector<32x32xf32>, vector<2x32xf32> -> vector<2x32xf32>
    %1073 = arith.addf %1070, %1072 : vector<2x32xf32>
    %c0_340 = arith.constant 0 : index
    %c0_341 = arith.constant 0 : index
    %1074 = vector.load %arg21[%c0_340, %c0_341] : memref<1x32xf32, #tpu.memory_space<vmem>>, vector<1x32xf32>
    %1075 = vector.broadcast %1074 : vector<1x32xf32> to vector<2x32xf32>
    %1076 = arith.addf %1073, %1075 : vector<2x32xf32>
    %1077 = math.tanh %1076 : vector<2x32xf32>
    %c0_342 = arith.constant 0 : index
    %c0_343 = arith.constant 0 : index
    %1078 = vector.load %arg22[%c0_342, %c0_343] : memref<32x16xf32, #tpu.memory_space<vmem>>, vector<32x16xf32>
    %cst_344 = arith.constant dense<0.000000e+00> : vector<2x16xf32>
    %1079 = tpu.matmul %1077, %1078, %cst_344 {dimension_numbers = #tpu.dot_dimension_numbers<[1], [0], [0], [1], [0, 0, 1, 1], [], []>} : vector<2x32xf32>, vector<32x16xf32>, vector<2x16xf32> -> vector<2x16xf32>
    %c0_345 = arith.constant 0 : index
    %c0_346 = arith.constant 0 : index
    %1080 = vector.load %arg23[%c0_345, %c0_346] : memref<1x16xf32, #tpu.memory_space<vmem>>, vector<1x16xf32>
    %1081 = vector.broadcast %1080 : vector<1x16xf32> to vector<2x16xf32>
    %1082 = arith.addf %1079, %1081 : vector<2x16xf32>
    %c0_347 = arith.constant 0 : index
    %c0_348 = arith.constant 0 : index
    %1083 = vector.load %arg24[%c0_347, %c0_348] : memref<2x16xf32, #tpu.memory_space<vmem>>, vector<2x16xf32>
    tpu.vector_store %arg24[%c0_347, %c0_348], %1082 {strides = array<i32>} : memref<2x16xf32, #tpu.memory_space<vmem>>, vector<2x16xf32>,
    return
  }
  func.func @transform_0(%arg0: i32) -> (i32, i32, i32) {
    %c0_i32 = arith.constant 0 : i32
    %c0_i32_0 = arith.constant 0 : i32
    %c0_i32_1 = arith.constant 0 : i32
    %c0_i32_2 = arith.constant 0 : i32
    return %c0_i32, %c0_i32_0, %c0_i32_1 : i32, i32, i32
  }
  func.func @transform_1(%arg0: i32) -> (i32, i32, i32) {
    %c0_i32 = arith.constant 0 : i32
    %c0_i32_0 = arith.constant 0 : i32
    %c0_i32_1 = arith.constant 0 : i32
    %c0_i32_2 = arith.constant 0 : i32
    return %c0_i32, %c0_i32_0, %c0_i32_1 : i32, i32, i32
  }
  func.func @transform_2(%arg0: i32) -> (i32, i32) {
    %c0_i32 = arith.constant 0 : i32
    %c0_i32_0 = arith.constant 0 : i32
    %c0_i32_1 = arith.constant 0 : i32
    return %c0_i32, %c0_i32_0 : i32, i32
  }
  func.func @transform_3(%arg0: i32) -> (i32, i32) {
    %c0_i32 = arith.constant 0 : i32
    %c0_i32_0 = arith.constant 0 : i32
    %c0_i32_1 = arith.constant 0 : i32
    return %c0_i32, %c0_i32_0 : i32, i32
  }
  func.func @transform_4(%arg0: i32) -> (i32, i32, i32) {
    %c0_i32 = arith.constant 0 : i32
    %c0_i32_0 = arith.constant 0 : i32
    %c0_i32_1 = arith.constant 0 : i32
    %c0_i32_2 = arith.constant 0 : i32
    return %c0_i32, %c0_i32_0, %c0_i32_1 : i32, i32, i32
  }
  func.func @transform_5(%arg0: i32) -> (i32, i32, i32) {
    %c0_i32 = arith.constant 0 : i32
    %c0_i32_0 = arith.constant 0 : i32
    %c0_i32_1 = arith.constant 0 : i32
    %c0_i32_2 = arith.constant 0 : i32
    return %c0_i32, %c0_i32_0, %c0_i32_1 : i32, i32, i32
  }
  func.func @transform_6(%arg0: i32) -> (i32, i32, i32) {
    %c0_i32 = arith.constant 0 : i32
    %c0_i32_0 = arith.constant 0 : i32
    %c0_i32_1 = arith.constant 0 : i32
    %c0_i32_2 = arith.constant 0 : i32
    return %c0_i32, %c0_i32_0, %c0_i32_1 : i32, i32, i32
  }
  func.func @transform_7(%arg0: i32) -> (i32, i32, i32) {
    %c0_i32 = arith.constant 0 : i32
    %c0_i32_0 = arith.constant 0 : i32
    %c0_i32_1 = arith.constant 0 : i32
    %c0_i32_2 = arith.constant 0 : i32
    return %c0_i32, %c0_i32_0, %c0_i32_1 : i32, i32, i32
  }
  func.func @transform_8(%arg0: i32) -> (i32, i32) {
    %c0_i32 = arith.constant 0 : i32
    %c0_i32_0 = arith.constant 0 : i32
    %c0_i32_1 = arith.constant 0 : i32
    return %c0_i32, %c0_i32_0 : i32, i32
  }
  func.func @transform_9(%arg0: i32) -> (i32, i32) {
    %c0_i32 = arith.constant 0 : i32
    %c0_i32_0 = arith.constant 0 : i32
    %c0_i32_1 = arith.constant 0 : i32
    return %c0_i32, %c0_i32_0 : i32, i32
  }
  func.func @transform_10(%arg0: i32) -> (i32, i32) {
    %c0_i32 = arith.constant 0 : i32
    %c0_i32_0 = arith.constant 0 : i32
    %c0_i32_1 = arith.constant 0 : i32
    return %c0_i32, %c0_i32_0 : i32, i32
  }
  func.func @transform_11(%arg0: i32) -> (i32, i32) {
    %c0_i32 = arith.constant 0 : i32
    %c0_i32_0 = arith.constant 0 : i32
    %c0_i32_1 = arith.constant 0 : i32
    return %c0_i32, %c0_i32_0 : i32, i32
  }
  func.func @transform_12(%arg0: i32) -> (i32, i32) {
    %c0_i32 = arith.constant 0 : i32
    %c0_i32_0 = arith.constant 0 : i32
    %c0_i32_1 = arith.constant 0 : i32
    return %c0_i32, %c0_i32_0 : i32, i32
  }
  func.func @transform_13(%arg0: i32) -> (i32, i32) {
    %c0_i32 = arith.constant 0 : i32
    %c0_i32_0 = arith.constant 0 : i32
    %c0_i32_1 = arith.constant 0 : i32
    return %c0_i32, %c0_i32_0 : i32, i32
  }
  func.func @transform_14(%arg0: i32) -> (i32, i32) {
    %c0_i32 = arith.constant 0 : i32
    %c0_i32_0 = arith.constant 0 : i32
    %c0_i32_1 = arith.constant 0 : i32
    return %c0_i32, %c0_i32_0 : i32, i32
  }
  func.func @transform_15(%arg0: i32) -> (i32, i32) {
    %c0_i32 = arith.constant 0 : i32
    %c0_i32_0 = arith.constant 0 : i32
    %c0_i32_1 = arith.constant 0 : i32
    return %c0_i32, %c0_i32_0 : i32, i32
  }
  func.func @transform_16(%arg0: i32) -> (i32, i32) {
    %c0_i32 = arith.constant 0 : i32
    %c0_i32_0 = arith.constant 0 : i32
    %c0_i32_1 = arith.constant 0 : i32
    return %c0_i32, %c0_i32_0 : i32, i32
  }
  func.func @transform_17(%arg0: i32) -> (i32, i32) {
    %c0_i32 = arith.constant 0 : i32
    %c0_i32_0 = arith.constant 0 : i32
    %c0_i32_1 = arith.constant 0 : i32
    return %c0_i32, %c0_i32_0 : i32, i32
  }
  func.func @transform_18(%arg0: i32) -> (i32, i32) {
    %c0_i32 = arith.constant 0 : i32
    %c0_i32_0 = arith.constant 0 : i32
    %c0_i32_1 = arith.constant 0 : i32
    return %c0_i32, %c0_i32_0 : i32, i32
  }
  func.func @transform_19(%arg0: i32) -> (i32, i32) {
    %c0_i32 = arith.constant 0 : i32
    %c0_i32_0 = arith.constant 0 : i32
    %c0_i32_1 = arith.constant 0 : i32
    return %c0_i32, %c0_i32_0 : i32, i32
  }
  func.func @transform_20(%arg0: i32) -> (i32, i32) {
    %c0_i32 = arith.constant 0 : i32
    %c0_i32_0 = arith.constant 0 : i32
    %c0_i32_1 = arith.constant 0 : i32
    return %c0_i32, %c0_i32_0 : i32, i32
  }
  func.func @transform_21(%arg0: i32) -> (i32, i32) {
    %c0_i32 = arith.constant 0 : i32
    %c0_i32_0 = arith.constant 0 : i32
    %c0_i32_1 = arith.constant 0 : i32
    return %c0_i32, %c0_i32_0 : i32, i32
  }
  func.func @transform_22(%arg0: i32) -> (i32, i32) {
    %c0_i32 = arith.constant 0 : i32
    %c0_i32_0 = arith.constant 0 : i32
    %c0_i32_1 = arith.constant 0 : i32
    return %c0_i32, %c0_i32_0 : i32, i32
  }
  func.func @transform_23(%arg0: i32) -> (i32, i32) {
    %c0_i32 = arith.constant 0 : i32
    %c0_i32_0 = arith.constant 0 : i32
    %c0_i32_1 = arith.constant 0 : i32
    return %c0_i32, %c0_i32_0 : i32, i32
  }
}

</mosaic_0001>

<llo_original>
// kernel: coattention_forward.1
$region0: #{coattention_forward.1}
  #allocation0 [shape = 'u32[]', space=smem, size = 0x4, offset = 0x4, fixed_abs, tag = 'smem constant byte address 0x4 - core index']
  #allocation1 [shape = 'u32[144,128]{1,0:T(1,128)}', space=vmem, size = 0x12000, scoped, tag = 'internal scratch']
  %s0 = inlined_call_operand.vmem [shape: f32[2,8,32], index: 0, kind: input, shape index: {}]
  %s1 = inlined_call_operand.vmem [shape: f32[2,16,32], index: 1, kind: input, shape index: {}]
  %s2 = inlined_call_operand.vmem [shape: f32[160,96], index: 2, kind: input, shape index: {}]
  %s3 = inlined_call_operand.vmem [shape: f32[1,96], index: 3, kind: input, shape index: {}]
  %s4 = inlined_call_operand.vmem [shape: f32[3,32,128], index: 4, kind: input, shape index: {}]
  %s5 = inlined_call_operand.vmem [shape: f32[3,32,128], index: 5, kind: input, shape index: {}]
  %s6 = inlined_call_operand.vmem [shape: f32[3,1,128], index: 6, kind: input, shape index: {}]
  %s7 = inlined_call_operand.vmem [shape: f32[3,1,128], index: 7, kind: input, shape index: {}]
  %s8 = inlined_call_operand.vmem [shape: f32[32,32], index: 8, kind: input, shape index: {}]
  %s9 = inlined_call_operand.vmem [shape: f32[32,8], index: 9, kind: input, shape index: {}]
  %s10 = inlined_call_operand.vmem [shape: f32[32,8], index: 10, kind: input, shape index: {}]
  %s11 = inlined_call_operand.vmem [shape: f32[1,8], index: 11, kind: input, shape index: {}]
  %s12 = inlined_call_operand.vmem [shape: f32[1,8], index: 12, kind: input, shape index: {}]
  %s13 = inlined_call_operand.vmem [shape: f32[32,32], index: 13, kind: input, shape index: {}]
  %s14 = inlined_call_operand.vmem [shape: f32[1,32], index: 14, kind: input, shape index: {}]
  %s15 = inlined_call_operand.vmem [shape: f32[32,32], index: 15, kind: input, shape index: {}]
  %s16 = inlined_call_operand.vmem [shape: f32[32,32], index: 16, kind: input, shape index: {}]
  %s17 = inlined_call_operand.vmem [shape: f32[1,32], index: 17, kind: input, shape index: {}]
  %s18 = inlined_call_operand.vmem [shape: f32[32,32], index: 18, kind: input, shape index: {}]
  %s19 = inlined_call_operand.vmem [shape: f32[32,32], index: 19, kind: input, shape index: {}]
  %s20 = inlined_call_operand.vmem [shape: f32[1,32], index: 20, kind: input, shape index: {}]
  %s21 = inlined_call_operand.vmem [shape: f32[32,16], index: 21, kind: input, shape index: {}]
  %s22 = inlined_call_operand.vmem [shape: f32[1,16], index: 22, kind: input, shape index: {}]
  %s23 = inlined_call_operand.hbm [shape: f32[2,16], index: 23, kind: output, shape index: {}]
  %s24 = sld [smem:[#allocation0]]
  $region102: #{coattention_forward.1} parent=0
    _
  %s26 = ssub.s32 1, %s24
  %s27 = scalar_select 0, %s26, %s24
  $region1: #{coattention_forward.1} parent=0
    #allocation2 [shape = 'u8[1024]{0}', space=vmem, size = 0x400, scoped, tag = 'output window, operand 0, single buffered']
    #allocation3 [shape = 's32[1]{0}', space=sflag, size = 0x4, scoped, tag = 'scoped memory for coattention_forward.1']
    %28 = vsyncpa [#allocation3], 0
    // Predicated region
    $region2: #{coattention_forward.1} parent=1 // pred_check
      _
    $region3: #{coattention_forward.1} parent=1 // pred_check_branch
      %30 = sbr.rel (0) target = $region5
    $region4: #{coattention_forward.1} parent=1 // pred_region
      _
    $region5: #{coattention_forward.1} parent=1 // pred_fallthru
      _
    // Predicated region
    $region6: #{coattention_forward.1} parent=1 // pred_check
      _
    $region7: #{coattention_forward.1} parent=1 // pred_check_branch
      %32 = sbr.rel (0) target = $region9
    $region8: #{coattention_forward.1} parent=1 // pred_region
      _
    $region9: #{coattention_forward.1} parent=1 // pred_fallthru
      _
    // Predicated region
    $region10: #{coattention_forward.1} parent=1 // pred_check
      _
    $region11: #{coattention_forward.1} parent=1 // pred_check_branch
      %34 = sbr.rel (0) target = $region13
    $region12: #{coattention_forward.1} parent=1 // pred_region
      _
    $region13: #{coattention_forward.1} parent=1 // pred_fallthru
      _
    // Predicated region
    $region14: #{coattention_forward.1} parent=1 // pred_check
      _
    $region15: #{coattention_forward.1} parent=1 // pred_check_branch
      %36 = sbr.rel (0) target = $region17
    $region16: #{coattention_forward.1} parent=1 // pred_region
      _
    $region17: #{coattention_forward.1} parent=1 // pred_fallthru
      _
    // Predicated region
    $region18: #{coattention_forward.1} parent=1 // pred_check
      _
    $region19: #{coattention_forward.1} parent=1 // pred_check_branch
      %38 = sbr.rel (0) target = $region21
    $region20: #{coattention_forward.1} parent=1 // pred_region
      _
    $region21: #{coattention_forward.1} parent=1 // pred_fallthru
      _
    // Predicated region
    $region22: #{coattention_forward.1} parent=1 // pred_check
      _
    $region23: #{coattention_forward.1} parent=1 // pred_check_branch
      %40 = sbr.rel (0) target = $region25
    $region24: #{coattention_forward.1} parent=1 // pred_region
      _
    $region25: #{coattention_forward.1} parent=1 // pred_fallthru
      _
    // Predicated region
    $region26: #{coattention_forward.1} parent=1 // pred_check
      _
    $region27: #{coattention_forward.1} parent=1 // pred_check_branch
      %42 = sbr.rel (0) target = $region29
    $region28: #{coattention_forward.1} parent=1 // pred_region
      _
    $region29: #{coattention_forward.1} parent=1 // pred_fallthru
      _
    // Predicated region
    $region30: #{coattention_forward.1} parent=1 // pred_check
      _
    $region31: #{coattention_forward.1} parent=1 // pred_check_branch
      %44 = sbr.rel (0) target = $region33
    $region32: #{coattention_forward.1} parent=1 // pred_region
      _
    $region33: #{coattention_forward.1} parent=1 // pred_fallthru
      _
    // Predicated region
    $region34: #{coattention_forward.1} parent=1 // pred_check
      _
    $region35: #{coattention_forward.1} parent=1 // pred_check_branch
      %46 = sbr.rel (0) target = $region37
    $region36: #{coattention_forward.1} parent=1 // pred_region
      _
    $region37: #{coattention_forward.1} parent=1 // pred_fallthru
      _
    // Predicated region
    $region38: #{coattention_forward.1} parent=1 // pred_check
      _
    $region39: #{coattention_forward.1} parent=1 // pred_check_branch
      %48 = sbr.rel (0) target = $region41
    $region40: #{coattention_forward.1} parent=1 // pred_region
      _
    $region41: #{coattention_forward.1} parent=1 // pred_fallthru
      _
    // Predicated region
    $region42: #{coattention_forward.1} parent=1 // pred_check
      _
    $region43: #{coattention_forward.1} parent=1 // pred_check_branch
      %50 = sbr.rel (0) target = $region45
    $region44: #{coattention_forward.1} parent=1 // pred_region
      _
    $region45: #{coattention_forward.1} parent=1 // pred_fallthru
      _
    // Predicated region
    $region46: #{coattention_forward.1} parent=1 // pred_check
      _
    $region47: #{coattention_forward.1} parent=1 // pred_check_branch
      %52 = sbr.rel (0) target = $region49
    $region48: #{coattention_forward.1} parent=1 // pred_region
      _
    $region49: #{coattention_forward.1} parent=1 // pred_fallthru
      _
    // Predicated region
    $region50: #{coattention_forward.1} parent=1 // pred_check
      _
    $region51: #{coattention_forward.1} parent=1 // pred_check_branch
      %54 = sbr.rel (0) target = $region53
    $region52: #{coattention_forward.1} parent=1 // pred_region
      _
    $region53: #{coattention_forward.1} parent=1 // pred_fallthru
      _
    // Predicated region
    $region54: #{coattention_forward.1} parent=1 // pred_check
      _
    $region55: #{coattention_forward.1} parent=1 // pred_check_branch
      %56 = sbr.rel (0) target = $region57
    $region56: #{coattention_forward.1} parent=1 // pred_region
      _
    $region57: #{coattention_forward.1} parent=1 // pred_fallthru
      _
    // Predicated region
    $region58: #{coattention_forward.1} parent=1 // pred_check
      _
    $region59: #{coattention_forward.1} parent=1 // pred_check_branch
      %58 = sbr.rel (0) target = $region61
    $region60: #{coattention_forward.1} parent=1 // pred_region
      _
    $region61: #{coattention_forward.1} parent=1 // pred_fallthru
      _
    // Predicated region
    $region62: #{coattention_forward.1} parent=1 // pred_check
      _
    $region63: #{coattention_forward.1} parent=1 // pred_check_branch
      %60 = sbr.rel (0) target = $region65
    $region64: #{coattention_forward.1} parent=1 // pred_region
      _
    $region65: #{coattention_forward.1} parent=1 // pred_fallthru
      _
    // Predicated region
    $region66: #{coattention_forward.1} parent=1 // pred_check
      _
    $region67: #{coattention_forward.1} parent=1 // pred_check_branch
      %62 = sbr.rel (0) target = $region69
    $region68: #{coattention_forward.1} parent=1 // pred_region
      _
    $region69: #{coattention_forward.1} parent=1 // pred_fallthru
      _
    // Predicated region
    $region70: #{coattention_forward.1} parent=1 // pred_check
      _
    $region71: #{coattention_forward.1} parent=1 // pred_check_branch
      %64 = sbr.rel (0) target = $region73
    $region72: #{coattention_forward.1} parent=1 // pred_region
      _
    $region73: #{coattention_forward.1} parent=1 // pred_fallthru
      _
    // Predicated region
    $region74: #{coattention_forward.1} parent=1 // pred_check
      _
    $region75: #{coattention_forward.1} parent=1 // pred_check_branch
      %66 = sbr.rel (0) target = $region77
    $region76: #{coattention_forward.1} parent=1 // pred_region
      _
    $region77: #{coattention_forward.1} parent=1 // pred_fallthru
      _
    // Predicated region
    $region78: #{coattention_forward.1} parent=1 // pred_check
      _
    $region79: #{coattention_forward.1} parent=1 // pred_check_branch
      %68 = sbr.rel (0) target = $region81
    $region80: #{coattention_forward.1} parent=1 // pred_region
      _
    $region81: #{coattention_forward.1} parent=1 // pred_fallthru
      _
    // Predicated region
    $region82: #{coattention_forward.1} parent=1 // pred_check
      _
    $region83: #{coattention_forward.1} parent=1 // pred_check_branch
      %70 = sbr.rel (0) target = $region85
    $region84: #{coattention_forward.1} parent=1 // pred_region
      _
    $region85: #{coattention_forward.1} parent=1 // pred_fallthru
      _
    // Predicated region
    $region86: #{coattention_forward.1} parent=1 // pred_check
      _
    $region87: #{coattention_forward.1} parent=1 // pred_check_branch
      %72 = sbr.rel (0) target = $region89
    $region88: #{coattention_forward.1} parent=1 // pred_region
      _
    $region89: #{coattention_forward.1} parent=1 // pred_fallthru
      _
    // Predicated region
    $region90: #{coattention_forward.1} parent=1 // pred_check
      _
    $region91: #{coattention_forward.1} parent=1 // pred_check_branch
      %74 = sbr.rel (0) target = $region93
    $region92: #{coattention_forward.1} parent=1 // pred_region
      _
    $region93: #{coattention_forward.1} parent=1 // pred_fallthru
      _
    %v75 = vld [vmem:[%s0] sm:$0xff]
    %v76 = vld [vmem:[%s0 + $0x8] sm:$0xff]
    %v77 = vld [vmem:[%s1] sm:$0xff]
    %v78 = vld [vmem:[%s1 + $0x8] sm:$0xff]
    %v79 = vld [vmem:[%s1 + $0x10] sm:$0xff]
    %v80 = vld [vmem:[%s1 + $0x18] sm:$0xff]
    %v83 = vrot.slane %v75, 7
    %v84 = vrot.slane %v76, 7
    %vm87 = vcmask 1040384
    %v88 = vsel %vm87, 0.0, %v83
    %v89 = vsel %vm87, 0.0, %v84
    %v90 = vrot.slane %v75, 1
    %v91 = vrot.slane %v76, 1
    %vm94 = vcmask 1046528
    %v95 = vsel %vm94, %v90, 0.0
    %v96 = vsel %vm94, %v91, 0.0
    %v97 = vrot.slane %v75, 6
    %v98 = vrot.slane %v76, 6
    %vm101 = vcmask 1041408
    %v102 = vsel %vm101, 0.0, %v97
    %v103 = vsel %vm101, 0.0, %v98
    %v104 = vrot.slane %v75, 2
    %v105 = vrot.slane %v76, 2
    %vm108 = vcmask 1045504
    %v109 = vsel %vm108, %v104, 0.0
    %v110 = vsel %vm108, %v105, 0.0
    %113 = vrot.lane.b32.xlu0 %v88, 32
    %v114 = vpop.permute.xlu0 %113
    %115 = vrot.lane.b32.xlu0 %v89, 32
    %v116 = vpop.permute.xlu0 %115
    %121 = vrot.lane.b32.xlu0 %v95, 64
    %v122 = vpop.permute.xlu0 %121
    %123 = vrot.lane.b32.xlu0 %v96, 64
    %v124 = vpop.permute.xlu0 %123
    %129 = vrot.lane.b32.xlu0 %v102, 96
    %v130 = vpop.permute.xlu0 %129
    %131 = vrot.lane.b32.xlu0 %v103, 96
    %v132 = vpop.permute.xlu0 %131
    %vm135 = vcmask 261120
    %v136 = vsel %vm135, %v75, %v114
    %v137 = vsel %vm135, %v76, %v116
    %vm138 = vcmask 523264
    %v139 = vsel %vm138, %v136, %v122
    %v140 = vsel %vm138, %v137, %v124
    %vm141 = vcmask 785408
    %v142 = vsel %vm141, %v139, %v130
    %v143 = vsel %vm141, %v140, %v132
    %v144 = vld [vmem:[%s2] sm:$0xff]
    %v145 = vld [vmem:[%s2 + $0x8] sm:$0xff]
    %v146 = vld [vmem:[%s2 + $0x10] sm:$0xff]
    %v147 = vld [vmem:[%s2 + $0x18] sm:$0xff]
    %v148 = vld [vmem:[%s2 + $0x20] sm:$0xff]
    %v149 = vld [vmem:[%s2 + $0x28] sm:$0xff]
    %v150 = vld [vmem:[%s2 + $0x30] sm:$0xff]
    %v151 = vld [vmem:[%s2 + $0x38] sm:$0xff]
    %v152 = vld [vmem:[%s2 + $0x40] sm:$0xff]
    %v153 = vld [vmem:[%s2 + $0x48] sm:$0xff]
    %v154 = vld [vmem:[%s2 + $0x50] sm:$0xff]
    %v155 = vld [vmem:[%s2 + $0x58] sm:$0xff]
    %v156 = vld [vmem:[%s2 + $0x60] sm:$0xff]
    %v157 = vld [vmem:[%s2 + $0x68] sm:$0xff]
    %v158 = vld [vmem:[%s2 + $0x70] sm:$0xff]
    %v159 = vld [vmem:[%s2 + $0x78] sm:$0xff]
    %v160 = vld [vmem:[%s2 + $0x80] sm:$0xff]
    %v161 = vld [vmem:[%s2 + $0x88] sm:$0xff]
    %v162 = vld [vmem:[%s2 + $0x90] sm:$0xff]
    %v163 = vld [vmem:[%s2 + $0x98] sm:$0xff]
    %v164 = vld [vmem:[%s3] sm:$0x1]
    %v166 = vlaneseq
    %v167 = vshrl.u32 %v166, 7
    %v168 = vsub.s32 0, %v167
    %v169 = vrot.slane %v164, %v168
    %v172 = vsel %vm135, %v109, 0
    %v175 = vsel %vm135, %v110, 0
    %177 = vmatprep.subr.mxu0 0.0
    %178 = vmatpush1.msra.mxu0 %v159
    %179 = vmatprep.subr.mxu0 0.0
    %180 = vmatpush1.msra.mxu0 %v158
    %181 = vmatprep.subr.mxu0 0.0
    %182 = vmatpush1.msra.mxu0 %v157
    %183 = vmatprep.subr.mxu0 0.0
    %184 = vmatpush1.msra.mxu0 %v156
    %185 = vmatprep.subr.mxu0 0.0
    %186 = vmatpush1.msra.mxu0 %v155
    %187 = vmatprep.subr.mxu0 0.0
    %188 = vmatpush1.msra.mxu0 %v154
    %189 = vmatprep.subr.mxu0 0.0
    %190 = vmatpush1.msra.mxu0 %v153
    %191 = vmatprep.subr.mxu0 0.0
    %192 = vmatpush1.msra.mxu0 %v152
    %193 = vmatprep.subr.mxu0 0.0
    %194 = vmatpush1.msra.mxu0 %v151
    %195 = vmatprep.subr.mxu0 0.0
    %196 = vmatpush1.msra.mxu0 %v150
    %197 = vmatprep.subr.mxu0 0.0
    %198 = vmatpush1.msra.mxu0 %v149
    %199 = vmatprep.subr.mxu0 0.0
    %200 = vmatpush1.msra.mxu0 %v148
    %201 = vmatprep.subr.mxu0 0.0
    %202 = vmatpush1.msra.mxu0 %v147
    %203 = vmatprep.subr.mxu0 0.0
    %204 = vmatpush1.msra.mxu0 %v146
    %205 = vmatprep.subr.mxu0 0.0
    %206 = vmatpush1.msra.mxu0 %v145
    %207 = vmatprep.subr.mxu0 0.0
    %208 = vmatpush1.msra.mxu0 %v144
    %209 = vmatprep.subr.mxu0 0.0
    %210 = vmatpush2.msra.mxu0 0.0
    %211 = vmatprep.subr.mxu0 0.0
    %212 = vmatpush2.msra.mxu0 0.0
    %213 = vmatprep.subr.mxu0 0.0
    %214 = vmatpush2.msra.mxu0 0.0
    %215 = vmatprep.subr.mxu0 0.0
    %216 = vmatpush2.msra.mxu0 0.0
    %217 = vmatprep.subr.mxu0 0.0
    %218 = vmatpush2.msra.mxu0 0.0
    %219 = vmatprep.subr.mxu0 0.0
    %220 = vmatpush2.msra.mxu0 0.0
    %221 = vmatprep.subr.mxu0 0.0
    %222 = vmatpush2.msra.mxu0 0.0
    %223 = vmatprep.subr.mxu0 0.0
    %224 = vmatpush2.msra.mxu0 0.0
    %225 = vmatprep.subr.mxu0 0.0
    %226 = vmatpush2.msra.mxu0 0.0
    %227 = vmatprep.subr.mxu0 0.0
    %228 = vmatpush2.msra.mxu0 0.0
    %229 = vmatprep.subr.mxu0 0.0
    %230 = vmatpush2.msra.mxu0 0.0
    %231 = vmatprep.subr.mxu0 0.0
    %232 = vmatpush2.msra.mxu0 0.0
    %233 = vmatprep.subr.mxu0 0.0
    %234 = vmatpush2.msra.mxu0 %v163
    %235 = vmatprep.subr.mxu0 0.0
    %236 = vmatpush2.msra.mxu0 %v162
    %237 = vmatprep.subr.mxu0 0.0
    %238 = vmatpush2.msra.mxu0 %v161
    %239 = vmatprep.subr.mxu0 0.0
    %240 = vmatpush2.msra.mxu0 %v160
    %241 = vmatprep.mubr.f32.mxu0 %v172
    %242 = vmatmul.mubr.f32.gmra.mxu0 %v142
    %v243 = vpop.f32.mrf.mxu0
    %v244 = vadd.f32 %v169, %v243
    %v245 = vpop.f32.mrf.mxu0
    %246 = vmatprep.mubr.f32.mxu0 %v175
    %247 = vmatmul.mubr.f32.gmra.mxu0 %v143
    %v248 = vpop.f32.mrf.mxu0
    %v249 = vadd.f32 %v169, %v248
    %v250 = vpop.f32.mrf.mxu0
    %251 = vdwg.mxu0
    %v252 = vtanh.pop %v244
    %v253 = vtanh.pop %v249
    %256 = vrot.lane.b32.xlu0 %v252, 96
    %v257 = vpop.permute.xlu0 %256
    %258 = vrot.lane.b32.xlu0 %v253, 96
    %v259 = vpop.permute.xlu0 %258
    %v262 = vmax.f32 %v252, %v257
    %v263 = vmax.f32 %v253, %v259
    %264 = vrot.lane.b32.xlu0 %v252, 64
    %v265 = vpop.permute.xlu0 %264
    %266 = vrot.lane.b32.xlu0 %v253, 64
    %v267 = vpop.permute.xlu0 %266
    %v270 = vmax.f32 %v262, %v265
    %v271 = vmax.f32 %v263, %v267
    %v272 = vld [vmem:[%s4] sm:$0xff]
    %v273 = vld [vmem:[%s4 + $0x8] sm:$0xff]
    %v274 = vld [vmem:[%s4 + $0x10] sm:$0xff]
    %v275 = vld [vmem:[%s4 + $0x18] sm:$0xff]
    %v276 = vld [vmem:[%s5] sm:$0xff]
    %v277 = vld [vmem:[%s5 + $0x8] sm:$0xff]
    %v278 = vld [vmem:[%s5 + $0x10] sm:$0xff]
    %v279 = vld [vmem:[%s5 + $0x18] sm:$0xff]
    %v280 = vld [vmem:[%s6] sm:$0x1]
    %v281 = vld [vmem:[%s7] sm:$0x1]
    %v283 = vlaneseq
    %v284 = vshrl.u32 %v283, 7
    %v285 = vsub.s32 0, %v284
    %v286 = vrot.slane %v280, %v285
    %v289 = vsel %vm135, %v270, 0
    %v292 = vsel %vm135, %v271, 0
    %294 = vmatprep.subr.mxu0 0.0
    %295 = vmatpush1.msra.mxu0 0.0
    %296 = vmatprep.subr.mxu0 0.0
    %297 = vmatpush1.msra.mxu0 0.0
    %298 = vmatprep.subr.mxu0 0.0
    %299 = vmatpush1.msra.mxu0 0.0
    %300 = vmatprep.subr.mxu0 0.0
    %301 = vmatpush1.msra.mxu0 0.0
    %302 = vmatprep.subr.mxu0 0.0
    %303 = vmatpush1.msra.mxu0 0.0
    %304 = vmatprep.subr.mxu0 0.0
    %305 = vmatpush1.msra.mxu0 0.0
    %306 = vmatprep.subr.mxu0 0.0
    %307 = vmatpush1.msra.mxu0 0.0
    %308 = vmatprep.subr.mxu0 0.0
    %309 = vmatpush1.msra.mxu0 0.0
    %310 = vmatprep.subr.mxu0 0.0
    %311 = vmatpush1.msra.mxu0 0.0
    %312 = vmatprep.subr.mxu0 0.0
    %313 = vmatpush1.msra.mxu0 0.0
    %314 = vmatprep.subr.mxu0 0.0
    %315 = vmatpush1.msra.mxu0 0.0
    %316 = vmatprep.subr.mxu0 0.0
    %317 = vmatpush1.msra.mxu0 0.0
    %318 = vmatprep.subr.mxu0 0.0
    %319 = vmatpush1.msra.mxu0 %v275
    %320 = vmatprep.subr.mxu0 0.0
    %321 = vmatpush1.msra.mxu0 %v274
    %322 = vmatprep.subr.mxu0 0.0
    %323 = vmatpush1.msra.mxu0 %v273
    %324 = vmatprep.subr.mxu0 0.0
    %325 = vmatpush1.msra.mxu0 %v272
    %326 = vmatprep.subr.mxu0 0.0
    %327 = vmatpush2.msra.mxu0 0.0
    %328 = vmatprep.subr.mxu0 0.0
    %329 = vmatpush2.msra.mxu0 0.0
    %330 = vmatprep.subr.mxu0 0.0
    %331 = vmatpush2.msra.mxu0 0.0
    %332 = vmatprep.subr.mxu0 0.0
    %333 = vmatpush2.msra.mxu0 0.0
    %334 = vmatprep.subr.mxu0 0.0
    %335 = vmatpush2.msra.mxu0 0.0
    %336 = vmatprep.subr.mxu0 0.0
    %337 = vmatpush2.msra.mxu0 0.0
    %338 = vmatprep.subr.mxu0 0.0
    %339 = vmatpush2.msra.mxu0 0.0
    %340 = vmatprep.subr.mxu0 0.0
    %341 = vmatpush2.msra.mxu0 0.0
    %342 = vmatprep.subr.mxu0 0.0
    %343 = vmatpush2.msra.mxu0 0.0
    %344 = vmatprep.subr.mxu0 0.0
    %345 = vmatpush2.msra.mxu0 0.0
    %346 = vmatprep.subr.mxu0 0.0
    %347 = vmatpush2.msra.mxu0 0.0
    %348 = vmatprep.subr.mxu0 0.0
    %349 = vmatpush2.msra.mxu0 0.0
    %350 = vmatprep.subr.mxu0 0.0
    %351 = vmatpush2.msra.mxu0 0.0
    %352 = vmatprep.subr.mxu0 0.0
    %353 = vmatpush2.msra.mxu0 0.0
    %354 = vmatprep.subr.mxu0 0.0
    %355 = vmatpush2.msra.mxu0 0.0
    %356 = vmatprep.subr.mxu0 0.0
    %357 = vmatpush2.msra.mxu0 0.0
    %358 = vmatprep.mubr.f32.mxu0 0.0
    %359 = vmatmul.mubr.f32.gmra.mxu0 %v289
    %v360 = vpop.f32.mrf.mxu0
    %v361 = vadd.f32 %v286, %v360
    %v362 = vpop.f32.mrf.mxu0
    %363 = vmatprep.mubr.f32.mxu0 0.0
    %364 = vmatmul.mubr.f32.gmra.mxu0 %v292
    %v365 = vpop.f32.mrf.mxu0
    %v366 = vadd.f32 %v286, %v365
    %v367 = vpop.f32.mrf.mxu0
    %368 = vdwg.mxu0
    %v370 = vsel %vm135, 0.0, 0
    %372 = vmatprep.subr.mxu0 0.0
    %373 = vmatpush1.msra.mxu0 0.0
    %374 = vmatprep.subr.mxu0 0.0
    %375 = vmatpush1.msra.mxu0 0.0
    %376 = vmatprep.subr.mxu0 0.0
    %377 = vmatpush1.msra.mxu0 0.0
    %378 = vmatprep.subr.mxu0 0.0
    %379 = vmatpush1.msra.mxu0 0.0
    %380 = vmatprep.subr.mxu0 0.0
    %381 = vmatpush1.msra.mxu0 0.0
    %382 = vmatprep.subr.mxu0 0.0
    %383 = vmatpush1.msra.mxu0 0.0
    %384 = vmatprep.subr.mxu0 0.0
    %385 = vmatpush1.msra.mxu0 0.0
    %386 = vmatprep.subr.mxu0 0.0
    %387 = vmatpush1.msra.mxu0 0.0
    %388 = vmatprep.subr.mxu0 0.0
    %389 = vmatpush1.msra.mxu0 0.0
    %390 = vmatprep.subr.mxu0 0.0
    %391 = vmatpush1.msra.mxu0 0.0
    %392 = vmatprep.subr.mxu0 0.0
    %393 = vmatpush1.msra.mxu0 0.0
    %394 = vmatprep.subr.mxu0 0.0
    %395 = vmatpush1.msra.mxu0 0.0
    %396 = vmatprep.subr.mxu0 0.0
    %397 = vmatpush1.msra.mxu0 %v279
    %398 = vmatprep.subr.mxu0 0.0
    %399 = vmatpush1.msra.mxu0 %v278
    %400 = vmatprep.subr.mxu0 0.0
    %401 = vmatpush1.msra.mxu0 %v277
    %402 = vmatprep.subr.mxu0 0.0
    %403 = vmatpush1.msra.mxu0 %v276
    %404 = vmatprep.subr.mxu0 0.0
    %405 = vmatpush2.msra.mxu0 0.0
    %406 = vmatprep.subr.mxu0 0.0
    %407 = vmatpush2.msra.mxu0 0.0
    %408 = vmatprep.subr.mxu0 0.0
    %409 = vmatpush2.msra.mxu0 0.0
    %410 = vmatprep.subr.mxu0 0.0
    %411 = vmatpush2.msra.mxu0 0.0
    %412 = vmatprep.subr.mxu0 0.0
    %413 = vmatpush2.msra.mxu0 0.0
    %414 = vmatprep.subr.mxu0 0.0
    %415 = vmatpush2.msra.mxu0 0.0
    %416 = vmatprep.subr.mxu0 0.0
    %417 = vmatpush2.msra.mxu0 0.0
    %418 = vmatprep.subr.mxu0 0.0
    %419 = vmatpush2.msra.mxu0 0.0
    %420 = vmatprep.subr.mxu0 0.0
    %421 = vmatpush2.msra.mxu0 0.0
    %422 = vmatprep.subr.mxu0 0.0
    %423 = vmatpush2.msra.mxu0 0.0
    %424 = vmatprep.subr.mxu0 0.0
    %425 = vmatpush2.msra.mxu0 0.0
    %426 = vmatprep.subr.mxu0 0.0
    %427 = vmatpush2.msra.mxu0 0.0
    %428 = vmatprep.subr.mxu0 0.0
    %429 = vmatpush2.msra.mxu0 0.0
    %430 = vmatprep.subr.mxu0 0.0
    %431 = vmatpush2.msra.mxu0 0.0
    %432 = vmatprep.subr.mxu0 0.0
    %433 = vmatpush2.msra.mxu0 0.0
    %434 = vmatprep.subr.mxu0 0.0
    %435 = vmatpush2.msra.mxu0 0.0
    %436 = vmatprep.mubr.f32.mxu0 0.0
    %437 = vmatmul.mubr.f32.gmra.mxu0 %v370
    %v438 = vpop.f32.mrf.mxu0
    %v439 = vadd.f32 0.0, %v438
    %v440 = vpop.f32.mrf.mxu0
    %441 = vdwg.mxu0
    %v443 = vrot.slane %v439, 1
    %v446 = vadd.f32 %v361, %v439
    %v447 = vadd.f32 %v366, %v443
    %v449 = vlaneseq
    %v450 = vshrl.u32 %v449, 7
    %v451 = vsub.s32 0, %v450
    %v452 = vrot.slane %v281, %v451
    %v454 = vadd.f32 %v446, %v452
    %v455 = vadd.f32 %v447, %v452
    %v456 = vmul.f32 %v454, 0.5
    %v457 = vmul.f32 %v455, 0.5
    %v458 = vtanh.pop %v456
    %v459 = vtanh.pop %v457
    %v460 = vadd.f32 %v458, 1.0
    %v461 = vadd.f32 %v459, 1.0
    %v462 = vmul.f32 %v460, 0.5
    %v463 = vmul.f32 %v461, 0.5
    %v464 = vtanh.pop %v454
    %v465 = vtanh.pop %v455
    %v466 = vmul.f32 %v462, 0.0
    %v467 = vmul.f32 %v463, 0.0
    %470 = vrot.lane.b32.xlu0 %v464, 64
    %v471 = vpop.permute.xlu0 %470
    %472 = vrot.lane.b32.xlu0 %v465, 64
    %v473 = vpop.permute.xlu0 %472
    %v476 = vmul.f32 %v462, %v471
    %v477 = vmul.f32 %v463, %v473
    %480 = vrot.lane.b32.xlu0 %v476, 32
    %v481 = vpop.permute.xlu0 %480
    %482 = vrot.lane.b32.xlu0 %v477, 32
    %v483 = vpop.permute.xlu0 %482
    %v486 = vadd.f32 %v466, %v481
    %v487 = vadd.f32 %v467, %v483
    %v488 = vtanh.pop %v486
    %v489 = vtanh.pop %v487
    %492 = vrot.lane.b32.xlu0 %v488, 64
    %v493 = vpop.permute.xlu0 %492
    %494 = vrot.lane.b32.xlu0 %v489, 64
    %v495 = vpop.permute.xlu0 %494
    %v498 = vmul.f32 %v462, %v493
    %v499 = vmul.f32 %v463, %v495
    %v502 = vrot.slane %v499, 7
    %vm503 = vcmask 1041409
    %v504 = vsel %vm503, %v502, %v498
    %505 = vrot.lane.b32.xlu0 %v504, 32
    %v506 = vpop.permute.xlu0 %505
    %v507 = vsel %vm135, %v506, 0
    %509 = vmatprep.subr.mxu0 0.0
    %510 = vmatpush1.msra.mxu0 0.0
    %511 = vmatprep.subr.mxu0 0.0
    %512 = vmatpush1.msra.mxu0 0.0
    %513 = vmatprep.subr.mxu0 0.0
    %514 = vmatpush1.msra.mxu0 0.0
    %515 = vmatprep.subr.mxu0 0.0
    %516 = vmatpush1.msra.mxu0 0.0
    %517 = vmatprep.subr.mxu0 0.0
    %518 = vmatpush1.msra.mxu0 0.0
    %519 = vmatprep.subr.mxu0 0.0
    %520 = vmatpush1.msra.mxu0 0.0
    %521 = vmatprep.subr.mxu0 0.0
    %522 = vmatpush1.msra.mxu0 0.0
    %523 = vmatprep.subr.mxu0 0.0
    %524 = vmatpush1.msra.mxu0 0.0
    %525 = vmatprep.subr.mxu0 0.0
    %526 = vmatpush1.msra.mxu0 0.0
    %527 = vmatprep.subr.mxu0 0.0
    %528 = vmatpush1.msra.mxu0 0.0
    %529 = vmatprep.subr.mxu0 0.0
    %530 = vmatpush1.msra.mxu0 0.0
    %531 = vmatprep.subr.mxu0 0.0
    %532 = vmatpush1.msra.mxu0 0.0
    %533 = vmatprep.subr.mxu0 0.0
    %534 = vmatpush1.msra.mxu0 %v279
    %535 = vmatprep.subr.mxu0 0.0
    %536 = vmatpush1.msra.mxu0 %v278
    %537 = vmatprep.subr.mxu0 0.0
    %538 = vmatpush1.msra.mxu0 %v277
    %539 = vmatprep.subr.mxu0 0.0
    %540 = vmatpush1.msra.mxu0 %v276
    %541 = vmatprep.subr.mxu0 0.0
    %542 = vmatpush2.msra.mxu0 0.0
    %543 = vmatprep.subr.mxu0 0.0
    %544 = vmatpush2.msra.mxu0 0.0
    %545 = vmatprep.subr.mxu0 0.0
    %546 = vmatpush2.msra.mxu0 0.0
    %547 = vmatprep.subr.mxu0 0.0
    %548 = vmatpush2.msra.mxu0 0.0
    %549 = vmatprep.subr.mxu0 0.0
    %550 = vmatpush2.msra.mxu0 0.0
    %551 = vmatprep.subr.mxu0 0.0
    %552 = vmatpush2.msra.mxu0 0.0
    %553 = vmatprep.subr.mxu0 0.0
    %554 = vmatpush2.msra.mxu0 0.0
    %555 = vmatprep.subr.mxu0 0.0
    %556 = vmatpush2.msra.mxu0 0.0
    %557 = vmatprep.subr.mxu0 0.0
    %558 = vmatpush2.msra.mxu0 0.0
    %559 = vmatprep.subr.mxu0 0.0
    %560 = vmatpush2.msra.mxu0 0.0
    %561 = vmatprep.subr.mxu0 0.0
    %562 = vmatpush2.msra.mxu0 0.0
    %563 = vmatprep.subr.mxu0 0.0
    %564 = vmatpush2.msra.mxu0 0.0
    %565 = vmatprep.subr.mxu0 0.0
    %566 = vmatpush2.msra.mxu0 0.0
    %567 = vmatprep.subr.mxu0 0.0
    %568 = vmatpush2.msra.mxu0 0.0
    %569 = vmatprep.subr.mxu0 0.0
    %570 = vmatpush2.msra.mxu0 0.0
    %571 = vmatprep.subr.mxu0 0.0
    %572 = vmatpush2.msra.mxu0 0.0
    %573 = vmatprep.mubr.f32.mxu0 0.0
    %574 = vmatmul.mubr.f32.gmra.mxu0 %v507
    %v575 = vpop.f32.mrf.mxu0
    %v576 = vadd.f32 0.0, %v575
    %v577 = vpop.f32.mrf.mxu0
    %578 = vdwg.mxu0
    %v580 = vrot.slane %v576, 7
    %v583 = vadd.f32 %v361, %v580
    %v584 = vadd.f32 %v366, %v576
    %v585 = vadd.f32 %v583, %v452
    %v586 = vadd.f32 %v584, %v452
    %v587 = vmul.f32 %v585, 0.5
    %v588 = vmul.f32 %v586, 0.5
    %v589 = vtanh.pop %v587
    %v590 = vtanh.pop %v588
    %v591 = vadd.f32 %v589, 1.0
    %v592 = vadd.f32 %v590, 1.0
    %v593 = vmul.f32 %v591, 0.5
    %v594 = vmul.f32 %v592, 0.5
    %v595 = vtanh.pop %v585
    %v596 = vtanh.pop %v586
    %v599 = vrot.slane %v486, 7
    %v600 = vrot.slane %v487, 7
    %v603 = vmul.f32 %v593, %v599
    %v604 = vmul.f32 %v594, %v600
    %607 = vrot.lane.b32.xlu0 %v595, 64
    %v608 = vpop.permute.xlu0 %607
    %609 = vrot.lane.b32.xlu0 %v596, 64
    %v610 = vpop.permute.xlu0 %609
    %v613 = vmul.f32 %v593, %v608
    %v614 = vmul.f32 %v594, %v610
    %617 = vrot.lane.b32.xlu0 %v613, 32
    %v618 = vpop.permute.xlu0 %617
    %619 = vrot.lane.b32.xlu0 %v614, 32
    %v620 = vpop.permute.xlu0 %619
    %v623 = vadd.f32 %v603, %v618
    %v624 = vadd.f32 %v604, %v620
    %v625 = vtanh.pop %v623
    %v626 = vtanh.pop %v624
    %629 = vrot.lane.b32.xlu0 %v625, 64
    %v630 = vpop.permute.xlu0 %629
    %631 = vrot.lane.b32.xlu0 %v626, 64
    %v632 = vpop.permute.xlu0 %631
    %v635 = vmul.f32 %v593, %v630
    %v636 = vmul.f32 %v594, %v632
    %v639 = vrot.slane %v635, 1
    %v640 = vsel %vm503, %v636, %v639
    %641 = vrot.lane.b32.xlu0 %v640, 32
    %v642 = vpop.permute.xlu0 %641
    %v643 = vsel %vm135, %v642, 0
    %645 = vmatprep.subr.mxu0 0.0
    %646 = vmatpush1.msra.mxu0 0.0
    %647 = vmatprep.subr.mxu0 0.0
    %648 = vmatpush1.msra.mxu0 0.0
    %649 = vmatprep.subr.mxu0 0.0
    %650 = vmatpush1.msra.mxu0 0.0
    %651 = vmatprep.subr.mxu0 0.0
    %652 = vmatpush1.msra.mxu0 0.0
    %653 = vmatprep.subr.mxu0 0.0
    %654 = vmatpush1.msra.mxu0 0.0
    %655 = vmatprep.subr.mxu0 0.0
    %656 = vmatpush1.msra.mxu0 0.0
    %657 = vmatprep.subr.mxu0 0.0
    %658 = vmatpush1.msra.mxu0 0.0
    %659 = vmatprep.subr.mxu0 0.0
    %660 = vmatpush1.msra.mxu0 0.0
    %661 = vmatprep.subr.mxu0 0.0
    %662 = vmatpush1.msra.mxu0 0.0
    %663 = vmatprep.subr.mxu0 0.0
    %664 = vmatpush1.msra.mxu0 0.0
    %665 = vmatprep.subr.mxu0 0.0
    %666 = vmatpush1.msra.mxu0 0.0
    %667 = vmatprep.subr.mxu0 0.0
    %668 = vmatpush1.msra.mxu0 0.0
    %669 = vmatprep.subr.mxu0 0.0
    %670 = vmatpush1.msra.mxu0 %v279
    %671 = vmatprep.subr.mxu0 0.0
    %672 = vmatpush1.msra.mxu0 %v278
    %673 = vmatprep.subr.mxu0 0.0
    %674 = vmatpush1.msra.mxu0 %v277
    %675 = vmatprep.subr.mxu0 0.0
    %676 = vmatpush1.msra.mxu0 %v276
    %677 = vmatprep.subr.mxu0 0.0
    %678 = vmatpush2.msra.mxu0 0.0
    %679 = vmatprep.subr.mxu0 0.0
    %680 = vmatpush2.msra.mxu0 0.0
    %681 = vmatprep.subr.mxu0 0.0
    %682 = vmatpush2.msra.mxu0 0.0
    %683 = vmatprep.subr.mxu0 0.0
    %684 = vmatpush2.msra.mxu0 0.0
    %685 = vmatprep.subr.mxu0 0.0
    %686 = vmatpush2.msra.mxu0 0.0
    %687 = vmatprep.subr.mxu0 0.0
    %688 = vmatpush2.msra.mxu0 0.0
    %689 = vmatprep.subr.mxu0 0.0
    %690 = vmatpush2.msra.mxu0 0.0
    %691 = vmatprep.subr.mxu0 0.0
    %692 = vmatpush2.msra.mxu0 0.0
    %693 = vmatprep.subr.mxu0 0.0
    %694 = vmatpush2.msra.mxu0 0.0
    %695 = vmatprep.subr.mxu0 0.0
    %696 = vmatpush2.msra.mxu0 0.0
    %697 = vmatprep.subr.mxu0 0.0
    %698 = vmatpush2.msra.mxu0 0.0
    %699 = vmatprep.subr.mxu0 0.0
    %700 = vmatpush2.msra.mxu0 0.0
    %701 = vmatprep.subr.mxu0 0.0
    %702 = vmatpush2.msra.mxu0 0.0
    %703 = vmatprep.subr.mxu0 0.0
    %704 = vmatpush2.msra.mxu0 0.0
    %705 = vmatprep.subr.mxu0 0.0
    %706 = vmatpush2.msra.mxu0 0.0
    %707 = vmatprep.subr.mxu0 0.0
    %708 = vmatpush2.msra.mxu0 0.0
    %709 = vmatprep.mubr.f32.mxu0 0.0
    %710 = vmatmul.mubr.f32.gmra.mxu0 %v643
    %v711 = vpop.f32.mrf.mxu0
    %v712 = vadd.f32 0.0, %v711
    %v713 = vpop.f32.mrf.mxu0
    %714 = vdwg.mxu0
    %v716 = vrot.slane %v712, 6
    %v717 = vrot.slane %v712, 7
    %v720 = vadd.f32 %v361, %v716
    %v721 = vadd.f32 %v366, %v717
    %v722 = vadd.f32 %v720, %v452
    %v723 = vadd.f32 %v721, %v452
    %v724 = vmul.f32 %v722, 0.5
    %v725 = vmul.f32 %v723, 0.5
    %v726 = vtanh.pop %v724
    %v727 = vtanh.pop %v725
    %v728 = vadd.f32 %v726, 1.0
    %v729 = vadd.f32 %v727, 1.0
    %v730 = vmul.f32 %v728, 0.5
    %v731 = vmul.f32 %v729, 0.5
    %v732 = vtanh.pop %v722
    %v733 = vtanh.pop %v723
    %v736 = vrot.slane %v623, 7
    %v737 = vrot.slane %v624, 7
    %v740 = vmul.f32 %v730, %v736
    %v741 = vmul.f32 %v731, %v737
    %744 = vrot.lane.b32.xlu0 %v732, 64
    %v745 = vpop.permute.xlu0 %744
    %746 = vrot.lane.b32.xlu0 %v733, 64
    %v747 = vpop.permute.xlu0 %746
    %v750 = vmul.f32 %v730, %v745
    %v751 = vmul.f32 %v731, %v747
    %754 = vrot.lane.b32.xlu0 %v750, 32
    %v755 = vpop.permute.xlu0 %754
    %756 = vrot.lane.b32.xlu0 %v751, 32
    %v757 = vpop.permute.xlu0 %756
    %v760 = vadd.f32 %v740, %v755
    %v761 = vadd.f32 %v741, %v757
    %v762 = vtanh.pop %v760
    %v763 = vtanh.pop %v761
    %766 = vrot.lane.b32.xlu0 %v762, 64
    %v767 = vpop.permute.xlu0 %766
    %768 = vrot.lane.b32.xlu0 %v763, 64
    %v769 = vpop.permute.xlu0 %768
    %v772 = vmul.f32 %v730, %v767
    %v773 = vmul.f32 %v731, %v769
    %v776 = vrot.slane %v772, 2
    %v777 = vrot.slane %v773, 1
    %v778 = vsel %vm503, %v777, %v776
    %779 = vrot.lane.b32.xlu0 %v778, 32
    %v780 = vpop.permute.xlu0 %779
    %v781 = vsel %vm135, %v780, 0
    %783 = vmatprep.subr.mxu0 0.0
    %784 = vmatpush1.msra.mxu0 0.0
    %785 = vmatprep.subr.mxu0 0.0
    %786 = vmatpush1.msra.mxu0 0.0
    %787 = vmatprep.subr.mxu0 0.0
    %788 = vmatpush1.msra.mxu0 0.0
    %789 = vmatprep.subr.mxu0 0.0
    %790 = vmatpush1.msra.mxu0 0.0
    %791 = vmatprep.subr.mxu0 0.0
    %792 = vmatpush1.msra.mxu0 0.0
    %793 = vmatprep.subr.mxu0 0.0
    %794 = vmatpush1.msra.mxu0 0.0
    %795 = vmatprep.subr.mxu0 0.0
    %796 = vmatpush1.msra.mxu0 0.0
    %797 = vmatprep.subr.mxu0 0.0
    %798 = vmatpush1.msra.mxu0 0.0
    %799 = vmatprep.subr.mxu0 0.0
    %800 = vmatpush1.msra.mxu0 0.0
    %801 = vmatprep.subr.mxu0 0.0
    %802 = vmatpush1.msra.mxu0 0.0
    %803 = vmatprep.subr.mxu0 0.0
    %804 = vmatpush1.msra.mxu0 0.0
    %805 = vmatprep.subr.mxu0 0.0
    %806 = vmatpush1.msra.mxu0 0.0
    %807 = vmatprep.subr.mxu0 0.0
    %808 = vmatpush1.msra.mxu0 %v279
    %809 = vmatprep.subr.mxu0 0.0
    %810 = vmatpush1.msra.mxu0 %v278
    %811 = vmatprep.subr.mxu0 0.0
    %812 = vmatpush1.msra.mxu0 %v277
    %813 = vmatprep.subr.mxu0 0.0
    %814 = vmatpush1.msra.mxu0 %v276
    %815 = vmatprep.subr.mxu0 0.0
    %816 = vmatpush2.msra.mxu0 0.0
    %817 = vmatprep.subr.mxu0 0.0
    %818 = vmatpush2.msra.mxu0 0.0
    %819 = vmatprep.subr.mxu0 0.0
    %820 = vmatpush2.msra.mxu0 0.0
    %821 = vmatprep.subr.mxu0 0.0
    %822 = vmatpush2.msra.mxu0 0.0
    %823 = vmatprep.subr.mxu0 0.0
    %824 = vmatpush2.msra.mxu0 0.0
    %825 = vmatprep.subr.mxu0 0.0
    %826 = vmatpush2.msra.mxu0 0.0
    %827 = vmatprep.subr.mxu0 0.0
    %828 = vmatpush2.msra.mxu0 0.0
    %829 = vmatprep.subr.mxu0 0.0
    %830 = vmatpush2.msra.mxu0 0.0
    %831 = vmatprep.subr.mxu0 0.0
    %832 = vmatpush2.msra.mxu0 0.0
    %833 = vmatprep.subr.mxu0 0.0
    %834 = vmatpush2.msra.mxu0 0.0
    %835 = vmatprep.subr.mxu0 0.0
    %836 = vmatpush2.msra.mxu0 0.0
    %837 = vmatprep.subr.mxu0 0.0
    %838 = vmatpush2.msra.mxu0 0.0
    %839 = vmatprep.subr.mxu0 0.0
    %840 = vmatpush2.msra.mxu0 0.0
    %841 = vmatprep.subr.mxu0 0.0
    %842 = vmatpush2.msra.mxu0 0.0
    %843 = vmatprep.subr.mxu0 0.0
    %844 = vmatpush2.msra.mxu0 0.0
    %845 = vmatprep.subr.mxu0 0.0
    %846 = vmatpush2.msra.mxu0 0.0
    %847 = vmatprep.mubr.f32.mxu0 0.0
    %848 = vmatmul.mubr.f32.gmra.mxu0 %v781
    %v849 = vpop.f32.mrf.mxu0
    %v850 = vadd.f32 0.0, %v849
    %v851 = vpop.f32.mrf.mxu0
    %852 = vdwg.mxu0
    %v854 = vrot.slane %v850, 5
    %v855 = vrot.slane %v850, 6
    %v858 = vadd.f32 %v361, %v854
    %v859 = vadd.f32 %v366, %v855
    %v860 = vadd.f32 %v858, %v452
    %v861 = vadd.f32 %v859, %v452
    %v862 = vmul.f32 %v860, 0.5
    %v863 = vmul.f32 %v861, 0.5
    %v864 = vtanh.pop %v862
    %v865 = vtanh.pop %v863
    %v866 = vadd.f32 %v864, 1.0
    %v867 = vadd.f32 %v865, 1.0
    %v868 = vmul.f32 %v866, 0.5
    %v869 = vmul.f32 %v867, 0.5
    %v870 = vtanh.pop %v860
    %v871 = vtanh.pop %v861
    %v874 = vrot.slane %v760, 7
    %v875 = vrot.slane %v761, 7
    %v878 = vmul.f32 %v868, %v874
    %v879 = vmul.f32 %v869, %v875
    %882 = vrot.lane.b32.xlu0 %v870, 64
    %v883 = vpop.permute.xlu0 %882
    %884 = vrot.lane.b32.xlu0 %v871, 64
    %v885 = vpop.permute.xlu0 %884
    %v888 = vmul.f32 %v868, %v883
    %v889 = vmul.f32 %v869, %v885
    %892 = vrot.lane.b32.xlu0 %v888, 32
    %v893 = vpop.permute.xlu0 %892
    %894 = vrot.lane.b32.xlu0 %v889, 32
    %v895 = vpop.permute.xlu0 %894
    %v898 = vadd.f32 %v878, %v893
    %v899 = vadd.f32 %v879, %v895
    %v900 = vtanh.pop %v898
    %v901 = vtanh.pop %v899
    %904 = vrot.lane.b32.xlu0 %v900, 64
    %v905 = vpop.permute.xlu0 %904
    %906 = vrot.lane.b32.xlu0 %v901, 64
    %v907 = vpop.permute.xlu0 %906
    %v910 = vmul.f32 %v868, %v905
    %v911 = vmul.f32 %v869, %v907
    %v914 = vrot.slane %v910, 3
    %v915 = vrot.slane %v911, 2
    %v916 = vsel %vm503, %v915, %v914
    %917 = vrot.lane.b32.xlu0 %v916, 32
    %v918 = vpop.permute.xlu0 %917
    %v919 = vsel %vm135, %v918, 0
    %921 = vmatprep.subr.mxu0 0.0
    %922 = vmatpush1.msra.mxu0 0.0
    %923 = vmatprep.subr.mxu0 0.0
    %924 = vmatpush1.msra.mxu0 0.0
    %925 = vmatprep.subr.mxu0 0.0
    %926 = vmatpush1.msra.mxu0 0.0
    %927 = vmatprep.subr.mxu0 0.0
    %928 = vmatpush1.msra.mxu0 0.0
    %929 = vmatprep.subr.mxu0 0.0
    %930 = vmatpush1.msra.mxu0 0.0
    %931 = vmatprep.subr.mxu0 0.0
    %932 = vmatpush1.msra.mxu0 0.0
    %933 = vmatprep.subr.mxu0 0.0
    %934 = vmatpush1.msra.mxu0 0.0
    %935 = vmatprep.subr.mxu0 0.0
    %936 = vmatpush1.msra.mxu0 0.0
    %937 = vmatprep.subr.mxu0 0.0
    %938 = vmatpush1.msra.mxu0 0.0
    %939 = vmatprep.subr.mxu0 0.0
    %940 = vmatpush1.msra.mxu0 0.0
    %941 = vmatprep.subr.mxu0 0.0
    %942 = vmatpush1.msra.mxu0 0.0
    %943 = vmatprep.subr.mxu0 0.0
    %944 = vmatpush1.msra.mxu0 0.0
    %945 = vmatprep.subr.mxu0 0.0
    %946 = vmatpush1.msra.mxu0 %v279
    %947 = vmatprep.subr.mxu0 0.0
    %948 = vmatpush1.msra.mxu0 %v278
    %949 = vmatprep.subr.mxu0 0.0
    %950 = vmatpush1.msra.mxu0 %v277
    %951 = vmatprep.subr.mxu0 0.0
    %952 = vmatpush1.msra.mxu0 %v276
    %953 = vmatprep.subr.mxu0 0.0
    %954 = vmatpush2.msra.mxu0 0.0
    %955 = vmatprep.subr.mxu0 0.0
    %956 = vmatpush2.msra.mxu0 0.0
    %957 = vmatprep.subr.mxu0 0.0
    %958 = vmatpush2.msra.mxu0 0.0
    %959 = vmatprep.subr.mxu0 0.0
    %960 = vmatpush2.msra.mxu0 0.0
    %961 = vmatprep.subr.mxu0 0.0
    %962 = vmatpush2.msra.mxu0 0.0
    %963 = vmatprep.subr.mxu0 0.0
    %964 = vmatpush2.msra.mxu0 0.0
    %965 = vmatprep.subr.mxu0 0.0
    %966 = vmatpush2.msra.mxu0 0.0
    %967 = vmatprep.subr.mxu0 0.0
    %968 = vmatpush2.msra.mxu0 0.0
    %969 = vmatprep.subr.mxu0 0.0
    %970 = vmatpush2.msra.mxu0 0.0
    %971 = vmatprep.subr.mxu0 0.0
    %972 = vmatpush2.msra.mxu0 0.0
    %973 = vmatprep.subr.mxu0 0.0
    %974 = vmatpush2.msra.mxu0 0.0
    %975 = vmatprep.subr.mxu0 0.0
    %976 = vmatpush2.msra.mxu0 0.0
    %977 = vmatprep.subr.mxu0 0.0
    %978 = vmatpush2.msra.mxu0 0.0
    %979 = vmatprep.subr.mxu0 0.0
    %980 = vmatpush2.msra.mxu0 0.0
    %981 = vmatprep.subr.mxu0 0.0
    %982 = vmatpush2.msra.mxu0 0.0
    %983 = vmatprep.subr.mxu0 0.0
    %984 = vmatpush2.msra.mxu0 0.0
    %985 = vmatprep.mubr.f32.mxu0 0.0
    %986 = vmatmul.mubr.f32.gmra.mxu0 %v919
    %v987 = vpop.f32.mrf.mxu0
    %v988 = vadd.f32 0.0, %v987
    %v989 = vpop.f32.mrf.mxu0
    %990 = vdwg.mxu0
    %v992 = vrot.slane %v988, 4
    %v993 = vrot.slane %v988, 5
    %v996 = vadd.f32 %v361, %v992
    %v997 = vadd.f32 %v366, %v993
    %v998 = vadd.f32 %v996, %v452
    %v999 = vadd.f32 %v997, %v452
    %v1000 = vmul.f32 %v998, 0.5
    %v1001 = vmul.f32 %v999, 0.5
    %v1002 = vtanh.pop %v1000
    %v1003 = vtanh.pop %v1001
    %v1004 = vadd.f32 %v1002, 1.0
    %v1005 = vadd.f32 %v1003, 1.0
    %v1006 = vmul.f32 %v1004, 0.5
    %v1007 = vmul.f32 %v1005, 0.5
    %v1008 = vtanh.pop %v998
    %v1009 = vtanh.pop %v999
    %v1012 = vrot.slane %v898, 7
    %v1013 = vrot.slane %v899, 7
    %v1016 = vmul.f32 %v1006, %v1012
    %v1017 = vmul.f32 %v1007, %v1013
    %1020 = vrot.lane.b32.xlu0 %v1008, 64
    %v1021 = vpop.permute.xlu0 %1020
    %1022 = vrot.lane.b32.xlu0 %v1009, 64
    %v1023 = vpop.permute.xlu0 %1022
    %v1026 = vmul.f32 %v1006, %v1021
    %v1027 = vmul.f32 %v1007, %v1023
    %1030 = vrot.lane.b32.xlu0 %v1026, 32
    %v1031 = vpop.permute.xlu0 %1030
    %1032 = vrot.lane.b32.xlu0 %v1027, 32
    %v1033 = vpop.permute.xlu0 %1032
    %v1036 = vadd.f32 %v1016, %v1031
    %v1037 = vadd.f32 %v1017, %v1033
    %v1038 = vtanh.pop %v1036
    %v1039 = vtanh.pop %v1037
    %1042 = vrot.lane.b32.xlu0 %v1038, 64
    %v1043 = vpop.permute.xlu0 %1042
    %1044 = vrot.lane.b32.xlu0 %v1039, 64
    %v1045 = vpop.permute.xlu0 %1044
    %v1048 = vmul.f32 %v1006, %v1043
    %v1049 = vmul.f32 %v1007, %v1045
    %v1052 = vrot.slane %v1048, 4
    %v1053 = vrot.slane %v1049, 3
    %v1054 = vsel %vm503, %v1053, %v1052
    %1055 = vrot.lane.b32.xlu0 %v1054, 32
    %v1056 = vpop.permute.xlu0 %1055
    %v1057 = vsel %vm135, %v1056, 0
    %1059 = vmatprep.subr.mxu0 0.0
    %1060 = vmatpush1.msra.mxu0 0.0
    %1061 = vmatprep.subr.mxu0 0.0
    %1062 = vmatpush1.msra.mxu0 0.0
    %1063 = vmatprep.subr.mxu0 0.0
    %1064 = vmatpush1.msra.mxu0 0.0
    %1065 = vmatprep.subr.mxu0 0.0
    %1066 = vmatpush1.msra.mxu0 0.0
    %1067 = vmatprep.subr.mxu0 0.0
    %1068 = vmatpush1.msra.mxu0 0.0
    %1069 = vmatprep.subr.mxu0 0.0
    %1070 = vmatpush1.msra.mxu0 0.0
    %1071 = vmatprep.subr.mxu0 0.0
    %1072 = vmatpush1.msra.mxu0 0.0
    %1073 = vmatprep.subr.mxu0 0.0
    %1074 = vmatpush1.msra.mxu0 0.0
    %1075 = vmatprep.subr.mxu0 0.0
    %1076 = vmatpush1.msra.mxu0 0.0
    %1077 = vmatprep.subr.mxu0 0.0
    %1078 = vmatpush1.msra.mxu0 0.0
    %1079 = vmatprep.subr.mxu0 0.0
    %1080 = vmatpush1.msra.mxu0 0.0
    %1081 = vmatprep.subr.mxu0 0.0
    %1082 = vmatpush1.msra.mxu0 0.0
    %1083 = vmatprep.subr.mxu0 0.0
    %1084 = vmatpush1.msra.mxu0 %v279
    %1085 = vmatprep.subr.mxu0 0.0
    %1086 = vmatpush1.msra.mxu0 %v278
    %1087 = vmatprep.subr.mxu0 0.0
    %1088 = vmatpush1.msra.mxu0 %v277
    %1089 = vmatprep.subr.mxu0 0.0
    %1090 = vmatpush1.msra.mxu0 %v276
    %1091 = vmatprep.subr.mxu0 0.0
    %1092 = vmatpush2.msra.mxu0 0.0
    %1093 = vmatprep.subr.mxu0 0.0
    %1094 = vmatpush2.msra.mxu0 0.0
    %1095 = vmatprep.subr.mxu0 0.0
    %1096 = vmatpush2.msra.mxu0 0.0
    %1097 = vmatprep.subr.mxu0 0.0
    %1098 = vmatpush2.msra.mxu0 0.0
    %1099 = vmatprep.subr.mxu0 0.0
    %1100 = vmatpush2.msra.mxu0 0.0
    %1101 = vmatprep.subr.mxu0 0.0
    %1102 = vmatpush2.msra.mxu0 0.0
    %1103 = vmatprep.subr.mxu0 0.0
    %1104 = vmatpush2.msra.mxu0 0.0
    %1105 = vmatprep.subr.mxu0 0.0
    %1106 = vmatpush2.msra.mxu0 0.0
    %1107 = vmatprep.subr.mxu0 0.0
    %1108 = vmatpush2.msra.mxu0 0.0
    %1109 = vmatprep.subr.mxu0 0.0
    %1110 = vmatpush2.msra.mxu0 0.0
    %1111 = vmatprep.subr.mxu0 0.0
    %1112 = vmatpush2.msra.mxu0 0.0
    %1113 = vmatprep.subr.mxu0 0.0
    %1114 = vmatpush2.msra.mxu0 0.0
    %1115 = vmatprep.subr.mxu0 0.0
    %1116 = vmatpush2.msra.mxu0 0.0
    %1117 = vmatprep.subr.mxu0 0.0
    %1118 = vmatpush2.msra.mxu0 0.0
    %1119 = vmatprep.subr.mxu0 0.0
    %1120 = vmatpush2.msra.mxu0 0.0
    %1121 = vmatprep.subr.mxu0 0.0
    %1122 = vmatpush2.msra.mxu0 0.0
    %1123 = vmatprep.mubr.f32.mxu0 0.0
    %1124 = vmatmul.mubr.f32.gmra.mxu0 %v1057
    %v1125 = vpop.f32.mrf.mxu0
    %v1126 = vadd.f32 0.0, %v1125
    %v1127 = vpop.f32.mrf.mxu0
    %1128 = vdwg.mxu0
    %v1130 = vrot.slane %v1126, 3
    %v1131 = vrot.slane %v1126, 4
    %v1134 = vadd.f32 %v361, %v1130
    %v1135 = vadd.f32 %v366, %v1131
    %v1136 = vadd.f32 %v1134, %v452
    %v1137 = vadd.f32 %v1135, %v452
    %v1138 = vmul.f32 %v1136, 0.5
    %v1139 = vmul.f32 %v1137, 0.5
    %v1140 = vtanh.pop %v1138
    %v1141 = vtanh.pop %v1139
    %v1142 = vadd.f32 %v1140, 1.0
    %v1143 = vadd.f32 %v1141, 1.0
    %v1144 = vmul.f32 %v1142, 0.5
    %v1145 = vmul.f32 %v1143, 0.5
    %v1146 = vtanh.pop %v1136
    %v1147 = vtanh.pop %v1137
    %v1150 = vrot.slane %v1036, 7
    %v1151 = vrot.slane %v1037, 7
    %v1154 = vmul.f32 %v1144, %v1150
    %v1155 = vmul.f32 %v1145, %v1151
    %1158 = vrot.lane.b32.xlu0 %v1146, 64
    %v1159 = vpop.permute.xlu0 %1158
    %1160 = vrot.lane.b32.xlu0 %v1147, 64
    %v1161 = vpop.permute.xlu0 %1160
    %v1164 = vmul.f32 %v1144, %v1159
    %v1165 = vmul.f32 %v1145, %v1161
    %1168 = vrot.lane.b32.xlu0 %v1164, 32
    %v1169 = vpop.permute.xlu0 %1168
    %1170 = vrot.lane.b32.xlu0 %v1165, 32
    %v1171 = vpop.permute.xlu0 %1170
    %v1174 = vadd.f32 %v1154, %v1169
    %v1175 = vadd.f32 %v1155, %v1171
    %v1176 = vtanh.pop %v1174
    %v1177 = vtanh.pop %v1175
    %1180 = vrot.lane.b32.xlu0 %v1176, 64
    %v1181 = vpop.permute.xlu0 %1180
    %1182 = vrot.lane.b32.xlu0 %v1177, 64
    %v1183 = vpop.permute.xlu0 %1182
    %v1186 = vmul.f32 %v1144, %v1181
    %v1187 = vmul.f32 %v1145, %v1183
    %v1190 = vrot.slane %v1186, 5
    %v1191 = vrot.slane %v1187, 4
    %v1192 = vsel %vm503, %v1191, %v1190
    %1193 = vrot.lane.b32.xlu0 %v1192, 32
    %v1194 = vpop.permute.xlu0 %1193
    %v1195 = vsel %vm135, %v1194, 0
    %1197 = vmatprep.subr.mxu0 0.0
    %1198 = vmatpush1.msra.mxu0 0.0
    %1199 = vmatprep.subr.mxu0 0.0
    %1200 = vmatpush1.msra.mxu0 0.0
    %1201 = vmatprep.subr.mxu0 0.0
    %1202 = vmatpush1.msra.mxu0 0.0
    %1203 = vmatprep.subr.mxu0 0.0
    %1204 = vmatpush1.msra.mxu0 0.0
    %1205 = vmatprep.subr.mxu0 0.0
    %1206 = vmatpush1.msra.mxu0 0.0
    %1207 = vmatprep.subr.mxu0 0.0
    %1208 = vmatpush1.msra.mxu0 0.0
    %1209 = vmatprep.subr.mxu0 0.0
    %1210 = vmatpush1.msra.mxu0 0.0
    %1211 = vmatprep.subr.mxu0 0.0
    %1212 = vmatpush1.msra.mxu0 0.0
    %1213 = vmatprep.subr.mxu0 0.0
    %1214 = vmatpush1.msra.mxu0 0.0
    %1215 = vmatprep.subr.mxu0 0.0
    %1216 = vmatpush1.msra.mxu0 0.0
    %1217 = vmatprep.subr.mxu0 0.0
    %1218 = vmatpush1.msra.mxu0 0.0
    %1219 = vmatprep.subr.mxu0 0.0
    %1220 = vmatpush1.msra.mxu0 0.0
    %1221 = vmatprep.subr.mxu0 0.0
    %1222 = vmatpush1.msra.mxu0 %v279
    %1223 = vmatprep.subr.mxu0 0.0
    %1224 = vmatpush1.msra.mxu0 %v278
    %1225 = vmatprep.subr.mxu0 0.0
    %1226 = vmatpush1.msra.mxu0 %v277
    %1227 = vmatprep.subr.mxu0 0.0
    %1228 = vmatpush1.msra.mxu0 %v276
    %1229 = vmatprep.subr.mxu0 0.0
    %1230 = vmatpush2.msra.mxu0 0.0
    %1231 = vmatprep.subr.mxu0 0.0
    %1232 = vmatpush2.msra.mxu0 0.0
    %1233 = vmatprep.subr.mxu0 0.0
    %1234 = vmatpush2.msra.mxu0 0.0
    %1235 = vmatprep.subr.mxu0 0.0
    %1236 = vmatpush2.msra.mxu0 0.0
    %1237 = vmatprep.subr.mxu0 0.0
    %1238 = vmatpush2.msra.mxu0 0.0
    %1239 = vmatprep.subr.mxu0 0.0
    %1240 = vmatpush2.msra.mxu0 0.0
    %1241 = vmatprep.subr.mxu0 0.0
    %1242 = vmatpush2.msra.mxu0 0.0
    %1243 = vmatprep.subr.mxu0 0.0
    %1244 = vmatpush2.msra.mxu0 0.0
    %1245 = vmatprep.subr.mxu0 0.0
    %1246 = vmatpush2.msra.mxu0 0.0
    %1247 = vmatprep.subr.mxu0 0.0
    %1248 = vmatpush2.msra.mxu0 0.0
    %1249 = vmatprep.subr.mxu0 0.0
    %1250 = vmatpush2.msra.mxu0 0.0
    %1251 = vmatprep.subr.mxu0 0.0
    %1252 = vmatpush2.msra.mxu0 0.0
    %1253 = vmatprep.subr.mxu0 0.0
    %1254 = vmatpush2.msra.mxu0 0.0
    %1255 = vmatprep.subr.mxu0 0.0
    %1256 = vmatpush2.msra.mxu0 0.0
    %1257 = vmatprep.subr.mxu0 0.0
    %1258 = vmatpush2.msra.mxu0 0.0
    %1259 = vmatprep.subr.mxu0 0.0
    %1260 = vmatpush2.msra.mxu0 0.0
    %1261 = vmatprep.mubr.f32.mxu0 0.0
    %1262 = vmatmul.mubr.f32.gmra.mxu0 %v1195
    %v1263 = vpop.f32.mrf.mxu0
    %v1264 = vadd.f32 0.0, %v1263
    %v1265 = vpop.f32.mrf.mxu0
    %1266 = vdwg.mxu0
    %v1268 = vrot.slane %v1264, 2
    %v1269 = vrot.slane %v1264, 3
    %v1272 = vadd.f32 %v361, %v1268
    %v1273 = vadd.f32 %v366, %v1269
    %v1274 = vadd.f32 %v1272, %v452
    %v1275 = vadd.f32 %v1273, %v452
    %v1276 = vmul.f32 %v1274, 0.5
    %v1277 = vmul.f32 %v1275, 0.5
    %v1278 = vtanh.pop %v1276
    %v1279 = vtanh.pop %v1277
    %v1280 = vadd.f32 %v1278, 1.0
    %v1281 = vadd.f32 %v1279, 1.0
    %v1282 = vmul.f32 %v1280, 0.5
    %v1283 = vmul.f32 %v1281, 0.5
    %v1284 = vtanh.pop %v1274
    %v1285 = vtanh.pop %v1275
    %v1288 = vrot.slane %v1174, 7
    %v1289 = vrot.slane %v1175, 7
    %v1292 = vmul.f32 %v1282, %v1288
    %v1293 = vmul.f32 %v1283, %v1289
    %1296 = vrot.lane.b32.xlu0 %v1284, 64
    %v1297 = vpop.permute.xlu0 %1296
    %1298 = vrot.lane.b32.xlu0 %v1285, 64
    %v1299 = vpop.permute.xlu0 %1298
    %v1302 = vmul.f32 %v1282, %v1297
    %v1303 = vmul.f32 %v1283, %v1299
    %1306 = vrot.lane.b32.xlu0 %v1302, 32
    %v1307 = vpop.permute.xlu0 %1306
    %1308 = vrot.lane.b32.xlu0 %v1303, 32
    %v1309 = vpop.permute.xlu0 %1308
    %v1312 = vadd.f32 %v1292, %v1307
    %v1313 = vadd.f32 %v1293, %v1309
    %v1314 = vtanh.pop %v1312
    %v1315 = vtanh.pop %v1313
    %1318 = vrot.lane.b32.xlu0 %v1314, 64
    %v1319 = vpop.permute.xlu0 %1318
    %1320 = vrot.lane.b32.xlu0 %v1315, 64
    %v1321 = vpop.permute.xlu0 %1320
    %v1324 = vmul.f32 %v1282, %v1319
    %v1325 = vmul.f32 %v1283, %v1321
    %v1328 = vrot.slane %v1324, 6
    %v1329 = vrot.slane %v1325, 5
    %v1330 = vsel %vm503, %v1329, %v1328
    %1331 = vrot.lane.b32.xlu0 %v1330, 32
    %v1332 = vpop.permute.xlu0 %1331
    %v1333 = vsel %vm135, %v1332, 0
    %1335 = vmatprep.subr.mxu0 0.0
    %1336 = vmatpush1.msra.mxu0 0.0
    %1337 = vmatprep.subr.mxu0 0.0
    %1338 = vmatpush1.msra.mxu0 0.0
    %1339 = vmatprep.subr.mxu0 0.0
    %1340 = vmatpush1.msra.mxu0 0.0
    %1341 = vmatprep.subr.mxu0 0.0
    %1342 = vmatpush1.msra.mxu0 0.0
    %1343 = vmatprep.subr.mxu0 0.0
    %1344 = vmatpush1.msra.mxu0 0.0
    %1345 = vmatprep.subr.mxu0 0.0
    %1346 = vmatpush1.msra.mxu0 0.0
    %1347 = vmatprep.subr.mxu0 0.0
    %1348 = vmatpush1.msra.mxu0 0.0
    %1349 = vmatprep.subr.mxu0 0.0
    %1350 = vmatpush1.msra.mxu0 0.0
    %1351 = vmatprep.subr.mxu0 0.0
    %1352 = vmatpush1.msra.mxu0 0.0
    %1353 = vmatprep.subr.mxu0 0.0
    %1354 = vmatpush1.msra.mxu0 0.0
    %1355 = vmatprep.subr.mxu0 0.0
    %1356 = vmatpush1.msra.mxu0 0.0
    %1357 = vmatprep.subr.mxu0 0.0
    %1358 = vmatpush1.msra.mxu0 0.0
    %1359 = vmatprep.subr.mxu0 0.0
    %1360 = vmatpush1.msra.mxu0 %v279
    %1361 = vmatprep.subr.mxu0 0.0
    %1362 = vmatpush1.msra.mxu0 %v278
    %1363 = vmatprep.subr.mxu0 0.0
    %1364 = vmatpush1.msra.mxu0 %v277
    %1365 = vmatprep.subr.mxu0 0.0
    %1366 = vmatpush1.msra.mxu0 %v276
    %1367 = vmatprep.subr.mxu0 0.0
    %1368 = vmatpush2.msra.mxu0 0.0
    %1369 = vmatprep.subr.mxu0 0.0
    %1370 = vmatpush2.msra.mxu0 0.0
    %1371 = vmatprep.subr.mxu0 0.0
    %1372 = vmatpush2.msra.mxu0 0.0
    %1373 = vmatprep.subr.mxu0 0.0
    %1374 = vmatpush2.msra.mxu0 0.0
    %1375 = vmatprep.subr.mxu0 0.0
    %1376 = vmatpush2.msra.mxu0 0.0
    %1377 = vmatprep.subr.mxu0 0.0
    %1378 = vmatpush2.msra.mxu0 0.0
    %1379 = vmatprep.subr.mxu0 0.0
    %1380 = vmatpush2.msra.mxu0 0.0
    %1381 = vmatprep.subr.mxu0 0.0
    %1382 = vmatpush2.msra.mxu0 0.0
    %1383 = vmatprep.subr.mxu0 0.0
    %1384 = vmatpush2.msra.mxu0 0.0
    %1385 = vmatprep.subr.mxu0 0.0
    %1386 = vmatpush2.msra.mxu0 0.0
    %1387 = vmatprep.subr.mxu0 0.0
    %1388 = vmatpush2.msra.mxu0 0.0
    %1389 = vmatprep.subr.mxu0 0.0
    %1390 = vmatpush2.msra.mxu0 0.0
    %1391 = vmatprep.subr.mxu0 0.0
    %1392 = vmatpush2.msra.mxu0 0.0
    %1393 = vmatprep.subr.mxu0 0.0
    %1394 = vmatpush2.msra.mxu0 0.0
    %1395 = vmatprep.subr.mxu0 0.0
    %1396 = vmatpush2.msra.mxu0 0.0
    %1397 = vmatprep.subr.mxu0 0.0
    %1398 = vmatpush2.msra.mxu0 0.0
    %1399 = vmatprep.mubr.f32.mxu0 0.0
    %1400 = vmatmul.mubr.f32.gmra.mxu0 %v1333
    %v1401 = vpop.f32.mrf.mxu0
    %v1402 = vadd.f32 0.0, %v1401
    %v1403 = vpop.f32.mrf.mxu0
    %1404 = vdwg.mxu0
    %v1406 = vrot.slane %v1402, 1
    %v1407 = vrot.slane %v1402, 2
    %v1410 = vadd.f32 %v361, %v1406
    %v1411 = vadd.f32 %v366, %v1407
    %v1412 = vadd.f32 %v1410, %v452
    %v1413 = vadd.f32 %v1411, %v452
    %v1414 = vmul.f32 %v1412, 0.5
    %v1415 = vmul.f32 %v1413, 0.5
    %v1416 = vtanh.pop %v1414
    %v1417 = vtanh.pop %v1415
    %v1418 = vadd.f32 %v1416, 1.0
    %v1419 = vadd.f32 %v1417, 1.0
    %v1420 = vmul.f32 %v1418, 0.5
    %v1421 = vmul.f32 %v1419, 0.5
    %v1422 = vtanh.pop %v1412
    %v1423 = vtanh.pop %v1413
    %v1426 = vrot.slane %v1312, 7
    %v1427 = vrot.slane %v1313, 7
    %v1430 = vmul.f32 %v1420, %v1426
    %v1431 = vmul.f32 %v1421, %v1427
    %1434 = vrot.lane.b32.xlu0 %v1422, 64
    %v1435 = vpop.permute.xlu0 %1434
    %1436 = vrot.lane.b32.xlu0 %v1423, 64
    %v1437 = vpop.permute.xlu0 %1436
    %v1440 = vmul.f32 %v1420, %v1435
    %v1441 = vmul.f32 %v1421, %v1437
    %1444 = vrot.lane.b32.xlu0 %v1440, 32
    %v1445 = vpop.permute.xlu0 %1444
    %1446 = vrot.lane.b32.xlu0 %v1441, 32
    %v1447 = vpop.permute.xlu0 %1446
    %v1450 = vadd.f32 %v1430, %v1445
    %v1451 = vadd.f32 %v1431, %v1447
    %v1452 = vtanh.pop %v1450
    %v1453 = vtanh.pop %v1451
    %1456 = vrot.lane.b32.xlu0 %v1452, 64
    %v1457 = vpop.permute.xlu0 %1456
    %1458 = vrot.lane.b32.xlu0 %v1453, 64
    %v1459 = vpop.permute.xlu0 %1458
    %v1462 = vmul.f32 %v1420, %v1457
    %v1463 = vmul.f32 %v1421, %v1459
    %v1464 = vsel %vm87, %v498, %v635
    %v1465 = vsel %vm87, %v499, %v636
    %v1466 = vsel %vm101, %v1464, %v772
    %v1467 = vsel %vm101, %v1465, %v773
    %vm1468 = vcmask 1042432
    %v1469 = vsel %vm1468, %v1466, %v910
    %v1470 = vsel %vm1468, %v1467, %v911
    %vm1471 = vcmask 1043456
    %v1472 = vsel %vm1471, %v1469, %v1048
    %v1473 = vsel %vm1471, %v1470, %v1049
    %vm1474 = vcmask 1044480
    %v1475 = vsel %vm1474, %v1472, %v1186
    %v1476 = vsel %vm1474, %v1473, %v1187
    %v1477 = vsel %vm108, %v1475, %v1324
    %v1478 = vsel %vm108, %v1476, %v1325
    %v1479 = vsel %vm94, %v1477, %v1462
    %v1480 = vsel %vm94, %v1478, %v1463
    %s1481 = scalar_lea.vmem %s4, 32
    %v1482 = vld [vmem:[%s1481] sm:$0xff]
    %v1483 = vld [vmem:[%s1481 + $0x8] sm:$0xff]
    %v1484 = vld [vmem:[%s1481 + $0x10] sm:$0xff]
    %v1485 = vld [vmem:[%s1481 + $0x18] sm:$0xff]
    %s1486 = scalar_lea.vmem %s5, 32
    %v1487 = vld [vmem:[%s1486] sm:$0xff]
    %v1488 = vld [vmem:[%s1486 + $0x8] sm:$0xff]
    %v1489 = vld [vmem:[%s1486 + $0x10] sm:$0xff]
    %v1490 = vld [vmem:[%s1486 + $0x18] sm:$0xff]
    %s1491 = scalar_lea.vmem %s6, 1
    %v1492 = vld [vmem:[%s1491] sm:$0x1]
    %s1493 = scalar_lea.vmem %s7, 1
    %v1494 = vld [vmem:[%s1493] sm:$0x1]
    %v1496 = vlaneseq
    %v1497 = vshrl.u32 %v1496, 7
    %v1498 = vsub.s32 0, %v1497
    %v1499 = vrot.slane %v1492, %v1498
    %1503 = vrot.lane.b32.xlu0 %v1479, 32
    %v1504 = vpop.permute.xlu0 %1503
    %1505 = vrot.lane.b32.xlu0 %v1480, 32
    %v1506 = vpop.permute.xlu0 %1505
    %v1507 = vsel %vm135, %v1504, 0
    %v1509 = vsel %vm135, %v1506, 0
    %1511 = vmatprep.subr.mxu0 0.0
    %1512 = vmatpush1.msra.mxu0 0.0
    %1513 = vmatprep.subr.mxu0 0.0
    %1514 = vmatpush1.msra.mxu0 0.0
    %1515 = vmatprep.subr.mxu0 0.0
    %1516 = vmatpush1.msra.mxu0 0.0
    %1517 = vmatprep.subr.mxu0 0.0
    %1518 = vmatpush1.msra.mxu0 0.0
    %1519 = vmatprep.subr.mxu0 0.0
    %1520 = vmatpush1.msra.mxu0 0.0
    %1521 = vmatprep.subr.mxu0 0.0
    %1522 = vmatpush1.msra.mxu0 0.0
    %1523 = vmatprep.subr.mxu0 0.0
    %1524 = vmatpush1.msra.mxu0 0.0
    %1525 = vmatprep.subr.mxu0 0.0
    %1526 = vmatpush1.msra.mxu0 0.0
    %1527 = vmatprep.subr.mxu0 0.0
    %1528 = vmatpush1.msra.mxu0 0.0
    %1529 = vmatprep.subr.mxu0 0.0
    %1530 = vmatpush1.msra.mxu0 0.0
    %1531 = vmatprep.subr.mxu0 0.0
    %1532 = vmatpush1.msra.mxu0 0.0
    %1533 = vmatprep.subr.mxu0 0.0
    %1534 = vmatpush1.msra.mxu0 0.0
    %1535 = vmatprep.subr.mxu0 0.0
    %1536 = vmatpush1.msra.mxu0 %v1485
    %1537 = vmatprep.subr.mxu0 0.0
    %1538 = vmatpush1.msra.mxu0 %v1484
    %1539 = vmatprep.subr.mxu0 0.0
    %1540 = vmatpush1.msra.mxu0 %v1483
    %1541 = vmatprep.subr.mxu0 0.0
    %1542 = vmatpush1.msra.mxu0 %v1482
    %1543 = vmatprep.subr.mxu0 0.0
    %1544 = vmatpush2.msra.mxu0 0.0
    %1545 = vmatprep.subr.mxu0 0.0
    %1546 = vmatpush2.msra.mxu0 0.0
    %1547 = vmatprep.subr.mxu0 0.0
    %1548 = vmatpush2.msra.mxu0 0.0
    %1549 = vmatprep.subr.mxu0 0.0
    %1550 = vmatpush2.msra.mxu0 0.0
    %1551 = vmatprep.subr.mxu0 0.0
    %1552 = vmatpush2.msra.mxu0 0.0
    %1553 = vmatprep.subr.mxu0 0.0
    %1554 = vmatpush2.msra.mxu0 0.0
    %1555 = vmatprep.subr.mxu0 0.0
    %1556 = vmatpush2.msra.mxu0 0.0
    %1557 = vmatprep.subr.mxu0 0.0
    %1558 = vmatpush2.msra.mxu0 0.0
    %1559 = vmatprep.subr.mxu0 0.0
    %1560 = vmatpush2.msra.mxu0 0.0
    %1561 = vmatprep.subr.mxu0 0.0
    %1562 = vmatpush2.msra.mxu0 0.0
    %1563 = vmatprep.subr.mxu0 0.0
    %1564 = vmatpush2.msra.mxu0 0.0
    %1565 = vmatprep.subr.mxu0 0.0
    %1566 = vmatpush2.msra.mxu0 0.0
    %1567 = vmatprep.subr.mxu0 0.0
    %1568 = vmatpush2.msra.mxu0 0.0
    %1569 = vmatprep.subr.mxu0 0.0
    %1570 = vmatpush2.msra.mxu0 0.0
    %1571 = vmatprep.subr.mxu0 0.0
    %1572 = vmatpush2.msra.mxu0 0.0
    %1573 = vmatprep.subr.mxu0 0.0
    %1574 = vmatpush2.msra.mxu0 0.0
    %1575 = vmatprep.mubr.f32.mxu0 0.0
    %1576 = vmatmul.mubr.f32.gmra.mxu0 %v1507
    %v1577 = vpop.f32.mrf.mxu0
    %v1578 = vadd.f32 %v1499, %v1577
    %v1579 = vpop.f32.mrf.mxu0
    %1580 = vmatprep.mubr.f32.mxu0 0.0
    %1581 = vmatmul.mubr.f32.gmra.mxu0 %v1509
    %v1582 = vpop.f32.mrf.mxu0
    %v1583 = vadd.f32 %v1499, %v1582
    %v1584 = vpop.f32.mrf.mxu0
    %1585 = vdwg.mxu0
    %1586 = vmatprep.subr.mxu0 0.0
    %1587 = vmatpush1.msra.mxu0 0.0
    %1588 = vmatprep.subr.mxu0 0.0
    %1589 = vmatpush1.msra.mxu0 0.0
    %1590 = vmatprep.subr.mxu0 0.0
    %1591 = vmatpush1.msra.mxu0 0.0
    %1592 = vmatprep.subr.mxu0 0.0
    %1593 = vmatpush1.msra.mxu0 0.0
    %1594 = vmatprep.subr.mxu0 0.0
    %1595 = vmatpush1.msra.mxu0 0.0
    %1596 = vmatprep.subr.mxu0 0.0
    %1597 = vmatpush1.msra.mxu0 0.0
    %1598 = vmatprep.subr.mxu0 0.0
    %1599 = vmatpush1.msra.mxu0 0.0
    %1600 = vmatprep.subr.mxu0 0.0
    %1601 = vmatpush1.msra.mxu0 0.0
    %1602 = vmatprep.subr.mxu0 0.0
    %1603 = vmatpush1.msra.mxu0 0.0
    %1604 = vmatprep.subr.mxu0 0.0
    %1605 = vmatpush1.msra.mxu0 0.0
    %1606 = vmatprep.subr.mxu0 0.0
    %1607 = vmatpush1.msra.mxu0 0.0
    %1608 = vmatprep.subr.mxu0 0.0
    %1609 = vmatpush1.msra.mxu0 0.0
    %1610 = vmatprep.subr.mxu0 0.0
    %1611 = vmatpush1.msra.mxu0 %v1490
    %1612 = vmatprep.subr.mxu0 0.0
    %1613 = vmatpush1.msra.mxu0 %v1489
    %1614 = vmatprep.subr.mxu0 0.0
    %1615 = vmatpush1.msra.mxu0 %v1488
    %1616 = vmatprep.subr.mxu0 0.0
    %1617 = vmatpush1.msra.mxu0 %v1487
    %1618 = vmatprep.subr.mxu0 0.0
    %1619 = vmatpush2.msra.mxu0 0.0
    %1620 = vmatprep.subr.mxu0 0.0
    %1621 = vmatpush2.msra.mxu0 0.0
    %1622 = vmatprep.subr.mxu0 0.0
    %1623 = vmatpush2.msra.mxu0 0.0
    %1624 = vmatprep.subr.mxu0 0.0
    %1625 = vmatpush2.msra.mxu0 0.0
    %1626 = vmatprep.subr.mxu0 0.0
    %1627 = vmatpush2.msra.mxu0 0.0
    %1628 = vmatprep.subr.mxu0 0.0
    %1629 = vmatpush2.msra.mxu0 0.0
    %1630 = vmatprep.subr.mxu0 0.0
    %1631 = vmatpush2.msra.mxu0 0.0
    %1632 = vmatprep.subr.mxu0 0.0
    %1633 = vmatpush2.msra.mxu0 0.0
    %1634 = vmatprep.subr.mxu0 0.0
    %1635 = vmatpush2.msra.mxu0 0.0
    %1636 = vmatprep.subr.mxu0 0.0
    %1637 = vmatpush2.msra.mxu0 0.0
    %1638 = vmatprep.subr.mxu0 0.0
    %1639 = vmatpush2.msra.mxu0 0.0
    %1640 = vmatprep.subr.mxu0 0.0
    %1641 = vmatpush2.msra.mxu0 0.0
    %1642 = vmatprep.subr.mxu0 0.0
    %1643 = vmatpush2.msra.mxu0 0.0
    %1644 = vmatprep.subr.mxu0 0.0
    %1645 = vmatpush2.msra.mxu0 0.0
    %1646 = vmatprep.subr.mxu0 0.0
    %1647 = vmatpush2.msra.mxu0 0.0
    %1648 = vmatprep.subr.mxu0 0.0
    %1649 = vmatpush2.msra.mxu0 0.0
    %1650 = vmatprep.mubr.f32.mxu0 0.0
    %1651 = vmatmul.mubr.f32.gmra.mxu0 %v370
    %v1652 = vpop.f32.mrf.mxu0
    %v1653 = vadd.f32 0.0, %v1652
    %v1654 = vpop.f32.mrf.mxu0
    %1655 = vdwg.mxu0
    %v1657 = vrot.slane %v1653, 1
    %v1660 = vadd.f32 %v1578, %v1653
    %v1661 = vadd.f32 %v1583, %v1657
    %v1663 = vlaneseq
    %v1664 = vshrl.u32 %v1663, 7
    %v1665 = vsub.s32 0, %v1664
    %v1666 = vrot.slane %v1494, %v1665
    %v1668 = vadd.f32 %v1660, %v1666
    %v1669 = vadd.f32 %v1661, %v1666
    %v1670 = vmul.f32 %v1668, 0.5
    %v1671 = vmul.f32 %v1669, 0.5
    %v1672 = vtanh.pop %v1670
    %v1673 = vtanh.pop %v1671
    %v1674 = vadd.f32 %v1672, 1.0
    %v1675 = vadd.f32 %v1673, 1.0
    %v1676 = vmul.f32 %v1674, 0.5
    %v1677 = vmul.f32 %v1675, 0.5
    %v1678 = vtanh.pop %v1668
    %v1679 = vtanh.pop %v1669
    %v1680 = vmul.f32 %v1676, 0.0
    %v1681 = vmul.f32 %v1677, 0.0
    %1684 = vrot.lane.b32.xlu0 %v1678, 64
    %v1685 = vpop.permute.xlu0 %1684
    %1686 = vrot.lane.b32.xlu0 %v1679, 64
    %v1687 = vpop.permute.xlu0 %1686
    %v1690 = vmul.f32 %v1676, %v1685
    %v1691 = vmul.f32 %v1677, %v1687
    %1694 = vrot.lane.b32.xlu0 %v1690, 32
    %v1695 = vpop.permute.xlu0 %1694
    %1696 = vrot.lane.b32.xlu0 %v1691, 32
    %v1697 = vpop.permute.xlu0 %1696
    %v1700 = vadd.f32 %v1680, %v1695
    %v1701 = vadd.f32 %v1681, %v1697
    %v1702 = vtanh.pop %v1700
    %v1703 = vtanh.pop %v1701
    %1706 = vrot.lane.b32.xlu0 %v1702, 64
    %v1707 = vpop.permute.xlu0 %1706
    %1708 = vrot.lane.b32.xlu0 %v1703, 64
    %v1709 = vpop.permute.xlu0 %1708
    %v1712 = vmul.f32 %v1676, %v1707
    %v1713 = vmul.f32 %v1677, %v1709
    %v1716 = vrot.slane %v1713, 7
    %v1717 = vsel %vm503, %v1716, %v1712
    %1718 = vrot.lane.b32.xlu0 %v1717, 32
    %v1719 = vpop.permute.xlu0 %1718
    %v1720 = vsel %vm135, %v1719, 0
    %1722 = vmatprep.subr.mxu0 0.0
    %1723 = vmatpush1.msra.mxu0 0.0
    %1724 = vmatprep.subr.mxu0 0.0
    %1725 = vmatpush1.msra.mxu0 0.0
    %1726 = vmatprep.subr.mxu0 0.0
    %1727 = vmatpush1.msra.mxu0 0.0
    %1728 = vmatprep.subr.mxu0 0.0
    %1729 = vmatpush1.msra.mxu0 0.0
    %1730 = vmatprep.subr.mxu0 0.0
    %1731 = vmatpush1.msra.mxu0 0.0
    %1732 = vmatprep.subr.mxu0 0.0
    %1733 = vmatpush1.msra.mxu0 0.0
    %1734 = vmatprep.subr.mxu0 0.0
    %1735 = vmatpush1.msra.mxu0 0.0
    %1736 = vmatprep.subr.mxu0 0.0
    %1737 = vmatpush1.msra.mxu0 0.0
    %1738 = vmatprep.subr.mxu0 0.0
    %1739 = vmatpush1.msra.mxu0 0.0
    %1740 = vmatprep.subr.mxu0 0.0
    %1741 = vmatpush1.msra.mxu0 0.0
    %1742 = vmatprep.subr.mxu0 0.0
    %1743 = vmatpush1.msra.mxu0 0.0
    %1744 = vmatprep.subr.mxu0 0.0
    %1745 = vmatpush1.msra.mxu0 0.0
    %1746 = vmatprep.subr.mxu0 0.0
    %1747 = vmatpush1.msra.mxu0 %v1490
    %1748 = vmatprep.subr.mxu0 0.0
    %1749 = vmatpush1.msra.mxu0 %v1489
    %1750 = vmatprep.subr.mxu0 0.0
    %1751 = vmatpush1.msra.mxu0 %v1488
    %1752 = vmatprep.subr.mxu0 0.0
    %1753 = vmatpush1.msra.mxu0 %v1487
    %1754 = vmatprep.subr.mxu0 0.0
    %1755 = vmatpush2.msra.mxu0 0.0
    %1756 = vmatprep.subr.mxu0 0.0
    %1757 = vmatpush2.msra.mxu0 0.0
    %1758 = vmatprep.subr.mxu0 0.0
    %1759 = vmatpush2.msra.mxu0 0.0
    %1760 = vmatprep.subr.mxu0 0.0
    %1761 = vmatpush2.msra.mxu0 0.0
    %1762 = vmatprep.subr.mxu0 0.0
    %1763 = vmatpush2.msra.mxu0 0.0
    %1764 = vmatprep.subr.mxu0 0.0
    %1765 = vmatpush2.msra.mxu0 0.0
    %1766 = vmatprep.subr.mxu0 0.0
    %1767 = vmatpush2.msra.mxu0 0.0
    %1768 = vmatprep.subr.mxu0 0.0
    %1769 = vmatpush2.msra.mxu0 0.0
    %1770 = vmatprep.subr.mxu0 0.0
    %1771 = vmatpush2.msra.mxu0 0.0
    %1772 = vmatprep.subr.mxu0 0.0
    %1773 = vmatpush2.msra.mxu0 0.0
    %1774 = vmatprep.subr.mxu0 0.0
    %1775 = vmatpush2.msra.mxu0 0.0
    %1776 = vmatprep.subr.mxu0 0.0
    %1777 = vmatpush2.msra.mxu0 0.0
    %1778 = vmatprep.subr.mxu0 0.0
    %1779 = vmatpush2.msra.mxu0 0.0
    %1780 = vmatprep.subr.mxu0 0.0
    %1781 = vmatpush2.msra.mxu0 0.0
    %1782 = vmatprep.subr.mxu0 0.0
    %1783 = vmatpush2.msra.mxu0 0.0
    %1784 = vmatprep.subr.mxu0 0.0
    %1785 = vmatpush2.msra.mxu0 0.0
    %1786 = vmatprep.mubr.f32.mxu0 0.0
    %1787 = vmatmul.mubr.f32.gmra.mxu0 %v1720
    %v1788 = vpop.f32.mrf.mxu0
    %v1789 = vadd.f32 0.0, %v1788
    %v1790 = vpop.f32.mrf.mxu0
    %1791 = vdwg.mxu0
    %v1793 = vrot.slane %v1789, 7
    %v1796 = vadd.f32 %v1578, %v1793
    %v1797 = vadd.f32 %v1583, %v1789
    %v1798 = vadd.f32 %v1796, %v1666
    %v1799 = vadd.f32 %v1797, %v1666
    %v1800 = vmul.f32 %v1798, 0.5
    %v1801 = vmul.f32 %v1799, 0.5
    %v1802 = vtanh.pop %v1800
    %v1803 = vtanh.pop %v1801
    %v1804 = vadd.f32 %v1802, 1.0
    %v1805 = vadd.f32 %v1803, 1.0
    %v1806 = vmul.f32 %v1804, 0.5
    %v1807 = vmul.f32 %v1805, 0.5
    %v1808 = vtanh.pop %v1798
    %v1809 = vtanh.pop %v1799
    %v1812 = vrot.slane %v1700, 7
    %v1813 = vrot.slane %v1701, 7
    %v1816 = vmul.f32 %v1806, %v1812
    %v1817 = vmul.f32 %v1807, %v1813
    %1820 = vrot.lane.b32.xlu0 %v1808, 64
    %v1821 = vpop.permute.xlu0 %1820
    %1822 = vrot.lane.b32.xlu0 %v1809, 64
    %v1823 = vpop.permute.xlu0 %1822
    %v1826 = vmul.f32 %v1806, %v1821
    %v1827 = vmul.f32 %v1807, %v1823
    %1830 = vrot.lane.b32.xlu0 %v1826, 32
    %v1831 = vpop.permute.xlu0 %1830
    %1832 = vrot.lane.b32.xlu0 %v1827, 32
    %v1833 = vpop.permute.xlu0 %1832
    %v1836 = vadd.f32 %v1816, %v1831
    %v1837 = vadd.f32 %v1817, %v1833
    %v1838 = vtanh.pop %v1836
    %v1839 = vtanh.pop %v1837
    %1842 = vrot.lane.b32.xlu0 %v1838, 64
    %v1843 = vpop.permute.xlu0 %1842
    %1844 = vrot.lane.b32.xlu0 %v1839, 64
    %v1845 = vpop.permute.xlu0 %1844
    %v1848 = vmul.f32 %v1806, %v1843
    %v1849 = vmul.f32 %v1807, %v1845
    %v1852 = vrot.slane %v1848, 1
    %v1853 = vsel %vm503, %v1849, %v1852
    %1854 = vrot.lane.b32.xlu0 %v1853, 32
    %v1855 = vpop.permute.xlu0 %1854
    %v1856 = vsel %vm135, %v1855, 0
    %1858 = vmatprep.subr.mxu0 0.0
    %1859 = vmatpush1.msra.mxu0 0.0
    %1860 = vmatprep.subr.mxu0 0.0
    %1861 = vmatpush1.msra.mxu0 0.0
    %1862 = vmatprep.subr.mxu0 0.0
    %1863 = vmatpush1.msra.mxu0 0.0
    %1864 = vmatprep.subr.mxu0 0.0
    %1865 = vmatpush1.msra.mxu0 0.0
    %1866 = vmatprep.subr.mxu0 0.0
    %1867 = vmatpush1.msra.mxu0 0.0
    %1868 = vmatprep.subr.mxu0 0.0
    %1869 = vmatpush1.msra.mxu0 0.0
    %1870 = vmatprep.subr.mxu0 0.0
    %1871 = vmatpush1.msra.mxu0 0.0
    %1872 = vmatprep.subr.mxu0 0.0
    %1873 = vmatpush1.msra.mxu0 0.0
    %1874 = vmatprep.subr.mxu0 0.0
    %1875 = vmatpush1.msra.mxu0 0.0
    %1876 = vmatprep.subr.mxu0 0.0
    %1877 = vmatpush1.msra.mxu0 0.0
    %1878 = vmatprep.subr.mxu0 0.0
    %1879 = vmatpush1.msra.mxu0 0.0
    %1880 = vmatprep.subr.mxu0 0.0
    %1881 = vmatpush1.msra.mxu0 0.0
    %1882 = vmatprep.subr.mxu0 0.0
    %1883 = vmatpush1.msra.mxu0 %v1490
    %1884 = vmatprep.subr.mxu0 0.0
    %1885 = vmatpush1.msra.mxu0 %v1489
    %1886 = vmatprep.subr.mxu0 0.0
    %1887 = vmatpush1.msra.mxu0 %v1488
    %1888 = vmatprep.subr.mxu0 0.0
    %1889 = vmatpush1.msra.mxu0 %v1487
    %1890 = vmatprep.subr.mxu0 0.0
    %1891 = vmatpush2.msra.mxu0 0.0
    %1892 = vmatprep.subr.mxu0 0.0
    %1893 = vmatpush2.msra.mxu0 0.0
    %1894 = vmatprep.subr.mxu0 0.0
    %1895 = vmatpush2.msra.mxu0 0.0
    %1896 = vmatprep.subr.mxu0 0.0
    %1897 = vmatpush2.msra.mxu0 0.0
    %1898 = vmatprep.subr.mxu0 0.0
    %1899 = vmatpush2.msra.mxu0 0.0
    %1900 = vmatprep.subr.mxu0 0.0
    %1901 = vmatpush2.msra.mxu0 0.0
    %1902 = vmatprep.subr.mxu0 0.0
    %1903 = vmatpush2.msra.mxu0 0.0
    %1904 = vmatprep.subr.mxu0 0.0
    %1905 = vmatpush2.msra.mxu0 0.0
    %1906 = vmatprep.subr.mxu0 0.0
    %1907 = vmatpush2.msra.mxu0 0.0
    %1908 = vmatprep.subr.mxu0 0.0
    %1909 = vmatpush2.msra.mxu0 0.0
    %1910 = vmatprep.subr.mxu0 0.0
    %1911 = vmatpush2.msra.mxu0 0.0
    %1912 = vmatprep.subr.mxu0 0.0
    %1913 = vmatpush2.msra.mxu0 0.0
    %1914 = vmatprep.subr.mxu0 0.0
    %1915 = vmatpush2.msra.mxu0 0.0
    %1916 = vmatprep.subr.mxu0 0.0
    %1917 = vmatpush2.msra.mxu0 0.0
    %1918 = vmatprep.subr.mxu0 0.0
    %1919 = vmatpush2.msra.mxu0 0.0
    %1920 = vmatprep.subr.mxu0 0.0
    %1921 = vmatpush2.msra.mxu0 0.0
    %1922 = vmatprep.mubr.f32.mxu0 0.0
    %1923 = vmatmul.mubr.f32.gmra.mxu0 %v1856
    %v1924 = vpop.f32.mrf.mxu0
    %v1925 = vadd.f32 0.0, %v1924
    %v1926 = vpop.f32.mrf.mxu0
    %1927 = vdwg.mxu0
    %v1929 = vrot.slane %v1925, 6
    %v1930 = vrot.slane %v1925, 7
    %v1933 = vadd.f32 %v1578, %v1929
    %v1934 = vadd.f32 %v1583, %v1930
    %v1935 = vadd.f32 %v1933, %v1666
    %v1936 = vadd.f32 %v1934, %v1666
    %v1937 = vmul.f32 %v1935, 0.5
    %v1938 = vmul.f32 %v1936, 0.5
    %v1939 = vtanh.pop %v1937
    %v1940 = vtanh.pop %v1938
    %v1941 = vadd.f32 %v1939, 1.0
    %v1942 = vadd.f32 %v1940, 1.0
    %v1943 = vmul.f32 %v1941, 0.5
    %v1944 = vmul.f32 %v1942, 0.5
    %v1945 = vtanh.pop %v1935
    %v1946 = vtanh.pop %v1936
    %v1949 = vrot.slane %v1836, 7
    %v1950 = vrot.slane %v1837, 7
    %v1953 = vmul.f32 %v1943, %v1949
    %v1954 = vmul.f32 %v1944, %v1950
    %1957 = vrot.lane.b32.xlu0 %v1945, 64
    %v1958 = vpop.permute.xlu0 %1957
    %1959 = vrot.lane.b32.xlu0 %v1946, 64
    %v1960 = vpop.permute.xlu0 %1959
    %v1963 = vmul.f32 %v1943, %v1958
    %v1964 = vmul.f32 %v1944, %v1960
    %1967 = vrot.lane.b32.xlu0 %v1963, 32
    %v1968 = vpop.permute.xlu0 %1967
    %1969 = vrot.lane.b32.xlu0 %v1964, 32
    %v1970 = vpop.permute.xlu0 %1969
    %v1973 = vadd.f32 %v1953, %v1968
    %v1974 = vadd.f32 %v1954, %v1970
    %v1975 = vtanh.pop %v1973
    %v1976 = vtanh.pop %v1974
    %1979 = vrot.lane.b32.xlu0 %v1975, 64
    %v1980 = vpop.permute.xlu0 %1979
    %1981 = vrot.lane.b32.xlu0 %v1976, 64
    %v1982 = vpop.permute.xlu0 %1981
    %v1985 = vmul.f32 %v1943, %v1980
    %v1986 = vmul.f32 %v1944, %v1982
    %v1989 = vrot.slane %v1985, 2
    %v1990 = vrot.slane %v1986, 1
    %v1991 = vsel %vm503, %v1990, %v1989
    %1992 = vrot.lane.b32.xlu0 %v1991, 32
    %v1993 = vpop.permute.xlu0 %1992
    %v1994 = vsel %vm135, %v1993, 0
    %1996 = vmatprep.subr.mxu0 0.0
    %1997 = vmatpush1.msra.mxu0 0.0
    %1998 = vmatprep.subr.mxu0 0.0
    %1999 = vmatpush1.msra.mxu0 0.0
    %2000 = vmatprep.subr.mxu0 0.0
    %2001 = vmatpush1.msra.mxu0 0.0
    %2002 = vmatprep.subr.mxu0 0.0
    %2003 = vmatpush1.msra.mxu0 0.0
    %2004 = vmatprep.subr.mxu0 0.0
    %2005 = vmatpush1.msra.mxu0 0.0
    %2006 = vmatprep.subr.mxu0 0.0
    %2007 = vmatpush1.msra.mxu0 0.0
    %2008 = vmatprep.subr.mxu0 0.0
    %2009 = vmatpush1.msra.mxu0 0.0
    %2010 = vmatprep.subr.mxu0 0.0
    %2011 = vmatpush1.msra.mxu0 0.0
    %2012 = vmatprep.subr.mxu0 0.0
    %2013 = vmatpush1.msra.mxu0 0.0
    %2014 = vmatprep.subr.mxu0 0.0
    %2015 = vmatpush1.msra.mxu0 0.0
    %2016 = vmatprep.subr.mxu0 0.0
    %2017 = vmatpush1.msra.mxu0 0.0
    %2018 = vmatprep.subr.mxu0 0.0
    %2019 = vmatpush1.msra.mxu0 0.0
    %2020 = vmatprep.subr.mxu0 0.0
    %2021 = vmatpush1.msra.mxu0 %v1490
    %2022 = vmatprep.subr.mxu0 0.0
    %2023 = vmatpush1.msra.mxu0 %v1489
    %2024 = vmatprep.subr.mxu0 0.0
    %2025 = vmatpush1.msra.mxu0 %v1488
    %2026 = vmatprep.subr.mxu0 0.0
    %2027 = vmatpush1.msra.mxu0 %v1487
    %2028 = vmatprep.subr.mxu0 0.0
    %2029 = vmatpush2.msra.mxu0 0.0
    %2030 = vmatprep.subr.mxu0 0.0
    %2031 = vmatpush2.msra.mxu0 0.0
    %2032 = vmatprep.subr.mxu0 0.0
    %2033 = vmatpush2.msra.mxu0 0.0
    %2034 = vmatprep.subr.mxu0 0.0
    %2035 = vmatpush2.msra.mxu0 0.0
    %2036 = vmatprep.subr.mxu0 0.0
    %2037 = vmatpush2.msra.mxu0 0.0
    %2038 = vmatprep.subr.mxu0 0.0
    %2039 = vmatpush2.msra.mxu0 0.0
    %2040 = vmatprep.subr.mxu0 0.0
    %2041 = vmatpush2.msra.mxu0 0.0
    %2042 = vmatprep.subr.mxu0 0.0
    %2043 = vmatpush2.msra.mxu0 0.0
    %2044 = vmatprep.subr.mxu0 0.0
    %2045 = vmatpush2.msra.mxu0 0.0
    %2046 = vmatprep.subr.mxu0 0.0
    %2047 = vmatpush2.msra.mxu0 0.0
    %2048 = vmatprep.subr.mxu0 0.0
    %2049 = vmatpush2.msra.mxu0 0.0
    %2050 = vmatprep.subr.mxu0 0.0
    %2051 = vmatpush2.msra.mxu0 0.0
    %2052 = vmatprep.subr.mxu0 0.0
    %2053 = vmatpush2.msra.mxu0 0.0
    %2054 = vmatprep.subr.mxu0 0.0
    %2055 = vmatpush2.msra.mxu0 0.0
    %2056 = vmatprep.subr.mxu0 0.0
    %2057 = vmatpush2.msra.mxu0 0.0
    %2058 = vmatprep.subr.mxu0 0.0
    %2059 = vmatpush2.msra.mxu0 0.0
    %2060 = vmatprep.mubr.f32.mxu0 0.0
    %2061 = vmatmul.mubr.f32.gmra.mxu0 %v1994
    %v2062 = vpop.f32.mrf.mxu0
    %v2063 = vadd.f32 0.0, %v2062
    %v2064 = vpop.f32.mrf.mxu0
    %2065 = vdwg.mxu0
    %v2067 = vrot.slane %v2063, 5
    %v2068 = vrot.slane %v2063, 6
    %v2071 = vadd.f32 %v1578, %v2067
    %v2072 = vadd.f32 %v1583, %v2068
    %v2073 = vadd.f32 %v2071, %v1666
    %v2074 = vadd.f32 %v2072, %v1666
    %v2075 = vmul.f32 %v2073, 0.5
    %v2076 = vmul.f32 %v2074, 0.5
    %v2077 = vtanh.pop %v2075
    %v2078 = vtanh.pop %v2076
    %v2079 = vadd.f32 %v2077, 1.0
    %v2080 = vadd.f32 %v2078, 1.0
    %v2081 = vmul.f32 %v2079, 0.5
    %v2082 = vmul.f32 %v2080, 0.5
    %v2083 = vtanh.pop %v2073
    %v2084 = vtanh.pop %v2074
    %v2087 = vrot.slane %v1973, 7
    %v2088 = vrot.slane %v1974, 7
    %v2091 = vmul.f32 %v2081, %v2087
    %v2092 = vmul.f32 %v2082, %v2088
    %2095 = vrot.lane.b32.xlu0 %v2083, 64
    %v2096 = vpop.permute.xlu0 %2095
    %2097 = vrot.lane.b32.xlu0 %v2084, 64
    %v2098 = vpop.permute.xlu0 %2097
    %v2101 = vmul.f32 %v2081, %v2096
    %v2102 = vmul.f32 %v2082, %v2098
    %2105 = vrot.lane.b32.xlu0 %v2101, 32
    %v2106 = vpop.permute.xlu0 %2105
    %2107 = vrot.lane.b32.xlu0 %v2102, 32
    %v2108 = vpop.permute.xlu0 %2107
    %v2111 = vadd.f32 %v2091, %v2106
    %v2112 = vadd.f32 %v2092, %v2108
    %v2113 = vtanh.pop %v2111
    %v2114 = vtanh.pop %v2112
    %2117 = vrot.lane.b32.xlu0 %v2113, 64
    %v2118 = vpop.permute.xlu0 %2117
    %2119 = vrot.lane.b32.xlu0 %v2114, 64
    %v2120 = vpop.permute.xlu0 %2119
    %v2123 = vmul.f32 %v2081, %v2118
    %v2124 = vmul.f32 %v2082, %v2120
    %v2127 = vrot.slane %v2123, 3
    %v2128 = vrot.slane %v2124, 2
    %v2129 = vsel %vm503, %v2128, %v2127
    %2130 = vrot.lane.b32.xlu0 %v2129, 32
    %v2131 = vpop.permute.xlu0 %2130
    %v2132 = vsel %vm135, %v2131, 0
    %2134 = vmatprep.subr.mxu0 0.0
    %2135 = vmatpush1.msra.mxu0 0.0
    %2136 = vmatprep.subr.mxu0 0.0
    %2137 = vmatpush1.msra.mxu0 0.0
    %2138 = vmatprep.subr.mxu0 0.0
    %2139 = vmatpush1.msra.mxu0 0.0
    %2140 = vmatprep.subr.mxu0 0.0
    %2141 = vmatpush1.msra.mxu0 0.0
    %2142 = vmatprep.subr.mxu0 0.0
    %2143 = vmatpush1.msra.mxu0 0.0
    %2144 = vmatprep.subr.mxu0 0.0
    %2145 = vmatpush1.msra.mxu0 0.0
    %2146 = vmatprep.subr.mxu0 0.0
    %2147 = vmatpush1.msra.mxu0 0.0
    %2148 = vmatprep.subr.mxu0 0.0
    %2149 = vmatpush1.msra.mxu0 0.0
    %2150 = vmatprep.subr.mxu0 0.0
    %2151 = vmatpush1.msra.mxu0 0.0
    %2152 = vmatprep.subr.mxu0 0.0
    %2153 = vmatpush1.msra.mxu0 0.0
    %2154 = vmatprep.subr.mxu0 0.0
    %2155 = vmatpush1.msra.mxu0 0.0
    %2156 = vmatprep.subr.mxu0 0.0
    %2157 = vmatpush1.msra.mxu0 0.0
    %2158 = vmatprep.subr.mxu0 0.0
    %2159 = vmatpush1.msra.mxu0 %v1490
    %2160 = vmatprep.subr.mxu0 0.0
    %2161 = vmatpush1.msra.mxu0 %v1489
    %2162 = vmatprep.subr.mxu0 0.0
    %2163 = vmatpush1.msra.mxu0 %v1488
    %2164 = vmatprep.subr.mxu0 0.0
    %2165 = vmatpush1.msra.mxu0 %v1487
    %2166 = vmatprep.subr.mxu0 0.0
    %2167 = vmatpush2.msra.mxu0 0.0
    %2168 = vmatprep.subr.mxu0 0.0
    %2169 = vmatpush2.msra.mxu0 0.0
    %2170 = vmatprep.subr.mxu0 0.0
    %2171 = vmatpush2.msra.mxu0 0.0
    %2172 = vmatprep.subr.mxu0 0.0
    %2173 = vmatpush2.msra.mxu0 0.0
    %2174 = vmatprep.subr.mxu0 0.0
    %2175 = vmatpush2.msra.mxu0 0.0
    %2176 = vmatprep.subr.mxu0 0.0
    %2177 = vmatpush2.msra.mxu0 0.0
    %2178 = vmatprep.subr.mxu0 0.0
    %2179 = vmatpush2.msra.mxu0 0.0
    %2180 = vmatprep.subr.mxu0 0.0
    %2181 = vmatpush2.msra.mxu0 0.0
    %2182 = vmatprep.subr.mxu0 0.0
    %2183 = vmatpush2.msra.mxu0 0.0
    %2184 = vmatprep.subr.mxu0 0.0
    %2185 = vmatpush2.msra.mxu0 0.0
    %2186 = vmatprep.subr.mxu0 0.0
    %2187 = vmatpush2.msra.mxu0 0.0
    %2188 = vmatprep.subr.mxu0 0.0
    %2189 = vmatpush2.msra.mxu0 0.0
    %2190 = vmatprep.subr.mxu0 0.0
    %2191 = vmatpush2.msra.mxu0 0.0
    %2192 = vmatprep.subr.mxu0 0.0
    %2193 = vmatpush2.msra.mxu0 0.0
    %2194 = vmatprep.subr.mxu0 0.0
    %2195 = vmatpush2.msra.mxu0 0.0
    %2196 = vmatprep.subr.mxu0 0.0
    %2197 = vmatpush2.msra.mxu0 0.0
    %2198 = vmatprep.mubr.f32.mxu0 0.0
    %2199 = vmatmul.mubr.f32.gmra.mxu0 %v2132
    %v2200 = vpop.f32.mrf.mxu0
    %v2201 = vadd.f32 0.0, %v2200
    %v2202 = vpop.f32.mrf.mxu0
    %2203 = vdwg.mxu0
    %v2205 = vrot.slane %v2201, 4
    %v2206 = vrot.slane %v2201, 5
    %v2209 = vadd.f32 %v1578, %v2205
    %v2210 = vadd.f32 %v1583, %v2206
    %v2211 = vadd.f32 %v2209, %v1666
    %v2212 = vadd.f32 %v2210, %v1666
    %v2213 = vmul.f32 %v2211, 0.5
    %v2214 = vmul.f32 %v2212, 0.5
    %v2215 = vtanh.pop %v2213
    %v2216 = vtanh.pop %v2214
    %v2217 = vadd.f32 %v2215, 1.0
    %v2218 = vadd.f32 %v2216, 1.0
    %v2219 = vmul.f32 %v2217, 0.5
    %v2220 = vmul.f32 %v2218, 0.5
    %v2221 = vtanh.pop %v2211
    %v2222 = vtanh.pop %v2212
    %v2225 = vrot.slane %v2111, 7
    %v2226 = vrot.slane %v2112, 7
    %v2229 = vmul.f32 %v2219, %v2225
    %v2230 = vmul.f32 %v2220, %v2226
    %2233 = vrot.lane.b32.xlu0 %v2221, 64
    %v2234 = vpop.permute.xlu0 %2233
    %2235 = vrot.lane.b32.xlu0 %v2222, 64
    %v2236 = vpop.permute.xlu0 %2235
    %v2239 = vmul.f32 %v2219, %v2234
    %v2240 = vmul.f32 %v2220, %v2236
    %2243 = vrot.lane.b32.xlu0 %v2239, 32
    %v2244 = vpop.permute.xlu0 %2243
    %2245 = vrot.lane.b32.xlu0 %v2240, 32
    %v2246 = vpop.permute.xlu0 %2245
    %v2249 = vadd.f32 %v2229, %v2244
    %v2250 = vadd.f32 %v2230, %v2246
    %v2251 = vtanh.pop %v2249
    %v2252 = vtanh.pop %v2250
    %2255 = vrot.lane.b32.xlu0 %v2251, 64
    %v2256 = vpop.permute.xlu0 %2255
    %2257 = vrot.lane.b32.xlu0 %v2252, 64
    %v2258 = vpop.permute.xlu0 %2257
    %v2261 = vmul.f32 %v2219, %v2256
    %v2262 = vmul.f32 %v2220, %v2258
    %v2265 = vrot.slane %v2261, 4
    %v2266 = vrot.slane %v2262, 3
    %v2267 = vsel %vm503, %v2266, %v2265
    %2268 = vrot.lane.b32.xlu0 %v2267, 32
    %v2269 = vpop.permute.xlu0 %2268
    %v2270 = vsel %vm135, %v2269, 0
    %2272 = vmatprep.subr.mxu0 0.0
    %2273 = vmatpush1.msra.mxu0 0.0
    %2274 = vmatprep.subr.mxu0 0.0
    %2275 = vmatpush1.msra.mxu0 0.0
    %2276 = vmatprep.subr.mxu0 0.0
    %2277 = vmatpush1.msra.mxu0 0.0
    %2278 = vmatprep.subr.mxu0 0.0
    %2279 = vmatpush1.msra.mxu0 0.0
    %2280 = vmatprep.subr.mxu0 0.0
    %2281 = vmatpush1.msra.mxu0 0.0
    %2282 = vmatprep.subr.mxu0 0.0
    %2283 = vmatpush1.msra.mxu0 0.0
    %2284 = vmatprep.subr.mxu0 0.0
    %2285 = vmatpush1.msra.mxu0 0.0
    %2286 = vmatprep.subr.mxu0 0.0
    %2287 = vmatpush1.msra.mxu0 0.0
    %2288 = vmatprep.subr.mxu0 0.0
    %2289 = vmatpush1.msra.mxu0 0.0
    %2290 = vmatprep.subr.mxu0 0.0
    %2291 = vmatpush1.msra.mxu0 0.0
    %2292 = vmatprep.subr.mxu0 0.0
    %2293 = vmatpush1.msra.mxu0 0.0
    %2294 = vmatprep.subr.mxu0 0.0
    %2295 = vmatpush1.msra.mxu0 0.0
    %2296 = vmatprep.subr.mxu0 0.0
    %2297 = vmatpush1.msra.mxu0 %v1490
    %2298 = vmatprep.subr.mxu0 0.0
    %2299 = vmatpush1.msra.mxu0 %v1489
    %2300 = vmatprep.subr.mxu0 0.0
    %2301 = vmatpush1.msra.mxu0 %v1488
    %2302 = vmatprep.subr.mxu0 0.0
    %2303 = vmatpush1.msra.mxu0 %v1487
    %2304 = vmatprep.subr.mxu0 0.0
    %2305 = vmatpush2.msra.mxu0 0.0
    %2306 = vmatprep.subr.mxu0 0.0
    %2307 = vmatpush2.msra.mxu0 0.0
    %2308 = vmatprep.subr.mxu0 0.0
    %2309 = vmatpush2.msra.mxu0 0.0
    %2310 = vmatprep.subr.mxu0 0.0
    %2311 = vmatpush2.msra.mxu0 0.0
    %2312 = vmatprep.subr.mxu0 0.0
    %2313 = vmatpush2.msra.mxu0 0.0
    %2314 = vmatprep.subr.mxu0 0.0
    %2315 = vmatpush2.msra.mxu0 0.0
    %2316 = vmatprep.subr.mxu0 0.0
    %2317 = vmatpush2.msra.mxu0 0.0
    %2318 = vmatprep.subr.mxu0 0.0
    %2319 = vmatpush2.msra.mxu0 0.0
    %2320 = vmatprep.subr.mxu0 0.0
    %2321 = vmatpush2.msra.mxu0 0.0
    %2322 = vmatprep.subr.mxu0 0.0
    %2323 = vmatpush2.msra.mxu0 0.0
    %2324 = vmatprep.subr.mxu0 0.0
    %2325 = vmatpush2.msra.mxu0 0.0
    %2326 = vmatprep.subr.mxu0 0.0
    %2327 = vmatpush2.msra.mxu0 0.0
    %2328 = vmatprep.subr.mxu0 0.0
    %2329 = vmatpush2.msra.mxu0 0.0
    %2330 = vmatprep.subr.mxu0 0.0
    %2331 = vmatpush2.msra.mxu0 0.0
    %2332 = vmatprep.subr.mxu0 0.0
    %2333 = vmatpush2.msra.mxu0 0.0
    %2334 = vmatprep.subr.mxu0 0.0
    %2335 = vmatpush2.msra.mxu0 0.0
    %2336 = vmatprep.mubr.f32.mxu0 0.0
    %2337 = vmatmul.mubr.f32.gmra.mxu0 %v2270
    %v2338 = vpop.f32.mrf.mxu0
    %v2339 = vadd.f32 0.0, %v2338
    %v2340 = vpop.f32.mrf.mxu0
    %2341 = vdwg.mxu0
    %v2343 = vrot.slane %v2339, 3
    %v2344 = vrot.slane %v2339, 4
    %v2347 = vadd.f32 %v1578, %v2343
    %v2348 = vadd.f32 %v1583, %v2344
    %v2349 = vadd.f32 %v2347, %v1666
    %v2350 = vadd.f32 %v2348, %v1666
    %v2351 = vmul.f32 %v2349, 0.5
    %v2352 = vmul.f32 %v2350, 0.5
    %v2353 = vtanh.pop %v2351
    %v2354 = vtanh.pop %v2352
    %v2355 = vadd.f32 %v2353, 1.0
    %v2356 = vadd.f32 %v2354, 1.0
    %v2357 = vmul.f32 %v2355, 0.5
    %v2358 = vmul.f32 %v2356, 0.5
    %v2359 = vtanh.pop %v2349
    %v2360 = vtanh.pop %v2350
    %v2363 = vrot.slane %v2249, 7
    %v2364 = vrot.slane %v2250, 7
    %v2367 = vmul.f32 %v2357, %v2363
    %v2368 = vmul.f32 %v2358, %v2364
    %2371 = vrot.lane.b32.xlu0 %v2359, 64
    %v2372 = vpop.permute.xlu0 %2371
    %2373 = vrot.lane.b32.xlu0 %v2360, 64
    %v2374 = vpop.permute.xlu0 %2373
    %v2377 = vmul.f32 %v2357, %v2372
    %v2378 = vmul.f32 %v2358, %v2374
    %2381 = vrot.lane.b32.xlu0 %v2377, 32
    %v2382 = vpop.permute.xlu0 %2381
    %2383 = vrot.lane.b32.xlu0 %v2378, 32
    %v2384 = vpop.permute.xlu0 %2383
    %v2387 = vadd.f32 %v2367, %v2382
    %v2388 = vadd.f32 %v2368, %v2384
    %v2389 = vtanh.pop %v2387
    %v2390 = vtanh.pop %v2388
    %2393 = vrot.lane.b32.xlu0 %v2389, 64
    %v2394 = vpop.permute.xlu0 %2393
    %2395 = vrot.lane.b32.xlu0 %v2390, 64
    %v2396 = vpop.permute.xlu0 %2395
    %v2399 = vmul.f32 %v2357, %v2394
    %v2400 = vmul.f32 %v2358, %v2396
    %v2403 = vrot.slane %v2399, 5
    %v2404 = vrot.slane %v2400, 4
    %v2405 = vsel %vm503, %v2404, %v2403
    %2406 = vrot.lane.b32.xlu0 %v2405, 32
    %v2407 = vpop.permute.xlu0 %2406
    %v2408 = vsel %vm135, %v2407, 0
    %2410 = vmatprep.subr.mxu0 0.0
    %2411 = vmatpush1.msra.mxu0 0.0
    %2412 = vmatprep.subr.mxu0 0.0
    %2413 = vmatpush1.msra.mxu0 0.0
    %2414 = vmatprep.subr.mxu0 0.0
    %2415 = vmatpush1.msra.mxu0 0.0
    %2416 = vmatprep.subr.mxu0 0.0
    %2417 = vmatpush1.msra.mxu0 0.0
    %2418 = vmatprep.subr.mxu0 0.0
    %2419 = vmatpush1.msra.mxu0 0.0
    %2420 = vmatprep.subr.mxu0 0.0
    %2421 = vmatpush1.msra.mxu0 0.0
    %2422 = vmatprep.subr.mxu0 0.0
    %2423 = vmatpush1.msra.mxu0 0.0
    %2424 = vmatprep.subr.mxu0 0.0
    %2425 = vmatpush1.msra.mxu0 0.0
    %2426 = vmatprep.subr.mxu0 0.0
    %2427 = vmatpush1.msra.mxu0 0.0
    %2428 = vmatprep.subr.mxu0 0.0
    %2429 = vmatpush1.msra.mxu0 0.0
    %2430 = vmatprep.subr.mxu0 0.0
    %2431 = vmatpush1.msra.mxu0 0.0
    %2432 = vmatprep.subr.mxu0 0.0
    %2433 = vmatpush1.msra.mxu0 0.0
    %2434 = vmatprep.subr.mxu0 0.0
    %2435 = vmatpush1.msra.mxu0 %v1490
    %2436 = vmatprep.subr.mxu0 0.0
    %2437 = vmatpush1.msra.mxu0 %v1489
    %2438 = vmatprep.subr.mxu0 0.0
    %2439 = vmatpush1.msra.mxu0 %v1488
    %2440 = vmatprep.subr.mxu0 0.0
    %2441 = vmatpush1.msra.mxu0 %v1487
    %2442 = vmatprep.subr.mxu0 0.0
    %2443 = vmatpush2.msra.mxu0 0.0
    %2444 = vmatprep.subr.mxu0 0.0
    %2445 = vmatpush2.msra.mxu0 0.0
    %2446 = vmatprep.subr.mxu0 0.0
    %2447 = vmatpush2.msra.mxu0 0.0
    %2448 = vmatprep.subr.mxu0 0.0
    %2449 = vmatpush2.msra.mxu0 0.0
    %2450 = vmatprep.subr.mxu0 0.0
    %2451 = vmatpush2.msra.mxu0 0.0
    %2452 = vmatprep.subr.mxu0 0.0
    %2453 = vmatpush2.msra.mxu0 0.0
    %2454 = vmatprep.subr.mxu0 0.0
    %2455 = vmatpush2.msra.mxu0 0.0
    %2456 = vmatprep.subr.mxu0 0.0
    %2457 = vmatpush2.msra.mxu0 0.0
    %2458 = vmatprep.subr.mxu0 0.0
    %2459 = vmatpush2.msra.mxu0 0.0
    %2460 = vmatprep.subr.mxu0 0.0
    %2461 = vmatpush2.msra.mxu0 0.0
    %2462 = vmatprep.subr.mxu0 0.0
    %2463 = vmatpush2.msra.mxu0 0.0
    %2464 = vmatprep.subr.mxu0 0.0
    %2465 = vmatpush2.msra.mxu0 0.0
    %2466 = vmatprep.subr.mxu0 0.0
    %2467 = vmatpush2.msra.mxu0 0.0
    %2468 = vmatprep.subr.mxu0 0.0
    %2469 = vmatpush2.msra.mxu0 0.0
    %2470 = vmatprep.subr.mxu0 0.0
    %2471 = vmatpush2.msra.mxu0 0.0
    %2472 = vmatprep.subr.mxu0 0.0
    %2473 = vmatpush2.msra.mxu0 0.0
    %2474 = vmatprep.mubr.f32.mxu0 0.0
    %2475 = vmatmul.mubr.f32.gmra.mxu0 %v2408
    %v2476 = vpop.f32.mrf.mxu0
    %v2477 = vadd.f32 0.0, %v2476
    %v2478 = vpop.f32.mrf.mxu0
    %2479 = vdwg.mxu0
    %v2481 = vrot.slane %v2477, 2
    %v2482 = vrot.slane %v2477, 3
    %v2485 = vadd.f32 %v1578, %v2481
    %v2486 = vadd.f32 %v1583, %v2482
    %v2487 = vadd.f32 %v2485, %v1666
    %v2488 = vadd.f32 %v2486, %v1666
    %v2489 = vmul.f32 %v2487, 0.5
    %v2490 = vmul.f32 %v2488, 0.5
    %v2491 = vtanh.pop %v2489
    %v2492 = vtanh.pop %v2490
    %v2493 = vadd.f32 %v2491, 1.0
    %v2494 = vadd.f32 %v2492, 1.0
    %v2495 = vmul.f32 %v2493, 0.5
    %v2496 = vmul.f32 %v2494, 0.5
    %v2497 = vtanh.pop %v2487
    %v2498 = vtanh.pop %v2488
    %v2501 = vrot.slane %v2387, 7
    %v2502 = vrot.slane %v2388, 7
    %v2505 = vmul.f32 %v2495, %v2501
    %v2506 = vmul.f32 %v2496, %v2502
    %2509 = vrot.lane.b32.xlu0 %v2497, 64
    %v2510 = vpop.permute.xlu0 %2509
    %2511 = vrot.lane.b32.xlu0 %v2498, 64
    %v2512 = vpop.permute.xlu0 %2511
    %v2515 = vmul.f32 %v2495, %v2510
    %v2516 = vmul.f32 %v2496, %v2512
    %2519 = vrot.lane.b32.xlu0 %v2515, 32
    %v2520 = vpop.permute.xlu0 %2519
    %2521 = vrot.lane.b32.xlu0 %v2516, 32
    %v2522 = vpop.permute.xlu0 %2521
    %v2525 = vadd.f32 %v2505, %v2520
    %v2526 = vadd.f32 %v2506, %v2522
    %v2527 = vtanh.pop %v2525
    %v2528 = vtanh.pop %v2526
    %2531 = vrot.lane.b32.xlu0 %v2527, 64
    %v2532 = vpop.permute.xlu0 %2531
    %2533 = vrot.lane.b32.xlu0 %v2528, 64
    %v2534 = vpop.permute.xlu0 %2533
    %v2537 = vmul.f32 %v2495, %v2532
    %v2538 = vmul.f32 %v2496, %v2534
    %v2541 = vrot.slane %v2537, 6
    %v2542 = vrot.slane %v2538, 5
    %v2543 = vsel %vm503, %v2542, %v2541
    %2544 = vrot.lane.b32.xlu0 %v2543, 32
    %v2545 = vpop.permute.xlu0 %2544
    %v2546 = vsel %vm135, %v2545, 0
    %2548 = vmatprep.subr.mxu0 0.0
    %2549 = vmatpush1.msra.mxu0 0.0
    %2550 = vmatprep.subr.mxu0 0.0
    %2551 = vmatpush1.msra.mxu0 0.0
    %2552 = vmatprep.subr.mxu0 0.0
    %2553 = vmatpush1.msra.mxu0 0.0
    %2554 = vmatprep.subr.mxu0 0.0
    %2555 = vmatpush1.msra.mxu0 0.0
    %2556 = vmatprep.subr.mxu0 0.0
    %2557 = vmatpush1.msra.mxu0 0.0
    %2558 = vmatprep.subr.mxu0 0.0
    %2559 = vmatpush1.msra.mxu0 0.0
    %2560 = vmatprep.subr.mxu0 0.0
    %2561 = vmatpush1.msra.mxu0 0.0
    %2562 = vmatprep.subr.mxu0 0.0
    %2563 = vmatpush1.msra.mxu0 0.0
    %2564 = vmatprep.subr.mxu0 0.0
    %2565 = vmatpush1.msra.mxu0 0.0
    %2566 = vmatprep.subr.mxu0 0.0
    %2567 = vmatpush1.msra.mxu0 0.0
    %2568 = vmatprep.subr.mxu0 0.0
    %2569 = vmatpush1.msra.mxu0 0.0
    %2570 = vmatprep.subr.mxu0 0.0
    %2571 = vmatpush1.msra.mxu0 0.0
    %2572 = vmatprep.subr.mxu0 0.0
    %2573 = vmatpush1.msra.mxu0 %v1490
    %2574 = vmatprep.subr.mxu0 0.0
    %2575 = vmatpush1.msra.mxu0 %v1489
    %2576 = vmatprep.subr.mxu0 0.0
    %2577 = vmatpush1.msra.mxu0 %v1488
    %2578 = vmatprep.subr.mxu0 0.0
    %2579 = vmatpush1.msra.mxu0 %v1487
    %2580 = vmatprep.subr.mxu0 0.0
    %2581 = vmatpush2.msra.mxu0 0.0
    %2582 = vmatprep.subr.mxu0 0.0
    %2583 = vmatpush2.msra.mxu0 0.0
    %2584 = vmatprep.subr.mxu0 0.0
    %2585 = vmatpush2.msra.mxu0 0.0
    %2586 = vmatprep.subr.mxu0 0.0
    %2587 = vmatpush2.msra.mxu0 0.0
    %2588 = vmatprep.subr.mxu0 0.0
    %2589 = vmatpush2.msra.mxu0 0.0
    %2590 = vmatprep.subr.mxu0 0.0
    %2591 = vmatpush2.msra.mxu0 0.0
    %2592 = vmatprep.subr.mxu0 0.0
    %2593 = vmatpush2.msra.mxu0 0.0
    %2594 = vmatprep.subr.mxu0 0.0
    %2595 = vmatpush2.msra.mxu0 0.0
    %2596 = vmatprep.subr.mxu0 0.0
    %2597 = vmatpush2.msra.mxu0 0.0
    %2598 = vmatprep.subr.mxu0 0.0
    %2599 = vmatpush2.msra.mxu0 0.0
    %2600 = vmatprep.subr.mxu0 0.0
    %2601 = vmatpush2.msra.mxu0 0.0
    %2602 = vmatprep.subr.mxu0 0.0
    %2603 = vmatpush2.msra.mxu0 0.0
    %2604 = vmatprep.subr.mxu0 0.0
    %2605 = vmatpush2.msra.mxu0 0.0
    %2606 = vmatprep.subr.mxu0 0.0
    %2607 = vmatpush2.msra.mxu0 0.0
    %2608 = vmatprep.subr.mxu0 0.0
    %2609 = vmatpush2.msra.mxu0 0.0
    %2610 = vmatprep.subr.mxu0 0.0
    %2611 = vmatpush2.msra.mxu0 0.0
    %2612 = vmatprep.mubr.f32.mxu0 0.0
    %2613 = vmatmul.mubr.f32.gmra.mxu0 %v2546
    %v2614 = vpop.f32.mrf.mxu0
    %v2615 = vadd.f32 0.0, %v2614
    %v2616 = vpop.f32.mrf.mxu0
    %2617 = vdwg.mxu0
    %v2619 = vrot.slane %v2615, 1
    %v2620 = vrot.slane %v2615, 2
    %v2623 = vadd.f32 %v1578, %v2619
    %v2624 = vadd.f32 %v1583, %v2620
    %v2625 = vadd.f32 %v2623, %v1666
    %v2626 = vadd.f32 %v2624, %v1666
    %v2627 = vmul.f32 %v2625, 0.5
    %v2628 = vmul.f32 %v2626, 0.5
    %v2629 = vtanh.pop %v2627
    %v2630 = vtanh.pop %v2628
    %v2631 = vadd.f32 %v2629, 1.0
    %v2632 = vadd.f32 %v2630, 1.0
    %v2633 = vmul.f32 %v2631, 0.5
    %v2634 = vmul.f32 %v2632, 0.5
    %v2635 = vtanh.pop %v2625
    %v2636 = vtanh.pop %v2626
    %v2639 = vrot.slane %v2525, 7
    %v2640 = vrot.slane %v2526, 7
    %v2643 = vmul.f32 %v2633, %v2639
    %v2644 = vmul.f32 %v2634, %v2640
    %2647 = vrot.lane.b32.xlu0 %v2635, 64
    %v2648 = vpop.permute.xlu0 %2647
    %2649 = vrot.lane.b32.xlu0 %v2636, 64
    %v2650 = vpop.permute.xlu0 %2649
    %v2653 = vmul.f32 %v2633, %v2648
    %v2654 = vmul.f32 %v2634, %v2650
    %2657 = vrot.lane.b32.xlu0 %v2653, 32
    %v2658 = vpop.permute.xlu0 %2657
    %2659 = vrot.lane.b32.xlu0 %v2654, 32
    %v2660 = vpop.permute.xlu0 %2659
    %v2663 = vadd.f32 %v2643, %v2658
    %v2664 = vadd.f32 %v2644, %v2660
    %v2665 = vtanh.pop %v2663
    %v2666 = vtanh.pop %v2664
    %2669 = vrot.lane.b32.xlu0 %v2665, 64
    %v2670 = vpop.permute.xlu0 %2669
    %2671 = vrot.lane.b32.xlu0 %v2666, 64
    %v2672 = vpop.permute.xlu0 %2671
    %v2675 = vmul.f32 %v2633, %v2670
    %v2676 = vmul.f32 %v2634, %v2672
    %v2677 = vsel %vm87, %v1712, %v1848
    %v2678 = vsel %vm87, %v1713, %v1849
    %v2679 = vsel %vm101, %v2677, %v1985
    %v2680 = vsel %vm101, %v2678, %v1986
    %v2681 = vsel %vm1468, %v2679, %v2123
    %v2682 = vsel %vm1468, %v2680, %v2124
    %v2683 = vsel %vm1471, %v2681, %v2261
    %v2684 = vsel %vm1471, %v2682, %v2262
    %v2685 = vsel %vm1474, %v2683, %v2399
    %v2686 = vsel %vm1474, %v2684, %v2400
    %v2687 = vsel %vm108, %v2685, %v2537
    %v2688 = vsel %vm108, %v2686, %v2538
    %v2689 = vsel %vm94, %v2687, %v2675
    %v2690 = vsel %vm94, %v2688, %v2676
    %s2691 = scalar_lea.vmem %s4, 64
    %v2692 = vld [vmem:[%s2691] sm:$0xff]
    %v2693 = vld [vmem:[%s2691 + $0x8] sm:$0xff]
    %v2694 = vld [vmem:[%s2691 + $0x10] sm:$0xff]
    %v2695 = vld [vmem:[%s2691 + $0x18] sm:$0xff]
    %s2696 = scalar_lea.vmem %s5, 64
    %v2697 = vld [vmem:[%s2696] sm:$0xff]
    %v2698 = vld [vmem:[%s2696 + $0x8] sm:$0xff]
    %v2699 = vld [vmem:[%s2696 + $0x10] sm:$0xff]
    %v2700 = vld [vmem:[%s2696 + $0x18] sm:$0xff]
    %s2701 = scalar_lea.vmem %s6, 2
    %v2702 = vld [vmem:[%s2701] sm:$0x1]
    %s2703 = scalar_lea.vmem %s7, 2
    %v2704 = vld [vmem:[%s2703] sm:$0x1]
    %v2706 = vlaneseq
    %v2707 = vshrl.u32 %v2706, 7
    %v2708 = vsub.s32 0, %v2707
    %v2709 = vrot.slane %v2702, %v2708
    %2713 = vrot.lane.b32.xlu0 %v2689, 32
    %v2714 = vpop.permute.xlu0 %2713
    %2715 = vrot.lane.b32.xlu0 %v2690, 32
    %v2716 = vpop.permute.xlu0 %2715
    %v2717 = vsel %vm135, %v2714, 0
    %v2719 = vsel %vm135, %v2716, 0
    %2721 = vmatprep.subr.mxu0 0.0
    %2722 = vmatpush1.msra.mxu0 0.0
    %2723 = vmatprep.subr.mxu0 0.0
    %2724 = vmatpush1.msra.mxu0 0.0
    %2725 = vmatprep.subr.mxu0 0.0
    %2726 = vmatpush1.msra.mxu0 0.0
    %2727 = vmatprep.subr.mxu0 0.0
    %2728 = vmatpush1.msra.mxu0 0.0
    %2729 = vmatprep.subr.mxu0 0.0
    %2730 = vmatpush1.msra.mxu0 0.0
    %2731 = vmatprep.subr.mxu0 0.0
    %2732 = vmatpush1.msra.mxu0 0.0
    %2733 = vmatprep.subr.mxu0 0.0
    %2734 = vmatpush1.msra.mxu0 0.0
    %2735 = vmatprep.subr.mxu0 0.0
    %2736 = vmatpush1.msra.mxu0 0.0
    %2737 = vmatprep.subr.mxu0 0.0
    %2738 = vmatpush1.msra.mxu0 0.0
    %2739 = vmatprep.subr.mxu0 0.0
    %2740 = vmatpush1.msra.mxu0 0.0
    %2741 = vmatprep.subr.mxu0 0.0
    %2742 = vmatpush1.msra.mxu0 0.0
    %2743 = vmatprep.subr.mxu0 0.0
    %2744 = vmatpush1.msra.mxu0 0.0
    %2745 = vmatprep.subr.mxu0 0.0
    %2746 = vmatpush1.msra.mxu0 %v2695
    %2747 = vmatprep.subr.mxu0 0.0
    %2748 = vmatpush1.msra.mxu0 %v2694
    %2749 = vmatprep.subr.mxu0 0.0
    %2750 = vmatpush1.msra.mxu0 %v2693
    %2751 = vmatprep.subr.mxu0 0.0
    %2752 = vmatpush1.msra.mxu0 %v2692
    %2753 = vmatprep.subr.mxu0 0.0
    %2754 = vmatpush2.msra.mxu0 0.0
    %2755 = vmatprep.subr.mxu0 0.0
    %2756 = vmatpush2.msra.mxu0 0.0
    %2757 = vmatprep.subr.mxu0 0.0
    %2758 = vmatpush2.msra.mxu0 0.0
    %2759 = vmatprep.subr.mxu0 0.0
    %2760 = vmatpush2.msra.mxu0 0.0
    %2761 = vmatprep.subr.mxu0 0.0
    %2762 = vmatpush2.msra.mxu0 0.0
    %2763 = vmatprep.subr.mxu0 0.0
    %2764 = vmatpush2.msra.mxu0 0.0
    %2765 = vmatprep.subr.mxu0 0.0
    %2766 = vmatpush2.msra.mxu0 0.0
    %2767 = vmatprep.subr.mxu0 0.0
    %2768 = vmatpush2.msra.mxu0 0.0
    %2769 = vmatprep.subr.mxu0 0.0
    %2770 = vmatpush2.msra.mxu0 0.0
    %2771 = vmatprep.subr.mxu0 0.0
    %2772 = vmatpush2.msra.mxu0 0.0
    %2773 = vmatprep.subr.mxu0 0.0
    %2774 = vmatpush2.msra.mxu0 0.0
    %2775 = vmatprep.subr.mxu0 0.0
    %2776 = vmatpush2.msra.mxu0 0.0
    %2777 = vmatprep.subr.mxu0 0.0
    %2778 = vmatpush2.msra.mxu0 0.0
    %2779 = vmatprep.subr.mxu0 0.0
    %2780 = vmatpush2.msra.mxu0 0.0
    %2781 = vmatprep.subr.mxu0 0.0
    %2782 = vmatpush2.msra.mxu0 0.0
    %2783 = vmatprep.subr.mxu0 0.0
    %2784 = vmatpush2.msra.mxu0 0.0
    %2785 = vmatprep.mubr.f32.mxu0 0.0
    %2786 = vmatmul.mubr.f32.gmra.mxu0 %v2717
    %v2787 = vpop.f32.mrf.mxu0
    %v2788 = vadd.f32 %v2709, %v2787
    %v2789 = vpop.f32.mrf.mxu0
    %2790 = vmatprep.mubr.f32.mxu0 0.0
    %2791 = vmatmul.mubr.f32.gmra.mxu0 %v2719
    %v2792 = vpop.f32.mrf.mxu0
    %v2793 = vadd.f32 %v2709, %v2792
    %v2794 = vpop.f32.mrf.mxu0
    %2795 = vdwg.mxu0
    %2796 = vmatprep.subr.mxu0 0.0
    %2797 = vmatpush1.msra.mxu0 0.0
    %2798 = vmatprep.subr.mxu0 0.0
    %2799 = vmatpush1.msra.mxu0 0.0
    %2800 = vmatprep.subr.mxu0 0.0
    %2801 = vmatpush1.msra.mxu0 0.0
    %2802 = vmatprep.subr.mxu0 0.0
    %2803 = vmatpush1.msra.mxu0 0.0
    %2804 = vmatprep.subr.mxu0 0.0
    %2805 = vmatpush1.msra.mxu0 0.0
    %2806 = vmatprep.subr.mxu0 0.0
    %2807 = vmatpush1.msra.mxu0 0.0
    %2808 = vmatprep.subr.mxu0 0.0
    %2809 = vmatpush1.msra.mxu0 0.0
    %2810 = vmatprep.subr.mxu0 0.0
    %2811 = vmatpush1.msra.mxu0 0.0
    %2812 = vmatprep.subr.mxu0 0.0
    %2813 = vmatpush1.msra.mxu0 0.0
    %2814 = vmatprep.subr.mxu0 0.0
    %2815 = vmatpush1.msra.mxu0 0.0
    %2816 = vmatprep.subr.mxu0 0.0
    %2817 = vmatpush1.msra.mxu0 0.0
    %2818 = vmatprep.subr.mxu0 0.0
    %2819 = vmatpush1.msra.mxu0 0.0
    %2820 = vmatprep.subr.mxu0 0.0
    %2821 = vmatpush1.msra.mxu0 %v2700
    %2822 = vmatprep.subr.mxu0 0.0
    %2823 = vmatpush1.msra.mxu0 %v2699
    %2824 = vmatprep.subr.mxu0 0.0
    %2825 = vmatpush1.msra.mxu0 %v2698
    %2826 = vmatprep.subr.mxu0 0.0
    %2827 = vmatpush1.msra.mxu0 %v2697
    %2828 = vmatprep.subr.mxu0 0.0
    %2829 = vmatpush2.msra.mxu0 0.0
    %2830 = vmatprep.subr.mxu0 0.0
    %2831 = vmatpush2.msra.mxu0 0.0
    %2832 = vmatprep.subr.mxu0 0.0
    %2833 = vmatpush2.msra.mxu0 0.0
    %2834 = vmatprep.subr.mxu0 0.0
    %2835 = vmatpush2.msra.mxu0 0.0
    %2836 = vmatprep.subr.mxu0 0.0
    %2837 = vmatpush2.msra.mxu0 0.0
    %2838 = vmatprep.subr.mxu0 0.0
    %2839 = vmatpush2.msra.mxu0 0.0
    %2840 = vmatprep.subr.mxu0 0.0
    %2841 = vmatpush2.msra.mxu0 0.0
    %2842 = vmatprep.subr.mxu0 0.0
    %2843 = vmatpush2.msra.mxu0 0.0
    %2844 = vmatprep.subr.mxu0 0.0
    %2845 = vmatpush2.msra.mxu0 0.0
    %2846 = vmatprep.subr.mxu0 0.0
    %2847 = vmatpush2.msra.mxu0 0.0
    %2848 = vmatprep.subr.mxu0 0.0
    %2849 = vmatpush2.msra.mxu0 0.0
    %2850 = vmatprep.subr.mxu0 0.0
    %2851 = vmatpush2.msra.mxu0 0.0
    %2852 = vmatprep.subr.mxu0 0.0
    %2853 = vmatpush2.msra.mxu0 0.0
    %2854 = vmatprep.subr.mxu0 0.0
    %2855 = vmatpush2.msra.mxu0 0.0
    %2856 = vmatprep.subr.mxu0 0.0
    %2857 = vmatpush2.msra.mxu0 0.0
    %2858 = vmatprep.subr.mxu0 0.0
    %2859 = vmatpush2.msra.mxu0 0.0
    %2860 = vmatprep.mubr.f32.mxu0 0.0
    %2861 = vmatmul.mubr.f32.gmra.mxu0 %v370
    %v2862 = vpop.f32.mrf.mxu0
    %v2863 = vadd.f32 0.0, %v2862
    %v2864 = vpop.f32.mrf.mxu0
    %2865 = vdwg.mxu0
    %v2867 = vrot.slane %v2863, 1
    %v2870 = vadd.f32 %v2788, %v2863
    %v2871 = vadd.f32 %v2793, %v2867
    %v2873 = vlaneseq
    %v2874 = vshrl.u32 %v2873, 7
    %v2875 = vsub.s32 0, %v2874
    %v2876 = vrot.slane %v2704, %v2875
    %v2878 = vadd.f32 %v2870, %v2876
    %v2879 = vadd.f32 %v2871, %v2876
    %v2880 = vmul.f32 %v2878, 0.5
    %v2881 = vmul.f32 %v2879, 0.5
    %v2882 = vtanh.pop %v2880
    %v2883 = vtanh.pop %v2881
    %v2884 = vadd.f32 %v2882, 1.0
    %v2885 = vadd.f32 %v2883, 1.0
    %v2886 = vmul.f32 %v2884, 0.5
    %v2887 = vmul.f32 %v2885, 0.5
    %v2888 = vtanh.pop %v2878
    %v2889 = vtanh.pop %v2879
    %v2890 = vmul.f32 %v2886, 0.0
    %v2891 = vmul.f32 %v2887, 0.0
    %2894 = vrot.lane.b32.xlu0 %v2888, 64
    %v2895 = vpop.permute.xlu0 %2894
    %2896 = vrot.lane.b32.xlu0 %v2889, 64
    %v2897 = vpop.permute.xlu0 %2896
    %v2900 = vmul.f32 %v2886, %v2895
    %v2901 = vmul.f32 %v2887, %v2897
    %2904 = vrot.lane.b32.xlu0 %v2900, 32
    %v2905 = vpop.permute.xlu0 %2904
    %2906 = vrot.lane.b32.xlu0 %v2901, 32
    %v2907 = vpop.permute.xlu0 %2906
    %v2910 = vadd.f32 %v2890, %v2905
    %v2911 = vadd.f32 %v2891, %v2907
    %v2912 = vtanh.pop %v2910
    %v2913 = vtanh.pop %v2911
    %2916 = vrot.lane.b32.xlu0 %v2912, 64
    %v2917 = vpop.permute.xlu0 %2916
    %2918 = vrot.lane.b32.xlu0 %v2913, 64
    %v2919 = vpop.permute.xlu0 %2918
    %v2922 = vmul.f32 %v2886, %v2917
    %v2923 = vmul.f32 %v2887, %v2919
    %v2926 = vrot.slane %v2923, 7
    %v2927 = vsel %vm503, %v2926, %v2922
    %2928 = vrot.lane.b32.xlu0 %v2927, 32
    %v2929 = vpop.permute.xlu0 %2928
    %v2930 = vsel %vm135, %v2929, 0
    %2932 = vmatprep.subr.mxu0 0.0
    %2933 = vmatpush1.msra.mxu0 0.0
    %2934 = vmatprep.subr.mxu0 0.0
    %2935 = vmatpush1.msra.mxu0 0.0
    %2936 = vmatprep.subr.mxu0 0.0
    %2937 = vmatpush1.msra.mxu0 0.0
    %2938 = vmatprep.subr.mxu0 0.0
    %2939 = vmatpush1.msra.mxu0 0.0
    %2940 = vmatprep.subr.mxu0 0.0
    %2941 = vmatpush1.msra.mxu0 0.0
    %2942 = vmatprep.subr.mxu0 0.0
    %2943 = vmatpush1.msra.mxu0 0.0
    %2944 = vmatprep.subr.mxu0 0.0
    %2945 = vmatpush1.msra.mxu0 0.0
    %2946 = vmatprep.subr.mxu0 0.0
    %2947 = vmatpush1.msra.mxu0 0.0
    %2948 = vmatprep.subr.mxu0 0.0
    %2949 = vmatpush1.msra.mxu0 0.0
    %2950 = vmatprep.subr.mxu0 0.0
    %2951 = vmatpush1.msra.mxu0 0.0
    %2952 = vmatprep.subr.mxu0 0.0
    %2953 = vmatpush1.msra.mxu0 0.0
    %2954 = vmatprep.subr.mxu0 0.0
    %2955 = vmatpush1.msra.mxu0 0.0
    %2956 = vmatprep.subr.mxu0 0.0
    %2957 = vmatpush1.msra.mxu0 %v2700
    %2958 = vmatprep.subr.mxu0 0.0
    %2959 = vmatpush1.msra.mxu0 %v2699
    %2960 = vmatprep.subr.mxu0 0.0
    %2961 = vmatpush1.msra.mxu0 %v2698
    %2962 = vmatprep.subr.mxu0 0.0
    %2963 = vmatpush1.msra.mxu0 %v2697
    %2964 = vmatprep.subr.mxu0 0.0
    %2965 = vmatpush2.msra.mxu0 0.0
    %2966 = vmatprep.subr.mxu0 0.0
    %2967 = vmatpush2.msra.mxu0 0.0
    %2968 = vmatprep.subr.mxu0 0.0
    %2969 = vmatpush2.msra.mxu0 0.0
    %2970 = vmatprep.subr.mxu0 0.0
    %2971 = vmatpush2.msra.mxu0 0.0
    %2972 = vmatprep.subr.mxu0 0.0
    %2973 = vmatpush2.msra.mxu0 0.0
    %2974 = vmatprep.subr.mxu0 0.0
    %2975 = vmatpush2.msra.mxu0 0.0
    %2976 = vmatprep.subr.mxu0 0.0
    %2977 = vmatpush2.msra.mxu0 0.0
    %2978 = vmatprep.subr.mxu0 0.0
    %2979 = vmatpush2.msra.mxu0 0.0
    %2980 = vmatprep.subr.mxu0 0.0
    %2981 = vmatpush2.msra.mxu0 0.0
    %2982 = vmatprep.subr.mxu0 0.0
    %2983 = vmatpush2.msra.mxu0 0.0
    %2984 = vmatprep.subr.mxu0 0.0
    %2985 = vmatpush2.msra.mxu0 0.0
    %2986 = vmatprep.subr.mxu0 0.0
    %2987 = vmatpush2.msra.mxu0 0.0
    %2988 = vmatprep.subr.mxu0 0.0
    %2989 = vmatpush2.msra.mxu0 0.0
    %2990 = vmatprep.subr.mxu0 0.0
    %2991 = vmatpush2.msra.mxu0 0.0
    %2992 = vmatprep.subr.mxu0 0.0
    %2993 = vmatpush2.msra.mxu0 0.0
    %2994 = vmatprep.subr.mxu0 0.0
    %2995 = vmatpush2.msra.mxu0 0.0
    %2996 = vmatprep.mubr.f32.mxu0 0.0
    %2997 = vmatmul.mubr.f32.gmra.mxu0 %v2930
    %v2998 = vpop.f32.mrf.mxu0
    %v2999 = vadd.f32 0.0, %v2998
    %v3000 = vpop.f32.mrf.mxu0
    %3001 = vdwg.mxu0
    %v3003 = vrot.slane %v2999, 7
    %v3006 = vadd.f32 %v2788, %v3003
    %v3007 = vadd.f32 %v2793, %v2999
    %v3008 = vadd.f32 %v3006, %v2876
    %v3009 = vadd.f32 %v3007, %v2876
    %v3010 = vmul.f32 %v3008, 0.5
    %v3011 = vmul.f32 %v3009, 0.5
    %v3012 = vtanh.pop %v3010
    %v3013 = vtanh.pop %v3011
    %v3014 = vadd.f32 %v3012, 1.0
    %v3015 = vadd.f32 %v3013, 1.0
    %v3016 = vmul.f32 %v3014, 0.5
    %v3017 = vmul.f32 %v3015, 0.5
    %v3018 = vtanh.pop %v3008
    %v3019 = vtanh.pop %v3009
    %v3022 = vrot.slane %v2910, 7
    %v3023 = vrot.slane %v2911, 7
    %v3026 = vmul.f32 %v3016, %v3022
    %v3027 = vmul.f32 %v3017, %v3023
    %3030 = vrot.lane.b32.xlu0 %v3018, 64
    %v3031 = vpop.permute.xlu0 %3030
    %3032 = vrot.lane.b32.xlu0 %v3019, 64
    %v3033 = vpop.permute.xlu0 %3032
    %v3036 = vmul.f32 %v3016, %v3031
    %v3037 = vmul.f32 %v3017, %v3033
    %3040 = vrot.lane.b32.xlu0 %v3036, 32
    %v3041 = vpop.permute.xlu0 %3040
    %3042 = vrot.lane.b32.xlu0 %v3037, 32
    %v3043 = vpop.permute.xlu0 %3042
    %v3046 = vadd.f32 %v3026, %v3041
    %v3047 = vadd.f32 %v3027, %v3043
    %v3048 = vtanh.pop %v3046
    %v3049 = vtanh.pop %v3047
    %3052 = vrot.lane.b32.xlu0 %v3048, 64
    %v3053 = vpop.permute.xlu0 %3052
    %3054 = vrot.lane.b32.xlu0 %v3049, 64
    %v3055 = vpop.permute.xlu0 %3054
    %v3058 = vmul.f32 %v3016, %v3053
    %v3059 = vmul.f32 %v3017, %v3055
    %v3062 = vrot.slane %v3058, 1
    %v3063 = vsel %vm503, %v3059, %v3062
    %3064 = vrot.lane.b32.xlu0 %v3063, 32
    %v3065 = vpop.permute.xlu0 %3064
    %v3066 = vsel %vm135, %v3065, 0
    %3068 = vmatprep.subr.mxu0 0.0
    %3069 = vmatpush1.msra.mxu0 0.0
    %3070 = vmatprep.subr.mxu0 0.0
    %3071 = vmatpush1.msra.mxu0 0.0
    %3072 = vmatprep.subr.mxu0 0.0
    %3073 = vmatpush1.msra.mxu0 0.0
    %3074 = vmatprep.subr.mxu0 0.0
    %3075 = vmatpush1.msra.mxu0 0.0
    %3076 = vmatprep.subr.mxu0 0.0
    %3077 = vmatpush1.msra.mxu0 0.0
    %3078 = vmatprep.subr.mxu0 0.0
    %3079 = vmatpush1.msra.mxu0 0.0
    %3080 = vmatprep.subr.mxu0 0.0
    %3081 = vmatpush1.msra.mxu0 0.0
    %3082 = vmatprep.subr.mxu0 0.0
    %3083 = vmatpush1.msra.mxu0 0.0
    %3084 = vmatprep.subr.mxu0 0.0
    %3085 = vmatpush1.msra.mxu0 0.0
    %3086 = vmatprep.subr.mxu0 0.0
    %3087 = vmatpush1.msra.mxu0 0.0
    %3088 = vmatprep.subr.mxu0 0.0
    %3089 = vmatpush1.msra.mxu0 0.0
    %3090 = vmatprep.subr.mxu0 0.0
    %3091 = vmatpush1.msra.mxu0 0.0
    %3092 = vmatprep.subr.mxu0 0.0
    %3093 = vmatpush1.msra.mxu0 %v2700
    %3094 = vmatprep.subr.mxu0 0.0
    %3095 = vmatpush1.msra.mxu0 %v2699
    %3096 = vmatprep.subr.mxu0 0.0
    %3097 = vmatpush1.msra.mxu0 %v2698
    %3098 = vmatprep.subr.mxu0 0.0
    %3099 = vmatpush1.msra.mxu0 %v2697
    %3100 = vmatprep.subr.mxu0 0.0
    %3101 = vmatpush2.msra.mxu0 0.0
    %3102 = vmatprep.subr.mxu0 0.0
    %3103 = vmatpush2.msra.mxu0 0.0
    %3104 = vmatprep.subr.mxu0 0.0
    %3105 = vmatpush2.msra.mxu0 0.0
    %3106 = vmatprep.subr.mxu0 0.0
    %3107 = vmatpush2.msra.mxu0 0.0
    %3108 = vmatprep.subr.mxu0 0.0
    %3109 = vmatpush2.msra.mxu0 0.0
    %3110 = vmatprep.subr.mxu0 0.0
    %3111 = vmatpush2.msra.mxu0 0.0
    %3112 = vmatprep.subr.mxu0 0.0
    %3113 = vmatpush2.msra.mxu0 0.0
    %3114 = vmatprep.subr.mxu0 0.0
    %3115 = vmatpush2.msra.mxu0 0.0
    %3116 = vmatprep.subr.mxu0 0.0
    %3117 = vmatpush2.msra.mxu0 0.0
    %3118 = vmatprep.subr.mxu0 0.0
    %3119 = vmatpush2.msra.mxu0 0.0
    %3120 = vmatprep.subr.mxu0 0.0
    %3121 = vmatpush2.msra.mxu0 0.0
    %3122 = vmatprep.subr.mxu0 0.0
    %3123 = vmatpush2.msra.mxu0 0.0
    %3124 = vmatprep.subr.mxu0 0.0
    %3125 = vmatpush2.msra.mxu0 0.0
    %3126 = vmatprep.subr.mxu0 0.0
    %3127 = vmatpush2.msra.mxu0 0.0
    %3128 = vmatprep.subr.mxu0 0.0
    %3129 = vmatpush2.msra.mxu0 0.0
    %3130 = vmatprep.subr.mxu0 0.0
    %3131 = vmatpush2.msra.mxu0 0.0
    %3132 = vmatprep.mubr.f32.mxu0 0.0
    %3133 = vmatmul.mubr.f32.gmra.mxu0 %v3066
    %v3134 = vpop.f32.mrf.mxu0
    %v3135 = vadd.f32 0.0, %v3134
    %v3136 = vpop.f32.mrf.mxu0
    %3137 = vdwg.mxu0
    %v3139 = vrot.slane %v3135, 6
    %v3140 = vrot.slane %v3135, 7
    %v3143 = vadd.f32 %v2788, %v3139
    %v3144 = vadd.f32 %v2793, %v3140
    %v3145 = vadd.f32 %v3143, %v2876
    %v3146 = vadd.f32 %v3144, %v2876
    %v3147 = vmul.f32 %v3145, 0.5
    %v3148 = vmul.f32 %v3146, 0.5
    %v3149 = vtanh.pop %v3147
    %v3150 = vtanh.pop %v3148
    %v3151 = vadd.f32 %v3149, 1.0
    %v3152 = vadd.f32 %v3150, 1.0
    %v3153 = vmul.f32 %v3151, 0.5
    %v3154 = vmul.f32 %v3152, 0.5
    %v3155 = vtanh.pop %v3145
    %v3156 = vtanh.pop %v3146
    %v3159 = vrot.slane %v3046, 7
    %v3160 = vrot.slane %v3047, 7
    %v3163 = vmul.f32 %v3153, %v3159
    %v3164 = vmul.f32 %v3154, %v3160
    %3167 = vrot.lane.b32.xlu0 %v3155, 64
    %v3168 = vpop.permute.xlu0 %3167
    %3169 = vrot.lane.b32.xlu0 %v3156, 64
    %v3170 = vpop.permute.xlu0 %3169
    %v3173 = vmul.f32 %v3153, %v3168
    %v3174 = vmul.f32 %v3154, %v3170
    %3177 = vrot.lane.b32.xlu0 %v3173, 32
    %v3178 = vpop.permute.xlu0 %3177
    %3179 = vrot.lane.b32.xlu0 %v3174, 32
    %v3180 = vpop.permute.xlu0 %3179
    %v3183 = vadd.f32 %v3163, %v3178
    %v3184 = vadd.f32 %v3164, %v3180
    %v3185 = vtanh.pop %v3183
    %v3186 = vtanh.pop %v3184
    %3189 = vrot.lane.b32.xlu0 %v3185, 64
    %v3190 = vpop.permute.xlu0 %3189
    %3191 = vrot.lane.b32.xlu0 %v3186, 64
    %v3192 = vpop.permute.xlu0 %3191
    %v3195 = vmul.f32 %v3153, %v3190
    %v3196 = vmul.f32 %v3154, %v3192
    %v3199 = vrot.slane %v3195, 2
    %v3200 = vrot.slane %v3196, 1
    %v3201 = vsel %vm503, %v3200, %v3199
    %3202 = vrot.lane.b32.xlu0 %v3201, 32
    %v3203 = vpop.permute.xlu0 %3202
    %v3204 = vsel %vm135, %v3203, 0
    %3206 = vmatprep.subr.mxu0 0.0
    %3207 = vmatpush1.msra.mxu0 0.0
    %3208 = vmatprep.subr.mxu0 0.0
    %3209 = vmatpush1.msra.mxu0 0.0
    %3210 = vmatprep.subr.mxu0 0.0
    %3211 = vmatpush1.msra.mxu0 0.0
    %3212 = vmatprep.subr.mxu0 0.0
    %3213 = vmatpush1.msra.mxu0 0.0
    %3214 = vmatprep.subr.mxu0 0.0
    %3215 = vmatpush1.msra.mxu0 0.0
    %3216 = vmatprep.subr.mxu0 0.0
    %3217 = vmatpush1.msra.mxu0 0.0
    %3218 = vmatprep.subr.mxu0 0.0
    %3219 = vmatpush1.msra.mxu0 0.0
    %3220 = vmatprep.subr.mxu0 0.0
    %3221 = vmatpush1.msra.mxu0 0.0
    %3222 = vmatprep.subr.mxu0 0.0
    %3223 = vmatpush1.msra.mxu0 0.0
    %3224 = vmatprep.subr.mxu0 0.0
    %3225 = vmatpush1.msra.mxu0 0.0
    %3226 = vmatprep.subr.mxu0 0.0
    %3227 = vmatpush1.msra.mxu0 0.0
    %3228 = vmatprep.subr.mxu0 0.0
    %3229 = vmatpush1.msra.mxu0 0.0
    %3230 = vmatprep.subr.mxu0 0.0
    %3231 = vmatpush1.msra.mxu0 %v2700
    %3232 = vmatprep.subr.mxu0 0.0
    %3233 = vmatpush1.msra.mxu0 %v2699
    %3234 = vmatprep.subr.mxu0 0.0
    %3235 = vmatpush1.msra.mxu0 %v2698
    %3236 = vmatprep.subr.mxu0 0.0
    %3237 = vmatpush1.msra.mxu0 %v2697
    %3238 = vmatprep.subr.mxu0 0.0
    %3239 = vmatpush2.msra.mxu0 0.0
    %3240 = vmatprep.subr.mxu0 0.0
    %3241 = vmatpush2.msra.mxu0 0.0
    %3242 = vmatprep.subr.mxu0 0.0
    %3243 = vmatpush2.msra.mxu0 0.0
    %3244 = vmatprep.subr.mxu0 0.0
    %3245 = vmatpush2.msra.mxu0 0.0
    %3246 = vmatprep.subr.mxu0 0.0
    %3247 = vmatpush2.msra.mxu0 0.0
    %3248 = vmatprep.subr.mxu0 0.0
    %3249 = vmatpush2.msra.mxu0 0.0
    %3250 = vmatprep.subr.mxu0 0.0
    %3251 = vmatpush2.msra.mxu0 0.0
    %3252 = vmatprep.subr.mxu0 0.0
    %3253 = vmatpush2.msra.mxu0 0.0
    %3254 = vmatprep.subr.mxu0 0.0
    %3255 = vmatpush2.msra.mxu0 0.0
    %3256 = vmatprep.subr.mxu0 0.0
    %3257 = vmatpush2.msra.mxu0 0.0
    %3258 = vmatprep.subr.mxu0 0.0
    %3259 = vmatpush2.msra.mxu0 0.0
    %3260 = vmatprep.subr.mxu0 0.0
    %3261 = vmatpush2.msra.mxu0 0.0
    %3262 = vmatprep.subr.mxu0 0.0
    %3263 = vmatpush2.msra.mxu0 0.0
    %3264 = vmatprep.subr.mxu0 0.0
    %3265 = vmatpush2.msra.mxu0 0.0
    %3266 = vmatprep.subr.mxu0 0.0
    %3267 = vmatpush2.msra.mxu0 0.0
    %3268 = vmatprep.subr.mxu0 0.0
    %3269 = vmatpush2.msra.mxu0 0.0
    %3270 = vmatprep.mubr.f32.mxu0 0.0
    %3271 = vmatmul.mubr.f32.gmra.mxu0 %v3204
    %v3272 = vpop.f32.mrf.mxu0
    %v3273 = vadd.f32 0.0, %v3272
    %v3274 = vpop.f32.mrf.mxu0
    %3275 = vdwg.mxu0
    %v3277 = vrot.slane %v3273, 5
    %v3278 = vrot.slane %v3273, 6
    %v3281 = vadd.f32 %v2788, %v3277
    %v3282 = vadd.f32 %v2793, %v3278
    %v3283 = vadd.f32 %v3281, %v2876
    %v3284 = vadd.f32 %v3282, %v2876
    %v3285 = vmul.f32 %v3283, 0.5
    %v3286 = vmul.f32 %v3284, 0.5
    %v3287 = vtanh.pop %v3285
    %v3288 = vtanh.pop %v3286
    %v3289 = vadd.f32 %v3287, 1.0
    %v3290 = vadd.f32 %v3288, 1.0
    %v3291 = vmul.f32 %v3289, 0.5
    %v3292 = vmul.f32 %v3290, 0.5
    %v3293 = vtanh.pop %v3283
    %v3294 = vtanh.pop %v3284
    %v3297 = vrot.slane %v3183, 7
    %v3298 = vrot.slane %v3184, 7
    %v3301 = vmul.f32 %v3291, %v3297
    %v3302 = vmul.f32 %v3292, %v3298
    %3305 = vrot.lane.b32.xlu0 %v3293, 64
    %v3306 = vpop.permute.xlu0 %3305
    %3307 = vrot.lane.b32.xlu0 %v3294, 64
    %v3308 = vpop.permute.xlu0 %3307
    %v3311 = vmul.f32 %v3291, %v3306
    %v3312 = vmul.f32 %v3292, %v3308
    %3315 = vrot.lane.b32.xlu0 %v3311, 32
    %v3316 = vpop.permute.xlu0 %3315
    %3317 = vrot.lane.b32.xlu0 %v3312, 32
    %v3318 = vpop.permute.xlu0 %3317
    %v3321 = vadd.f32 %v3301, %v3316
    %v3322 = vadd.f32 %v3302, %v3318
    %v3323 = vtanh.pop %v3321
    %v3324 = vtanh.pop %v3322
    %3327 = vrot.lane.b32.xlu0 %v3323, 64
    %v3328 = vpop.permute.xlu0 %3327
    %3329 = vrot.lane.b32.xlu0 %v3324, 64
    %v3330 = vpop.permute.xlu0 %3329
    %v3333 = vmul.f32 %v3291, %v3328
    %v3334 = vmul.f32 %v3292, %v3330
    %v3337 = vrot.slane %v3333, 3
    %v3338 = vrot.slane %v3334, 2
    %v3339 = vsel %vm503, %v3338, %v3337
    %3340 = vrot.lane.b32.xlu0 %v3339, 32
    %v3341 = vpop.permute.xlu0 %3340
    %v3342 = vsel %vm135, %v3341, 0
    %3344 = vmatprep.subr.mxu0 0.0
    %3345 = vmatpush1.msra.mxu0 0.0
    %3346 = vmatprep.subr.mxu0 0.0
    %3347 = vmatpush1.msra.mxu0 0.0
    %3348 = vmatprep.subr.mxu0 0.0
    %3349 = vmatpush1.msra.mxu0 0.0
    %3350 = vmatprep.subr.mxu0 0.0
    %3351 = vmatpush1.msra.mxu0 0.0
    %3352 = vmatprep.subr.mxu0 0.0
    %3353 = vmatpush1.msra.mxu0 0.0
    %3354 = vmatprep.subr.mxu0 0.0
    %3355 = vmatpush1.msra.mxu0 0.0
    %3356 = vmatprep.subr.mxu0 0.0
    %3357 = vmatpush1.msra.mxu0 0.0
    %3358 = vmatprep.subr.mxu0 0.0
    %3359 = vmatpush1.msra.mxu0 0.0
    %3360 = vmatprep.subr.mxu0 0.0
    %3361 = vmatpush1.msra.mxu0 0.0
    %3362 = vmatprep.subr.mxu0 0.0
    %3363 = vmatpush1.msra.mxu0 0.0
    %3364 = vmatprep.subr.mxu0 0.0
    %3365 = vmatpush1.msra.mxu0 0.0
    %3366 = vmatprep.subr.mxu0 0.0
    %3367 = vmatpush1.msra.mxu0 0.0
    %3368 = vmatprep.subr.mxu0 0.0
    %3369 = vmatpush1.msra.mxu0 %v2700
    %3370 = vmatprep.subr.mxu0 0.0
    %3371 = vmatpush1.msra.mxu0 %v2699
    %3372 = vmatprep.subr.mxu0 0.0
    %3373 = vmatpush1.msra.mxu0 %v2698
    %3374 = vmatprep.subr.mxu0 0.0
    %3375 = vmatpush1.msra.mxu0 %v2697
    %3376 = vmatprep.subr.mxu0 0.0
    %3377 = vmatpush2.msra.mxu0 0.0
    %3378 = vmatprep.subr.mxu0 0.0
    %3379 = vmatpush2.msra.mxu0 0.0
    %3380 = vmatprep.subr.mxu0 0.0
    %3381 = vmatpush2.msra.mxu0 0.0
    %3382 = vmatprep.subr.mxu0 0.0
    %3383 = vmatpush2.msra.mxu0 0.0
    %3384 = vmatprep.subr.mxu0 0.0
    %3385 = vmatpush2.msra.mxu0 0.0
    %3386 = vmatprep.subr.mxu0 0.0
    %3387 = vmatpush2.msra.mxu0 0.0
    %3388 = vmatprep.subr.mxu0 0.0
    %3389 = vmatpush2.msra.mxu0 0.0
    %3390 = vmatprep.subr.mxu0 0.0
    %3391 = vmatpush2.msra.mxu0 0.0
    %3392 = vmatprep.subr.mxu0 0.0
    %3393 = vmatpush2.msra.mxu0 0.0
    %3394 = vmatprep.subr.mxu0 0.0
    %3395 = vmatpush2.msra.mxu0 0.0
    %3396 = vmatprep.subr.mxu0 0.0
    %3397 = vmatpush2.msra.mxu0 0.0
    %3398 = vmatprep.subr.mxu0 0.0
    %3399 = vmatpush2.msra.mxu0 0.0
    %3400 = vmatprep.subr.mxu0 0.0
    %3401 = vmatpush2.msra.mxu0 0.0
    %3402 = vmatprep.subr.mxu0 0.0
    %3403 = vmatpush2.msra.mxu0 0.0
    %3404 = vmatprep.subr.mxu0 0.0
    %3405 = vmatpush2.msra.mxu0 0.0
    %3406 = vmatprep.subr.mxu0 0.0
    %3407 = vmatpush2.msra.mxu0 0.0
    %3408 = vmatprep.mubr.f32.mxu0 0.0
    %3409 = vmatmul.mubr.f32.gmra.mxu0 %v3342
    %v3410 = vpop.f32.mrf.mxu0
    %v3411 = vadd.f32 0.0, %v3410
    %v3412 = vpop.f32.mrf.mxu0
    %3413 = vdwg.mxu0
    %v3415 = vrot.slane %v3411, 4
    %v3416 = vrot.slane %v3411, 5
    %v3419 = vadd.f32 %v2788, %v3415
    %v3420 = vadd.f32 %v2793, %v3416
    %v3421 = vadd.f32 %v3419, %v2876
    %v3422 = vadd.f32 %v3420, %v2876
    %v3423 = vmul.f32 %v3421, 0.5
    %v3424 = vmul.f32 %v3422, 0.5
    %v3425 = vtanh.pop %v3423
    %v3426 = vtanh.pop %v3424
    %v3427 = vadd.f32 %v3425, 1.0
    %v3428 = vadd.f32 %v3426, 1.0
    %v3429 = vmul.f32 %v3427, 0.5
    %v3430 = vmul.f32 %v3428, 0.5
    %v3431 = vtanh.pop %v3421
    %v3432 = vtanh.pop %v3422
    %v3435 = vrot.slane %v3321, 7
    %v3436 = vrot.slane %v3322, 7
    %v3439 = vmul.f32 %v3429, %v3435
    %v3440 = vmul.f32 %v3430, %v3436
    %3443 = vrot.lane.b32.xlu0 %v3431, 64
    %v3444 = vpop.permute.xlu0 %3443
    %3445 = vrot.lane.b32.xlu0 %v3432, 64
    %v3446 = vpop.permute.xlu0 %3445
    %v3449 = vmul.f32 %v3429, %v3444
    %v3450 = vmul.f32 %v3430, %v3446
    %3453 = vrot.lane.b32.xlu0 %v3449, 32
    %v3454 = vpop.permute.xlu0 %3453
    %3455 = vrot.lane.b32.xlu0 %v3450, 32
    %v3456 = vpop.permute.xlu0 %3455
    %v3459 = vadd.f32 %v3439, %v3454
    %v3460 = vadd.f32 %v3440, %v3456
    %v3461 = vtanh.pop %v3459
    %v3462 = vtanh.pop %v3460
    %3465 = vrot.lane.b32.xlu0 %v3461, 64
    %v3466 = vpop.permute.xlu0 %3465
    %3467 = vrot.lane.b32.xlu0 %v3462, 64
    %v3468 = vpop.permute.xlu0 %3467
    %v3471 = vmul.f32 %v3429, %v3466
    %v3472 = vmul.f32 %v3430, %v3468
    %v3475 = vrot.slane %v3471, 4
    %v3476 = vrot.slane %v3472, 3
    %v3477 = vsel %vm503, %v3476, %v3475
    %3478 = vrot.lane.b32.xlu0 %v3477, 32
    %v3479 = vpop.permute.xlu0 %3478
    %v3480 = vsel %vm135, %v3479, 0
    %3482 = vmatprep.subr.mxu0 0.0
    %3483 = vmatpush1.msra.mxu0 0.0
    %3484 = vmatprep.subr.mxu0 0.0
    %3485 = vmatpush1.msra.mxu0 0.0
    %3486 = vmatprep.subr.mxu0 0.0
    %3487 = vmatpush1.msra.mxu0 0.0
    %3488 = vmatprep.subr.mxu0 0.0
    %3489 = vmatpush1.msra.mxu0 0.0
    %3490 = vmatprep.subr.mxu0 0.0
    %3491 = vmatpush1.msra.mxu0 0.0
    %3492 = vmatprep.subr.mxu0 0.0
    %3493 = vmatpush1.msra.mxu0 0.0
    %3494 = vmatprep.subr.mxu0 0.0
    %3495 = vmatpush1.msra.mxu0 0.0
    %3496 = vmatprep.subr.mxu0 0.0
    %3497 = vmatpush1.msra.mxu0 0.0
    %3498 = vmatprep.subr.mxu0 0.0
    %3499 = vmatpush1.msra.mxu0 0.0
    %3500 = vmatprep.subr.mxu0 0.0
    %3501 = vmatpush1.msra.mxu0 0.0
    %3502 = vmatprep.subr.mxu0 0.0
    %3503 = vmatpush1.msra.mxu0 0.0
    %3504 = vmatprep.subr.mxu0 0.0
    %3505 = vmatpush1.msra.mxu0 0.0
    %3506 = vmatprep.subr.mxu0 0.0
    %3507 = vmatpush1.msra.mxu0 %v2700
    %3508 = vmatprep.subr.mxu0 0.0
    %3509 = vmatpush1.msra.mxu0 %v2699
    %3510 = vmatprep.subr.mxu0 0.0
    %3511 = vmatpush1.msra.mxu0 %v2698
    %3512 = vmatprep.subr.mxu0 0.0
    %3513 = vmatpush1.msra.mxu0 %v2697
    %3514 = vmatprep.subr.mxu0 0.0
    %3515 = vmatpush2.msra.mxu0 0.0
    %3516 = vmatprep.subr.mxu0 0.0
    %3517 = vmatpush2.msra.mxu0 0.0
    %3518 = vmatprep.subr.mxu0 0.0
    %3519 = vmatpush2.msra.mxu0 0.0
    %3520 = vmatprep.subr.mxu0 0.0
    %3521 = vmatpush2.msra.mxu0 0.0
    %3522 = vmatprep.subr.mxu0 0.0
    %3523 = vmatpush2.msra.mxu0 0.0
    %3524 = vmatprep.subr.mxu0 0.0
    %3525 = vmatpush2.msra.mxu0 0.0
    %3526 = vmatprep.subr.mxu0 0.0
    %3527 = vmatpush2.msra.mxu0 0.0
    %3528 = vmatprep.subr.mxu0 0.0
    %3529 = vmatpush2.msra.mxu0 0.0
    %3530 = vmatprep.subr.mxu0 0.0
    %3531 = vmatpush2.msra.mxu0 0.0
    %3532 = vmatprep.subr.mxu0 0.0
    %3533 = vmatpush2.msra.mxu0 0.0
    %3534 = vmatprep.subr.mxu0 0.0
    %3535 = vmatpush2.msra.mxu0 0.0
    %3536 = vmatprep.subr.mxu0 0.0
    %3537 = vmatpush2.msra.mxu0 0.0
    %3538 = vmatprep.subr.mxu0 0.0
    %3539 = vmatpush2.msra.mxu0 0.0
    %3540 = vmatprep.subr.mxu0 0.0
    %3541 = vmatpush2.msra.mxu0 0.0
    %3542 = vmatprep.subr.mxu0 0.0
    %3543 = vmatpush2.msra.mxu0 0.0
    %3544 = vmatprep.subr.mxu0 0.0
    %3545 = vmatpush2.msra.mxu0 0.0
    %3546 = vmatprep.mubr.f32.mxu0 0.0
    %3547 = vmatmul.mubr.f32.gmra.mxu0 %v3480
    %v3548 = vpop.f32.mrf.mxu0
    %v3549 = vadd.f32 0.0, %v3548
    %v3550 = vpop.f32.mrf.mxu0
    %3551 = vdwg.mxu0
    %v3553 = vrot.slane %v3549, 3
    %v3554 = vrot.slane %v3549, 4
    %v3557 = vadd.f32 %v2788, %v3553
    %v3558 = vadd.f32 %v2793, %v3554
    %v3559 = vadd.f32 %v3557, %v2876
    %v3560 = vadd.f32 %v3558, %v2876
    %v3561 = vmul.f32 %v3559, 0.5
    %v3562 = vmul.f32 %v3560, 0.5
    %v3563 = vtanh.pop %v3561
    %v3564 = vtanh.pop %v3562
    %v3565 = vadd.f32 %v3563, 1.0
    %v3566 = vadd.f32 %v3564, 1.0
    %v3567 = vmul.f32 %v3565, 0.5
    %v3568 = vmul.f32 %v3566, 0.5
    %v3569 = vtanh.pop %v3559
    %v3570 = vtanh.pop %v3560
    %v3573 = vrot.slane %v3459, 7
    %v3574 = vrot.slane %v3460, 7
    %v3577 = vmul.f32 %v3567, %v3573
    %v3578 = vmul.f32 %v3568, %v3574
    %3581 = vrot.lane.b32.xlu0 %v3569, 64
    %v3582 = vpop.permute.xlu0 %3581
    %3583 = vrot.lane.b32.xlu0 %v3570, 64
    %v3584 = vpop.permute.xlu0 %3583
    %v3587 = vmul.f32 %v3567, %v3582
    %v3588 = vmul.f32 %v3568, %v3584
    %3591 = vrot.lane.b32.xlu0 %v3587, 32
    %v3592 = vpop.permute.xlu0 %3591
    %3593 = vrot.lane.b32.xlu0 %v3588, 32
    %v3594 = vpop.permute.xlu0 %3593
    %v3597 = vadd.f32 %v3577, %v3592
    %v3598 = vadd.f32 %v3578, %v3594
    %v3599 = vtanh.pop %v3597
    %v3600 = vtanh.pop %v3598
    %3603 = vrot.lane.b32.xlu0 %v3599, 64
    %v3604 = vpop.permute.xlu0 %3603
    %3605 = vrot.lane.b32.xlu0 %v3600, 64
    %v3606 = vpop.permute.xlu0 %3605
    %v3609 = vmul.f32 %v3567, %v3604
    %v3610 = vmul.f32 %v3568, %v3606
    %v3613 = vrot.slane %v3609, 5
    %v3614 = vrot.slane %v3610, 4
    %v3615 = vsel %vm503, %v3614, %v3613
    %3616 = vrot.lane.b32.xlu0 %v3615, 32
    %v3617 = vpop.permute.xlu0 %3616
    %v3618 = vsel %vm135, %v3617, 0
    %3620 = vmatprep.subr.mxu0 0.0
    %3621 = vmatpush1.msra.mxu0 0.0
    %3622 = vmatprep.subr.mxu0 0.0
    %3623 = vmatpush1.msra.mxu0 0.0
    %3624 = vmatprep.subr.mxu0 0.0
    %3625 = vmatpush1.msra.mxu0 0.0
    %3626 = vmatprep.subr.mxu0 0.0
    %3627 = vmatpush1.msra.mxu0 0.0
    %3628 = vmatprep.subr.mxu0 0.0
    %3629 = vmatpush1.msra.mxu0 0.0
    %3630 = vmatprep.subr.mxu0 0.0
    %3631 = vmatpush1.msra.mxu0 0.0
    %3632 = vmatprep.subr.mxu0 0.0
    %3633 = vmatpush1.msra.mxu0 0.0
    %3634 = vmatprep.subr.mxu0 0.0
    %3635 = vmatpush1.msra.mxu0 0.0
    %3636 = vmatprep.subr.mxu0 0.0
    %3637 = vmatpush1.msra.mxu0 0.0
    %3638 = vmatprep.subr.mxu0 0.0
    %3639 = vmatpush1.msra.mxu0 0.0
    %3640 = vmatprep.subr.mxu0 0.0
    %3641 = vmatpush1.msra.mxu0 0.0
    %3642 = vmatprep.subr.mxu0 0.0
    %3643 = vmatpush1.msra.mxu0 0.0
    %3644 = vmatprep.subr.mxu0 0.0
    %3645 = vmatpush1.msra.mxu0 %v2700
    %3646 = vmatprep.subr.mxu0 0.0
    %3647 = vmatpush1.msra.mxu0 %v2699
    %3648 = vmatprep.subr.mxu0 0.0
    %3649 = vmatpush1.msra.mxu0 %v2698
    %3650 = vmatprep.subr.mxu0 0.0
    %3651 = vmatpush1.msra.mxu0 %v2697
    %3652 = vmatprep.subr.mxu0 0.0
    %3653 = vmatpush2.msra.mxu0 0.0
    %3654 = vmatprep.subr.mxu0 0.0
    %3655 = vmatpush2.msra.mxu0 0.0
    %3656 = vmatprep.subr.mxu0 0.0
    %3657 = vmatpush2.msra.mxu0 0.0
    %3658 = vmatprep.subr.mxu0 0.0
    %3659 = vmatpush2.msra.mxu0 0.0
    %3660 = vmatprep.subr.mxu0 0.0
    %3661 = vmatpush2.msra.mxu0 0.0
    %3662 = vmatprep.subr.mxu0 0.0
    %3663 = vmatpush2.msra.mxu0 0.0
    %3664 = vmatprep.subr.mxu0 0.0
    %3665 = vmatpush2.msra.mxu0 0.0
    %3666 = vmatprep.subr.mxu0 0.0
    %3667 = vmatpush2.msra.mxu0 0.0
    %3668 = vmatprep.subr.mxu0 0.0
    %3669 = vmatpush2.msra.mxu0 0.0
    %3670 = vmatprep.subr.mxu0 0.0
    %3671 = vmatpush2.msra.mxu0 0.0
    %3672 = vmatprep.subr.mxu0 0.0
    %3673 = vmatpush2.msra.mxu0 0.0
    %3674 = vmatprep.subr.mxu0 0.0
    %3675 = vmatpush2.msra.mxu0 0.0
    %3676 = vmatprep.subr.mxu0 0.0
    %3677 = vmatpush2.msra.mxu0 0.0
    %3678 = vmatprep.subr.mxu0 0.0
    %3679 = vmatpush2.msra.mxu0 0.0
    %3680 = vmatprep.subr.mxu0 0.0
    %3681 = vmatpush2.msra.mxu0 0.0
    %3682 = vmatprep.subr.mxu0 0.0
    %3683 = vmatpush2.msra.mxu0 0.0
    %3684 = vmatprep.mubr.f32.mxu0 0.0
    %3685 = vmatmul.mubr.f32.gmra.mxu0 %v3618
    %v3686 = vpop.f32.mrf.mxu0
    %v3687 = vadd.f32 0.0, %v3686
    %v3688 = vpop.f32.mrf.mxu0
    %3689 = vdwg.mxu0
    %v3691 = vrot.slane %v3687, 2
    %v3692 = vrot.slane %v3687, 3
    %v3695 = vadd.f32 %v2788, %v3691
    %v3696 = vadd.f32 %v2793, %v3692
    %v3697 = vadd.f32 %v3695, %v2876
    %v3698 = vadd.f32 %v3696, %v2876
    %v3699 = vmul.f32 %v3697, 0.5
    %v3700 = vmul.f32 %v3698, 0.5
    %v3701 = vtanh.pop %v3699
    %v3702 = vtanh.pop %v3700
    %v3703 = vadd.f32 %v3701, 1.0
    %v3704 = vadd.f32 %v3702, 1.0
    %v3705 = vmul.f32 %v3703, 0.5
    %v3706 = vmul.f32 %v3704, 0.5
    %v3707 = vtanh.pop %v3697
    %v3708 = vtanh.pop %v3698
    %v3711 = vrot.slane %v3597, 7
    %v3712 = vrot.slane %v3598, 7
    %v3715 = vmul.f32 %v3705, %v3711
    %v3716 = vmul.f32 %v3706, %v3712
    %3719 = vrot.lane.b32.xlu0 %v3707, 64
    %v3720 = vpop.permute.xlu0 %3719
    %3721 = vrot.lane.b32.xlu0 %v3708, 64
    %v3722 = vpop.permute.xlu0 %3721
    %v3725 = vmul.f32 %v3705, %v3720
    %v3726 = vmul.f32 %v3706, %v3722
    %3729 = vrot.lane.b32.xlu0 %v3725, 32
    %v3730 = vpop.permute.xlu0 %3729
    %3731 = vrot.lane.b32.xlu0 %v3726, 32
    %v3732 = vpop.permute.xlu0 %3731
    %v3735 = vadd.f32 %v3715, %v3730
    %v3736 = vadd.f32 %v3716, %v3732
    %v3737 = vtanh.pop %v3735
    %v3738 = vtanh.pop %v3736
    %3741 = vrot.lane.b32.xlu0 %v3737, 64
    %v3742 = vpop.permute.xlu0 %3741
    %3743 = vrot.lane.b32.xlu0 %v3738, 64
    %v3744 = vpop.permute.xlu0 %3743
    %v3747 = vmul.f32 %v3705, %v3742
    %v3748 = vmul.f32 %v3706, %v3744
    %v3751 = vrot.slane %v3747, 6
    %v3752 = vrot.slane %v3748, 5
    %v3753 = vsel %vm503, %v3752, %v3751
    %3754 = vrot.lane.b32.xlu0 %v3753, 32
    %v3755 = vpop.permute.xlu0 %3754
    %v3756 = vsel %vm135, %v3755, 0
    %3758 = vmatprep.subr.mxu0 0.0
    %3759 = vmatpush1.msra.mxu0 0.0
    %3760 = vmatprep.subr.mxu0 0.0
    %3761 = vmatpush1.msra.mxu0 0.0
    %3762 = vmatprep.subr.mxu0 0.0
    %3763 = vmatpush1.msra.mxu0 0.0
    %3764 = vmatprep.subr.mxu0 0.0
    %3765 = vmatpush1.msra.mxu0 0.0
    %3766 = vmatprep.subr.mxu0 0.0
    %3767 = vmatpush1.msra.mxu0 0.0
    %3768 = vmatprep.subr.mxu0 0.0
    %3769 = vmatpush1.msra.mxu0 0.0
    %3770 = vmatprep.subr.mxu0 0.0
    %3771 = vmatpush1.msra.mxu0 0.0
    %3772 = vmatprep.subr.mxu0 0.0
    %3773 = vmatpush1.msra.mxu0 0.0
    %3774 = vmatprep.subr.mxu0 0.0
    %3775 = vmatpush1.msra.mxu0 0.0
    %3776 = vmatprep.subr.mxu0 0.0
    %3777 = vmatpush1.msra.mxu0 0.0
    %3778 = vmatprep.subr.mxu0 0.0
    %3779 = vmatpush1.msra.mxu0 0.0
    %3780 = vmatprep.subr.mxu0 0.0
    %3781 = vmatpush1.msra.mxu0 0.0
    %3782 = vmatprep.subr.mxu0 0.0
    %3783 = vmatpush1.msra.mxu0 %v2700
    %3784 = vmatprep.subr.mxu0 0.0
    %3785 = vmatpush1.msra.mxu0 %v2699
    %3786 = vmatprep.subr.mxu0 0.0
    %3787 = vmatpush1.msra.mxu0 %v2698
    %3788 = vmatprep.subr.mxu0 0.0
    %3789 = vmatpush1.msra.mxu0 %v2697
    %3790 = vmatprep.subr.mxu0 0.0
    %3791 = vmatpush2.msra.mxu0 0.0
    %3792 = vmatprep.subr.mxu0 0.0
    %3793 = vmatpush2.msra.mxu0 0.0
    %3794 = vmatprep.subr.mxu0 0.0
    %3795 = vmatpush2.msra.mxu0 0.0
    %3796 = vmatprep.subr.mxu0 0.0
    %3797 = vmatpush2.msra.mxu0 0.0
    %3798 = vmatprep.subr.mxu0 0.0
    %3799 = vmatpush2.msra.mxu0 0.0
    %3800 = vmatprep.subr.mxu0 0.0
    %3801 = vmatpush2.msra.mxu0 0.0
    %3802 = vmatprep.subr.mxu0 0.0
    %3803 = vmatpush2.msra.mxu0 0.0
    %3804 = vmatprep.subr.mxu0 0.0
    %3805 = vmatpush2.msra.mxu0 0.0
    %3806 = vmatprep.subr.mxu0 0.0
    %3807 = vmatpush2.msra.mxu0 0.0
    %3808 = vmatprep.subr.mxu0 0.0
    %3809 = vmatpush2.msra.mxu0 0.0
    %3810 = vmatprep.subr.mxu0 0.0
    %3811 = vmatpush2.msra.mxu0 0.0
    %3812 = vmatprep.subr.mxu0 0.0
    %3813 = vmatpush2.msra.mxu0 0.0
    %3814 = vmatprep.subr.mxu0 0.0
    %3815 = vmatpush2.msra.mxu0 0.0
    %3816 = vmatprep.subr.mxu0 0.0
    %3817 = vmatpush2.msra.mxu0 0.0
    %3818 = vmatprep.subr.mxu0 0.0
    %3819 = vmatpush2.msra.mxu0 0.0
    %3820 = vmatprep.subr.mxu0 0.0
    %3821 = vmatpush2.msra.mxu0 0.0
    %3822 = vmatprep.mubr.f32.mxu0 0.0
    %3823 = vmatmul.mubr.f32.gmra.mxu0 %v3756
    %v3824 = vpop.f32.mrf.mxu0
    %v3825 = vadd.f32 0.0, %v3824
    %v3826 = vpop.f32.mrf.mxu0
    %3827 = vdwg.mxu0
    %v3829 = vrot.slane %v3825, 1
    %v3830 = vrot.slane %v3825, 2
    %v3833 = vadd.f32 %v2788, %v3829
    %v3834 = vadd.f32 %v2793, %v3830
    %v3835 = vadd.f32 %v3833, %v2876
    %v3836 = vadd.f32 %v3834, %v2876
    %v3837 = vmul.f32 %v3835, 0.5
    %v3838 = vmul.f32 %v3836, 0.5
    %v3839 = vtanh.pop %v3837
    %v3840 = vtanh.pop %v3838
    %v3841 = vadd.f32 %v3839, 1.0
    %v3842 = vadd.f32 %v3840, 1.0
    %v3843 = vmul.f32 %v3841, 0.5
    %v3844 = vmul.f32 %v3842, 0.5
    %v3845 = vtanh.pop %v3835
    %v3846 = vtanh.pop %v3836
    %v3849 = vrot.slane %v3735, 7
    %v3850 = vrot.slane %v3736, 7
    %v3853 = vmul.f32 %v3843, %v3849
    %v3854 = vmul.f32 %v3844, %v3850
    %3857 = vrot.lane.b32.xlu0 %v3845, 64
    %v3858 = vpop.permute.xlu0 %3857
    %3859 = vrot.lane.b32.xlu0 %v3846, 64
    %v3860 = vpop.permute.xlu0 %3859
    %v3863 = vmul.f32 %v3843, %v3858
    %v3864 = vmul.f32 %v3844, %v3860
    %3867 = vrot.lane.b32.xlu0 %v3863, 32
    %v3868 = vpop.permute.xlu0 %3867
    %3869 = vrot.lane.b32.xlu0 %v3864, 32
    %v3870 = vpop.permute.xlu0 %3869
    %v3873 = vadd.f32 %v3853, %v3868
    %v3874 = vadd.f32 %v3854, %v3870
    %v3875 = vtanh.pop %v3873
    %v3876 = vtanh.pop %v3874
    %3879 = vrot.lane.b32.xlu0 %v3875, 64
    %v3880 = vpop.permute.xlu0 %3879
    %3881 = vrot.lane.b32.xlu0 %v3876, 64
    %v3882 = vpop.permute.xlu0 %3881
    %v3885 = vmul.f32 %v3843, %v3880
    %v3886 = vmul.f32 %v3844, %v3882
    %v3887 = vsel %vm87, %v2922, %v3058
    %v3888 = vsel %vm87, %v2923, %v3059
    %v3889 = vsel %vm101, %v3887, %v3195
    %v3890 = vsel %vm101, %v3888, %v3196
    %v3891 = vsel %vm1468, %v3889, %v3333
    %v3892 = vsel %vm1468, %v3890, %v3334
    %v3893 = vsel %vm1471, %v3891, %v3471
    %v3894 = vsel %vm1471, %v3892, %v3472
    %v3895 = vsel %vm1474, %v3893, %v3609
    %v3896 = vsel %vm1474, %v3894, %v3610
    %v3897 = vsel %vm108, %v3895, %v3747
    %v3898 = vsel %vm108, %v3896, %v3748
    %v3899 = vsel %vm94, %v3897, %v3885
    %v3900 = vsel %vm94, %v3898, %v3886
    %3903 = vrot.lane.b32.xlu0 %v3899, 32
    %v3904 = vpop.permute.xlu0 %3903
    %3905 = vrot.lane.b32.xlu0 %v3900, 32
    %v3906 = vpop.permute.xlu0 %3905
    %v3909 = vld [vmem:[%s8] sm:$0xff]
    %v3910 = vld [vmem:[%s8 + $0x8] sm:$0xff]
    %v3911 = vld [vmem:[%s8 + $0x10] sm:$0xff]
    %v3912 = vld [vmem:[%s8 + $0x18] sm:$0xff]
    %v3913 = vsel %vm135, %v75, 0
    %v3915 = vsel %vm135, %v76, 0
    %v3917 = vsel %vm135, %v3904, 0
    %v3919 = vsel %vm135, %v3906, 0
    %3921 = vmatprep.subr.mxu0 0.0
    %3922 = vmatpush1.msra.mxu0 0.0
    %3923 = vmatprep.subr.mxu0 0.0
    %3924 = vmatpush1.msra.mxu0 0.0
    %3925 = vmatprep.subr.mxu0 0.0
    %3926 = vmatpush1.msra.mxu0 0.0
    %3927 = vmatprep.subr.mxu0 0.0
    %3928 = vmatpush1.msra.mxu0 0.0
    %3929 = vmatprep.subr.mxu0 0.0
    %3930 = vmatpush1.msra.mxu0 0.0
    %3931 = vmatprep.subr.mxu0 0.0
    %3932 = vmatpush1.msra.mxu0 0.0
    %3933 = vmatprep.subr.mxu0 0.0
    %3934 = vmatpush1.msra.mxu0 0.0
    %3935 = vmatprep.subr.mxu0 0.0
    %3936 = vmatpush1.msra.mxu0 0.0
    %3937 = vmatprep.subr.mxu0 0.0
    %3938 = vmatpush1.msra.mxu0 0.0
    %3939 = vmatprep.subr.mxu0 0.0
    %3940 = vmatpush1.msra.mxu0 0.0
    %3941 = vmatprep.subr.mxu0 0.0
    %3942 = vmatpush1.msra.mxu0 0.0
    %3943 = vmatprep.subr.mxu0 0.0
    %3944 = vmatpush1.msra.mxu0 0.0
    %3945 = vmatprep.subr.mxu0 0.0
    %3946 = vmatpush1.msra.mxu0 %v3912
    %3947 = vmatprep.subr.mxu0 0.0
    %3948 = vmatpush1.msra.mxu0 %v3911
    %3949 = vmatprep.subr.mxu0 0.0
    %3950 = vmatpush1.msra.mxu0 %v3910
    %3951 = vmatprep.subr.mxu0 0.0
    %3952 = vmatpush1.msra.mxu0 %v3909
    %3953 = vmatprep.subr.mxu0 0.0
    %3954 = vmatpush2.msra.mxu0 0.0
    %3955 = vmatprep.subr.mxu0 0.0
    %3956 = vmatpush2.msra.mxu0 0.0
    %3957 = vmatprep.subr.mxu0 0.0
    %3958 = vmatpush2.msra.mxu0 0.0
    %3959 = vmatprep.subr.mxu0 0.0
    %3960 = vmatpush2.msra.mxu0 0.0
    %3961 = vmatprep.subr.mxu0 0.0
    %3962 = vmatpush2.msra.mxu0 0.0
    %3963 = vmatprep.subr.mxu0 0.0
    %3964 = vmatpush2.msra.mxu0 0.0
    %3965 = vmatprep.subr.mxu0 0.0
    %3966 = vmatpush2.msra.mxu0 0.0
    %3967 = vmatprep.subr.mxu0 0.0
    %3968 = vmatpush2.msra.mxu0 0.0
    %3969 = vmatprep.subr.mxu0 0.0
    %3970 = vmatpush2.msra.mxu0 0.0
    %3971 = vmatprep.subr.mxu0 0.0
    %3972 = vmatpush2.msra.mxu0 0.0
    %3973 = vmatprep.subr.mxu0 0.0
    %3974 = vmatpush2.msra.mxu0 0.0
    %3975 = vmatprep.subr.mxu0 0.0
    %3976 = vmatpush2.msra.mxu0 0.0
    %3977 = vmatprep.subr.mxu0 0.0
    %3978 = vmatpush2.msra.mxu0 0.0
    %3979 = vmatprep.subr.mxu0 0.0
    %3980 = vmatpush2.msra.mxu0 0.0
    %3981 = vmatprep.subr.mxu0 0.0
    %3982 = vmatpush2.msra.mxu0 0.0
    %3983 = vmatprep.subr.mxu0 0.0
    %3984 = vmatpush2.msra.mxu0 0.0
    %3985 = vmatprep.mubr.f32.mxu0 0.0
    %3986 = vmatmul.mubr.f32.gmra.mxu0 %v3913
    %v3987 = vpop.f32.mrf.mxu0
    %v3988 = vadd.f32 0.0, %v3987
    %v3989 = vpop.f32.mrf.mxu0
    %3990 = vmatprep.mubr.f32.mxu0 0.0
    %3991 = vmatmul.mubr.f32.gmra.mxu0 %v3915
    %v3992 = vpop.f32.mrf.mxu0
    %v3993 = vadd.f32 0.0, %v3992
    %v3994 = vpop.f32.mrf.mxu0
    %3995 = vmatprep.mubr.f32.mxu0 0.0
    %3996 = vmatmul.mubr.f32.gmra.mxu0 %v289
    %v3997 = vpop.f32.mrf.mxu0
    %v3998 = vadd.f32 0.0, %v3997
    %v3999 = vpop.f32.mrf.mxu0
    %4000 = vmatprep.mubr.f32.mxu0 0.0
    %4001 = vmatmul.mubr.f32.gmra.mxu0 %v292
    %v4002 = vpop.f32.mrf.mxu0
    %v4003 = vadd.f32 0.0, %v4002
    %v4004 = vpop.f32.mrf.mxu0
    %4005 = vmatprep.mubr.f32.mxu0 0.0
    %4006 = vmatmul.mubr.f32.gmra.mxu0 %v3917
    %v4007 = vpop.f32.mrf.mxu0
    %v4008 = vadd.f32 0.0, %v4007
    %v4009 = vpop.f32.mrf.mxu0
    %4010 = vmatprep.mubr.f32.mxu0 0.0
    %4011 = vmatmul.mubr.f32.gmra.mxu0 %v3919
    %v4012 = vpop.f32.mrf.mxu0
    %v4013 = vadd.f32 0.0, %v4012
    %v4014 = vpop.f32.mrf.mxu0
    %4015 = vdwg.mxu0
    %v4016 = vld [vmem:[%s9] sm:$0xff]
    %v4017 = vld [vmem:[%s9 + $0x8] sm:$0xff]
    %v4018 = vld [vmem:[%s9 + $0x10] sm:$0xff]
    %v4019 = vld [vmem:[%s9 + $0x18] sm:$0xff]
    %4020 = vmatprep.subr.mxu0 0.0
    %4021 = vmatpush1.msra.mxu0 0.0
    %4022 = vmatprep.subr.mxu0 0.0
    %4023 = vmatpush1.msra.mxu0 0.0
    %4024 = vmatprep.subr.mxu0 0.0
    %4025 = vmatpush1.msra.mxu0 0.0
    %4026 = vmatprep.subr.mxu0 0.0
    %4027 = vmatpush1.msra.mxu0 0.0
    %4028 = vmatprep.subr.mxu0 0.0
    %4029 = vmatpush1.msra.mxu0 0.0
    %4030 = vmatprep.subr.mxu0 0.0
    %4031 = vmatpush1.msra.mxu0 0.0
    %4032 = vmatprep.subr.mxu0 0.0
    %4033 = vmatpush1.msra.mxu0 0.0
    %4034 = vmatprep.subr.mxu0 0.0
    %4035 = vmatpush1.msra.mxu0 0.0
    %4036 = vmatprep.subr.mxu0 0.0
    %4037 = vmatpush1.msra.mxu0 0.0
    %4038 = vmatprep.subr.mxu0 0.0
    %4039 = vmatpush1.msra.mxu0 0.0
    %4040 = vmatprep.subr.mxu0 0.0
    %4041 = vmatpush1.msra.mxu0 0.0
    %4042 = vmatprep.subr.mxu0 0.0
    %4043 = vmatpush1.msra.mxu0 0.0
    %4044 = vmatprep.subr.mxu0 0.0
    %4045 = vmatpush1.msra.mxu0 %v4019
    %4046 = vmatprep.subr.mxu0 0.0
    %4047 = vmatpush1.msra.mxu0 %v4018
    %4048 = vmatprep.subr.mxu0 0.0
    %4049 = vmatpush1.msra.mxu0 %v4017
    %4050 = vmatprep.subr.mxu0 0.0
    %4051 = vmatpush1.msra.mxu0 %v4016
    %4052 = vmatprep.subr.mxu0 0.0
    %4053 = vmatpush2.msra.mxu0 0.0
    %4054 = vmatprep.subr.mxu0 0.0
    %4055 = vmatpush2.msra.mxu0 0.0
    %4056 = vmatprep.subr.mxu0 0.0
    %4057 = vmatpush2.msra.mxu0 0.0
    %4058 = vmatprep.subr.mxu0 0.0
    %4059 = vmatpush2.msra.mxu0 0.0
    %4060 = vmatprep.subr.mxu0 0.0
    %4061 = vmatpush2.msra.mxu0 0.0
    %4062 = vmatprep.subr.mxu0 0.0
    %4063 = vmatpush2.msra.mxu0 0.0
    %4064 = vmatprep.subr.mxu0 0.0
    %4065 = vmatpush2.msra.mxu0 0.0
    %4066 = vmatprep.subr.mxu0 0.0
    %4067 = vmatpush2.msra.mxu0 0.0
    %4068 = vmatprep.subr.mxu0 0.0
    %4069 = vmatpush2.msra.mxu0 0.0
    %4070 = vmatprep.subr.mxu0 0.0
    %4071 = vmatpush2.msra.mxu0 0.0
    %4072 = vmatprep.subr.mxu0 0.0
    %4073 = vmatpush2.msra.mxu0 0.0
    %4074 = vmatprep.subr.mxu0 0.0
    %4075 = vmatpush2.msra.mxu0 0.0
    %4076 = vmatprep.subr.mxu0 0.0
    %4077 = vmatpush2.msra.mxu0 0.0
    %4078 = vmatprep.subr.mxu0 0.0
    %4079 = vmatpush2.msra.mxu0 0.0
    %4080 = vmatprep.subr.mxu0 0.0
    %4081 = vmatpush2.msra.mxu0 0.0
    %4082 = vmatprep.subr.mxu0 0.0
    %4083 = vmatpush2.msra.mxu0 0.0
    %4084 = vmatprep.mubr.f32.mxu0 0.0
    %4085 = vmatmul.mubr.f32.gmra.mxu0 %v3913
    %v4086 = vpop.f32.mrf.mxu0
    %v4087 = vadd.f32 0.0, %v4086
    %v4088 = vpop.f32.mrf.mxu0
    %4089 = vmatprep.mubr.f32.mxu0 0.0
    %4090 = vmatmul.mubr.f32.gmra.mxu0 %v3915
    %v4091 = vpop.f32.mrf.mxu0
    %v4092 = vadd.f32 0.0, %v4091
    %v4093 = vpop.f32.mrf.mxu0
    %4094 = vmatprep.mubr.f32.mxu0 0.0
    %4095 = vmatmul.mubr.f32.gmra.mxu0 %v289
    %v4096 = vpop.f32.mrf.mxu0
    %v4097 = vadd.f32 0.0, %v4096
    %v4098 = vpop.f32.mrf.mxu0
    %4099 = vmatprep.mubr.f32.mxu0 0.0
    %4100 = vmatmul.mubr.f32.gmra.mxu0 %v292
    %v4101 = vpop.f32.mrf.mxu0
    %v4102 = vadd.f32 0.0, %v4101
    %v4103 = vpop.f32.mrf.mxu0
    %4104 = vmatprep.mubr.f32.mxu0 0.0
    %4105 = vmatmul.mubr.f32.gmra.mxu0 %v3917
    %v4106 = vpop.f32.mrf.mxu0
    %v4107 = vadd.f32 0.0, %v4106
    %v4108 = vpop.f32.mrf.mxu0
    %4109 = vmatprep.mubr.f32.mxu0 0.0
    %4110 = vmatmul.mubr.f32.gmra.mxu0 %v3919
    %v4111 = vpop.f32.mrf.mxu0
    %v4112 = vadd.f32 0.0, %v4111
    %v4113 = vpop.f32.mrf.mxu0
    %4114 = vdwg.mxu0
    %v4115 = vld [vmem:[%s10] sm:$0xff]
    %v4116 = vld [vmem:[%s10 + $0x8] sm:$0xff]
    %v4117 = vld [vmem:[%s10 + $0x10] sm:$0xff]
    %v4118 = vld [vmem:[%s10 + $0x18] sm:$0xff]
    %v4120 = vsel %vm135, %v77, 0
    %v4123 = vsel %vm135, %v78, 0
    %v4126 = vsel %vm135, %v79, 0
    %v4129 = vsel %vm135, %v80, 0
    %4131 = vmatprep.subr.mxu0 0.0
    %4132 = vmatpush1.msra.mxu0 0.0
    %4133 = vmatprep.subr.mxu0 0.0
    %4134 = vmatpush1.msra.mxu0 0.0
    %4135 = vmatprep.subr.mxu0 0.0
    %4136 = vmatpush1.msra.mxu0 0.0
    %4137 = vmatprep.subr.mxu0 0.0
    %4138 = vmatpush1.msra.mxu0 0.0
    %4139 = vmatprep.subr.mxu0 0.0
    %4140 = vmatpush1.msra.mxu0 0.0
    %4141 = vmatprep.subr.mxu0 0.0
    %4142 = vmatpush1.msra.mxu0 0.0
    %4143 = vmatprep.subr.mxu0 0.0
    %4144 = vmatpush1.msra.mxu0 0.0
    %4145 = vmatprep.subr.mxu0 0.0
    %4146 = vmatpush1.msra.mxu0 0.0
    %4147 = vmatprep.subr.mxu0 0.0
    %4148 = vmatpush1.msra.mxu0 0.0
    %4149 = vmatprep.subr.mxu0 0.0
    %4150 = vmatpush1.msra.mxu0 0.0
    %4151 = vmatprep.subr.mxu0 0.0
    %4152 = vmatpush1.msra.mxu0 0.0
    %4153 = vmatprep.subr.mxu0 0.0
    %4154 = vmatpush1.msra.mxu0 0.0
    %4155 = vmatprep.subr.mxu0 0.0
    %4156 = vmatpush1.msra.mxu0 %v4118
    %4157 = vmatprep.subr.mxu0 0.0
    %4158 = vmatpush1.msra.mxu0 %v4117
    %4159 = vmatprep.subr.mxu0 0.0
    %4160 = vmatpush1.msra.mxu0 %v4116
    %4161 = vmatprep.subr.mxu0 0.0
    %4162 = vmatpush1.msra.mxu0 %v4115
    %4163 = vmatprep.subr.mxu0 0.0
    %4164 = vmatpush2.msra.mxu0 0.0
    %4165 = vmatprep.subr.mxu0 0.0
    %4166 = vmatpush2.msra.mxu0 0.0
    %4167 = vmatprep.subr.mxu0 0.0
    %4168 = vmatpush2.msra.mxu0 0.0
    %4169 = vmatprep.subr.mxu0 0.0
    %4170 = vmatpush2.msra.mxu0 0.0
    %4171 = vmatprep.subr.mxu0 0.0
    %4172 = vmatpush2.msra.mxu0 0.0
    %4173 = vmatprep.subr.mxu0 0.0
    %4174 = vmatpush2.msra.mxu0 0.0
    %4175 = vmatprep.subr.mxu0 0.0
    %4176 = vmatpush2.msra.mxu0 0.0
    %4177 = vmatprep.subr.mxu0 0.0
    %4178 = vmatpush2.msra.mxu0 0.0
    %4179 = vmatprep.subr.mxu0 0.0
    %4180 = vmatpush2.msra.mxu0 0.0
    %4181 = vmatprep.subr.mxu0 0.0
    %4182 = vmatpush2.msra.mxu0 0.0
    %4183 = vmatprep.subr.mxu0 0.0
    %4184 = vmatpush2.msra.mxu0 0.0
    %4185 = vmatprep.subr.mxu0 0.0
    %4186 = vmatpush2.msra.mxu0 0.0
    %4187 = vmatprep.subr.mxu0 0.0
    %4188 = vmatpush2.msra.mxu0 0.0
    %4189 = vmatprep.subr.mxu0 0.0
    %4190 = vmatpush2.msra.mxu0 0.0
    %4191 = vmatprep.subr.mxu0 0.0
    %4192 = vmatpush2.msra.mxu0 0.0
    %4193 = vmatprep.subr.mxu0 0.0
    %4194 = vmatpush2.msra.mxu0 0.0
    %4195 = vmatprep.mubr.f32.mxu0 0.0
    %4196 = vmatmul.mubr.f32.gmra.mxu0 %v4120
    %v4197 = vpop.f32.mrf.mxu0
    %v4198 = vadd.f32 0.0, %v4197
    %v4199 = vpop.f32.mrf.mxu0
    %4200 = vmatprep.mubr.f32.mxu0 0.0
    %4201 = vmatmul.mubr.f32.gmra.mxu0 %v4123
    %v4202 = vpop.f32.mrf.mxu0
    %v4203 = vadd.f32 0.0, %v4202
    %v4204 = vpop.f32.mrf.mxu0
    %4205 = vmatprep.mubr.f32.mxu0 0.0
    %4206 = vmatmul.mubr.f32.gmra.mxu0 %v4126
    %v4207 = vpop.f32.mrf.mxu0
    %v4208 = vadd.f32 0.0, %v4207
    %v4209 = vpop.f32.mrf.mxu0
    %4210 = vmatprep.mubr.f32.mxu0 0.0
    %4211 = vmatmul.mubr.f32.gmra.mxu0 %v4129
    %v4212 = vpop.f32.mrf.mxu0
    %v4213 = vadd.f32 0.0, %v4212
    %v4214 = vpop.f32.mrf.mxu0
    %4215 = vdwg.mxu0
    %v4217 = vsel %vm135, %v3988, 0
    %4219 = vmatprep.subr.mxu0 0.0
    %4220 = vmatpush1.xpose.msra.mxu0 0.0
    %4221 = vmatprep.subr.mxu0 0.0
    %4222 = vmatpush1.xpose.msra.mxu0 0.0
    %4223 = vmatprep.subr.mxu0 0.0
    %4224 = vmatpush1.xpose.msra.mxu0 0.0
    %4225 = vmatprep.subr.mxu0 0.0
    %4226 = vmatpush1.xpose.msra.mxu0 0.0
    %4227 = vmatprep.subr.mxu0 0.0
    %4228 = vmatpush1.xpose.msra.mxu0 0.0
    %4229 = vmatprep.subr.mxu0 0.0
    %4230 = vmatpush1.xpose.msra.mxu0 0.0
    %4231 = vmatprep.subr.mxu0 0.0
    %4232 = vmatpush1.xpose.msra.mxu0 0.0
    %4233 = vmatprep.subr.mxu0 0.0
    %4234 = vmatpush1.xpose.msra.mxu0 0.0
    %4235 = vmatprep.subr.mxu0 0.0
    %4236 = vmatpush1.xpose.msra.mxu0 0.0
    %4237 = vmatprep.subr.mxu0 0.0
    %4238 = vmatpush1.xpose.msra.mxu0 0.0
    %4239 = vmatprep.subr.mxu0 0.0
    %4240 = vmatpush1.xpose.msra.mxu0 0.0
    %4241 = vmatprep.subr.mxu0 0.0
    %4242 = vmatpush1.xpose.msra.mxu0 0.0
    %4243 = vmatprep.subr.mxu0 0.0
    %4244 = vmatpush1.xpose.msra.mxu0 0.0
    %4245 = vmatprep.subr.mxu0 0.0
    %4246 = vmatpush1.xpose.msra.mxu0 0.0
    %4247 = vmatprep.subr.mxu0 0.0
    %4248 = vmatpush1.xpose.msra.mxu0 %v4123
    %4249 = vmatprep.subr.mxu0 0.0
    %4250 = vmatpush1.xpose.msra.mxu0 %v4120
    %4251 = vmatprep.subr.mxu0 0.0
    %4252 = vmatpush2.xpose.msra.mxu0 0.0
    %4253 = vmatprep.subr.mxu0 0.0
    %4254 = vmatpush2.xpose.msra.mxu0 0.0
    %4255 = vmatprep.subr.mxu0 0.0
    %4256 = vmatpush2.xpose.msra.mxu0 0.0
    %4257 = vmatprep.subr.mxu0 0.0
    %4258 = vmatpush2.xpose.msra.mxu0 0.0
    %4259 = vmatprep.subr.mxu0 0.0
    %4260 = vmatpush2.xpose.msra.mxu0 0.0
    %4261 = vmatprep.subr.mxu0 0.0
    %4262 = vmatpush2.xpose.msra.mxu0 0.0
    %4263 = vmatprep.subr.mxu0 0.0
    %4264 = vmatpush2.xpose.msra.mxu0 0.0
    %4265 = vmatprep.subr.mxu0 0.0
    %4266 = vmatpush2.xpose.msra.mxu0 0.0
    %4267 = vmatprep.subr.mxu0 0.0
    %4268 = vmatpush2.xpose.msra.mxu0 0.0
    %4269 = vmatprep.subr.mxu0 0.0
    %4270 = vmatpush2.xpose.msra.mxu0 0.0
    %4271 = vmatprep.subr.mxu0 0.0
    %4272 = vmatpush2.xpose.msra.mxu0 0.0
    %4273 = vmatprep.subr.mxu0 0.0
    %4274 = vmatpush2.xpose.msra.mxu0 0.0
    %4275 = vmatprep.subr.mxu0 0.0
    %4276 = vmatpush2.xpose.msra.mxu0 0.0
    %4277 = vmatprep.subr.mxu0 0.0
    %4278 = vmatpush2.xpose.msra.mxu0 0.0
    %4279 = vmatprep.subr.mxu0 0.0
    %4280 = vmatpush2.xpose.msra.mxu0 0.0
    %4281 = vmatprep.subr.mxu0 0.0
    %4282 = vmatpush2.xpose.msra.mxu0 0.0
    %4283 = vmatprep.mubr.f32.mxu0 0.0
    %4284 = vmatmul.mubr.f32.gmra.mxu0 %v4217
    %v4285 = vpop.f32.mrf.mxu0
    %v4286 = vadd.f32 0.0, %v4285
    %v4287 = vpop.f32.mrf.mxu0
    %4288 = vdwg.mxu0
    %v4290 = vsel %vm135, %v3993, 0
    %4292 = vmatprep.subr.mxu0 0.0
    %4293 = vmatpush1.xpose.msra.mxu0 0.0
    %4294 = vmatprep.subr.mxu0 0.0
    %4295 = vmatpush1.xpose.msra.mxu0 0.0
    %4296 = vmatprep.subr.mxu0 0.0
    %4297 = vmatpush1.xpose.msra.mxu0 0.0
    %4298 = vmatprep.subr.mxu0 0.0
    %4299 = vmatpush1.xpose.msra.mxu0 0.0
    %4300 = vmatprep.subr.mxu0 0.0
    %4301 = vmatpush1.xpose.msra.mxu0 0.0
    %4302 = vmatprep.subr.mxu0 0.0
    %4303 = vmatpush1.xpose.msra.mxu0 0.0
    %4304 = vmatprep.subr.mxu0 0.0
    %4305 = vmatpush1.xpose.msra.mxu0 0.0
    %4306 = vmatprep.subr.mxu0 0.0
    %4307 = vmatpush1.xpose.msra.mxu0 0.0
    %4308 = vmatprep.subr.mxu0 0.0
    %4309 = vmatpush1.xpose.msra.mxu0 0.0
    %4310 = vmatprep.subr.mxu0 0.0
    %4311 = vmatpush1.xpose.msra.mxu0 0.0
    %4312 = vmatprep.subr.mxu0 0.0
    %4313 = vmatpush1.xpose.msra.mxu0 0.0
    %4314 = vmatprep.subr.mxu0 0.0
    %4315 = vmatpush1.xpose.msra.mxu0 0.0
    %4316 = vmatprep.subr.mxu0 0.0
    %4317 = vmatpush1.xpose.msra.mxu0 0.0
    %4318 = vmatprep.subr.mxu0 0.0
    %4319 = vmatpush1.xpose.msra.mxu0 0.0
    %4320 = vmatprep.subr.mxu0 0.0
    %4321 = vmatpush1.xpose.msra.mxu0 %v4129
    %4322 = vmatprep.subr.mxu0 0.0
    %4323 = vmatpush1.xpose.msra.mxu0 %v4126
    %4324 = vmatprep.subr.mxu0 0.0
    %4325 = vmatpush2.xpose.msra.mxu0 0.0
    %4326 = vmatprep.subr.mxu0 0.0
    %4327 = vmatpush2.xpose.msra.mxu0 0.0
    %4328 = vmatprep.subr.mxu0 0.0
    %4329 = vmatpush2.xpose.msra.mxu0 0.0
    %4330 = vmatprep.subr.mxu0 0.0
    %4331 = vmatpush2.xpose.msra.mxu0 0.0
    %4332 = vmatprep.subr.mxu0 0.0
    %4333 = vmatpush2.xpose.msra.mxu0 0.0
    %4334 = vmatprep.subr.mxu0 0.0
    %4335 = vmatpush2.xpose.msra.mxu0 0.0
    %4336 = vmatprep.subr.mxu0 0.0
    %4337 = vmatpush2.xpose.msra.mxu0 0.0
    %4338 = vmatprep.subr.mxu0 0.0
    %4339 = vmatpush2.xpose.msra.mxu0 0.0
    %4340 = vmatprep.subr.mxu0 0.0
    %4341 = vmatpush2.xpose.msra.mxu0 0.0
    %4342 = vmatprep.subr.mxu0 0.0
    %4343 = vmatpush2.xpose.msra.mxu0 0.0
    %4344 = vmatprep.subr.mxu0 0.0
    %4345 = vmatpush2.xpose.msra.mxu0 0.0
    %4346 = vmatprep.subr.mxu0 0.0
    %4347 = vmatpush2.xpose.msra.mxu0 0.0
    %4348 = vmatprep.subr.mxu0 0.0
    %4349 = vmatpush2.xpose.msra.mxu0 0.0
    %4350 = vmatprep.subr.mxu0 0.0
    %4351 = vmatpush2.xpose.msra.mxu0 0.0
    %4352 = vmatprep.subr.mxu0 0.0
    %4353 = vmatpush2.xpose.msra.mxu0 0.0
    %4354 = vmatprep.subr.mxu0 0.0
    %4355 = vmatpush2.xpose.msra.mxu0 0.0
    %4356 = vmatprep.mubr.f32.mxu0 0.0
    %4357 = vmatmul.mubr.f32.gmra.mxu0 %v4290
    %v4358 = vpop.f32.mrf.mxu0
    %v4359 = vadd.f32 0.0, %v4358
    %v4360 = vpop.f32.mrf.mxu0
    %4361 = vdwg.mxu0
    %v4363 = vsel %vm135, %v3998, 0
    %4365 = vmatprep.subr.mxu0 0.0
    %4366 = vmatpush1.xpose.msra.mxu0 0.0
    %4367 = vmatprep.subr.mxu0 0.0
    %4368 = vmatpush1.xpose.msra.mxu0 0.0
    %4369 = vmatprep.subr.mxu0 0.0
    %4370 = vmatpush1.xpose.msra.mxu0 0.0
    %4371 = vmatprep.subr.mxu0 0.0
    %4372 = vmatpush1.xpose.msra.mxu0 0.0
    %4373 = vmatprep.subr.mxu0 0.0
    %4374 = vmatpush1.xpose.msra.mxu0 0.0
    %4375 = vmatprep.subr.mxu0 0.0
    %4376 = vmatpush1.xpose.msra.mxu0 0.0
    %4377 = vmatprep.subr.mxu0 0.0
    %4378 = vmatpush1.xpose.msra.mxu0 0.0
    %4379 = vmatprep.subr.mxu0 0.0
    %4380 = vmatpush1.xpose.msra.mxu0 0.0
    %4381 = vmatprep.subr.mxu0 0.0
    %4382 = vmatpush1.xpose.msra.mxu0 0.0
    %4383 = vmatprep.subr.mxu0 0.0
    %4384 = vmatpush1.xpose.msra.mxu0 0.0
    %4385 = vmatprep.subr.mxu0 0.0
    %4386 = vmatpush1.xpose.msra.mxu0 0.0
    %4387 = vmatprep.subr.mxu0 0.0
    %4388 = vmatpush1.xpose.msra.mxu0 0.0
    %4389 = vmatprep.subr.mxu0 0.0
    %4390 = vmatpush1.xpose.msra.mxu0 0.0
    %4391 = vmatprep.subr.mxu0 0.0
    %4392 = vmatpush1.xpose.msra.mxu0 0.0
    %4393 = vmatprep.subr.mxu0 0.0
    %4394 = vmatpush1.xpose.msra.mxu0 %v4123
    %4395 = vmatprep.subr.mxu0 0.0
    %4396 = vmatpush1.xpose.msra.mxu0 %v4120
    %4397 = vmatprep.subr.mxu0 0.0
    %4398 = vmatpush2.xpose.msra.mxu0 0.0
    %4399 = vmatprep.subr.mxu0 0.0
    %4400 = vmatpush2.xpose.msra.mxu0 0.0
    %4401 = vmatprep.subr.mxu0 0.0
    %4402 = vmatpush2.xpose.msra.mxu0 0.0
    %4403 = vmatprep.subr.mxu0 0.0
    %4404 = vmatpush2.xpose.msra.mxu0 0.0
    %4405 = vmatprep.subr.mxu0 0.0
    %4406 = vmatpush2.xpose.msra.mxu0 0.0
    %4407 = vmatprep.subr.mxu0 0.0
    %4408 = vmatpush2.xpose.msra.mxu0 0.0
    %4409 = vmatprep.subr.mxu0 0.0
    %4410 = vmatpush2.xpose.msra.mxu0 0.0
    %4411 = vmatprep.subr.mxu0 0.0
    %4412 = vmatpush2.xpose.msra.mxu0 0.0
    %4413 = vmatprep.subr.mxu0 0.0
    %4414 = vmatpush2.xpose.msra.mxu0 0.0
    %4415 = vmatprep.subr.mxu0 0.0
    %4416 = vmatpush2.xpose.msra.mxu0 0.0
    %4417 = vmatprep.subr.mxu0 0.0
    %4418 = vmatpush2.xpose.msra.mxu0 0.0
    %4419 = vmatprep.subr.mxu0 0.0
    %4420 = vmatpush2.xpose.msra.mxu0 0.0
    %4421 = vmatprep.subr.mxu0 0.0
    %4422 = vmatpush2.xpose.msra.mxu0 0.0
    %4423 = vmatprep.subr.mxu0 0.0
    %4424 = vmatpush2.xpose.msra.mxu0 0.0
    %4425 = vmatprep.subr.mxu0 0.0
    %4426 = vmatpush2.xpose.msra.mxu0 0.0
    %4427 = vmatprep.subr.mxu0 0.0
    %4428 = vmatpush2.xpose.msra.mxu0 0.0
    %4429 = vmatprep.mubr.f32.mxu0 0.0
    %4430 = vmatmul.mubr.f32.gmra.mxu0 %v4363
    %v4431 = vpop.f32.mrf.mxu0
    %v4432 = vadd.f32 0.0, %v4431
    %v4433 = vpop.f32.mrf.mxu0
    %4434 = vdwg.mxu0
    %v4436 = vsel %vm135, %v4003, 0
    %4438 = vmatprep.subr.mxu0 0.0
    %4439 = vmatpush1.xpose.msra.mxu0 0.0
    %4440 = vmatprep.subr.mxu0 0.0
    %4441 = vmatpush1.xpose.msra.mxu0 0.0
    %4442 = vmatprep.subr.mxu0 0.0
    %4443 = vmatpush1.xpose.msra.mxu0 0.0
    %4444 = vmatprep.subr.mxu0 0.0
    %4445 = vmatpush1.xpose.msra.mxu0 0.0
    %4446 = vmatprep.subr.mxu0 0.0
    %4447 = vmatpush1.xpose.msra.mxu0 0.0
    %4448 = vmatprep.subr.mxu0 0.0
    %4449 = vmatpush1.xpose.msra.mxu0 0.0
    %4450 = vmatprep.subr.mxu0 0.0
    %4451 = vmatpush1.xpose.msra.mxu0 0.0
    %4452 = vmatprep.subr.mxu0 0.0
    %4453 = vmatpush1.xpose.msra.mxu0 0.0
    %4454 = vmatprep.subr.mxu0 0.0
    %4455 = vmatpush1.xpose.msra.mxu0 0.0
    %4456 = vmatprep.subr.mxu0 0.0
    %4457 = vmatpush1.xpose.msra.mxu0 0.0
    %4458 = vmatprep.subr.mxu0 0.0
    %4459 = vmatpush1.xpose.msra.mxu0 0.0
    %4460 = vmatprep.subr.mxu0 0.0
    %4461 = vmatpush1.xpose.msra.mxu0 0.0
    %4462 = vmatprep.subr.mxu0 0.0
    %4463 = vmatpush1.xpose.msra.mxu0 0.0
    %4464 = vmatprep.subr.mxu0 0.0
    %4465 = vmatpush1.xpose.msra.mxu0 0.0
    %4466 = vmatprep.subr.mxu0 0.0
    %4467 = vmatpush1.xpose.msra.mxu0 %v4129
    %4468 = vmatprep.subr.mxu0 0.0
    %4469 = vmatpush1.xpose.msra.mxu0 %v4126
    %4470 = vmatprep.subr.mxu0 0.0
    %4471 = vmatpush2.xpose.msra.mxu0 0.0
    %4472 = vmatprep.subr.mxu0 0.0
    %4473 = vmatpush2.xpose.msra.mxu0 0.0
    %4474 = vmatprep.subr.mxu0 0.0
    %4475 = vmatpush2.xpose.msra.mxu0 0.0
    %4476 = vmatprep.subr.mxu0 0.0
    %4477 = vmatpush2.xpose.msra.mxu0 0.0
    %4478 = vmatprep.subr.mxu0 0.0
    %4479 = vmatpush2.xpose.msra.mxu0 0.0
    %4480 = vmatprep.subr.mxu0 0.0
    %4481 = vmatpush2.xpose.msra.mxu0 0.0
    %4482 = vmatprep.subr.mxu0 0.0
    %4483 = vmatpush2.xpose.msra.mxu0 0.0
    %4484 = vmatprep.subr.mxu0 0.0
    %4485 = vmatpush2.xpose.msra.mxu0 0.0
    %4486 = vmatprep.subr.mxu0 0.0
    %4487 = vmatpush2.xpose.msra.mxu0 0.0
    %4488 = vmatprep.subr.mxu0 0.0
    %4489 = vmatpush2.xpose.msra.mxu0 0.0
    %4490 = vmatprep.subr.mxu0 0.0
    %4491 = vmatpush2.xpose.msra.mxu0 0.0
    %4492 = vmatprep.subr.mxu0 0.0
    %4493 = vmatpush2.xpose.msra.mxu0 0.0
    %4494 = vmatprep.subr.mxu0 0.0
    %4495 = vmatpush2.xpose.msra.mxu0 0.0
    %4496 = vmatprep.subr.mxu0 0.0
    %4497 = vmatpush2.xpose.msra.mxu0 0.0
    %4498 = vmatprep.subr.mxu0 0.0
    %4499 = vmatpush2.xpose.msra.mxu0 0.0
    %4500 = vmatprep.subr.mxu0 0.0
    %4501 = vmatpush2.xpose.msra.mxu0 0.0
    %4502 = vmatprep.mubr.f32.mxu0 0.0
    %4503 = vmatmul.mubr.f32.gmra.mxu0 %v4436
    %v4504 = vpop.f32.mrf.mxu0
    %v4505 = vadd.f32 0.0, %v4504
    %v4506 = vpop.f32.mrf.mxu0
    %4507 = vdwg.mxu0
    %v4509 = vsel %vm135, %v4008, 0
    %4511 = vmatprep.subr.mxu0 0.0
    %4512 = vmatpush1.xpose.msra.mxu0 0.0
    %4513 = vmatprep.subr.mxu0 0.0
    %4514 = vmatpush1.xpose.msra.mxu0 0.0
    %4515 = vmatprep.subr.mxu0 0.0
    %4516 = vmatpush1.xpose.msra.mxu0 0.0
    %4517 = vmatprep.subr.mxu0 0.0
    %4518 = vmatpush1.xpose.msra.mxu0 0.0
    %4519 = vmatprep.subr.mxu0 0.0
    %4520 = vmatpush1.xpose.msra.mxu0 0.0
    %4521 = vmatprep.subr.mxu0 0.0
    %4522 = vmatpush1.xpose.msra.mxu0 0.0
    %4523 = vmatprep.subr.mxu0 0.0
    %4524 = vmatpush1.xpose.msra.mxu0 0.0
    %4525 = vmatprep.subr.mxu0 0.0
    %4526 = vmatpush1.xpose.msra.mxu0 0.0
    %4527 = vmatprep.subr.mxu0 0.0
    %4528 = vmatpush1.xpose.msra.mxu0 0.0
    %4529 = vmatprep.subr.mxu0 0.0
    %4530 = vmatpush1.xpose.msra.mxu0 0.0
    %4531 = vmatprep.subr.mxu0 0.0
    %4532 = vmatpush1.xpose.msra.mxu0 0.0
    %4533 = vmatprep.subr.mxu0 0.0
    %4534 = vmatpush1.xpose.msra.mxu0 0.0
    %4535 = vmatprep.subr.mxu0 0.0
    %4536 = vmatpush1.xpose.msra.mxu0 0.0
    %4537 = vmatprep.subr.mxu0 0.0
    %4538 = vmatpush1.xpose.msra.mxu0 0.0
    %4539 = vmatprep.subr.mxu0 0.0
    %4540 = vmatpush1.xpose.msra.mxu0 %v4123
    %4541 = vmatprep.subr.mxu0 0.0
    %4542 = vmatpush1.xpose.msra.mxu0 %v4120
    %4543 = vmatprep.subr.mxu0 0.0
    %4544 = vmatpush2.xpose.msra.mxu0 0.0
    %4545 = vmatprep.subr.mxu0 0.0
    %4546 = vmatpush2.xpose.msra.mxu0 0.0
    %4547 = vmatprep.subr.mxu0 0.0
    %4548 = vmatpush2.xpose.msra.mxu0 0.0
    %4549 = vmatprep.subr.mxu0 0.0
    %4550 = vmatpush2.xpose.msra.mxu0 0.0
    %4551 = vmatprep.subr.mxu0 0.0
    %4552 = vmatpush2.xpose.msra.mxu0 0.0
    %4553 = vmatprep.subr.mxu0 0.0
    %4554 = vmatpush2.xpose.msra.mxu0 0.0
    %4555 = vmatprep.subr.mxu0 0.0
    %4556 = vmatpush2.xpose.msra.mxu0 0.0
    %4557 = vmatprep.subr.mxu0 0.0
    %4558 = vmatpush2.xpose.msra.mxu0 0.0
    %4559 = vmatprep.subr.mxu0 0.0
    %4560 = vmatpush2.xpose.msra.mxu0 0.0
    %4561 = vmatprep.subr.mxu0 0.0
    %4562 = vmatpush2.xpose.msra.mxu0 0.0
    %4563 = vmatprep.subr.mxu0 0.0
    %4564 = vmatpush2.xpose.msra.mxu0 0.0
    %4565 = vmatprep.subr.mxu0 0.0
    %4566 = vmatpush2.xpose.msra.mxu0 0.0
    %4567 = vmatprep.subr.mxu0 0.0
    %4568 = vmatpush2.xpose.msra.mxu0 0.0
    %4569 = vmatprep.subr.mxu0 0.0
    %4570 = vmatpush2.xpose.msra.mxu0 0.0
    %4571 = vmatprep.subr.mxu0 0.0
    %4572 = vmatpush2.xpose.msra.mxu0 0.0
    %4573 = vmatprep.subr.mxu0 0.0
    %4574 = vmatpush2.xpose.msra.mxu0 0.0
    %4575 = vmatprep.mubr.f32.mxu0 0.0
    %4576 = vmatmul.mubr.f32.gmra.mxu0 %v4509
    %v4577 = vpop.f32.mrf.mxu0
    %v4578 = vadd.f32 0.0, %v4577
    %v4579 = vpop.f32.mrf.mxu0
    %4580 = vdwg.mxu0
    %v4582 = vsel %vm135, %v4013, 0
    %4584 = vmatprep.subr.mxu0 0.0
    %4585 = vmatpush1.xpose.msra.mxu0 0.0
    %4586 = vmatprep.subr.mxu0 0.0
    %4587 = vmatpush1.xpose.msra.mxu0 0.0
    %4588 = vmatprep.subr.mxu0 0.0
    %4589 = vmatpush1.xpose.msra.mxu0 0.0
    %4590 = vmatprep.subr.mxu0 0.0
    %4591 = vmatpush1.xpose.msra.mxu0 0.0
    %4592 = vmatprep.subr.mxu0 0.0
    %4593 = vmatpush1.xpose.msra.mxu0 0.0
    %4594 = vmatprep.subr.mxu0 0.0
    %4595 = vmatpush1.xpose.msra.mxu0 0.0
    %4596 = vmatprep.subr.mxu0 0.0
    %4597 = vmatpush1.xpose.msra.mxu0 0.0
    %4598 = vmatprep.subr.mxu0 0.0
    %4599 = vmatpush1.xpose.msra.mxu0 0.0
    %4600 = vmatprep.subr.mxu0 0.0
    %4601 = vmatpush1.xpose.msra.mxu0 0.0
    %4602 = vmatprep.subr.mxu0 0.0
    %4603 = vmatpush1.xpose.msra.mxu0 0.0
    %4604 = vmatprep.subr.mxu0 0.0
    %4605 = vmatpush1.xpose.msra.mxu0 0.0
    %4606 = vmatprep.subr.mxu0 0.0
    %4607 = vmatpush1.xpose.msra.mxu0 0.0
    %4608 = vmatprep.subr.mxu0 0.0
    %4609 = vmatpush1.xpose.msra.mxu0 0.0
    %4610 = vmatprep.subr.mxu0 0.0
    %4611 = vmatpush1.xpose.msra.mxu0 0.0
    %4612 = vmatprep.subr.mxu0 0.0
    %4613 = vmatpush1.xpose.msra.mxu0 %v4129
    %4614 = vmatprep.subr.mxu0 0.0
    %4615 = vmatpush1.xpose.msra.mxu0 %v4126
    %4616 = vmatprep.subr.mxu0 0.0
    %4617 = vmatpush2.xpose.msra.mxu0 0.0
    %4618 = vmatprep.subr.mxu0 0.0
    %4619 = vmatpush2.xpose.msra.mxu0 0.0
    %4620 = vmatprep.subr.mxu0 0.0
    %4621 = vmatpush2.xpose.msra.mxu0 0.0
    %4622 = vmatprep.subr.mxu0 0.0
    %4623 = vmatpush2.xpose.msra.mxu0 0.0
    %4624 = vmatprep.subr.mxu0 0.0
    %4625 = vmatpush2.xpose.msra.mxu0 0.0
    %4626 = vmatprep.subr.mxu0 0.0
    %4627 = vmatpush2.xpose.msra.mxu0 0.0
    %4628 = vmatprep.subr.mxu0 0.0
    %4629 = vmatpush2.xpose.msra.mxu0 0.0
    %4630 = vmatprep.subr.mxu0 0.0
    %4631 = vmatpush2.xpose.msra.mxu0 0.0
    %4632 = vmatprep.subr.mxu0 0.0
    %4633 = vmatpush2.xpose.msra.mxu0 0.0
    %4634 = vmatprep.subr.mxu0 0.0
    %4635 = vmatpush2.xpose.msra.mxu0 0.0
    %4636 = vmatprep.subr.mxu0 0.0
    %4637 = vmatpush2.xpose.msra.mxu0 0.0
    %4638 = vmatprep.subr.mxu0 0.0
    %4639 = vmatpush2.xpose.msra.mxu0 0.0
    %4640 = vmatprep.subr.mxu0 0.0
    %4641 = vmatpush2.xpose.msra.mxu0 0.0
    %4642 = vmatprep.subr.mxu0 0.0
    %4643 = vmatpush2.xpose.msra.mxu0 0.0
    %4644 = vmatprep.subr.mxu0 0.0
    %4645 = vmatpush2.xpose.msra.mxu0 0.0
    %4646 = vmatprep.subr.mxu0 0.0
    %4647 = vmatpush2.xpose.msra.mxu0 0.0
    %4648 = vmatprep.mubr.f32.mxu0 0.0
    %4649 = vmatmul.mubr.f32.gmra.mxu0 %v4582
    %v4650 = vpop.f32.mrf.mxu0
    %v4651 = vadd.f32 0.0, %v4650
    %v4652 = vpop.f32.mrf.mxu0
    %4653 = vdwg.mxu0
    %v4654 = vtanh.pop %v4286
    %v4655 = vtanh.pop %v4359
    %v4656 = vtanh.pop %v4432
    %v4657 = vtanh.pop %v4505
    %v4658 = vtanh.pop %v4578
    %v4659 = vtanh.pop %v4651
    %4660 = vmatprep.subr.mxu0 0.0
    %4661 = vmatpush1.xpose.msra.mxu0 0.0
    %4662 = vmatprep.subr.mxu0 0.0
    %4663 = vmatpush1.xpose.msra.mxu0 0.0
    %4664 = vmatprep.subr.mxu0 0.0
    %4665 = vmatpush1.xpose.msra.mxu0 0.0
    %4666 = vmatprep.subr.mxu0 0.0
    %4667 = vmatpush1.xpose.msra.mxu0 0.0
    %4668 = vmatprep.subr.mxu0 0.0
    %4669 = vmatpush1.xpose.msra.mxu0 0.0
    %4670 = vmatprep.subr.mxu0 0.0
    %4671 = vmatpush1.xpose.msra.mxu0 0.0
    %4672 = vmatprep.subr.mxu0 0.0
    %4673 = vmatpush1.xpose.msra.mxu0 0.0
    %4674 = vmatprep.subr.mxu0 0.0
    %4675 = vmatpush1.xpose.msra.mxu0 0.0
    %4676 = vmatprep.subr.mxu0 0.0
    %4677 = vmatpush1.xpose.msra.mxu0 0.0
    %4678 = vmatprep.subr.mxu0 0.0
    %4679 = vmatpush1.xpose.msra.mxu0 0.0
    %4680 = vmatprep.subr.mxu0 0.0
    %4681 = vmatpush1.xpose.msra.mxu0 0.0
    %4682 = vmatprep.subr.mxu0 0.0
    %4683 = vmatpush1.xpose.msra.mxu0 0.0
    %4684 = vmatprep.subr.mxu0 0.0
    %4685 = vmatpush1.xpose.msra.mxu0 0.0
    %4686 = vmatprep.subr.mxu0 0.0
    %4687 = vmatpush1.xpose.msra.mxu0 0.0
    %4688 = vmatprep.subr.mxu0 0.0
    %4689 = vmatpush1.xpose.msra.mxu0 0.0
    %4690 = vmatprep.subr.mxu0 0.0
    %4691 = vmatpush1.xpose.msra.mxu0 %v4217
    %4692 = vmatprep.subr.mxu0 0.0
    %4693 = vmatpush2.xpose.msra.mxu0 0.0
    %4694 = vmatprep.subr.mxu0 0.0
    %4695 = vmatpush2.xpose.msra.mxu0 0.0
    %4696 = vmatprep.subr.mxu0 0.0
    %4697 = vmatpush2.xpose.msra.mxu0 0.0
    %4698 = vmatprep.subr.mxu0 0.0
    %4699 = vmatpush2.xpose.msra.mxu0 0.0
    %4700 = vmatprep.subr.mxu0 0.0
    %4701 = vmatpush2.xpose.msra.mxu0 0.0
    %4702 = vmatprep.subr.mxu0 0.0
    %4703 = vmatpush2.xpose.msra.mxu0 0.0
    %4704 = vmatprep.subr.mxu0 0.0
    %4705 = vmatpush2.xpose.msra.mxu0 0.0
    %4706 = vmatprep.subr.mxu0 0.0
    %4707 = vmatpush2.xpose.msra.mxu0 0.0
    %4708 = vmatprep.subr.mxu0 0.0
    %4709 = vmatpush2.xpose.msra.mxu0 0.0
    %4710 = vmatprep.subr.mxu0 0.0
    %4711 = vmatpush2.xpose.msra.mxu0 0.0
    %4712 = vmatprep.subr.mxu0 0.0
    %4713 = vmatpush2.xpose.msra.mxu0 0.0
    %4714 = vmatprep.subr.mxu0 0.0
    %4715 = vmatpush2.xpose.msra.mxu0 0.0
    %4716 = vmatprep.subr.mxu0 0.0
    %4717 = vmatpush2.xpose.msra.mxu0 0.0
    %4718 = vmatprep.subr.mxu0 0.0
    %4719 = vmatpush2.xpose.msra.mxu0 0.0
    %4720 = vmatprep.subr.mxu0 0.0
    %4721 = vmatpush2.xpose.msra.mxu0 0.0
    %4722 = vmatprep.subr.mxu0 0.0
    %4723 = vmatpush2.xpose.msra.mxu0 0.0
    %4724 = vmatprep.mubr.f32.mxu0 0.0
    %4725 = vmatmul.mubr.f32.gmra.mxu0 %v4120
    %v4726 = vpop.f32.mrf.mxu0
    %v4727 = vadd.f32 0.0, %v4726
    %v4728 = vpop.f32.mrf.mxu0
    %4729 = vmatprep.mubr.f32.mxu0 0.0
    %4730 = vmatmul.mubr.f32.gmra.mxu0 %v4123
    %v4731 = vpop.f32.mrf.mxu0
    %v4732 = vadd.f32 0.0, %v4731
    %v4733 = vpop.f32.mrf.mxu0
    %4734 = vdwg.mxu0
    %4735 = vmatprep.subr.mxu0 0.0
    %4736 = vmatpush1.xpose.msra.mxu0 0.0
    %4737 = vmatprep.subr.mxu0 0.0
    %4738 = vmatpush1.xpose.msra.mxu0 0.0
    %4739 = vmatprep.subr.mxu0 0.0
    %4740 = vmatpush1.xpose.msra.mxu0 0.0
    %4741 = vmatprep.subr.mxu0 0.0
    %4742 = vmatpush1.xpose.msra.mxu0 0.0
    %4743 = vmatprep.subr.mxu0 0.0
    %4744 = vmatpush1.xpose.msra.mxu0 0.0
    %4745 = vmatprep.subr.mxu0 0.0
    %4746 = vmatpush1.xpose.msra.mxu0 0.0
    %4747 = vmatprep.subr.mxu0 0.0
    %4748 = vmatpush1.xpose.msra.mxu0 0.0
    %4749 = vmatprep.subr.mxu0 0.0
    %4750 = vmatpush1.xpose.msra.mxu0 0.0
    %4751 = vmatprep.subr.mxu0 0.0
    %4752 = vmatpush1.xpose.msra.mxu0 0.0
    %4753 = vmatprep.subr.mxu0 0.0
    %4754 = vmatpush1.xpose.msra.mxu0 0.0
    %4755 = vmatprep.subr.mxu0 0.0
    %4756 = vmatpush1.xpose.msra.mxu0 0.0
    %4757 = vmatprep.subr.mxu0 0.0
    %4758 = vmatpush1.xpose.msra.mxu0 0.0
    %4759 = vmatprep.subr.mxu0 0.0
    %4760 = vmatpush1.xpose.msra.mxu0 0.0
    %4761 = vmatprep.subr.mxu0 0.0
    %4762 = vmatpush1.xpose.msra.mxu0 0.0
    %4763 = vmatprep.subr.mxu0 0.0
    %4764 = vmatpush1.xpose.msra.mxu0 0.0
    %4765 = vmatprep.subr.mxu0 0.0
    %4766 = vmatpush1.xpose.msra.mxu0 %v4290
    %4767 = vmatprep.subr.mxu0 0.0
    %4768 = vmatpush2.xpose.msra.mxu0 0.0
    %4769 = vmatprep.subr.mxu0 0.0
    %4770 = vmatpush2.xpose.msra.mxu0 0.0
    %4771 = vmatprep.subr.mxu0 0.0
    %4772 = vmatpush2.xpose.msra.mxu0 0.0
    %4773 = vmatprep.subr.mxu0 0.0
    %4774 = vmatpush2.xpose.msra.mxu0 0.0
    %4775 = vmatprep.subr.mxu0 0.0
    %4776 = vmatpush2.xpose.msra.mxu0 0.0
    %4777 = vmatprep.subr.mxu0 0.0
    %4778 = vmatpush2.xpose.msra.mxu0 0.0
    %4779 = vmatprep.subr.mxu0 0.0
    %4780 = vmatpush2.xpose.msra.mxu0 0.0
    %4781 = vmatprep.subr.mxu0 0.0
    %4782 = vmatpush2.xpose.msra.mxu0 0.0
    %4783 = vmatprep.subr.mxu0 0.0
    %4784 = vmatpush2.xpose.msra.mxu0 0.0
    %4785 = vmatprep.subr.mxu0 0.0
    %4786 = vmatpush2.xpose.msra.mxu0 0.0
    %4787 = vmatprep.subr.mxu0 0.0
    %4788 = vmatpush2.xpose.msra.mxu0 0.0
    %4789 = vmatprep.subr.mxu0 0.0
    %4790 = vmatpush2.xpose.msra.mxu0 0.0
    %4791 = vmatprep.subr.mxu0 0.0
    %4792 = vmatpush2.xpose.msra.mxu0 0.0
    %4793 = vmatprep.subr.mxu0 0.0
    %4794 = vmatpush2.xpose.msra.mxu0 0.0
    %4795 = vmatprep.subr.mxu0 0.0
    %4796 = vmatpush2.xpose.msra.mxu0 0.0
    %4797 = vmatprep.subr.mxu0 0.0
    %4798 = vmatpush2.xpose.msra.mxu0 0.0
    %4799 = vmatprep.mubr.f32.mxu0 0.0
    %4800 = vmatmul.mubr.f32.gmra.mxu0 %v4126
    %v4801 = vpop.f32.mrf.mxu0
    %v4802 = vadd.f32 0.0, %v4801
    %v4803 = vpop.f32.mrf.mxu0
    %4804 = vmatprep.mubr.f32.mxu0 0.0
    %4805 = vmatmul.mubr.f32.gmra.mxu0 %v4129
    %v4806 = vpop.f32.mrf.mxu0
    %v4807 = vadd.f32 0.0, %v4806
    %v4808 = vpop.f32.mrf.mxu0
    %4809 = vdwg.mxu0
    %4810 = vmatprep.subr.mxu0 0.0
    %4811 = vmatpush1.xpose.msra.mxu0 0.0
    %4812 = vmatprep.subr.mxu0 0.0
    %4813 = vmatpush1.xpose.msra.mxu0 0.0
    %4814 = vmatprep.subr.mxu0 0.0
    %4815 = vmatpush1.xpose.msra.mxu0 0.0
    %4816 = vmatprep.subr.mxu0 0.0
    %4817 = vmatpush1.xpose.msra.mxu0 0.0
    %4818 = vmatprep.subr.mxu0 0.0
    %4819 = vmatpush1.xpose.msra.mxu0 0.0
    %4820 = vmatprep.subr.mxu0 0.0
    %4821 = vmatpush1.xpose.msra.mxu0 0.0
    %4822 = vmatprep.subr.mxu0 0.0
    %4823 = vmatpush1.xpose.msra.mxu0 0.0
    %4824 = vmatprep.subr.mxu0 0.0
    %4825 = vmatpush1.xpose.msra.mxu0 0.0
    %4826 = vmatprep.subr.mxu0 0.0
    %4827 = vmatpush1.xpose.msra.mxu0 0.0
    %4828 = vmatprep.subr.mxu0 0.0
    %4829 = vmatpush1.xpose.msra.mxu0 0.0
    %4830 = vmatprep.subr.mxu0 0.0
    %4831 = vmatpush1.xpose.msra.mxu0 0.0
    %4832 = vmatprep.subr.mxu0 0.0
    %4833 = vmatpush1.xpose.msra.mxu0 0.0
    %4834 = vmatprep.subr.mxu0 0.0
    %4835 = vmatpush1.xpose.msra.mxu0 0.0
    %4836 = vmatprep.subr.mxu0 0.0
    %4837 = vmatpush1.xpose.msra.mxu0 0.0
    %4838 = vmatprep.subr.mxu0 0.0
    %4839 = vmatpush1.xpose.msra.mxu0 0.0
    %4840 = vmatprep.subr.mxu0 0.0
    %4841 = vmatpush1.xpose.msra.mxu0 %v4363
    %4842 = vmatprep.subr.mxu0 0.0
    %4843 = vmatpush2.xpose.msra.mxu0 0.0
    %4844 = vmatprep.subr.mxu0 0.0
    %4845 = vmatpush2.xpose.msra.mxu0 0.0
    %4846 = vmatprep.subr.mxu0 0.0
    %4847 = vmatpush2.xpose.msra.mxu0 0.0
    %4848 = vmatprep.subr.mxu0 0.0
    %4849 = vmatpush2.xpose.msra.mxu0 0.0
    %4850 = vmatprep.subr.mxu0 0.0
    %4851 = vmatpush2.xpose.msra.mxu0 0.0
    %4852 = vmatprep.subr.mxu0 0.0
    %4853 = vmatpush2.xpose.msra.mxu0 0.0
    %4854 = vmatprep.subr.mxu0 0.0
    %4855 = vmatpush2.xpose.msra.mxu0 0.0
    %4856 = vmatprep.subr.mxu0 0.0
    %4857 = vmatpush2.xpose.msra.mxu0 0.0
    %4858 = vmatprep.subr.mxu0 0.0
    %4859 = vmatpush2.xpose.msra.mxu0 0.0
    %4860 = vmatprep.subr.mxu0 0.0
    %4861 = vmatpush2.xpose.msra.mxu0 0.0
    %4862 = vmatprep.subr.mxu0 0.0
    %4863 = vmatpush2.xpose.msra.mxu0 0.0
    %4864 = vmatprep.subr.mxu0 0.0
    %4865 = vmatpush2.xpose.msra.mxu0 0.0
    %4866 = vmatprep.subr.mxu0 0.0
    %4867 = vmatpush2.xpose.msra.mxu0 0.0
    %4868 = vmatprep.subr.mxu0 0.0
    %4869 = vmatpush2.xpose.msra.mxu0 0.0
    %4870 = vmatprep.subr.mxu0 0.0
    %4871 = vmatpush2.xpose.msra.mxu0 0.0
    %4872 = vmatprep.subr.mxu0 0.0
    %4873 = vmatpush2.xpose.msra.mxu0 0.0
    %4874 = vmatprep.mubr.f32.mxu0 0.0
    %4875 = vmatmul.mubr.f32.gmra.mxu0 %v4120
    %v4876 = vpop.f32.mrf.mxu0
    %v4877 = vadd.f32 0.0, %v4876
    %v4878 = vpop.f32.mrf.mxu0
    %4879 = vmatprep.mubr.f32.mxu0 0.0
    %4880 = vmatmul.mubr.f32.gmra.mxu0 %v4123
    %v4881 = vpop.f32.mrf.mxu0
    %v4882 = vadd.f32 0.0, %v4881
    %v4883 = vpop.f32.mrf.mxu0
    %4884 = vdwg.mxu0
    %4885 = vmatprep.subr.mxu0 0.0
    %4886 = vmatpush1.xpose.msra.mxu0 0.0
    %4887 = vmatprep.subr.mxu0 0.0
    %4888 = vmatpush1.xpose.msra.mxu0 0.0
    %4889 = vmatprep.subr.mxu0 0.0
    %4890 = vmatpush1.xpose.msra.mxu0 0.0
    %4891 = vmatprep.subr.mxu0 0.0
    %4892 = vmatpush1.xpose.msra.mxu0 0.0
    %4893 = vmatprep.subr.mxu0 0.0
    %4894 = vmatpush1.xpose.msra.mxu0 0.0
    %4895 = vmatprep.subr.mxu0 0.0
    %4896 = vmatpush1.xpose.msra.mxu0 0.0
    %4897 = vmatprep.subr.mxu0 0.0
    %4898 = vmatpush1.xpose.msra.mxu0 0.0
    %4899 = vmatprep.subr.mxu0 0.0
    %4900 = vmatpush1.xpose.msra.mxu0 0.0
    %4901 = vmatprep.subr.mxu0 0.0
    %4902 = vmatpush1.xpose.msra.mxu0 0.0
    %4903 = vmatprep.subr.mxu0 0.0
    %4904 = vmatpush1.xpose.msra.mxu0 0.0
    %4905 = vmatprep.subr.mxu0 0.0
    %4906 = vmatpush1.xpose.msra.mxu0 0.0
    %4907 = vmatprep.subr.mxu0 0.0
    %4908 = vmatpush1.xpose.msra.mxu0 0.0
    %4909 = vmatprep.subr.mxu0 0.0
    %4910 = vmatpush1.xpose.msra.mxu0 0.0
    %4911 = vmatprep.subr.mxu0 0.0
    %4912 = vmatpush1.xpose.msra.mxu0 0.0
    %4913 = vmatprep.subr.mxu0 0.0
    %4914 = vmatpush1.xpose.msra.mxu0 0.0
    %4915 = vmatprep.subr.mxu0 0.0
    %4916 = vmatpush1.xpose.msra.mxu0 %v4436
    %4917 = vmatprep.subr.mxu0 0.0
    %4918 = vmatpush2.xpose.msra.mxu0 0.0
    %4919 = vmatprep.subr.mxu0 0.0
    %4920 = vmatpush2.xpose.msra.mxu0 0.0
    %4921 = vmatprep.subr.mxu0 0.0
    %4922 = vmatpush2.xpose.msra.mxu0 0.0
    %4923 = vmatprep.subr.mxu0 0.0
    %4924 = vmatpush2.xpose.msra.mxu0 0.0
    %4925 = vmatprep.subr.mxu0 0.0
    %4926 = vmatpush2.xpose.msra.mxu0 0.0
    %4927 = vmatprep.subr.mxu0 0.0
    %4928 = vmatpush2.xpose.msra.mxu0 0.0
    %4929 = vmatprep.subr.mxu0 0.0
    %4930 = vmatpush2.xpose.msra.mxu0 0.0
    %4931 = vmatprep.subr.mxu0 0.0
    %4932 = vmatpush2.xpose.msra.mxu0 0.0
    %4933 = vmatprep.subr.mxu0 0.0
    %4934 = vmatpush2.xpose.msra.mxu0 0.0
    %4935 = vmatprep.subr.mxu0 0.0
    %4936 = vmatpush2.xpose.msra.mxu0 0.0
    %4937 = vmatprep.subr.mxu0 0.0
    %4938 = vmatpush2.xpose.msra.mxu0 0.0
    %4939 = vmatprep.subr.mxu0 0.0
    %4940 = vmatpush2.xpose.msra.mxu0 0.0
    %4941 = vmatprep.subr.mxu0 0.0
    %4942 = vmatpush2.xpose.msra.mxu0 0.0
    %4943 = vmatprep.subr.mxu0 0.0
    %4944 = vmatpush2.xpose.msra.mxu0 0.0
    %4945 = vmatprep.subr.mxu0 0.0
    %4946 = vmatpush2.xpose.msra.mxu0 0.0
    %4947 = vmatprep.subr.mxu0 0.0
    %4948 = vmatpush2.xpose.msra.mxu0 0.0
    %4949 = vmatprep.mubr.f32.mxu0 0.0
    %4950 = vmatmul.mubr.f32.gmra.mxu0 %v4126
    %v4951 = vpop.f32.mrf.mxu0
    %v4952 = vadd.f32 0.0, %v4951
    %v4953 = vpop.f32.mrf.mxu0
    %4954 = vmatprep.mubr.f32.mxu0 0.0
    %4955 = vmatmul.mubr.f32.gmra.mxu0 %v4129
    %v4956 = vpop.f32.mrf.mxu0
    %v4957 = vadd.f32 0.0, %v4956
    %v4958 = vpop.f32.mrf.mxu0
    %4959 = vdwg.mxu0
    %4960 = vmatprep.subr.mxu0 0.0
    %4961 = vmatpush1.xpose.msra.mxu0 0.0
    %4962 = vmatprep.subr.mxu0 0.0
    %4963 = vmatpush1.xpose.msra.mxu0 0.0
    %4964 = vmatprep.subr.mxu0 0.0
    %4965 = vmatpush1.xpose.msra.mxu0 0.0
    %4966 = vmatprep.subr.mxu0 0.0
    %4967 = vmatpush1.xpose.msra.mxu0 0.0
    %4968 = vmatprep.subr.mxu0 0.0
    %4969 = vmatpush1.xpose.msra.mxu0 0.0
    %4970 = vmatprep.subr.mxu0 0.0
    %4971 = vmatpush1.xpose.msra.mxu0 0.0
    %4972 = vmatprep.subr.mxu0 0.0
    %4973 = vmatpush1.xpose.msra.mxu0 0.0
    %4974 = vmatprep.subr.mxu0 0.0
    %4975 = vmatpush1.xpose.msra.mxu0 0.0
    %4976 = vmatprep.subr.mxu0 0.0
    %4977 = vmatpush1.xpose.msra.mxu0 0.0
    %4978 = vmatprep.subr.mxu0 0.0
    %4979 = vmatpush1.xpose.msra.mxu0 0.0
    %4980 = vmatprep.subr.mxu0 0.0
    %4981 = vmatpush1.xpose.msra.mxu0 0.0
    %4982 = vmatprep.subr.mxu0 0.0
    %4983 = vmatpush1.xpose.msra.mxu0 0.0
    %4984 = vmatprep.subr.mxu0 0.0
    %4985 = vmatpush1.xpose.msra.mxu0 0.0
    %4986 = vmatprep.subr.mxu0 0.0
    %4987 = vmatpush1.xpose.msra.mxu0 0.0
    %4988 = vmatprep.subr.mxu0 0.0
    %4989 = vmatpush1.xpose.msra.mxu0 0.0
    %4990 = vmatprep.subr.mxu0 0.0
    %4991 = vmatpush1.xpose.msra.mxu0 %v4509
    %4992 = vmatprep.subr.mxu0 0.0
    %4993 = vmatpush2.xpose.msra.mxu0 0.0
    %4994 = vmatprep.subr.mxu0 0.0
    %4995 = vmatpush2.xpose.msra.mxu0 0.0
    %4996 = vmatprep.subr.mxu0 0.0
    %4997 = vmatpush2.xpose.msra.mxu0 0.0
    %4998 = vmatprep.subr.mxu0 0.0
    %4999 = vmatpush2.xpose.msra.mxu0 0.0
    %5000 = vmatprep.subr.mxu0 0.0
    %5001 = vmatpush2.xpose.msra.mxu0 0.0
    %5002 = vmatprep.subr.mxu0 0.0
    %5003 = vmatpush2.xpose.msra.mxu0 0.0
    %5004 = vmatprep.subr.mxu0 0.0
    %5005 = vmatpush2.xpose.msra.mxu0 0.0
    %5006 = vmatprep.subr.mxu0 0.0
    %5007 = vmatpush2.xpose.msra.mxu0 0.0
    %5008 = vmatprep.subr.mxu0 0.0
    %5009 = vmatpush2.xpose.msra.mxu0 0.0
    %5010 = vmatprep.subr.mxu0 0.0
    %5011 = vmatpush2.xpose.msra.mxu0 0.0
    %5012 = vmatprep.subr.mxu0 0.0
    %5013 = vmatpush2.xpose.msra.mxu0 0.0
    %5014 = vmatprep.subr.mxu0 0.0
    %5015 = vmatpush2.xpose.msra.mxu0 0.0
    %5016 = vmatprep.subr.mxu0 0.0
    %5017 = vmatpush2.xpose.msra.mxu0 0.0
    %5018 = vmatprep.subr.mxu0 0.0
    %5019 = vmatpush2.xpose.msra.mxu0 0.0
    %5020 = vmatprep.subr.mxu0 0.0
    %5021 = vmatpush2.xpose.msra.mxu0 0.0
    %5022 = vmatprep.subr.mxu0 0.0
    %5023 = vmatpush2.xpose.msra.mxu0 0.0
    %5024 = vmatprep.mubr.f32.mxu0 0.0
    %5025 = vmatmul.mubr.f32.gmra.mxu0 %v4120
    %v5026 = vpop.f32.mrf.mxu0
    %v5027 = vadd.f32 0.0, %v5026
    %v5028 = vpop.f32.mrf.mxu0
    %5029 = vmatprep.mubr.f32.mxu0 0.0
    %5030 = vmatmul.mubr.f32.gmra.mxu0 %v4123
    %v5031 = vpop.f32.mrf.mxu0
    %v5032 = vadd.f32 0.0, %v5031
    %v5033 = vpop.f32.mrf.mxu0
    %5034 = vdwg.mxu0
    %5035 = vmatprep.subr.mxu0 0.0
    %5036 = vmatpush1.xpose.msra.mxu0 0.0
    %5037 = vmatprep.subr.mxu0 0.0
    %5038 = vmatpush1.xpose.msra.mxu0 0.0
    %5039 = vmatprep.subr.mxu0 0.0
    %5040 = vmatpush1.xpose.msra.mxu0 0.0
    %5041 = vmatprep.subr.mxu0 0.0
    %5042 = vmatpush1.xpose.msra.mxu0 0.0
    %5043 = vmatprep.subr.mxu0 0.0
    %5044 = vmatpush1.xpose.msra.mxu0 0.0
    %5045 = vmatprep.subr.mxu0 0.0
    %5046 = vmatpush1.xpose.msra.mxu0 0.0
    %5047 = vmatprep.subr.mxu0 0.0
    %5048 = vmatpush1.xpose.msra.mxu0 0.0
    %5049 = vmatprep.subr.mxu0 0.0
    %5050 = vmatpush1.xpose.msra.mxu0 0.0
    %5051 = vmatprep.subr.mxu0 0.0
    %5052 = vmatpush1.xpose.msra.mxu0 0.0
    %5053 = vmatprep.subr.mxu0 0.0
    %5054 = vmatpush1.xpose.msra.mxu0 0.0
    %5055 = vmatprep.subr.mxu0 0.0
    %5056 = vmatpush1.xpose.msra.mxu0 0.0
    %5057 = vmatprep.subr.mxu0 0.0
    %5058 = vmatpush1.xpose.msra.mxu0 0.0
    %5059 = vmatprep.subr.mxu0 0.0
    %5060 = vmatpush1.xpose.msra.mxu0 0.0
    %5061 = vmatprep.subr.mxu0 0.0
    %5062 = vmatpush1.xpose.msra.mxu0 0.0
    %5063 = vmatprep.subr.mxu0 0.0
    %5064 = vmatpush1.xpose.msra.mxu0 0.0
    %5065 = vmatprep.subr.mxu0 0.0
    %5066 = vmatpush1.xpose.msra.mxu0 %v4582
    %5067 = vmatprep.subr.mxu0 0.0
    %5068 = vmatpush2.xpose.msra.mxu0 0.0
    %5069 = vmatprep.subr.mxu0 0.0
    %5070 = vmatpush2.xpose.msra.mxu0 0.0
    %5071 = vmatprep.subr.mxu0 0.0
    %5072 = vmatpush2.xpose.msra.mxu0 0.0
    %5073 = vmatprep.subr.mxu0 0.0
    %5074 = vmatpush2.xpose.msra.mxu0 0.0
    %5075 = vmatprep.subr.mxu0 0.0
    %5076 = vmatpush2.xpose.msra.mxu0 0.0
    %5077 = vmatprep.subr.mxu0 0.0
    %5078 = vmatpush2.xpose.msra.mxu0 0.0
    %5079 = vmatprep.subr.mxu0 0.0
    %5080 = vmatpush2.xpose.msra.mxu0 0.0
    %5081 = vmatprep.subr.mxu0 0.0
    %5082 = vmatpush2.xpose.msra.mxu0 0.0
    %5083 = vmatprep.subr.mxu0 0.0
    %5084 = vmatpush2.xpose.msra.mxu0 0.0
    %5085 = vmatprep.subr.mxu0 0.0
    %5086 = vmatpush2.xpose.msra.mxu0 0.0
    %5087 = vmatprep.subr.mxu0 0.0
    %5088 = vmatpush2.xpose.msra.mxu0 0.0
    %5089 = vmatprep.subr.mxu0 0.0
    %5090 = vmatpush2.xpose.msra.mxu0 0.0
    %5091 = vmatprep.subr.mxu0 0.0
    %5092 = vmatpush2.xpose.msra.mxu0 0.0
    %5093 = vmatprep.subr.mxu0 0.0
    %5094 = vmatpush2.xpose.msra.mxu0 0.0
    %5095 = vmatprep.subr.mxu0 0.0
    %5096 = vmatpush2.xpose.msra.mxu0 0.0
    %5097 = vmatprep.subr.mxu0 0.0
    %5098 = vmatpush2.xpose.msra.mxu0 0.0
    %5099 = vmatprep.mubr.f32.mxu0 0.0
    %5100 = vmatmul.mubr.f32.gmra.mxu0 %v4126
    %v5101 = vpop.f32.mrf.mxu0
    %v5102 = vadd.f32 0.0, %v5101
    %v5103 = vpop.f32.mrf.mxu0
    %5104 = vmatprep.mubr.f32.mxu0 0.0
    %5105 = vmatmul.mubr.f32.gmra.mxu0 %v4129
    %v5106 = vpop.f32.mrf.mxu0
    %v5107 = vadd.f32 0.0, %v5106
    %v5108 = vpop.f32.mrf.mxu0
    %5109 = vdwg.mxu0
    %v5110 = vtanh.pop %v4727
    %v5111 = vtanh.pop %v4732
    %v5112 = vtanh.pop %v4802
    %v5113 = vtanh.pop %v4807
    %v5114 = vtanh.pop %v4877
    %v5115 = vtanh.pop %v4882
    %v5116 = vtanh.pop %v4952
    %v5117 = vtanh.pop %v4957
    %v5118 = vtanh.pop %v5027
    %v5119 = vtanh.pop %v5032
    %v5120 = vtanh.pop %v5102
    %v5121 = vtanh.pop %v5107
    %vm5122 = vcmask 64512
    %v5124 = vsel %vm5122, %v5110, 0
    %v5127 = vsel %vm5122, %v5111, 0
    %5129 = vmatprep.subr.mxu0 0.0
    %5130 = vmatpush1.msra.mxu0 0.0
    %5131 = vmatprep.subr.mxu0 0.0
    %5132 = vmatpush1.msra.mxu0 0.0
    %5133 = vmatprep.subr.mxu0 0.0
    %5134 = vmatpush1.msra.mxu0 0.0
    %5135 = vmatprep.subr.mxu0 0.0
    %5136 = vmatpush1.msra.mxu0 0.0
    %5137 = vmatprep.subr.mxu0 0.0
    %5138 = vmatpush1.msra.mxu0 0.0
    %5139 = vmatprep.subr.mxu0 0.0
    %5140 = vmatpush1.msra.mxu0 0.0
    %5141 = vmatprep.subr.mxu0 0.0
    %5142 = vmatpush1.msra.mxu0 0.0
    %5143 = vmatprep.subr.mxu0 0.0
    %5144 = vmatpush1.msra.mxu0 0.0
    %5145 = vmatprep.subr.mxu0 0.0
    %5146 = vmatpush1.msra.mxu0 0.0
    %5147 = vmatprep.subr.mxu0 0.0
    %5148 = vmatpush1.msra.mxu0 0.0
    %5149 = vmatprep.subr.mxu0 0.0
    %5150 = vmatpush1.msra.mxu0 0.0
    %5151 = vmatprep.subr.mxu0 0.0
    %5152 = vmatpush1.msra.mxu0 0.0
    %5153 = vmatprep.subr.mxu0 0.0
    %5154 = vmatpush1.msra.mxu0 0.0
    %5155 = vmatprep.subr.mxu0 0.0
    %5156 = vmatpush1.msra.mxu0 0.0
    %5157 = vmatprep.subr.mxu0 0.0
    %5158 = vmatpush1.msra.mxu0 0.0
    %5159 = vmatprep.subr.mxu0 0.0
    %5160 = vmatpush1.msra.mxu0 %v4087
    %5161 = vmatprep.subr.mxu0 0.0
    %5162 = vmatpush2.msra.mxu0 0.0
    %5163 = vmatprep.subr.mxu0 0.0
    %5164 = vmatpush2.msra.mxu0 0.0
    %5165 = vmatprep.subr.mxu0 0.0
    %5166 = vmatpush2.msra.mxu0 0.0
    %5167 = vmatprep.subr.mxu0 0.0
    %5168 = vmatpush2.msra.mxu0 0.0
    %5169 = vmatprep.subr.mxu0 0.0
    %5170 = vmatpush2.msra.mxu0 0.0
    %5171 = vmatprep.subr.mxu0 0.0
    %5172 = vmatpush2.msra.mxu0 0.0
    %5173 = vmatprep.subr.mxu0 0.0
    %5174 = vmatpush2.msra.mxu0 0.0
    %5175 = vmatprep.subr.mxu0 0.0
    %5176 = vmatpush2.msra.mxu0 0.0
    %5177 = vmatprep.subr.mxu0 0.0
    %5178 = vmatpush2.msra.mxu0 0.0
    %5179 = vmatprep.subr.mxu0 0.0
    %5180 = vmatpush2.msra.mxu0 0.0
    %5181 = vmatprep.subr.mxu0 0.0
    %5182 = vmatpush2.msra.mxu0 0.0
    %5183 = vmatprep.subr.mxu0 0.0
    %5184 = vmatpush2.msra.mxu0 0.0
    %5185 = vmatprep.subr.mxu0 0.0
    %5186 = vmatpush2.msra.mxu0 0.0
    %5187 = vmatprep.subr.mxu0 0.0
    %5188 = vmatpush2.msra.mxu0 0.0
    %5189 = vmatprep.subr.mxu0 0.0
    %5190 = vmatpush2.msra.mxu0 0.0
    %5191 = vmatprep.subr.mxu0 0.0
    %5192 = vmatpush2.msra.mxu0 0.0
    %5193 = vmatprep.mubr.f32.mxu0 0.0
    %5194 = vmatmul.mubr.f32.gmra.mxu0 %v5124
    %v5195 = vpop.f32.mrf.mxu0
    %v5196 = vadd.f32 0.0, %v5195
    %v5197 = vpop.f32.mrf.mxu0
    %5198 = vmatprep.mubr.f32.mxu0 0.0
    %5199 = vmatmul.mubr.f32.gmra.mxu0 %v5127
    %v5200 = vpop.f32.mrf.mxu0
    %v5201 = vadd.f32 0.0, %v5200
    %v5202 = vpop.f32.mrf.mxu0
    %5203 = vdwg.mxu0
    %v5205 = vsel %vm5122, %v5112, 0
    %v5208 = vsel %vm5122, %v5113, 0
    %5210 = vmatprep.subr.mxu0 0.0
    %5211 = vmatpush1.msra.mxu0 0.0
    %5212 = vmatprep.subr.mxu0 0.0
    %5213 = vmatpush1.msra.mxu0 0.0
    %5214 = vmatprep.subr.mxu0 0.0
    %5215 = vmatpush1.msra.mxu0 0.0
    %5216 = vmatprep.subr.mxu0 0.0
    %5217 = vmatpush1.msra.mxu0 0.0
    %5218 = vmatprep.subr.mxu0 0.0
    %5219 = vmatpush1.msra.mxu0 0.0
    %5220 = vmatprep.subr.mxu0 0.0
    %5221 = vmatpush1.msra.mxu0 0.0
    %5222 = vmatprep.subr.mxu0 0.0
    %5223 = vmatpush1.msra.mxu0 0.0
    %5224 = vmatprep.subr.mxu0 0.0
    %5225 = vmatpush1.msra.mxu0 0.0
    %5226 = vmatprep.subr.mxu0 0.0
    %5227 = vmatpush1.msra.mxu0 0.0
    %5228 = vmatprep.subr.mxu0 0.0
    %5229 = vmatpush1.msra.mxu0 0.0
    %5230 = vmatprep.subr.mxu0 0.0
    %5231 = vmatpush1.msra.mxu0 0.0
    %5232 = vmatprep.subr.mxu0 0.0
    %5233 = vmatpush1.msra.mxu0 0.0
    %5234 = vmatprep.subr.mxu0 0.0
    %5235 = vmatpush1.msra.mxu0 0.0
    %5236 = vmatprep.subr.mxu0 0.0
    %5237 = vmatpush1.msra.mxu0 0.0
    %5238 = vmatprep.subr.mxu0 0.0
    %5239 = vmatpush1.msra.mxu0 0.0
    %5240 = vmatprep.subr.mxu0 0.0
    %5241 = vmatpush1.msra.mxu0 %v4092
    %5242 = vmatprep.subr.mxu0 0.0
    %5243 = vmatpush2.msra.mxu0 0.0
    %5244 = vmatprep.subr.mxu0 0.0
    %5245 = vmatpush2.msra.mxu0 0.0
    %5246 = vmatprep.subr.mxu0 0.0
    %5247 = vmatpush2.msra.mxu0 0.0
    %5248 = vmatprep.subr.mxu0 0.0
    %5249 = vmatpush2.msra.mxu0 0.0
    %5250 = vmatprep.subr.mxu0 0.0
    %5251 = vmatpush2.msra.mxu0 0.0
    %5252 = vmatprep.subr.mxu0 0.0
    %5253 = vmatpush2.msra.mxu0 0.0
    %5254 = vmatprep.subr.mxu0 0.0
    %5255 = vmatpush2.msra.mxu0 0.0
    %5256 = vmatprep.subr.mxu0 0.0
    %5257 = vmatpush2.msra.mxu0 0.0
    %5258 = vmatprep.subr.mxu0 0.0
    %5259 = vmatpush2.msra.mxu0 0.0
    %5260 = vmatprep.subr.mxu0 0.0
    %5261 = vmatpush2.msra.mxu0 0.0
    %5262 = vmatprep.subr.mxu0 0.0
    %5263 = vmatpush2.msra.mxu0 0.0
    %5264 = vmatprep.subr.mxu0 0.0
    %5265 = vmatpush2.msra.mxu0 0.0
    %5266 = vmatprep.subr.mxu0 0.0
    %5267 = vmatpush2.msra.mxu0 0.0
    %5268 = vmatprep.subr.mxu0 0.0
    %5269 = vmatpush2.msra.mxu0 0.0
    %5270 = vmatprep.subr.mxu0 0.0
    %5271 = vmatpush2.msra.mxu0 0.0
    %5272 = vmatprep.subr.mxu0 0.0
    %5273 = vmatpush2.msra.mxu0 0.0
    %5274 = vmatprep.mubr.f32.mxu0 0.0
    %5275 = vmatmul.mubr.f32.gmra.mxu0 %v5205
    %v5276 = vpop.f32.mrf.mxu0
    %v5277 = vadd.f32 0.0, %v5276
    %v5278 = vpop.f32.mrf.mxu0
    %5279 = vmatprep.mubr.f32.mxu0 0.0
    %5280 = vmatmul.mubr.f32.gmra.mxu0 %v5208
    %v5281 = vpop.f32.mrf.mxu0
    %v5282 = vadd.f32 0.0, %v5281
    %v5283 = vpop.f32.mrf.mxu0
    %5284 = vdwg.mxu0
    %v5286 = vsel %vm5122, %v5114, 0
    %v5289 = vsel %vm5122, %v5115, 0
    %5291 = vmatprep.subr.mxu0 0.0
    %5292 = vmatpush1.msra.mxu0 0.0
    %5293 = vmatprep.subr.mxu0 0.0
    %5294 = vmatpush1.msra.mxu0 0.0
    %5295 = vmatprep.subr.mxu0 0.0
    %5296 = vmatpush1.msra.mxu0 0.0
    %5297 = vmatprep.subr.mxu0 0.0
    %5298 = vmatpush1.msra.mxu0 0.0
    %5299 = vmatprep.subr.mxu0 0.0
    %5300 = vmatpush1.msra.mxu0 0.0
    %5301 = vmatprep.subr.mxu0 0.0
    %5302 = vmatpush1.msra.mxu0 0.0
    %5303 = vmatprep.subr.mxu0 0.0
    %5304 = vmatpush1.msra.mxu0 0.0
    %5305 = vmatprep.subr.mxu0 0.0
    %5306 = vmatpush1.msra.mxu0 0.0
    %5307 = vmatprep.subr.mxu0 0.0
    %5308 = vmatpush1.msra.mxu0 0.0
    %5309 = vmatprep.subr.mxu0 0.0
    %5310 = vmatpush1.msra.mxu0 0.0
    %5311 = vmatprep.subr.mxu0 0.0
    %5312 = vmatpush1.msra.mxu0 0.0
    %5313 = vmatprep.subr.mxu0 0.0
    %5314 = vmatpush1.msra.mxu0 0.0
    %5315 = vmatprep.subr.mxu0 0.0
    %5316 = vmatpush1.msra.mxu0 0.0
    %5317 = vmatprep.subr.mxu0 0.0
    %5318 = vmatpush1.msra.mxu0 0.0
    %5319 = vmatprep.subr.mxu0 0.0
    %5320 = vmatpush1.msra.mxu0 0.0
    %5321 = vmatprep.subr.mxu0 0.0
    %5322 = vmatpush1.msra.mxu0 %v4097
    %5323 = vmatprep.subr.mxu0 0.0
    %5324 = vmatpush2.msra.mxu0 0.0
    %5325 = vmatprep.subr.mxu0 0.0
    %5326 = vmatpush2.msra.mxu0 0.0
    %5327 = vmatprep.subr.mxu0 0.0
    %5328 = vmatpush2.msra.mxu0 0.0
    %5329 = vmatprep.subr.mxu0 0.0
    %5330 = vmatpush2.msra.mxu0 0.0
    %5331 = vmatprep.subr.mxu0 0.0
    %5332 = vmatpush2.msra.mxu0 0.0
    %5333 = vmatprep.subr.mxu0 0.0
    %5334 = vmatpush2.msra.mxu0 0.0
    %5335 = vmatprep.subr.mxu0 0.0
    %5336 = vmatpush2.msra.mxu0 0.0
    %5337 = vmatprep.subr.mxu0 0.0
    %5338 = vmatpush2.msra.mxu0 0.0
    %5339 = vmatprep.subr.mxu0 0.0
    %5340 = vmatpush2.msra.mxu0 0.0
    %5341 = vmatprep.subr.mxu0 0.0
    %5342 = vmatpush2.msra.mxu0 0.0
    %5343 = vmatprep.subr.mxu0 0.0
    %5344 = vmatpush2.msra.mxu0 0.0
    %5345 = vmatprep.subr.mxu0 0.0
    %5346 = vmatpush2.msra.mxu0 0.0
    %5347 = vmatprep.subr.mxu0 0.0
    %5348 = vmatpush2.msra.mxu0 0.0
    %5349 = vmatprep.subr.mxu0 0.0
    %5350 = vmatpush2.msra.mxu0 0.0
    %5351 = vmatprep.subr.mxu0 0.0
    %5352 = vmatpush2.msra.mxu0 0.0
    %5353 = vmatprep.subr.mxu0 0.0
    %5354 = vmatpush2.msra.mxu0 0.0
    %5355 = vmatprep.mubr.f32.mxu0 0.0
    %5356 = vmatmul.mubr.f32.gmra.mxu0 %v5286
    %v5357 = vpop.f32.mrf.mxu0
    %v5358 = vadd.f32 0.0, %v5357
    %v5359 = vpop.f32.mrf.mxu0
    %5360 = vmatprep.mubr.f32.mxu0 0.0
    %5361 = vmatmul.mubr.f32.gmra.mxu0 %v5289
    %v5362 = vpop.f32.mrf.mxu0
    %v5363 = vadd.f32 0.0, %v5362
    %v5364 = vpop.f32.mrf.mxu0
    %5365 = vdwg.mxu0
    %v5367 = vsel %vm5122, %v5116, 0
    %v5370 = vsel %vm5122, %v5117, 0
    %5372 = vmatprep.subr.mxu0 0.0
    %5373 = vmatpush1.msra.mxu0 0.0
    %5374 = vmatprep.subr.mxu0 0.0
    %5375 = vmatpush1.msra.mxu0 0.0
    %5376 = vmatprep.subr.mxu0 0.0
    %5377 = vmatpush1.msra.mxu0 0.0
    %5378 = vmatprep.subr.mxu0 0.0
    %5379 = vmatpush1.msra.mxu0 0.0
    %5380 = vmatprep.subr.mxu0 0.0
    %5381 = vmatpush1.msra.mxu0 0.0
    %5382 = vmatprep.subr.mxu0 0.0
    %5383 = vmatpush1.msra.mxu0 0.0
    %5384 = vmatprep.subr.mxu0 0.0
    %5385 = vmatpush1.msra.mxu0 0.0
    %5386 = vmatprep.subr.mxu0 0.0
    %5387 = vmatpush1.msra.mxu0 0.0
    %5388 = vmatprep.subr.mxu0 0.0
    %5389 = vmatpush1.msra.mxu0 0.0
    %5390 = vmatprep.subr.mxu0 0.0
    %5391 = vmatpush1.msra.mxu0 0.0
    %5392 = vmatprep.subr.mxu0 0.0
    %5393 = vmatpush1.msra.mxu0 0.0
    %5394 = vmatprep.subr.mxu0 0.0
    %5395 = vmatpush1.msra.mxu0 0.0
    %5396 = vmatprep.subr.mxu0 0.0
    %5397 = vmatpush1.msra.mxu0 0.0
    %5398 = vmatprep.subr.mxu0 0.0
    %5399 = vmatpush1.msra.mxu0 0.0
    %5400 = vmatprep.subr.mxu0 0.0
    %5401 = vmatpush1.msra.mxu0 0.0
    %5402 = vmatprep.subr.mxu0 0.0
    %5403 = vmatpush1.msra.mxu0 %v4102
    %5404 = vmatprep.subr.mxu0 0.0
    %5405 = vmatpush2.msra.mxu0 0.0
    %5406 = vmatprep.subr.mxu0 0.0
    %5407 = vmatpush2.msra.mxu0 0.0
    %5408 = vmatprep.subr.mxu0 0.0
    %5409 = vmatpush2.msra.mxu0 0.0
    %5410 = vmatprep.subr.mxu0 0.0
    %5411 = vmatpush2.msra.mxu0 0.0
    %5412 = vmatprep.subr.mxu0 0.0
    %5413 = vmatpush2.msra.mxu0 0.0
    %5414 = vmatprep.subr.mxu0 0.0
    %5415 = vmatpush2.msra.mxu0 0.0
    %5416 = vmatprep.subr.mxu0 0.0
    %5417 = vmatpush2.msra.mxu0 0.0
    %5418 = vmatprep.subr.mxu0 0.0
    %5419 = vmatpush2.msra.mxu0 0.0
    %5420 = vmatprep.subr.mxu0 0.0
    %5421 = vmatpush2.msra.mxu0 0.0
    %5422 = vmatprep.subr.mxu0 0.0
    %5423 = vmatpush2.msra.mxu0 0.0
    %5424 = vmatprep.subr.mxu0 0.0
    %5425 = vmatpush2.msra.mxu0 0.0
    %5426 = vmatprep.subr.mxu0 0.0
    %5427 = vmatpush2.msra.mxu0 0.0
    %5428 = vmatprep.subr.mxu0 0.0
    %5429 = vmatpush2.msra.mxu0 0.0
    %5430 = vmatprep.subr.mxu0 0.0
    %5431 = vmatpush2.msra.mxu0 0.0
    %5432 = vmatprep.subr.mxu0 0.0
    %5433 = vmatpush2.msra.mxu0 0.0
    %5434 = vmatprep.subr.mxu0 0.0
    %5435 = vmatpush2.msra.mxu0 0.0
    %5436 = vmatprep.mubr.f32.mxu0 0.0
    %5437 = vmatmul.mubr.f32.gmra.mxu0 %v5367
    %v5438 = vpop.f32.mrf.mxu0
    %v5439 = vadd.f32 0.0, %v5438
    %v5440 = vpop.f32.mrf.mxu0
    %5441 = vmatprep.mubr.f32.mxu0 0.0
    %5442 = vmatmul.mubr.f32.gmra.mxu0 %v5370
    %v5443 = vpop.f32.mrf.mxu0
    %v5444 = vadd.f32 0.0, %v5443
    %v5445 = vpop.f32.mrf.mxu0
    %5446 = vdwg.mxu0
    %v5448 = vsel %vm5122, %v5118, 0
    %v5451 = vsel %vm5122, %v5119, 0
    %5453 = vmatprep.subr.mxu0 0.0
    %5454 = vmatpush1.msra.mxu0 0.0
    %5455 = vmatprep.subr.mxu0 0.0
    %5456 = vmatpush1.msra.mxu0 0.0
    %5457 = vmatprep.subr.mxu0 0.0
    %5458 = vmatpush1.msra.mxu0 0.0
    %5459 = vmatprep.subr.mxu0 0.0
    %5460 = vmatpush1.msra.mxu0 0.0
    %5461 = vmatprep.subr.mxu0 0.0
    %5462 = vmatpush1.msra.mxu0 0.0
    %5463 = vmatprep.subr.mxu0 0.0
    %5464 = vmatpush1.msra.mxu0 0.0
    %5465 = vmatprep.subr.mxu0 0.0
    %5466 = vmatpush1.msra.mxu0 0.0
    %5467 = vmatprep.subr.mxu0 0.0
    %5468 = vmatpush1.msra.mxu0 0.0
    %5469 = vmatprep.subr.mxu0 0.0
    %5470 = vmatpush1.msra.mxu0 0.0
    %5471 = vmatprep.subr.mxu0 0.0
    %5472 = vmatpush1.msra.mxu0 0.0
    %5473 = vmatprep.subr.mxu0 0.0
    %5474 = vmatpush1.msra.mxu0 0.0
    %5475 = vmatprep.subr.mxu0 0.0
    %5476 = vmatpush1.msra.mxu0 0.0
    %5477 = vmatprep.subr.mxu0 0.0
    %5478 = vmatpush1.msra.mxu0 0.0
    %5479 = vmatprep.subr.mxu0 0.0
    %5480 = vmatpush1.msra.mxu0 0.0
    %5481 = vmatprep.subr.mxu0 0.0
    %5482 = vmatpush1.msra.mxu0 0.0
    %5483 = vmatprep.subr.mxu0 0.0
    %5484 = vmatpush1.msra.mxu0 %v4107
    %5485 = vmatprep.subr.mxu0 0.0
    %5486 = vmatpush2.msra.mxu0 0.0
    %5487 = vmatprep.subr.mxu0 0.0
    %5488 = vmatpush2.msra.mxu0 0.0
    %5489 = vmatprep.subr.mxu0 0.0
    %5490 = vmatpush2.msra.mxu0 0.0
    %5491 = vmatprep.subr.mxu0 0.0
    %5492 = vmatpush2.msra.mxu0 0.0
    %5493 = vmatprep.subr.mxu0 0.0
    %5494 = vmatpush2.msra.mxu0 0.0
    %5495 = vmatprep.subr.mxu0 0.0
    %5496 = vmatpush2.msra.mxu0 0.0
    %5497 = vmatprep.subr.mxu0 0.0
    %5498 = vmatpush2.msra.mxu0 0.0
    %5499 = vmatprep.subr.mxu0 0.0
    %5500 = vmatpush2.msra.mxu0 0.0
    %5501 = vmatprep.subr.mxu0 0.0
    %5502 = vmatpush2.msra.mxu0 0.0
    %5503 = vmatprep.subr.mxu0 0.0
    %5504 = vmatpush2.msra.mxu0 0.0
    %5505 = vmatprep.subr.mxu0 0.0
    %5506 = vmatpush2.msra.mxu0 0.0
    %5507 = vmatprep.subr.mxu0 0.0
    %5508 = vmatpush2.msra.mxu0 0.0
    %5509 = vmatprep.subr.mxu0 0.0
    %5510 = vmatpush2.msra.mxu0 0.0
    %5511 = vmatprep.subr.mxu0 0.0
    %5512 = vmatpush2.msra.mxu0 0.0
    %5513 = vmatprep.subr.mxu0 0.0
    %5514 = vmatpush2.msra.mxu0 0.0
    %5515 = vmatprep.subr.mxu0 0.0
    %5516 = vmatpush2.msra.mxu0 0.0
    %5517 = vmatprep.mubr.f32.mxu0 0.0
    %5518 = vmatmul.mubr.f32.gmra.mxu0 %v5448
    %v5519 = vpop.f32.mrf.mxu0
    %v5520 = vadd.f32 0.0, %v5519
    %v5521 = vpop.f32.mrf.mxu0
    %5522 = vmatprep.mubr.f32.mxu0 0.0
    %5523 = vmatmul.mubr.f32.gmra.mxu0 %v5451
    %v5524 = vpop.f32.mrf.mxu0
    %v5525 = vadd.f32 0.0, %v5524
    %v5526 = vpop.f32.mrf.mxu0
    %5527 = vdwg.mxu0
    %v5529 = vsel %vm5122, %v5120, 0
    %v5532 = vsel %vm5122, %v5121, 0
    %5534 = vmatprep.subr.mxu0 0.0
    %5535 = vmatpush1.msra.mxu0 0.0
    %5536 = vmatprep.subr.mxu0 0.0
    %5537 = vmatpush1.msra.mxu0 0.0
    %5538 = vmatprep.subr.mxu0 0.0
    %5539 = vmatpush1.msra.mxu0 0.0
    %5540 = vmatprep.subr.mxu0 0.0
    %5541 = vmatpush1.msra.mxu0 0.0
    %5542 = vmatprep.subr.mxu0 0.0
    %5543 = vmatpush1.msra.mxu0 0.0
    %5544 = vmatprep.subr.mxu0 0.0
    %5545 = vmatpush1.msra.mxu0 0.0
    %5546 = vmatprep.subr.mxu0 0.0
    %5547 = vmatpush1.msra.mxu0 0.0
    %5548 = vmatprep.subr.mxu0 0.0
    %5549 = vmatpush1.msra.mxu0 0.0
    %5550 = vmatprep.subr.mxu0 0.0
    %5551 = vmatpush1.msra.mxu0 0.0
    %5552 = vmatprep.subr.mxu0 0.0
    %5553 = vmatpush1.msra.mxu0 0.0
    %5554 = vmatprep.subr.mxu0 0.0
    %5555 = vmatpush1.msra.mxu0 0.0
    %5556 = vmatprep.subr.mxu0 0.0
    %5557 = vmatpush1.msra.mxu0 0.0
    %5558 = vmatprep.subr.mxu0 0.0
    %5559 = vmatpush1.msra.mxu0 0.0
    %5560 = vmatprep.subr.mxu0 0.0
    %5561 = vmatpush1.msra.mxu0 0.0
    %5562 = vmatprep.subr.mxu0 0.0
    %5563 = vmatpush1.msra.mxu0 0.0
    %5564 = vmatprep.subr.mxu0 0.0
    %5565 = vmatpush1.msra.mxu0 %v4112
    %5566 = vmatprep.subr.mxu0 0.0
    %5567 = vmatpush2.msra.mxu0 0.0
    %5568 = vmatprep.subr.mxu0 0.0
    %5569 = vmatpush2.msra.mxu0 0.0
    %5570 = vmatprep.subr.mxu0 0.0
    %5571 = vmatpush2.msra.mxu0 0.0
    %5572 = vmatprep.subr.mxu0 0.0
    %5573 = vmatpush2.msra.mxu0 0.0
    %5574 = vmatprep.subr.mxu0 0.0
    %5575 = vmatpush2.msra.mxu0 0.0
    %5576 = vmatprep.subr.mxu0 0.0
    %5577 = vmatpush2.msra.mxu0 0.0
    %5578 = vmatprep.subr.mxu0 0.0
    %5579 = vmatpush2.msra.mxu0 0.0
    %5580 = vmatprep.subr.mxu0 0.0
    %5581 = vmatpush2.msra.mxu0 0.0
    %5582 = vmatprep.subr.mxu0 0.0
    %5583 = vmatpush2.msra.mxu0 0.0
    %5584 = vmatprep.subr.mxu0 0.0
    %5585 = vmatpush2.msra.mxu0 0.0
    %5586 = vmatprep.subr.mxu0 0.0
    %5587 = vmatpush2.msra.mxu0 0.0
    %5588 = vmatprep.subr.mxu0 0.0
    %5589 = vmatpush2.msra.mxu0 0.0
    %5590 = vmatprep.subr.mxu0 0.0
    %5591 = vmatpush2.msra.mxu0 0.0
    %5592 = vmatprep.subr.mxu0 0.0
    %5593 = vmatpush2.msra.mxu0 0.0
    %5594 = vmatprep.subr.mxu0 0.0
    %5595 = vmatpush2.msra.mxu0 0.0
    %5596 = vmatprep.subr.mxu0 0.0
    %5597 = vmatpush2.msra.mxu0 0.0
    %5598 = vmatprep.mubr.f32.mxu0 0.0
    %5599 = vmatmul.mubr.f32.gmra.mxu0 %v5529
    %v5600 = vpop.f32.mrf.mxu0
    %v5601 = vadd.f32 0.0, %v5600
    %v5602 = vpop.f32.mrf.mxu0
    %5603 = vmatprep.mubr.f32.mxu0 0.0
    %5604 = vmatmul.mubr.f32.gmra.mxu0 %v5532
    %v5605 = vpop.f32.mrf.mxu0
    %v5606 = vadd.f32 0.0, %v5605
    %v5607 = vpop.f32.mrf.mxu0
    %5608 = vdwg.mxu0
    %v5609 = vadd.f32 %v4198, %v5196
    %v5610 = vadd.f32 %v4203, %v5201
    %v5611 = vadd.f32 %v4208, %v5277
    %v5612 = vadd.f32 %v4213, %v5282
    %v5613 = vadd.f32 %v4198, %v5358
    %v5614 = vadd.f32 %v4203, %v5363
    %v5615 = vadd.f32 %v4208, %v5439
    %v5616 = vadd.f32 %v4213, %v5444
    %v5617 = vadd.f32 %v4198, %v5520
    %v5618 = vadd.f32 %v4203, %v5525
    %v5619 = vadd.f32 %v4208, %v5601
    %v5620 = vadd.f32 %v4213, %v5606
    %v5621 = vtanh.pop %v5609
    %v5622 = vtanh.pop %v5610
    %v5623 = vtanh.pop %v5611
    %v5624 = vtanh.pop %v5612
    %v5625 = vtanh.pop %v5613
    %v5626 = vtanh.pop %v5614
    %v5627 = vtanh.pop %v5615
    %v5628 = vtanh.pop %v5616
    %v5629 = vtanh.pop %v5617
    %v5630 = vtanh.pop %v5618
    %v5631 = vtanh.pop %v5619
    %v5632 = vtanh.pop %v5620
    %vm5633 = vcmask 130048
    %v5635 = vsel %vm5633, %v4654, 0
    %5637 = vmatprep.subr.mxu0 0.0
    %5638 = vmatpush1.msra.mxu0 0.0
    %5639 = vmatprep.subr.mxu0 0.0
    %5640 = vmatpush1.msra.mxu0 0.0
    %5641 = vmatprep.subr.mxu0 0.0
    %5642 = vmatpush1.msra.mxu0 0.0
    %5643 = vmatprep.subr.mxu0 0.0
    %5644 = vmatpush1.msra.mxu0 0.0
    %5645 = vmatprep.subr.mxu0 0.0
    %5646 = vmatpush1.msra.mxu0 0.0
    %5647 = vmatprep.subr.mxu0 0.0
    %5648 = vmatpush1.msra.mxu0 0.0
    %5649 = vmatprep.subr.mxu0 0.0
    %5650 = vmatpush1.msra.mxu0 0.0
    %5651 = vmatprep.subr.mxu0 0.0
    %5652 = vmatpush1.msra.mxu0 0.0
    %5653 = vmatprep.subr.mxu0 0.0
    %5654 = vmatpush1.msra.mxu0 0.0
    %5655 = vmatprep.subr.mxu0 0.0
    %5656 = vmatpush1.msra.mxu0 0.0
    %5657 = vmatprep.subr.mxu0 0.0
    %5658 = vmatpush1.msra.mxu0 0.0
    %5659 = vmatprep.subr.mxu0 0.0
    %5660 = vmatpush1.msra.mxu0 0.0
    %5661 = vmatprep.subr.mxu0 0.0
    %5662 = vmatpush1.msra.mxu0 0.0
    %5663 = vmatprep.subr.mxu0 0.0
    %5664 = vmatpush1.msra.mxu0 0.0
    %5665 = vmatprep.subr.mxu0 0.0
    %5666 = vmatpush1.msra.mxu0 %v4203
    %5667 = vmatprep.subr.mxu0 0.0
    %5668 = vmatpush1.msra.mxu0 %v4198
    %5669 = vmatprep.subr.mxu0 0.0
    %5670 = vmatpush2.msra.mxu0 0.0
    %5671 = vmatprep.subr.mxu0 0.0
    %5672 = vmatpush2.msra.mxu0 0.0
    %5673 = vmatprep.subr.mxu0 0.0
    %5674 = vmatpush2.msra.mxu0 0.0
    %5675 = vmatprep.subr.mxu0 0.0
    %5676 = vmatpush2.msra.mxu0 0.0
    %5677 = vmatprep.subr.mxu0 0.0
    %5678 = vmatpush2.msra.mxu0 0.0
    %5679 = vmatprep.subr.mxu0 0.0
    %5680 = vmatpush2.msra.mxu0 0.0
    %5681 = vmatprep.subr.mxu0 0.0
    %5682 = vmatpush2.msra.mxu0 0.0
    %5683 = vmatprep.subr.mxu0 0.0
    %5684 = vmatpush2.msra.mxu0 0.0
    %5685 = vmatprep.subr.mxu0 0.0
    %5686 = vmatpush2.msra.mxu0 0.0
    %5687 = vmatprep.subr.mxu0 0.0
    %5688 = vmatpush2.msra.mxu0 0.0
    %5689 = vmatprep.subr.mxu0 0.0
    %5690 = vmatpush2.msra.mxu0 0.0
    %5691 = vmatprep.subr.mxu0 0.0
    %5692 = vmatpush2.msra.mxu0 0.0
    %5693 = vmatprep.subr.mxu0 0.0
    %5694 = vmatpush2.msra.mxu0 0.0
    %5695 = vmatprep.subr.mxu0 0.0
    %5696 = vmatpush2.msra.mxu0 0.0
    %5697 = vmatprep.subr.mxu0 0.0
    %5698 = vmatpush2.msra.mxu0 0.0
    %5699 = vmatprep.subr.mxu0 0.0
    %5700 = vmatpush2.msra.mxu0 0.0
    %5701 = vmatprep.mubr.f32.mxu0 0.0
    %5702 = vmatmul.mubr.f32.gmra.mxu0 %v5635
    %v5703 = vpop.f32.mrf.mxu0
    %v5704 = vadd.f32 0.0, %v5703
    %v5705 = vpop.f32.mrf.mxu0
    %5706 = vdwg.mxu0
    %v5708 = vsel %vm5633, %v4655, 0
    %5710 = vmatprep.subr.mxu0 0.0
    %5711 = vmatpush1.msra.mxu0 0.0
    %5712 = vmatprep.subr.mxu0 0.0
    %5713 = vmatpush1.msra.mxu0 0.0
    %5714 = vmatprep.subr.mxu0 0.0
    %5715 = vmatpush1.msra.mxu0 0.0
    %5716 = vmatprep.subr.mxu0 0.0
    %5717 = vmatpush1.msra.mxu0 0.0
    %5718 = vmatprep.subr.mxu0 0.0
    %5719 = vmatpush1.msra.mxu0 0.0
    %5720 = vmatprep.subr.mxu0 0.0
    %5721 = vmatpush1.msra.mxu0 0.0
    %5722 = vmatprep.subr.mxu0 0.0
    %5723 = vmatpush1.msra.mxu0 0.0
    %5724 = vmatprep.subr.mxu0 0.0
    %5725 = vmatpush1.msra.mxu0 0.0
    %5726 = vmatprep.subr.mxu0 0.0
    %5727 = vmatpush1.msra.mxu0 0.0
    %5728 = vmatprep.subr.mxu0 0.0
    %5729 = vmatpush1.msra.mxu0 0.0
    %5730 = vmatprep.subr.mxu0 0.0
    %5731 = vmatpush1.msra.mxu0 0.0
    %5732 = vmatprep.subr.mxu0 0.0
    %5733 = vmatpush1.msra.mxu0 0.0
    %5734 = vmatprep.subr.mxu0 0.0
    %5735 = vmatpush1.msra.mxu0 0.0
    %5736 = vmatprep.subr.mxu0 0.0
    %5737 = vmatpush1.msra.mxu0 0.0
    %5738 = vmatprep.subr.mxu0 0.0
    %5739 = vmatpush1.msra.mxu0 %v4213
    %5740 = vmatprep.subr.mxu0 0.0
    %5741 = vmatpush1.msra.mxu0 %v4208
    %5742 = vmatprep.subr.mxu0 0.0
    %5743 = vmatpush2.msra.mxu0 0.0
    %5744 = vmatprep.subr.mxu0 0.0
    %5745 = vmatpush2.msra.mxu0 0.0
    %5746 = vmatprep.subr.mxu0 0.0
    %5747 = vmatpush2.msra.mxu0 0.0
    %5748 = vmatprep.subr.mxu0 0.0
    %5749 = vmatpush2.msra.mxu0 0.0
    %5750 = vmatprep.subr.mxu0 0.0
    %5751 = vmatpush2.msra.mxu0 0.0
    %5752 = vmatprep.subr.mxu0 0.0
    %5753 = vmatpush2.msra.mxu0 0.0
    %5754 = vmatprep.subr.mxu0 0.0
    %5755 = vmatpush2.msra.mxu0 0.0
    %5756 = vmatprep.subr.mxu0 0.0
    %5757 = vmatpush2.msra.mxu0 0.0
    %5758 = vmatprep.subr.mxu0 0.0
    %5759 = vmatpush2.msra.mxu0 0.0
    %5760 = vmatprep.subr.mxu0 0.0
    %5761 = vmatpush2.msra.mxu0 0.0
    %5762 = vmatprep.subr.mxu0 0.0
    %5763 = vmatpush2.msra.mxu0 0.0
    %5764 = vmatprep.subr.mxu0 0.0
    %5765 = vmatpush2.msra.mxu0 0.0
    %5766 = vmatprep.subr.mxu0 0.0
    %5767 = vmatpush2.msra.mxu0 0.0
    %5768 = vmatprep.subr.mxu0 0.0
    %5769 = vmatpush2.msra.mxu0 0.0
    %5770 = vmatprep.subr.mxu0 0.0
    %5771 = vmatpush2.msra.mxu0 0.0
    %5772 = vmatprep.subr.mxu0 0.0
    %5773 = vmatpush2.msra.mxu0 0.0
    %5774 = vmatprep.mubr.f32.mxu0 0.0
    %5775 = vmatmul.mubr.f32.gmra.mxu0 %v5708
    %v5776 = vpop.f32.mrf.mxu0
    %v5777 = vadd.f32 0.0, %v5776
    %v5778 = vpop.f32.mrf.mxu0
    %5779 = vdwg.mxu0
    %v5781 = vsel %vm5633, %v4656, 0
    %5783 = vmatprep.subr.mxu0 0.0
    %5784 = vmatpush1.msra.mxu0 0.0
    %5785 = vmatprep.subr.mxu0 0.0
    %5786 = vmatpush1.msra.mxu0 0.0
    %5787 = vmatprep.subr.mxu0 0.0
    %5788 = vmatpush1.msra.mxu0 0.0
    %5789 = vmatprep.subr.mxu0 0.0
    %5790 = vmatpush1.msra.mxu0 0.0
    %5791 = vmatprep.subr.mxu0 0.0
    %5792 = vmatpush1.msra.mxu0 0.0
    %5793 = vmatprep.subr.mxu0 0.0
    %5794 = vmatpush1.msra.mxu0 0.0
    %5795 = vmatprep.subr.mxu0 0.0
    %5796 = vmatpush1.msra.mxu0 0.0
    %5797 = vmatprep.subr.mxu0 0.0
    %5798 = vmatpush1.msra.mxu0 0.0
    %5799 = vmatprep.subr.mxu0 0.0
    %5800 = vmatpush1.msra.mxu0 0.0
    %5801 = vmatprep.subr.mxu0 0.0
    %5802 = vmatpush1.msra.mxu0 0.0
    %5803 = vmatprep.subr.mxu0 0.0
    %5804 = vmatpush1.msra.mxu0 0.0
    %5805 = vmatprep.subr.mxu0 0.0
    %5806 = vmatpush1.msra.mxu0 0.0
    %5807 = vmatprep.subr.mxu0 0.0
    %5808 = vmatpush1.msra.mxu0 0.0
    %5809 = vmatprep.subr.mxu0 0.0
    %5810 = vmatpush1.msra.mxu0 0.0
    %5811 = vmatprep.subr.mxu0 0.0
    %5812 = vmatpush1.msra.mxu0 %v4203
    %5813 = vmatprep.subr.mxu0 0.0
    %5814 = vmatpush1.msra.mxu0 %v4198
    %5815 = vmatprep.subr.mxu0 0.0
    %5816 = vmatpush2.msra.mxu0 0.0
    %5817 = vmatprep.subr.mxu0 0.0
    %5818 = vmatpush2.msra.mxu0 0.0
    %5819 = vmatprep.subr.mxu0 0.0
    %5820 = vmatpush2.msra.mxu0 0.0
    %5821 = vmatprep.subr.mxu0 0.0
    %5822 = vmatpush2.msra.mxu0 0.0
    %5823 = vmatprep.subr.mxu0 0.0
    %5824 = vmatpush2.msra.mxu0 0.0
    %5825 = vmatprep.subr.mxu0 0.0
    %5826 = vmatpush2.msra.mxu0 0.0
    %5827 = vmatprep.subr.mxu0 0.0
    %5828 = vmatpush2.msra.mxu0 0.0
    %5829 = vmatprep.subr.mxu0 0.0
    %5830 = vmatpush2.msra.mxu0 0.0
    %5831 = vmatprep.subr.mxu0 0.0
    %5832 = vmatpush2.msra.mxu0 0.0
    %5833 = vmatprep.subr.mxu0 0.0
    %5834 = vmatpush2.msra.mxu0 0.0
    %5835 = vmatprep.subr.mxu0 0.0
    %5836 = vmatpush2.msra.mxu0 0.0
    %5837 = vmatprep.subr.mxu0 0.0
    %5838 = vmatpush2.msra.mxu0 0.0
    %5839 = vmatprep.subr.mxu0 0.0
    %5840 = vmatpush2.msra.mxu0 0.0
    %5841 = vmatprep.subr.mxu0 0.0
    %5842 = vmatpush2.msra.mxu0 0.0
    %5843 = vmatprep.subr.mxu0 0.0
    %5844 = vmatpush2.msra.mxu0 0.0
    %5845 = vmatprep.subr.mxu0 0.0
    %5846 = vmatpush2.msra.mxu0 0.0
    %5847 = vmatprep.mubr.f32.mxu0 0.0
    %5848 = vmatmul.mubr.f32.gmra.mxu0 %v5781
    %v5849 = vpop.f32.mrf.mxu0
    %v5850 = vadd.f32 0.0, %v5849
    %v5851 = vpop.f32.mrf.mxu0
    %5852 = vdwg.mxu0
    %v5854 = vsel %vm5633, %v4657, 0
    %5856 = vmatprep.subr.mxu0 0.0
    %5857 = vmatpush1.msra.mxu0 0.0
    %5858 = vmatprep.subr.mxu0 0.0
    %5859 = vmatpush1.msra.mxu0 0.0
    %5860 = vmatprep.subr.mxu0 0.0
    %5861 = vmatpush1.msra.mxu0 0.0
    %5862 = vmatprep.subr.mxu0 0.0
    %5863 = vmatpush1.msra.mxu0 0.0
    %5864 = vmatprep.subr.mxu0 0.0
    %5865 = vmatpush1.msra.mxu0 0.0
    %5866 = vmatprep.subr.mxu0 0.0
    %5867 = vmatpush1.msra.mxu0 0.0
    %5868 = vmatprep.subr.mxu0 0.0
    %5869 = vmatpush1.msra.mxu0 0.0
    %5870 = vmatprep.subr.mxu0 0.0
    %5871 = vmatpush1.msra.mxu0 0.0
    %5872 = vmatprep.subr.mxu0 0.0
    %5873 = vmatpush1.msra.mxu0 0.0
    %5874 = vmatprep.subr.mxu0 0.0
    %5875 = vmatpush1.msra.mxu0 0.0
    %5876 = vmatprep.subr.mxu0 0.0
    %5877 = vmatpush1.msra.mxu0 0.0
    %5878 = vmatprep.subr.mxu0 0.0
    %5879 = vmatpush1.msra.mxu0 0.0
    %5880 = vmatprep.subr.mxu0 0.0
    %5881 = vmatpush1.msra.mxu0 0.0
    %5882 = vmatprep.subr.mxu0 0.0
    %5883 = vmatpush1.msra.mxu0 0.0
    %5884 = vmatprep.subr.mxu0 0.0
    %5885 = vmatpush1.msra.mxu0 %v4213
    %5886 = vmatprep.subr.mxu0 0.0
    %5887 = vmatpush1.msra.mxu0 %v4208
    %5888 = vmatprep.subr.mxu0 0.0
    %5889 = vmatpush2.msra.mxu0 0.0
    %5890 = vmatprep.subr.mxu0 0.0
    %5891 = vmatpush2.msra.mxu0 0.0
    %5892 = vmatprep.subr.mxu0 0.0
    %5893 = vmatpush2.msra.mxu0 0.0
    %5894 = vmatprep.subr.mxu0 0.0
    %5895 = vmatpush2.msra.mxu0 0.0
    %5896 = vmatprep.subr.mxu0 0.0
    %5897 = vmatpush2.msra.mxu0 0.0
    %5898 = vmatprep.subr.mxu0 0.0
    %5899 = vmatpush2.msra.mxu0 0.0
    %5900 = vmatprep.subr.mxu0 0.0
    %5901 = vmatpush2.msra.mxu0 0.0
    %5902 = vmatprep.subr.mxu0 0.0
    %5903 = vmatpush2.msra.mxu0 0.0
    %5904 = vmatprep.subr.mxu0 0.0
    %5905 = vmatpush2.msra.mxu0 0.0
    %5906 = vmatprep.subr.mxu0 0.0
    %5907 = vmatpush2.msra.mxu0 0.0
    %5908 = vmatprep.subr.mxu0 0.0
    %5909 = vmatpush2.msra.mxu0 0.0
    %5910 = vmatprep.subr.mxu0 0.0
    %5911 = vmatpush2.msra.mxu0 0.0
    %5912 = vmatprep.subr.mxu0 0.0
    %5913 = vmatpush2.msra.mxu0 0.0
    %5914 = vmatprep.subr.mxu0 0.0
    %5915 = vmatpush2.msra.mxu0 0.0
    %5916 = vmatprep.subr.mxu0 0.0
    %5917 = vmatpush2.msra.mxu0 0.0
    %5918 = vmatprep.subr.mxu0 0.0
    %5919 = vmatpush2.msra.mxu0 0.0
    %5920 = vmatprep.mubr.f32.mxu0 0.0
    %5921 = vmatmul.mubr.f32.gmra.mxu0 %v5854
    %v5922 = vpop.f32.mrf.mxu0
    %v5923 = vadd.f32 0.0, %v5922
    %v5924 = vpop.f32.mrf.mxu0
    %5925 = vdwg.mxu0
    %v5927 = vsel %vm5633, %v4658, 0
    %5929 = vmatprep.subr.mxu0 0.0
    %5930 = vmatpush1.msra.mxu0 0.0
    %5931 = vmatprep.subr.mxu0 0.0
    %5932 = vmatpush1.msra.mxu0 0.0
    %5933 = vmatprep.subr.mxu0 0.0
    %5934 = vmatpush1.msra.mxu0 0.0
    %5935 = vmatprep.subr.mxu0 0.0
    %5936 = vmatpush1.msra.mxu0 0.0
    %5937 = vmatprep.subr.mxu0 0.0
    %5938 = vmatpush1.msra.mxu0 0.0
    %5939 = vmatprep.subr.mxu0 0.0
    %5940 = vmatpush1.msra.mxu0 0.0
    %5941 = vmatprep.subr.mxu0 0.0
    %5942 = vmatpush1.msra.mxu0 0.0
    %5943 = vmatprep.subr.mxu0 0.0
    %5944 = vmatpush1.msra.mxu0 0.0
    %5945 = vmatprep.subr.mxu0 0.0
    %5946 = vmatpush1.msra.mxu0 0.0
    %5947 = vmatprep.subr.mxu0 0.0
    %5948 = vmatpush1.msra.mxu0 0.0
    %5949 = vmatprep.subr.mxu0 0.0
    %5950 = vmatpush1.msra.mxu0 0.0
    %5951 = vmatprep.subr.mxu0 0.0
    %5952 = vmatpush1.msra.mxu0 0.0
    %5953 = vmatprep.subr.mxu0 0.0
    %5954 = vmatpush1.msra.mxu0 0.0
    %5955 = vmatprep.subr.mxu0 0.0
    %5956 = vmatpush1.msra.mxu0 0.0
    %5957 = vmatprep.subr.mxu0 0.0
    %5958 = vmatpush1.msra.mxu0 %v4203
    %5959 = vmatprep.subr.mxu0 0.0
    %5960 = vmatpush1.msra.mxu0 %v4198
    %5961 = vmatprep.subr.mxu0 0.0
    %5962 = vmatpush2.msra.mxu0 0.0
    %5963 = vmatprep.subr.mxu0 0.0
    %5964 = vmatpush2.msra.mxu0 0.0
    %5965 = vmatprep.subr.mxu0 0.0
    %5966 = vmatpush2.msra.mxu0 0.0
    %5967 = vmatprep.subr.mxu0 0.0
    %5968 = vmatpush2.msra.mxu0 0.0
    %5969 = vmatprep.subr.mxu0 0.0
    %5970 = vmatpush2.msra.mxu0 0.0
    %5971 = vmatprep.subr.mxu0 0.0
    %5972 = vmatpush2.msra.mxu0 0.0
    %5973 = vmatprep.subr.mxu0 0.0
    %5974 = vmatpush2.msra.mxu0 0.0
    %5975 = vmatprep.subr.mxu0 0.0
    %5976 = vmatpush2.msra.mxu0 0.0
    %5977 = vmatprep.subr.mxu0 0.0
    %5978 = vmatpush2.msra.mxu0 0.0
    %5979 = vmatprep.subr.mxu0 0.0
    %5980 = vmatpush2.msra.mxu0 0.0
    %5981 = vmatprep.subr.mxu0 0.0
    %5982 = vmatpush2.msra.mxu0 0.0
    %5983 = vmatprep.subr.mxu0 0.0
    %5984 = vmatpush2.msra.mxu0 0.0
    %5985 = vmatprep.subr.mxu0 0.0
    %5986 = vmatpush2.msra.mxu0 0.0
    %5987 = vmatprep.subr.mxu0 0.0
    %5988 = vmatpush2.msra.mxu0 0.0
    %5989 = vmatprep.subr.mxu0 0.0
    %5990 = vmatpush2.msra.mxu0 0.0
    %5991 = vmatprep.subr.mxu0 0.0
    %5992 = vmatpush2.msra.mxu0 0.0
    %5993 = vmatprep.mubr.f32.mxu0 0.0
    %5994 = vmatmul.mubr.f32.gmra.mxu0 %v5927
    %v5995 = vpop.f32.mrf.mxu0
    %v5996 = vadd.f32 0.0, %v5995
    %v5997 = vpop.f32.mrf.mxu0
    %5998 = vdwg.mxu0
    %v6000 = vsel %vm5633, %v4659, 0
    %6002 = vmatprep.subr.mxu0 0.0
    %6003 = vmatpush1.msra.mxu0 0.0
    %6004 = vmatprep.subr.mxu0 0.0
    %6005 = vmatpush1.msra.mxu0 0.0
    %6006 = vmatprep.subr.mxu0 0.0
    %6007 = vmatpush1.msra.mxu0 0.0
    %6008 = vmatprep.subr.mxu0 0.0
    %6009 = vmatpush1.msra.mxu0 0.0
    %6010 = vmatprep.subr.mxu0 0.0
    %6011 = vmatpush1.msra.mxu0 0.0
    %6012 = vmatprep.subr.mxu0 0.0
    %6013 = vmatpush1.msra.mxu0 0.0
    %6014 = vmatprep.subr.mxu0 0.0
    %6015 = vmatpush1.msra.mxu0 0.0
    %6016 = vmatprep.subr.mxu0 0.0
    %6017 = vmatpush1.msra.mxu0 0.0
    %6018 = vmatprep.subr.mxu0 0.0
    %6019 = vmatpush1.msra.mxu0 0.0
    %6020 = vmatprep.subr.mxu0 0.0
    %6021 = vmatpush1.msra.mxu0 0.0
    %6022 = vmatprep.subr.mxu0 0.0
    %6023 = vmatpush1.msra.mxu0 0.0
    %6024 = vmatprep.subr.mxu0 0.0
    %6025 = vmatpush1.msra.mxu0 0.0
    %6026 = vmatprep.subr.mxu0 0.0
    %6027 = vmatpush1.msra.mxu0 0.0
    %6028 = vmatprep.subr.mxu0 0.0
    %6029 = vmatpush1.msra.mxu0 0.0
    %6030 = vmatprep.subr.mxu0 0.0
    %6031 = vmatpush1.msra.mxu0 %v4213
    %6032 = vmatprep.subr.mxu0 0.0
    %6033 = vmatpush1.msra.mxu0 %v4208
    %6034 = vmatprep.subr.mxu0 0.0
    %6035 = vmatpush2.msra.mxu0 0.0
    %6036 = vmatprep.subr.mxu0 0.0
    %6037 = vmatpush2.msra.mxu0 0.0
    %6038 = vmatprep.subr.mxu0 0.0
    %6039 = vmatpush2.msra.mxu0 0.0
    %6040 = vmatprep.subr.mxu0 0.0
    %6041 = vmatpush2.msra.mxu0 0.0
    %6042 = vmatprep.subr.mxu0 0.0
    %6043 = vmatpush2.msra.mxu0 0.0
    %6044 = vmatprep.subr.mxu0 0.0
    %6045 = vmatpush2.msra.mxu0 0.0
    %6046 = vmatprep.subr.mxu0 0.0
    %6047 = vmatpush2.msra.mxu0 0.0
    %6048 = vmatprep.subr.mxu0 0.0
    %6049 = vmatpush2.msra.mxu0 0.0
    %6050 = vmatprep.subr.mxu0 0.0
    %6051 = vmatpush2.msra.mxu0 0.0
    %6052 = vmatprep.subr.mxu0 0.0
    %6053 = vmatpush2.msra.mxu0 0.0
    %6054 = vmatprep.subr.mxu0 0.0
    %6055 = vmatpush2.msra.mxu0 0.0
    %6056 = vmatprep.subr.mxu0 0.0
    %6057 = vmatpush2.msra.mxu0 0.0
    %6058 = vmatprep.subr.mxu0 0.0
    %6059 = vmatpush2.msra.mxu0 0.0
    %6060 = vmatprep.subr.mxu0 0.0
    %6061 = vmatpush2.msra.mxu0 0.0
    %6062 = vmatprep.subr.mxu0 0.0
    %6063 = vmatpush2.msra.mxu0 0.0
    %6064 = vmatprep.subr.mxu0 0.0
    %6065 = vmatpush2.msra.mxu0 0.0
    %6066 = vmatprep.mubr.f32.mxu0 0.0
    %6067 = vmatmul.mubr.f32.gmra.mxu0 %v6000
    %v6068 = vpop.f32.mrf.mxu0
    %v6069 = vadd.f32 0.0, %v6068
    %v6070 = vpop.f32.mrf.mxu0
    %6071 = vdwg.mxu0
    %v6072 = vadd.f32 %v4087, %v5704
    %v6073 = vadd.f32 %v4092, %v5777
    %v6074 = vadd.f32 %v4097, %v5850
    %v6075 = vadd.f32 %v4102, %v5923
    %v6076 = vadd.f32 %v4107, %v5996
    %v6077 = vadd.f32 %v4112, %v6069
    %v6078 = vtanh.pop %v6072
    %v6079 = vtanh.pop %v6073
    %v6080 = vtanh.pop %v6074
    %v6081 = vtanh.pop %v6075
    %v6082 = vtanh.pop %v6076
    %v6083 = vtanh.pop %v6077
    %v6084 = vld [vmem:[%s11] sm:$0x1]
    %v6086 = vlaneseq
    %v6087 = vshrl.u32 %v6086, 7
    %v6088 = vsub.s32 0, %v6087
    %v6089 = vrot.slane %v6084, %v6088
    %v6091 = vmul.f32 %v5621, %v6089
    %v6092 = vmul.f32 %v5622, %v6089
    %v6093 = vmul.f32 %v5623, %v6089
    %v6094 = vmul.f32 %v5624, %v6089
    %v6095 = vmul.f32 %v5625, %v6089
    %v6096 = vmul.f32 %v5626, %v6089
    %v6097 = vmul.f32 %v5627, %v6089
    %v6098 = vmul.f32 %v5628, %v6089
    %v6099 = vmul.f32 %v5629, %v6089
    %v6100 = vmul.f32 %v5630, %v6089
    %v6101 = vmul.f32 %v5631, %v6089
    %v6102 = vmul.f32 %v5632, %v6089
    %v6103 = vsel %vm5122, %v6091, 0.0
    %6104 = vadd.xlane.f32.xlu0 %v6103
    %v6105 = vpop.xlane.xlu0 %6104
    %v6106 = vsel %vm5122, %v6092, 0.0
    %6107 = vadd.xlane.f32.xlu0 %v6106
    %v6108 = vpop.xlane.xlu0 %6107
    %v6109 = vsel %vm5122, %v6093, 0.0
    %6110 = vadd.xlane.f32.xlu0 %v6109
    %v6111 = vpop.xlane.xlu0 %6110
    %v6112 = vsel %vm5122, %v6094, 0.0
    %6113 = vadd.xlane.f32.xlu0 %v6112
    %v6114 = vpop.xlane.xlu0 %6113
    %v6115 = vsel %vm5122, %v6095, 0.0
    %6116 = vadd.xlane.f32.xlu0 %v6115
    %v6117 = vpop.xlane.xlu0 %6116
    %v6118 = vsel %vm5122, %v6096, 0.0
    %6119 = vadd.xlane.f32.xlu0 %v6118
    %v6120 = vpop.xlane.xlu0 %6119
    %v6121 = vsel %vm5122, %v6097, 0.0
    %6122 = vadd.xlane.f32.xlu0 %v6121
    %v6123 = vpop.xlane.xlu0 %6122
    %v6124 = vsel %vm5122, %v6098, 0.0
    %6125 = vadd.xlane.f32.xlu0 %v6124
    %v6126 = vpop.xlane.xlu0 %6125
    %v6127 = vsel %vm5122, %v6099, 0.0
    %6128 = vadd.xlane.f32.xlu0 %v6127
    %v6129 = vpop.xlane.xlu0 %6128
    %v6130 = vsel %vm5122, %v6100, 0.0
    %6131 = vadd.xlane.f32.xlu0 %v6130
    %v6132 = vpop.xlane.xlu0 %6131
    %v6133 = vsel %vm5122, %v6101, 0.0
    %6134 = vadd.xlane.f32.xlu0 %v6133
    %v6135 = vpop.xlane.xlu0 %6134
    %v6136 = vsel %vm5122, %v6102, 0.0
    %6137 = vadd.xlane.f32.xlu0 %v6136
    %v6138 = vpop.xlane.xlu0 %6137
    %v6139 = vld [vmem:[%s12] sm:$0x1]
    %v6141 = vlaneseq
    %v6142 = vshrl.u32 %v6141, 7
    %v6143 = vsub.s32 0, %v6142
    %v6144 = vrot.slane %v6139, %v6143
    %v6146 = vmul.f32 %v6078, %v6144
    %v6147 = vmul.f32 %v6079, %v6144
    %v6148 = vmul.f32 %v6080, %v6144
    %v6149 = vmul.f32 %v6081, %v6144
    %v6150 = vmul.f32 %v6082, %v6144
    %v6151 = vmul.f32 %v6083, %v6144
    %v6152 = vsel %vm5122, %v6146, 0.0
    %6153 = vadd.xlane.f32.xlu0 %v6152
    %v6154 = vpop.xlane.xlu0 %6153
    %v6155 = vsel %vm5122, %v6147, 0.0
    %6156 = vadd.xlane.f32.xlu0 %v6155
    %v6157 = vpop.xlane.xlu0 %6156
    %v6158 = vsel %vm5122, %v6148, 0.0
    %6159 = vadd.xlane.f32.xlu0 %v6158
    %v6160 = vpop.xlane.xlu0 %6159
    %v6161 = vsel %vm5122, %v6149, 0.0
    %6162 = vadd.xlane.f32.xlu0 %v6161
    %v6163 = vpop.xlane.xlu0 %6162
    %v6164 = vsel %vm5122, %v6150, 0.0
    %6165 = vadd.xlane.f32.xlu0 %v6164
    %v6166 = vpop.xlane.xlu0 %6165
    %v6167 = vsel %vm5122, %v6151, 0.0
    %6168 = vadd.xlane.f32.xlu0 %v6167
    %v6169 = vpop.xlane.xlu0 %6168
    %v6182 = vlaneseq
    %v6183 = vand.u32 %v6182, 127
    %v6184 = vlaneseq
    %v6185 = vshrl.u32 %v6184, 7
    %v6186 = vsub.s32 %v6183, %v6185
    %v6187 = vrot.slane %v6105, %v6186
    %v6188 = vadd.s32 %v6183, 4294967288
    %v6189 = vlaneseq
    %v6190 = vshrl.u32 %v6189, 7
    %v6191 = vsub.s32 %v6188, %v6190
    %v6192 = vrot.slane %v6108, %v6191
    %vm6193 = vcmask 130112
    %v6194 = vsel %vm6193, %v6192, %v6187
    %v6195 = vlaneseq
    %v6196 = vshrl.u32 %v6195, 7
    %v6197 = vsub.s32 %v6183, %v6196
    %v6198 = vrot.slane %v6111, %v6197
    %v6199 = vlaneseq
    %v6200 = vshrl.u32 %v6199, 7
    %v6201 = vsub.s32 %v6188, %v6200
    %v6202 = vrot.slane %v6114, %v6201
    %v6203 = vsel %vm6193, %v6202, %v6198
    %v6204 = vlaneseq
    %v6205 = vshrl.u32 %v6204, 7
    %v6206 = vsub.s32 %v6183, %v6205
    %v6207 = vrot.slane %v6117, %v6206
    %v6208 = vlaneseq
    %v6209 = vshrl.u32 %v6208, 7
    %v6210 = vsub.s32 %v6188, %v6209
    %v6211 = vrot.slane %v6120, %v6210
    %v6212 = vsel %vm6193, %v6211, %v6207
    %v6213 = vlaneseq
    %v6214 = vshrl.u32 %v6213, 7
    %v6215 = vsub.s32 %v6183, %v6214
    %v6216 = vrot.slane %v6123, %v6215
    %v6217 = vlaneseq
    %v6218 = vshrl.u32 %v6217, 7
    %v6219 = vsub.s32 %v6188, %v6218
    %v6220 = vrot.slane %v6126, %v6219
    %v6221 = vsel %vm6193, %v6220, %v6216
    %v6222 = vlaneseq
    %v6223 = vshrl.u32 %v6222, 7
    %v6224 = vsub.s32 %v6183, %v6223
    %v6225 = vrot.slane %v6129, %v6224
    %v6226 = vlaneseq
    %v6227 = vshrl.u32 %v6226, 7
    %v6228 = vsub.s32 %v6188, %v6227
    %v6229 = vrot.slane %v6132, %v6228
    %v6230 = vsel %vm6193, %v6229, %v6225
    %v6231 = vlaneseq
    %v6232 = vshrl.u32 %v6231, 7
    %v6233 = vsub.s32 %v6183, %v6232
    %v6234 = vrot.slane %v6135, %v6233
    %v6235 = vlaneseq
    %v6236 = vshrl.u32 %v6235, 7
    %v6237 = vsub.s32 %v6188, %v6236
    %v6238 = vrot.slane %v6138, %v6237
    %v6239 = vsel %vm6193, %v6238, %v6234
    %v6240 = vsel %vm503, %v6203, %v6194
    %vm6241 = vcmask 1042434
    %v6242 = vsel %vm6241, %v6212, %v6240
    %vm6243 = vcmask 1043459
    %v6244 = vsel %vm6243, %v6221, %v6242
    %vm6245 = vcmask 1044484
    %v6246 = vsel %vm6245, %v6230, %v6244
    %vm6247 = vcmask 1045509
    %v6248 = vsel %vm6247, %v6239, %v6246
    %vm6250 = vcmask 128000
    %v6251 = vsel %vm6250, %v6248, -inf
    %6252 = vmax.xlane.f32.xlu0 %v6251
    %v6253 = vpop.xlane.xlu0 %6252
    %v6255 = vlaneseq
    %v6256 = vshrl.u32 %v6255, 7
    %v6257 = vsub.s32 0, %v6256
    %v6258 = vrot.slane %v6253, %v6257
    %v6259 = vlaneseq
    %v6260 = vshrl.u32 %v6259, 7
    %v6261 = vsub.s32 1, %v6260
    %v6262 = vrot.slane %v6253, %v6261
    %v6263 = vlaneseq
    %v6264 = vshrl.u32 %v6263, 7
    %v6265 = vsub.s32 2, %v6264
    %v6266 = vrot.slane %v6253, %v6265
    %v6267 = vlaneseq
    %v6268 = vshrl.u32 %v6267, 7
    %v6269 = vsub.s32 3, %v6268
    %v6270 = vrot.slane %v6253, %v6269
    %v6271 = vlaneseq
    %v6272 = vshrl.u32 %v6271, 7
    %v6273 = vsub.s32 4, %v6272
    %v6274 = vrot.slane %v6253, %v6273
    %v6275 = vlaneseq
    %v6276 = vshrl.u32 %v6275, 7
    %v6277 = vsub.s32 5, %v6276
    %v6278 = vrot.slane %v6253, %v6277
    %v6285 = vsub.f32 %v6105, %v6258
    %v6286 = vsub.f32 %v6108, %v6258
    %v6287 = vsub.f32 %v6111, %v6262
    %v6288 = vsub.f32 %v6114, %v6262
    %v6289 = vsub.f32 %v6117, %v6266
    %v6290 = vsub.f32 %v6120, %v6266
    %v6291 = vsub.f32 %v6123, %v6270
    %v6292 = vsub.f32 %v6126, %v6270
    %v6293 = vsub.f32 %v6129, %v6274
    %v6294 = vsub.f32 %v6132, %v6274
    %v6295 = vsub.f32 %v6135, %v6278
    %v6296 = vsub.f32 %v6138, %v6278
    %v6297 = vmul.f32 %v6285, 1.442695
    %v6298 = vpow.pop %v6297
    %v6299 = vmul.f32 %v6286, 1.442695
    %v6300 = vpow.pop %v6299
    %v6301 = vmul.f32 %v6287, 1.442695
    %v6302 = vpow.pop %v6301
    %v6303 = vmul.f32 %v6288, 1.442695
    %v6304 = vpow.pop %v6303
    %v6305 = vmul.f32 %v6289, 1.442695
    %v6306 = vpow.pop %v6305
    %v6307 = vmul.f32 %v6290, 1.442695
    %v6308 = vpow.pop %v6307
    %v6309 = vmul.f32 %v6291, 1.442695
    %v6310 = vpow.pop %v6309
    %v6311 = vmul.f32 %v6292, 1.442695
    %v6312 = vpow.pop %v6311
    %v6313 = vmul.f32 %v6293, 1.442695
    %v6314 = vpow.pop %v6313
    %v6315 = vmul.f32 %v6294, 1.442695
    %v6316 = vpow.pop %v6315
    %v6317 = vmul.f32 %v6295, 1.442695
    %v6318 = vpow.pop %v6317
    %v6319 = vmul.f32 %v6296, 1.442695
    %v6320 = vpow.pop %v6319
    %6333 = vset.pattern.permute.xlu0 0
    %6334 = vperm.xlu0 %6333, %v6298
    %v6335 = vpop.permute.xlu0 %6334
    %6336 = vset.pattern.permute.xlu0 0
    %6337 = vperm.xlu0 %6336, %v6300
    %v6338 = vpop.permute.xlu0 %6337
    %6339 = vset.pattern.permute.xlu0 0
    %6340 = vperm.xlu0 %6339, %v6302
    %v6341 = vpop.permute.xlu0 %6340
    %6342 = vset.pattern.permute.xlu0 0
    %6343 = vperm.xlu0 %6342, %v6304
    %v6344 = vpop.permute.xlu0 %6343
    %6345 = vset.pattern.permute.xlu0 0
    %6346 = vperm.xlu0 %6345, %v6306
    %v6347 = vpop.permute.xlu0 %6346
    %6348 = vset.pattern.permute.xlu0 0
    %6349 = vperm.xlu0 %6348, %v6308
    %v6350 = vpop.permute.xlu0 %6349
    %6351 = vset.pattern.permute.xlu0 0
    %6352 = vperm.xlu0 %6351, %v6310
    %v6353 = vpop.permute.xlu0 %6352
    %6354 = vset.pattern.permute.xlu0 0
    %6355 = vperm.xlu0 %6354, %v6312
    %v6356 = vpop.permute.xlu0 %6355
    %6357 = vset.pattern.permute.xlu0 0
    %6358 = vperm.xlu0 %6357, %v6314
    %v6359 = vpop.permute.xlu0 %6358
    %6360 = vset.pattern.permute.xlu0 0
    %6361 = vperm.xlu0 %6360, %v6316
    %v6362 = vpop.permute.xlu0 %6361
    %6363 = vset.pattern.permute.xlu0 0
    %6364 = vperm.xlu0 %6363, %v6318
    %v6365 = vpop.permute.xlu0 %6364
    %6366 = vset.pattern.permute.xlu0 0
    %6367 = vperm.xlu0 %6366, %v6320
    %v6368 = vpop.permute.xlu0 %6367
    %v6369 = vlaneseq
    %v6370 = vshrl.u32 %v6369, 7
    %v6371 = vsub.s32 %v6183, %v6370
    %v6372 = vrot.slane %v6335, %v6371
    %v6373 = vlaneseq
    %v6374 = vshrl.u32 %v6373, 7
    %v6375 = vsub.s32 %v6188, %v6374
    %v6376 = vrot.slane %v6338, %v6375
    %v6377 = vsel %vm6193, %v6376, %v6372
    %v6378 = vlaneseq
    %v6379 = vshrl.u32 %v6378, 7
    %v6380 = vsub.s32 %v6183, %v6379
    %v6381 = vrot.slane %v6341, %v6380
    %v6382 = vlaneseq
    %v6383 = vshrl.u32 %v6382, 7
    %v6384 = vsub.s32 %v6188, %v6383
    %v6385 = vrot.slane %v6344, %v6384
    %v6386 = vsel %vm6193, %v6385, %v6381
    %v6387 = vlaneseq
    %v6388 = vshrl.u32 %v6387, 7
    %v6389 = vsub.s32 %v6183, %v6388
    %v6390 = vrot.slane %v6347, %v6389
    %v6391 = vlaneseq
    %v6392 = vshrl.u32 %v6391, 7
    %v6393 = vsub.s32 %v6188, %v6392
    %v6394 = vrot.slane %v6350, %v6393
    %v6395 = vsel %vm6193, %v6394, %v6390
    %v6396 = vlaneseq
    %v6397 = vshrl.u32 %v6396, 7
    %v6398 = vsub.s32 %v6183, %v6397
    %v6399 = vrot.slane %v6353, %v6398
    %v6400 = vlaneseq
    %v6401 = vshrl.u32 %v6400, 7
    %v6402 = vsub.s32 %v6188, %v6401
    %v6403 = vrot.slane %v6356, %v6402
    %v6404 = vsel %vm6193, %v6403, %v6399
    %v6405 = vlaneseq
    %v6406 = vshrl.u32 %v6405, 7
    %v6407 = vsub.s32 %v6183, %v6406
    %v6408 = vrot.slane %v6359, %v6407
    %v6409 = vlaneseq
    %v6410 = vshrl.u32 %v6409, 7
    %v6411 = vsub.s32 %v6188, %v6410
    %v6412 = vrot.slane %v6362, %v6411
    %v6413 = vsel %vm6193, %v6412, %v6408
    %v6414 = vlaneseq
    %v6415 = vshrl.u32 %v6414, 7
    %v6416 = vsub.s32 %v6183, %v6415
    %v6417 = vrot.slane %v6365, %v6416
    %v6418 = vlaneseq
    %v6419 = vshrl.u32 %v6418, 7
    %v6420 = vsub.s32 %v6188, %v6419
    %v6421 = vrot.slane %v6368, %v6420
    %v6422 = vsel %vm6193, %v6421, %v6417
    %v6423 = vsel %vm503, %v6386, %v6377
    %v6424 = vsel %vm6241, %v6395, %v6423
    %v6425 = vsel %vm6243, %v6404, %v6424
    %v6426 = vsel %vm6245, %v6413, %v6425
    %v6427 = vsel %vm6247, %v6422, %v6426
    %v6429 = vsel %vm6250, %v6427, 0.0
    %6430 = vadd.xlane.f32.xlu0 %v6429
    %v6431 = vpop.xlane.xlu0 %6430
    %v6432 = vrcp.pop %v6431
    %v6434 = vlaneseq
    %v6435 = vshrl.u32 %v6434, 7
    %v6436 = vsub.s32 0, %v6435
    %v6437 = vrot.slane %v6432, %v6436
    %v6438 = vlaneseq
    %v6439 = vshrl.u32 %v6438, 7
    %v6440 = vsub.s32 1, %v6439
    %v6441 = vrot.slane %v6432, %v6440
    %v6442 = vlaneseq
    %v6443 = vshrl.u32 %v6442, 7
    %v6444 = vsub.s32 2, %v6443
    %v6445 = vrot.slane %v6432, %v6444
    %v6446 = vlaneseq
    %v6447 = vshrl.u32 %v6446, 7
    %v6448 = vsub.s32 3, %v6447
    %v6449 = vrot.slane %v6432, %v6448
    %v6450 = vlaneseq
    %v6451 = vshrl.u32 %v6450, 7
    %v6452 = vsub.s32 4, %v6451
    %v6453 = vrot.slane %v6432, %v6452
    %v6454 = vlaneseq
    %v6455 = vshrl.u32 %v6454, 7
    %v6456 = vsub.s32 5, %v6455
    %v6457 = vrot.slane %v6432, %v6456
    %v6464 = vmul.f32 %v6298, %v6437
    %v6465 = vmul.f32 %v6300, %v6437
    %v6466 = vmul.f32 %v6302, %v6441
    %v6467 = vmul.f32 %v6304, %v6441
    %v6468 = vmul.f32 %v6306, %v6445
    %v6469 = vmul.f32 %v6308, %v6445
    %v6470 = vmul.f32 %v6310, %v6449
    %v6471 = vmul.f32 %v6312, %v6449
    %v6472 = vmul.f32 %v6314, %v6453
    %v6473 = vmul.f32 %v6316, %v6453
    %v6474 = vmul.f32 %v6318, %v6457
    %v6475 = vmul.f32 %v6320, %v6457
    %v6482 = vlaneseq
    %v6483 = vshrl.u32 %v6482, 7
    %v6484 = vsub.s32 %v6183, %v6483
    %v6485 = vrot.slane %v6154, %v6484
    %v6486 = vlaneseq
    %v6487 = vshrl.u32 %v6486, 7
    %v6488 = vsub.s32 %v6183, %v6487
    %v6489 = vrot.slane %v6157, %v6488
    %v6490 = vlaneseq
    %v6491 = vshrl.u32 %v6490, 7
    %v6492 = vsub.s32 %v6183, %v6491
    %v6493 = vrot.slane %v6160, %v6492
    %v6494 = vlaneseq
    %v6495 = vshrl.u32 %v6494, 7
    %v6496 = vsub.s32 %v6183, %v6495
    %v6497 = vrot.slane %v6163, %v6496
    %v6498 = vlaneseq
    %v6499 = vshrl.u32 %v6498, 7
    %v6500 = vsub.s32 %v6183, %v6499
    %v6501 = vrot.slane %v6166, %v6500
    %v6502 = vlaneseq
    %v6503 = vshrl.u32 %v6502, 7
    %v6504 = vsub.s32 %v6183, %v6503
    %v6505 = vrot.slane %v6169, %v6504
    %v6506 = vsel %vm503, %v6489, %v6485
    %v6507 = vsel %vm6241, %v6493, %v6506
    %v6508 = vsel %vm6243, %v6497, %v6507
    %v6509 = vsel %vm6245, %v6501, %v6508
    %v6510 = vsel %vm6247, %v6505, %v6509
    %vm6512 = vcmask 62464
    %v6513 = vsel %vm6512, %v6510, -inf
    %6514 = vmax.xlane.f32.xlu0 %v6513
    %v6515 = vpop.xlane.xlu0 %6514
    %v6517 = vlaneseq
    %v6518 = vshrl.u32 %v6517, 7
    %v6519 = vsub.s32 0, %v6518
    %v6520 = vrot.slane %v6515, %v6519
    %v6521 = vlaneseq
    %v6522 = vshrl.u32 %v6521, 7
    %v6523 = vsub.s32 1, %v6522
    %v6524 = vrot.slane %v6515, %v6523
    %v6525 = vlaneseq
    %v6526 = vshrl.u32 %v6525, 7
    %v6527 = vsub.s32 2, %v6526
    %v6528 = vrot.slane %v6515, %v6527
    %v6529 = vlaneseq
    %v6530 = vshrl.u32 %v6529, 7
    %v6531 = vsub.s32 3, %v6530
    %v6532 = vrot.slane %v6515, %v6531
    %v6533 = vlaneseq
    %v6534 = vshrl.u32 %v6533, 7
    %v6535 = vsub.s32 4, %v6534
    %v6536 = vrot.slane %v6515, %v6535
    %v6537 = vlaneseq
    %v6538 = vshrl.u32 %v6537, 7
    %v6539 = vsub.s32 5, %v6538
    %v6540 = vrot.slane %v6515, %v6539
    %v6547 = vsub.f32 %v6154, %v6520
    %v6548 = vsub.f32 %v6157, %v6524
    %v6549 = vsub.f32 %v6160, %v6528
    %v6550 = vsub.f32 %v6163, %v6532
    %v6551 = vsub.f32 %v6166, %v6536
    %v6552 = vsub.f32 %v6169, %v6540
    %v6553 = vmul.f32 %v6547, 1.442695
    %v6554 = vpow.pop %v6553
    %v6555 = vmul.f32 %v6548, 1.442695
    %v6556 = vpow.pop %v6555
    %v6557 = vmul.f32 %v6549, 1.442695
    %v6558 = vpow.pop %v6557
    %v6559 = vmul.f32 %v6550, 1.442695
    %v6560 = vpow.pop %v6559
    %v6561 = vmul.f32 %v6551, 1.442695
    %v6562 = vpow.pop %v6561
    %v6563 = vmul.f32 %v6552, 1.442695
    %v6564 = vpow.pop %v6563
    %6571 = vset.pattern.permute.xlu0 0
    %6572 = vperm.xlu0 %6571, %v6554
    %v6573 = vpop.permute.xlu0 %6572
    %6574 = vset.pattern.permute.xlu0 0
    %6575 = vperm.xlu0 %6574, %v6556
    %v6576 = vpop.permute.xlu0 %6575
    %6577 = vset.pattern.permute.xlu0 0
    %6578 = vperm.xlu0 %6577, %v6558
    %v6579 = vpop.permute.xlu0 %6578
    %6580 = vset.pattern.permute.xlu0 0
    %6581 = vperm.xlu0 %6580, %v6560
    %v6582 = vpop.permute.xlu0 %6581
    %6583 = vset.pattern.permute.xlu0 0
    %6584 = vperm.xlu0 %6583, %v6562
    %v6585 = vpop.permute.xlu0 %6584
    %6586 = vset.pattern.permute.xlu0 0
    %6587 = vperm.xlu0 %6586, %v6564
    %v6588 = vpop.permute.xlu0 %6587
    %v6589 = vlaneseq
    %v6590 = vshrl.u32 %v6589, 7
    %v6591 = vsub.s32 %v6183, %v6590
    %v6592 = vrot.slane %v6573, %v6591
    %v6593 = vlaneseq
    %v6594 = vshrl.u32 %v6593, 7
    %v6595 = vsub.s32 %v6183, %v6594
    %v6596 = vrot.slane %v6576, %v6595
    %v6597 = vlaneseq
    %v6598 = vshrl.u32 %v6597, 7
    %v6599 = vsub.s32 %v6183, %v6598
    %v6600 = vrot.slane %v6579, %v6599
    %v6601 = vlaneseq
    %v6602 = vshrl.u32 %v6601, 7
    %v6603 = vsub.s32 %v6183, %v6602
    %v6604 = vrot.slane %v6582, %v6603
    %v6605 = vlaneseq
    %v6606 = vshrl.u32 %v6605, 7
    %v6607 = vsub.s32 %v6183, %v6606
    %v6608 = vrot.slane %v6585, %v6607
    %v6609 = vlaneseq
    %v6610 = vshrl.u32 %v6609, 7
    %v6611 = vsub.s32 %v6183, %v6610
    %v6612 = vrot.slane %v6588, %v6611
    %v6613 = vsel %vm503, %v6596, %v6592
    %v6614 = vsel %vm6241, %v6600, %v6613
    %v6615 = vsel %vm6243, %v6604, %v6614
    %v6616 = vsel %vm6245, %v6608, %v6615
    %v6617 = vsel %vm6247, %v6612, %v6616
    %v6619 = vsel %vm6512, %v6617, 0.0
    %6620 = vadd.xlane.f32.xlu0 %v6619
    %v6621 = vpop.xlane.xlu0 %6620
    %v6622 = vrcp.pop %v6621
    %v6624 = vlaneseq
    %v6625 = vshrl.u32 %v6624, 7
    %v6626 = vsub.s32 0, %v6625
    %v6627 = vrot.slane %v6622, %v6626
    %v6628 = vlaneseq
    %v6629 = vshrl.u32 %v6628, 7
    %v6630 = vsub.s32 1, %v6629
    %v6631 = vrot.slane %v6622, %v6630
    %v6632 = vlaneseq
    %v6633 = vshrl.u32 %v6632, 7
    %v6634 = vsub.s32 2, %v6633
    %v6635 = vrot.slane %v6622, %v6634
    %v6636 = vlaneseq
    %v6637 = vshrl.u32 %v6636, 7
    %v6638 = vsub.s32 3, %v6637
    %v6639 = vrot.slane %v6622, %v6638
    %v6640 = vlaneseq
    %v6641 = vshrl.u32 %v6640, 7
    %v6642 = vsub.s32 4, %v6641
    %v6643 = vrot.slane %v6622, %v6642
    %v6644 = vlaneseq
    %v6645 = vshrl.u32 %v6644, 7
    %v6646 = vsub.s32 5, %v6645
    %v6647 = vrot.slane %v6622, %v6646
    %v6654 = vmul.f32 %v6554, %v6627
    %v6655 = vmul.f32 %v6556, %v6631
    %v6656 = vmul.f32 %v6558, %v6635
    %v6657 = vmul.f32 %v6560, %v6639
    %v6658 = vmul.f32 %v6562, %v6643
    %v6659 = vmul.f32 %v6564, %v6647
    %6661 = vset.pattern.permute.xlu0 0
    %6662 = vperm.xlu0 %6661, %v6464
    %v6663 = vpop.permute.xlu0 %6662
    %6666 = vset.pattern.permute.xlu0 0
    %6667 = vperm.xlu0 %6666, %v6465
    %v6668 = vpop.permute.xlu0 %6667
    %6671 = vset.pattern.permute.xlu0 0
    %6672 = vperm.xlu0 %6671, %v6466
    %v6673 = vpop.permute.xlu0 %6672
    %6676 = vset.pattern.permute.xlu0 0
    %6677 = vperm.xlu0 %6676, %v6467
    %v6678 = vpop.permute.xlu0 %6677
    %6681 = vset.pattern.permute.xlu0 0
    %6682 = vperm.xlu0 %6681, %v6468
    %v6683 = vpop.permute.xlu0 %6682
    %6686 = vset.pattern.permute.xlu0 0
    %6687 = vperm.xlu0 %6686, %v6469
    %v6688 = vpop.permute.xlu0 %6687
    %6691 = vset.pattern.permute.xlu0 0
    %6692 = vperm.xlu0 %6691, %v6470
    %v6693 = vpop.permute.xlu0 %6692
    %6696 = vset.pattern.permute.xlu0 0
    %6697 = vperm.xlu0 %6696, %v6471
    %v6698 = vpop.permute.xlu0 %6697
    %6701 = vset.pattern.permute.xlu0 0
    %6702 = vperm.xlu0 %6701, %v6472
    %v6703 = vpop.permute.xlu0 %6702
    %6706 = vset.pattern.permute.xlu0 0
    %6707 = vperm.xlu0 %6706, %v6473
    %v6708 = vpop.permute.xlu0 %6707
    %6711 = vset.pattern.permute.xlu0 0
    %6712 = vperm.xlu0 %6711, %v6474
    %v6713 = vpop.permute.xlu0 %6712
    %6716 = vset.pattern.permute.xlu0 0
    %6717 = vperm.xlu0 %6716, %v6475
    %v6718 = vpop.permute.xlu0 %6717
    %v6720 = vmul.f32 %v6663, %v77
    %v6721 = vmul.f32 %v6668, %v78
    %v6722 = vmul.f32 %v6673, %v79
    %v6723 = vmul.f32 %v6678, %v80
    %v6724 = vmul.f32 %v6683, %v77
    %v6725 = vmul.f32 %v6688, %v78
    %v6726 = vmul.f32 %v6693, %v79
    %v6727 = vmul.f32 %v6698, %v80
    %v6728 = vmul.f32 %v6703, %v77
    %v6729 = vmul.f32 %v6708, %v78
    %v6730 = vmul.f32 %v6713, %v79
    %v6731 = vmul.f32 %v6718, %v80
    %v6732 = vsel %vm135, %v6720, 0.0
    %v6733 = vsel %vm135, %v6721, 0.0
    %v6734 = vadd.f32 %v6732, %v6733
    %v6735 = vrot.slane %v6734, 4
    %v6736 = vadd.f32 %v6734, %v6735
    %v6737 = vrot.slane %v6736, 2
    %v6738 = vadd.f32 %v6736, %v6737
    %v6739 = vrot.slane %v6738, 1
    %v6740 = vadd.f32 %v6738, %v6739
    %v6741 = vsel %vm135, %v6722, 0.0
    %v6742 = vsel %vm135, %v6723, 0.0
    %v6743 = vadd.f32 %v6741, %v6742
    %v6744 = vrot.slane %v6743, 4
    %v6745 = vadd.f32 %v6743, %v6744
    %v6746 = vrot.slane %v6745, 2
    %v6747 = vadd.f32 %v6745, %v6746
    %v6748 = vrot.slane %v6747, 1
    %v6749 = vadd.f32 %v6747, %v6748
    %v6750 = vsel %vm135, %v6724, 0.0
    %v6751 = vsel %vm135, %v6725, 0.0
    %v6752 = vadd.f32 %v6750, %v6751
    %v6753 = vrot.slane %v6752, 4
    %v6754 = vadd.f32 %v6752, %v6753
    %v6755 = vrot.slane %v6754, 2
    %v6756 = vadd.f32 %v6754, %v6755
    %v6757 = vrot.slane %v6756, 1
    %v6758 = vadd.f32 %v6756, %v6757
    %v6759 = vsel %vm135, %v6726, 0.0
    %v6760 = vsel %vm135, %v6727, 0.0
    %v6761 = vadd.f32 %v6759, %v6760
    %v6762 = vrot.slane %v6761, 4
    %v6763 = vadd.f32 %v6761, %v6762
    %v6764 = vrot.slane %v6763, 2
    %v6765 = vadd.f32 %v6763, %v6764
    %v6766 = vrot.slane %v6765, 1
    %v6767 = vadd.f32 %v6765, %v6766
    %v6768 = vsel %vm135, %v6728, 0.0
    %v6769 = vsel %vm135, %v6729, 0.0
    %v6770 = vadd.f32 %v6768, %v6769
    %v6771 = vrot.slane %v6770, 4
    %v6772 = vadd.f32 %v6770, %v6771
    %v6773 = vrot.slane %v6772, 2
    %v6774 = vadd.f32 %v6772, %v6773
    %v6775 = vrot.slane %v6774, 1
    %v6776 = vadd.f32 %v6774, %v6775
    %v6777 = vsel %vm135, %v6730, 0.0
    %v6778 = vsel %vm135, %v6731, 0.0
    %v6779 = vadd.f32 %v6777, %v6778
    %v6780 = vrot.slane %v6779, 4
    %v6781 = vadd.f32 %v6779, %v6780
    %v6782 = vrot.slane %v6781, 2
    %v6783 = vadd.f32 %v6781, %v6782
    %v6784 = vrot.slane %v6783, 1
    %v6785 = vadd.f32 %v6783, %v6784
    %6787 = vset.pattern.permute.xlu0 0
    %6788 = vperm.xlu0 %6787, %v6654
    %v6789 = vpop.permute.xlu0 %6788
    %6792 = vset.pattern.permute.xlu0 0
    %6793 = vperm.xlu0 %6792, %v6655
    %v6794 = vpop.permute.xlu0 %6793
    %6797 = vset.pattern.permute.xlu0 0
    %6798 = vperm.xlu0 %6797, %v6656
    %v6799 = vpop.permute.xlu0 %6798
    %6802 = vset.pattern.permute.xlu0 0
    %6803 = vperm.xlu0 %6802, %v6657
    %v6804 = vpop.permute.xlu0 %6803
    %6807 = vset.pattern.permute.xlu0 0
    %6808 = vperm.xlu0 %6807, %v6658
    %v6809 = vpop.permute.xlu0 %6808
    %6812 = vset.pattern.permute.xlu0 0
    %6813 = vperm.xlu0 %6812, %v6659
    %v6814 = vpop.permute.xlu0 %6813
    %v6816 = vmul.f32 %v6789, %v75
    %v6817 = vmul.f32 %v6794, %v76
    %v6818 = vmul.f32 %v6799, %v270
    %v6819 = vmul.f32 %v6804, %v271
    %v6820 = vmul.f32 %v6809, %v3904
    %v6821 = vmul.f32 %v6814, %v3906
    %v6822 = vsel %vm135, %v6816, 0.0
    %v6823 = vrot.slane %v6822, 4
    %v6824 = vadd.f32 %v6822, %v6823
    %v6825 = vrot.slane %v6824, 2
    %v6826 = vadd.f32 %v6824, %v6825
    %v6827 = vrot.slane %v6826, 1
    %v6828 = vadd.f32 %v6826, %v6827
    %v6829 = vsel %vm135, %v6817, 0.0
    %v6830 = vrot.slane %v6829, 4
    %v6831 = vadd.f32 %v6829, %v6830
    %v6832 = vrot.slane %v6831, 2
    %v6833 = vadd.f32 %v6831, %v6832
    %v6834 = vrot.slane %v6833, 1
    %v6835 = vadd.f32 %v6833, %v6834
    %v6836 = vsel %vm135, %v6818, 0.0
    %v6837 = vrot.slane %v6836, 4
    %v6838 = vadd.f32 %v6836, %v6837
    %v6839 = vrot.slane %v6838, 2
    %v6840 = vadd.f32 %v6838, %v6839
    %v6841 = vrot.slane %v6840, 1
    %v6842 = vadd.f32 %v6840, %v6841
    %v6843 = vsel %vm135, %v6819, 0.0
    %v6844 = vrot.slane %v6843, 4
    %v6845 = vadd.f32 %v6843, %v6844
    %v6846 = vrot.slane %v6845, 2
    %v6847 = vadd.f32 %v6845, %v6846
    %v6848 = vrot.slane %v6847, 1
    %v6849 = vadd.f32 %v6847, %v6848
    %v6850 = vsel %vm135, %v6820, 0.0
    %v6851 = vrot.slane %v6850, 4
    %v6852 = vadd.f32 %v6850, %v6851
    %v6853 = vrot.slane %v6852, 2
    %v6854 = vadd.f32 %v6852, %v6853
    %v6855 = vrot.slane %v6854, 1
    %v6856 = vadd.f32 %v6854, %v6855
    %v6857 = vsel %vm135, %v6821, 0.0
    %v6858 = vrot.slane %v6857, 4
    %v6859 = vadd.f32 %v6857, %v6858
    %v6860 = vrot.slane %v6859, 2
    %v6861 = vadd.f32 %v6859, %v6860
    %v6862 = vrot.slane %v6861, 1
    %v6863 = vadd.f32 %v6861, %v6862
    %v6864 = vadd.f32 %v6740, %v6828
    %v6865 = vadd.f32 %v6749, %v6835
    %v6866 = vadd.f32 %v6758, %v6842
    %v6867 = vadd.f32 %v6767, %v6849
    %v6868 = vadd.f32 %v6776, %v6856
    %v6869 = vadd.f32 %v6785, %v6863
    %v6870 = vld [vmem:[%s13] sm:$0xff]
    %v6871 = vld [vmem:[%s13 + $0x8] sm:$0xff]
    %v6872 = vld [vmem:[%s13 + $0x10] sm:$0xff]
    %v6873 = vld [vmem:[%s13 + $0x18] sm:$0xff]
    %v6874 = vld [vmem:[%s14] sm:$0x1]
    %v6876 = vlaneseq
    %v6877 = vshrl.u32 %v6876, 7
    %v6878 = vsub.s32 0, %v6877
    %v6879 = vrot.slane %v6874, %v6878
    %v6883 = vsel %vm503, %v6865, %v6864
    %v6884 = vsel %vm135, %v6883, 0
    %6886 = vmatprep.subr.mxu0 0.0
    %6887 = vmatpush1.msra.mxu0 0.0
    %6888 = vmatprep.subr.mxu0 0.0
    %6889 = vmatpush1.msra.mxu0 0.0
    %6890 = vmatprep.subr.mxu0 0.0
    %6891 = vmatpush1.msra.mxu0 0.0
    %6892 = vmatprep.subr.mxu0 0.0
    %6893 = vmatpush1.msra.mxu0 0.0
    %6894 = vmatprep.subr.mxu0 0.0
    %6895 = vmatpush1.msra.mxu0 0.0
    %6896 = vmatprep.subr.mxu0 0.0
    %6897 = vmatpush1.msra.mxu0 0.0
    %6898 = vmatprep.subr.mxu0 0.0
    %6899 = vmatpush1.msra.mxu0 0.0
    %6900 = vmatprep.subr.mxu0 0.0
    %6901 = vmatpush1.msra.mxu0 0.0
    %6902 = vmatprep.subr.mxu0 0.0
    %6903 = vmatpush1.msra.mxu0 0.0
    %6904 = vmatprep.subr.mxu0 0.0
    %6905 = vmatpush1.msra.mxu0 0.0
    %6906 = vmatprep.subr.mxu0 0.0
    %6907 = vmatpush1.msra.mxu0 0.0
    %6908 = vmatprep.subr.mxu0 0.0
    %6909 = vmatpush1.msra.mxu0 0.0
    %6910 = vmatprep.subr.mxu0 0.0
    %6911 = vmatpush1.msra.mxu0 %v6873
    %6912 = vmatprep.subr.mxu0 0.0
    %6913 = vmatpush1.msra.mxu0 %v6872
    %6914 = vmatprep.subr.mxu0 0.0
    %6915 = vmatpush1.msra.mxu0 %v6871
    %6916 = vmatprep.subr.mxu0 0.0
    %6917 = vmatpush1.msra.mxu0 %v6870
    %6918 = vmatprep.subr.mxu0 0.0
    %6919 = vmatpush2.msra.mxu0 0.0
    %6920 = vmatprep.subr.mxu0 0.0
    %6921 = vmatpush2.msra.mxu0 0.0
    %6922 = vmatprep.subr.mxu0 0.0
    %6923 = vmatpush2.msra.mxu0 0.0
    %6924 = vmatprep.subr.mxu0 0.0
    %6925 = vmatpush2.msra.mxu0 0.0
    %6926 = vmatprep.subr.mxu0 0.0
    %6927 = vmatpush2.msra.mxu0 0.0
    %6928 = vmatprep.subr.mxu0 0.0
    %6929 = vmatpush2.msra.mxu0 0.0
    %6930 = vmatprep.subr.mxu0 0.0
    %6931 = vmatpush2.msra.mxu0 0.0
    %6932 = vmatprep.subr.mxu0 0.0
    %6933 = vmatpush2.msra.mxu0 0.0
    %6934 = vmatprep.subr.mxu0 0.0
    %6935 = vmatpush2.msra.mxu0 0.0
    %6936 = vmatprep.subr.mxu0 0.0
    %6937 = vmatpush2.msra.mxu0 0.0
    %6938 = vmatprep.subr.mxu0 0.0
    %6939 = vmatpush2.msra.mxu0 0.0
    %6940 = vmatprep.subr.mxu0 0.0
    %6941 = vmatpush2.msra.mxu0 0.0
    %6942 = vmatprep.subr.mxu0 0.0
    %6943 = vmatpush2.msra.mxu0 0.0
    %6944 = vmatprep.subr.mxu0 0.0
    %6945 = vmatpush2.msra.mxu0 0.0
    %6946 = vmatprep.subr.mxu0 0.0
    %6947 = vmatpush2.msra.mxu0 0.0
    %6948 = vmatprep.subr.mxu0 0.0
    %6949 = vmatpush2.msra.mxu0 0.0
    %6950 = vmatprep.mubr.f32.mxu0 0.0
    %6951 = vmatmul.mubr.f32.gmra.mxu0 %v6884
    %v6952 = vpop.f32.mrf.mxu0
    %v6953 = vadd.f32 %v6879, %v6952
    %v6954 = vpop.f32.mrf.mxu0
    %6955 = vdwg.mxu0
    %v6956 = vtanh.pop %v6953
    %v6957 = vld [vmem:[%s15] sm:$0xff]
    %v6958 = vld [vmem:[%s15 + $0x8] sm:$0xff]
    %v6959 = vld [vmem:[%s15 + $0x10] sm:$0xff]
    %v6960 = vld [vmem:[%s15 + $0x18] sm:$0xff]
    %v6961 = vld [vmem:[%s16] sm:$0xff]
    %v6962 = vld [vmem:[%s16 + $0x8] sm:$0xff]
    %v6963 = vld [vmem:[%s16 + $0x10] sm:$0xff]
    %v6964 = vld [vmem:[%s16 + $0x18] sm:$0xff]
    %v6966 = vsel %vm135, %v6956, 0
    %6968 = vmatprep.subr.mxu0 0.0
    %6969 = vmatpush1.msra.mxu0 0.0
    %6970 = vmatprep.subr.mxu0 0.0
    %6971 = vmatpush1.msra.mxu0 0.0
    %6972 = vmatprep.subr.mxu0 0.0
    %6973 = vmatpush1.msra.mxu0 0.0
    %6974 = vmatprep.subr.mxu0 0.0
    %6975 = vmatpush1.msra.mxu0 0.0
    %6976 = vmatprep.subr.mxu0 0.0
    %6977 = vmatpush1.msra.mxu0 0.0
    %6978 = vmatprep.subr.mxu0 0.0
    %6979 = vmatpush1.msra.mxu0 0.0
    %6980 = vmatprep.subr.mxu0 0.0
    %6981 = vmatpush1.msra.mxu0 0.0
    %6982 = vmatprep.subr.mxu0 0.0
    %6983 = vmatpush1.msra.mxu0 0.0
    %6984 = vmatprep.subr.mxu0 0.0
    %6985 = vmatpush1.msra.mxu0 0.0
    %6986 = vmatprep.subr.mxu0 0.0
    %6987 = vmatpush1.msra.mxu0 0.0
    %6988 = vmatprep.subr.mxu0 0.0
    %6989 = vmatpush1.msra.mxu0 0.0
    %6990 = vmatprep.subr.mxu0 0.0
    %6991 = vmatpush1.msra.mxu0 0.0
    %6992 = vmatprep.subr.mxu0 0.0
    %6993 = vmatpush1.msra.mxu0 %v6964
    %6994 = vmatprep.subr.mxu0 0.0
    %6995 = vmatpush1.msra.mxu0 %v6963
    %6996 = vmatprep.subr.mxu0 0.0
    %6997 = vmatpush1.msra.mxu0 %v6962
    %6998 = vmatprep.subr.mxu0 0.0
    %6999 = vmatpush1.msra.mxu0 %v6961
    %7000 = vmatprep.subr.mxu0 0.0
    %7001 = vmatpush2.msra.mxu0 0.0
    %7002 = vmatprep.subr.mxu0 0.0
    %7003 = vmatpush2.msra.mxu0 0.0
    %7004 = vmatprep.subr.mxu0 0.0
    %7005 = vmatpush2.msra.mxu0 0.0
    %7006 = vmatprep.subr.mxu0 0.0
    %7007 = vmatpush2.msra.mxu0 0.0
    %7008 = vmatprep.subr.mxu0 0.0
    %7009 = vmatpush2.msra.mxu0 0.0
    %7010 = vmatprep.subr.mxu0 0.0
    %7011 = vmatpush2.msra.mxu0 0.0
    %7012 = vmatprep.subr.mxu0 0.0
    %7013 = vmatpush2.msra.mxu0 0.0
    %7014 = vmatprep.subr.mxu0 0.0
    %7015 = vmatpush2.msra.mxu0 0.0
    %7016 = vmatprep.subr.mxu0 0.0
    %7017 = vmatpush2.msra.mxu0 0.0
    %7018 = vmatprep.subr.mxu0 0.0
    %7019 = vmatpush2.msra.mxu0 0.0
    %7020 = vmatprep.subr.mxu0 0.0
    %7021 = vmatpush2.msra.mxu0 0.0
    %7022 = vmatprep.subr.mxu0 0.0
    %7023 = vmatpush2.msra.mxu0 0.0
    %7024 = vmatprep.subr.mxu0 0.0
    %7025 = vmatpush2.msra.mxu0 0.0
    %7026 = vmatprep.subr.mxu0 0.0
    %7027 = vmatpush2.msra.mxu0 0.0
    %7028 = vmatprep.subr.mxu0 0.0
    %7029 = vmatpush2.msra.mxu0 0.0
    %7030 = vmatprep.subr.mxu0 0.0
    %7031 = vmatpush2.msra.mxu0 0.0
    %7032 = vmatprep.mubr.f32.mxu0 0.0
    %7033 = vmatmul.mubr.f32.gmra.mxu0 %v6966
    %v7034 = vpop.f32.mrf.mxu0
    %v7035 = vadd.f32 0.0, %v7034
    %v7036 = vpop.f32.mrf.mxu0
    %7037 = vdwg.mxu0
    %v7040 = vsel %vm503, %v6867, %v6866
    %v7041 = vsel %vm135, %v7040, 0
    %7043 = vmatprep.subr.mxu0 0.0
    %7044 = vmatpush1.msra.mxu0 0.0
    %7045 = vmatprep.subr.mxu0 0.0
    %7046 = vmatpush1.msra.mxu0 0.0
    %7047 = vmatprep.subr.mxu0 0.0
    %7048 = vmatpush1.msra.mxu0 0.0
    %7049 = vmatprep.subr.mxu0 0.0
    %7050 = vmatpush1.msra.mxu0 0.0
    %7051 = vmatprep.subr.mxu0 0.0
    %7052 = vmatpush1.msra.mxu0 0.0
    %7053 = vmatprep.subr.mxu0 0.0
    %7054 = vmatpush1.msra.mxu0 0.0
    %7055 = vmatprep.subr.mxu0 0.0
    %7056 = vmatpush1.msra.mxu0 0.0
    %7057 = vmatprep.subr.mxu0 0.0
    %7058 = vmatpush1.msra.mxu0 0.0
    %7059 = vmatprep.subr.mxu0 0.0
    %7060 = vmatpush1.msra.mxu0 0.0
    %7061 = vmatprep.subr.mxu0 0.0
    %7062 = vmatpush1.msra.mxu0 0.0
    %7063 = vmatprep.subr.mxu0 0.0
    %7064 = vmatpush1.msra.mxu0 0.0
    %7065 = vmatprep.subr.mxu0 0.0
    %7066 = vmatpush1.msra.mxu0 0.0
    %7067 = vmatprep.subr.mxu0 0.0
    %7068 = vmatpush1.msra.mxu0 %v6960
    %7069 = vmatprep.subr.mxu0 0.0
    %7070 = vmatpush1.msra.mxu0 %v6959
    %7071 = vmatprep.subr.mxu0 0.0
    %7072 = vmatpush1.msra.mxu0 %v6958
    %7073 = vmatprep.subr.mxu0 0.0
    %7074 = vmatpush1.msra.mxu0 %v6957
    %7075 = vmatprep.subr.mxu0 0.0
    %7076 = vmatpush2.msra.mxu0 0.0
    %7077 = vmatprep.subr.mxu0 0.0
    %7078 = vmatpush2.msra.mxu0 0.0
    %7079 = vmatprep.subr.mxu0 0.0
    %7080 = vmatpush2.msra.mxu0 0.0
    %7081 = vmatprep.subr.mxu0 0.0
    %7082 = vmatpush2.msra.mxu0 0.0
    %7083 = vmatprep.subr.mxu0 0.0
    %7084 = vmatpush2.msra.mxu0 0.0
    %7085 = vmatprep.subr.mxu0 0.0
    %7086 = vmatpush2.msra.mxu0 0.0
    %7087 = vmatprep.subr.mxu0 0.0
    %7088 = vmatpush2.msra.mxu0 0.0
    %7089 = vmatprep.subr.mxu0 0.0
    %7090 = vmatpush2.msra.mxu0 0.0
    %7091 = vmatprep.subr.mxu0 0.0
    %7092 = vmatpush2.msra.mxu0 0.0
    %7093 = vmatprep.subr.mxu0 0.0
    %7094 = vmatpush2.msra.mxu0 0.0
    %7095 = vmatprep.subr.mxu0 0.0
    %7096 = vmatpush2.msra.mxu0 0.0
    %7097 = vmatprep.subr.mxu0 0.0
    %7098 = vmatpush2.msra.mxu0 0.0
    %7099 = vmatprep.subr.mxu0 0.0
    %7100 = vmatpush2.msra.mxu0 0.0
    %7101 = vmatprep.subr.mxu0 0.0
    %7102 = vmatpush2.msra.mxu0 0.0
    %7103 = vmatprep.subr.mxu0 0.0
    %7104 = vmatpush2.msra.mxu0 0.0
    %7105 = vmatprep.subr.mxu0 0.0
    %7106 = vmatpush2.msra.mxu0 0.0
    %7107 = vmatprep.mubr.f32.mxu0 0.0
    %7108 = vmatmul.mubr.f32.gmra.mxu0 %v7041
    %v7109 = vpop.f32.mrf.mxu0
    %v7110 = vadd.f32 %v7035, %v7109
    %v7111 = vpop.f32.mrf.mxu0
    %7112 = vdwg.mxu0
    %v7113 = vld [vmem:[%s17] sm:$0x1]
    %v7115 = vlaneseq
    %v7116 = vshrl.u32 %v7115, 7
    %v7117 = vsub.s32 0, %v7116
    %v7118 = vrot.slane %v7113, %v7117
    %v7120 = vadd.f32 %v7110, %v7118
    %v7121 = vtanh.pop %v7120
    %v7122 = vld [vmem:[%s18] sm:$0xff]
    %v7123 = vld [vmem:[%s18 + $0x8] sm:$0xff]
    %v7124 = vld [vmem:[%s18 + $0x10] sm:$0xff]
    %v7125 = vld [vmem:[%s18 + $0x18] sm:$0xff]
    %v7126 = vld [vmem:[%s19] sm:$0xff]
    %v7127 = vld [vmem:[%s19 + $0x8] sm:$0xff]
    %v7128 = vld [vmem:[%s19 + $0x10] sm:$0xff]
    %v7129 = vld [vmem:[%s19 + $0x18] sm:$0xff]
    %v7131 = vsel %vm135, %v7121, 0
    %7133 = vmatprep.subr.mxu0 0.0
    %7134 = vmatpush1.msra.mxu0 0.0
    %7135 = vmatprep.subr.mxu0 0.0
    %7136 = vmatpush1.msra.mxu0 0.0
    %7137 = vmatprep.subr.mxu0 0.0
    %7138 = vmatpush1.msra.mxu0 0.0
    %7139 = vmatprep.subr.mxu0 0.0
    %7140 = vmatpush1.msra.mxu0 0.0
    %7141 = vmatprep.subr.mxu0 0.0
    %7142 = vmatpush1.msra.mxu0 0.0
    %7143 = vmatprep.subr.mxu0 0.0
    %7144 = vmatpush1.msra.mxu0 0.0
    %7145 = vmatprep.subr.mxu0 0.0
    %7146 = vmatpush1.msra.mxu0 0.0
    %7147 = vmatprep.subr.mxu0 0.0
    %7148 = vmatpush1.msra.mxu0 0.0
    %7149 = vmatprep.subr.mxu0 0.0
    %7150 = vmatpush1.msra.mxu0 0.0
    %7151 = vmatprep.subr.mxu0 0.0
    %7152 = vmatpush1.msra.mxu0 0.0
    %7153 = vmatprep.subr.mxu0 0.0
    %7154 = vmatpush1.msra.mxu0 0.0
    %7155 = vmatprep.subr.mxu0 0.0
    %7156 = vmatpush1.msra.mxu0 0.0
    %7157 = vmatprep.subr.mxu0 0.0
    %7158 = vmatpush1.msra.mxu0 %v7129
    %7159 = vmatprep.subr.mxu0 0.0
    %7160 = vmatpush1.msra.mxu0 %v7128
    %7161 = vmatprep.subr.mxu0 0.0
    %7162 = vmatpush1.msra.mxu0 %v7127
    %7163 = vmatprep.subr.mxu0 0.0
    %7164 = vmatpush1.msra.mxu0 %v7126
    %7165 = vmatprep.subr.mxu0 0.0
    %7166 = vmatpush2.msra.mxu0 0.0
    %7167 = vmatprep.subr.mxu0 0.0
    %7168 = vmatpush2.msra.mxu0 0.0
    %7169 = vmatprep.subr.mxu0 0.0
    %7170 = vmatpush2.msra.mxu0 0.0
    %7171 = vmatprep.subr.mxu0 0.0
    %7172 = vmatpush2.msra.mxu0 0.0
    %7173 = vmatprep.subr.mxu0 0.0
    %7174 = vmatpush2.msra.mxu0 0.0
    %7175 = vmatprep.subr.mxu0 0.0
    %7176 = vmatpush2.msra.mxu0 0.0
    %7177 = vmatprep.subr.mxu0 0.0
    %7178 = vmatpush2.msra.mxu0 0.0
    %7179 = vmatprep.subr.mxu0 0.0
    %7180 = vmatpush2.msra.mxu0 0.0
    %7181 = vmatprep.subr.mxu0 0.0
    %7182 = vmatpush2.msra.mxu0 0.0
    %7183 = vmatprep.subr.mxu0 0.0
    %7184 = vmatpush2.msra.mxu0 0.0
    %7185 = vmatprep.subr.mxu0 0.0
    %7186 = vmatpush2.msra.mxu0 0.0
    %7187 = vmatprep.subr.mxu0 0.0
    %7188 = vmatpush2.msra.mxu0 0.0
    %7189 = vmatprep.subr.mxu0 0.0
    %7190 = vmatpush2.msra.mxu0 0.0
    %7191 = vmatprep.subr.mxu0 0.0
    %7192 = vmatpush2.msra.mxu0 0.0
    %7193 = vmatprep.subr.mxu0 0.0
    %7194 = vmatpush2.msra.mxu0 0.0
    %7195 = vmatprep.subr.mxu0 0.0
    %7196 = vmatpush2.msra.mxu0 0.0
    %7197 = vmatprep.mubr.f32.mxu0 0.0
    %7198 = vmatmul.mubr.f32.gmra.mxu0 %v7131
    %v7199 = vpop.f32.mrf.mxu0
    %v7200 = vadd.f32 0.0, %v7199
    %v7201 = vpop.f32.mrf.mxu0
    %7202 = vdwg.mxu0
    %v7205 = vsel %vm503, %v6869, %v6868
    %v7206 = vsel %vm135, %v7205, 0
    %7208 = vmatprep.subr.mxu0 0.0
    %7209 = vmatpush1.msra.mxu0 0.0
    %7210 = vmatprep.subr.mxu0 0.0
    %7211 = vmatpush1.msra.mxu0 0.0
    %7212 = vmatprep.subr.mxu0 0.0
    %7213 = vmatpush1.msra.mxu0 0.0
    %7214 = vmatprep.subr.mxu0 0.0
    %7215 = vmatpush1.msra.mxu0 0.0
    %7216 = vmatprep.subr.mxu0 0.0
    %7217 = vmatpush1.msra.mxu0 0.0
    %7218 = vmatprep.subr.mxu0 0.0
    %7219 = vmatpush1.msra.mxu0 0.0
    %7220 = vmatprep.subr.mxu0 0.0
    %7221 = vmatpush1.msra.mxu0 0.0
    %7222 = vmatprep.subr.mxu0 0.0
    %7223 = vmatpush1.msra.mxu0 0.0
    %7224 = vmatprep.subr.mxu0 0.0
    %7225 = vmatpush1.msra.mxu0 0.0
    %7226 = vmatprep.subr.mxu0 0.0
    %7227 = vmatpush1.msra.mxu0 0.0
    %7228 = vmatprep.subr.mxu0 0.0
    %7229 = vmatpush1.msra.mxu0 0.0
    %7230 = vmatprep.subr.mxu0 0.0
    %7231 = vmatpush1.msra.mxu0 0.0
    %7232 = vmatprep.subr.mxu0 0.0
    %7233 = vmatpush1.msra.mxu0 %v7125
    %7234 = vmatprep.subr.mxu0 0.0
    %7235 = vmatpush1.msra.mxu0 %v7124
    %7236 = vmatprep.subr.mxu0 0.0
    %7237 = vmatpush1.msra.mxu0 %v7123
    %7238 = vmatprep.subr.mxu0 0.0
    %7239 = vmatpush1.msra.mxu0 %v7122
    %7240 = vmatprep.subr.mxu0 0.0
    %7241 = vmatpush2.msra.mxu0 0.0
    %7242 = vmatprep.subr.mxu0 0.0
    %7243 = vmatpush2.msra.mxu0 0.0
    %7244 = vmatprep.subr.mxu0 0.0
    %7245 = vmatpush2.msra.mxu0 0.0
    %7246 = vmatprep.subr.mxu0 0.0
    %7247 = vmatpush2.msra.mxu0 0.0
    %7248 = vmatprep.subr.mxu0 0.0
    %7249 = vmatpush2.msra.mxu0 0.0
    %7250 = vmatprep.subr.mxu0 0.0
    %7251 = vmatpush2.msra.mxu0 0.0
    %7252 = vmatprep.subr.mxu0 0.0
    %7253 = vmatpush2.msra.mxu0 0.0
    %7254 = vmatprep.subr.mxu0 0.0
    %7255 = vmatpush2.msra.mxu0 0.0
    %7256 = vmatprep.subr.mxu0 0.0
    %7257 = vmatpush2.msra.mxu0 0.0
    %7258 = vmatprep.subr.mxu0 0.0
    %7259 = vmatpush2.msra.mxu0 0.0
    %7260 = vmatprep.subr.mxu0 0.0
    %7261 = vmatpush2.msra.mxu0 0.0
    %7262 = vmatprep.subr.mxu0 0.0
    %7263 = vmatpush2.msra.mxu0 0.0
    %7264 = vmatprep.subr.mxu0 0.0
    %7265 = vmatpush2.msra.mxu0 0.0
    %7266 = vmatprep.subr.mxu0 0.0
    %7267 = vmatpush2.msra.mxu0 0.0
    %7268 = vmatprep.subr.mxu0 0.0
    %7269 = vmatpush2.msra.mxu0 0.0
    %7270 = vmatprep.subr.mxu0 0.0
    %7271 = vmatpush2.msra.mxu0 0.0
    %7272 = vmatprep.mubr.f32.mxu0 0.0
    %7273 = vmatmul.mubr.f32.gmra.mxu0 %v7206
    %v7274 = vpop.f32.mrf.mxu0
    %v7275 = vadd.f32 %v7200, %v7274
    %v7276 = vpop.f32.mrf.mxu0
    %7277 = vdwg.mxu0
    %v7278 = vld [vmem:[%s20] sm:$0x1]
    %v7280 = vlaneseq
    %v7281 = vshrl.u32 %v7280, 7
    %v7282 = vsub.s32 0, %v7281
    %v7283 = vrot.slane %v7278, %v7282
    %v7285 = vadd.f32 %v7275, %v7283
    %v7286 = vtanh.pop %v7285
    %v7287 = vld [vmem:[%s21] sm:$0xff]
    %v7288 = vld [vmem:[%s21 + $0x8] sm:$0xff]
    %v7289 = vld [vmem:[%s21 + $0x10] sm:$0xff]
    %v7290 = vld [vmem:[%s21 + $0x18] sm:$0xff]
    %v7291 = vld [vmem:[%s22] sm:$0x1]
    %v7293 = vlaneseq
    %v7294 = vshrl.u32 %v7293, 7
    %v7295 = vsub.s32 0, %v7294
    %v7296 = vrot.slane %v7291, %v7295
    %v7299 = vsel %vm135, %v7286, 0
    %7301 = vmatprep.subr.mxu0 0.0
    %7302 = vmatpush1.msra.mxu0 0.0
    %7303 = vmatprep.subr.mxu0 0.0
    %7304 = vmatpush1.msra.mxu0 0.0
    %7305 = vmatprep.subr.mxu0 0.0
    %7306 = vmatpush1.msra.mxu0 0.0
    %7307 = vmatprep.subr.mxu0 0.0
    %7308 = vmatpush1.msra.mxu0 0.0
    %7309 = vmatprep.subr.mxu0 0.0
    %7310 = vmatpush1.msra.mxu0 0.0
    %7311 = vmatprep.subr.mxu0 0.0
    %7312 = vmatpush1.msra.mxu0 0.0
    %7313 = vmatprep.subr.mxu0 0.0
    %7314 = vmatpush1.msra.mxu0 0.0
    %7315 = vmatprep.subr.mxu0 0.0
    %7316 = vmatpush1.msra.mxu0 0.0
    %7317 = vmatprep.subr.mxu0 0.0
    %7318 = vmatpush1.msra.mxu0 0.0
    %7319 = vmatprep.subr.mxu0 0.0
    %7320 = vmatpush1.msra.mxu0 0.0
    %7321 = vmatprep.subr.mxu0 0.0
    %7322 = vmatpush1.msra.mxu0 0.0
    %7323 = vmatprep.subr.mxu0 0.0
    %7324 = vmatpush1.msra.mxu0 0.0
    %7325 = vmatprep.subr.mxu0 0.0
    %7326 = vmatpush1.msra.mxu0 %v7290
    %7327 = vmatprep.subr.mxu0 0.0
    %7328 = vmatpush1.msra.mxu0 %v7289
    %7329 = vmatprep.subr.mxu0 0.0
    %7330 = vmatpush1.msra.mxu0 %v7288
    %7331 = vmatprep.subr.mxu0 0.0
    %7332 = vmatpush1.msra.mxu0 %v7287
    %7333 = vmatprep.subr.mxu0 0.0
    %7334 = vmatpush2.msra.mxu0 0.0
    %7335 = vmatprep.subr.mxu0 0.0
    %7336 = vmatpush2.msra.mxu0 0.0
    %7337 = vmatprep.subr.mxu0 0.0
    %7338 = vmatpush2.msra.mxu0 0.0
    %7339 = vmatprep.subr.mxu0 0.0
    %7340 = vmatpush2.msra.mxu0 0.0
    %7341 = vmatprep.subr.mxu0 0.0
    %7342 = vmatpush2.msra.mxu0 0.0
    %7343 = vmatprep.subr.mxu0 0.0
    %7344 = vmatpush2.msra.mxu0 0.0
    %7345 = vmatprep.subr.mxu0 0.0
    %7346 = vmatpush2.msra.mxu0 0.0
    %7347 = vmatprep.subr.mxu0 0.0
    %7348 = vmatpush2.msra.mxu0 0.0
    %7349 = vmatprep.subr.mxu0 0.0
    %7350 = vmatpush2.msra.mxu0 0.0
    %7351 = vmatprep.subr.mxu0 0.0
    %7352 = vmatpush2.msra.mxu0 0.0
    %7353 = vmatprep.subr.mxu0 0.0
    %7354 = vmatpush2.msra.mxu0 0.0
    %7355 = vmatprep.subr.mxu0 0.0
    %7356 = vmatpush2.msra.mxu0 0.0
    %7357 = vmatprep.subr.mxu0 0.0
    %7358 = vmatpush2.msra.mxu0 0.0
    %7359 = vmatprep.subr.mxu0 0.0
    %7360 = vmatpush2.msra.mxu0 0.0
    %7361 = vmatprep.subr.mxu0 0.0
    %7362 = vmatpush2.msra.mxu0 0.0
    %7363 = vmatprep.subr.mxu0 0.0
    %7364 = vmatpush2.msra.mxu0 0.0
    %7365 = vmatprep.mubr.f32.mxu0 0.0
    %7366 = vmatmul.mubr.f32.gmra.mxu0 %v7299
    %v7367 = vpop.f32.mrf.mxu0
    %v7368 = vadd.f32 %v7296, %v7367
    %v7369 = vpop.f32.mrf.mxu0
    %7370 = vdwg.mxu0
    %vm7371 = vcmask 123904
    %7372 = vst.msk [vmem:[#allocation2] sm:$0x3] %vm7371, %v7368
    // Predicated region
    $region94: #{coattention_forward.1} parent=1 // pred_check
      _
    $region95: #{coattention_forward.1} parent=1 // pred_check_branch
      %7374 = sbr.rel (0) target = $region97
    $region96: #{coattention_forward.1} parent=1 // pred_region
      %s7376 = ssub.s32 32, 32
      %7377 = vsyncadd [#allocation3], %s7376
      %s7379 = sshll.u32 [#allocation2], 4
      %s7380 = int_to_ptr.vmem [resolvable:$true] %s7379
      %7382 = dma.vmem_to_hbm [thread:$0]  %s7380, 32, %s23, [#allocation3]
    $region97: #{coattention_forward.1} parent=1 // pred_fallthru
      _
    // Predicated region
    $region98: #{coattention_forward.1} parent=1 // pred_check
      _
    $region99: #{coattention_forward.1} parent=1 // pred_check_branch
      %7384 = sbr.rel (0) target = $region101
    $region100: #{coattention_forward.1} parent=1 // pred_region
      %7385 = dma.done [#allocation3], 32
    $region101: #{coattention_forward.1} parent=1 // pred_fallthru
      _
    %7386 = vsyncpa [#allocation3], 1

</llo_original>
